<compile_context>
chip_gen: v7x
topology: tpu7x:2x2x1
jax: 0.10.0
libtpu: 0.0.40
codegen_flags: <defaults>
</compile_context>

<pallas_src>
import functools

import numpy as np
import jax
import jax.numpy as jnp
from jax.experimental import pallas as pl
from jax.experimental.pallas import tpu as pltpu


C_PAD = 128   # internal channel padding so every output tile is 128 lanes wide


# ----------------------------------------------------------------------------
# Example NB101 architecture (from the NB101Wrapper docstring)
# ----------------------------------------------------------------------------
ARCH_MATRIX = [
    [0, 1, 0, 0, 0, 0, 0],
    [0, 0, 1, 0, 0, 1, 0],
    [0, 0, 0, 1, 1, 1, 0],
    [0, 0, 0, 0, 0, 1, 0],
    [0, 0, 0, 0, 0, 1, 0],
    [0, 0, 0, 0, 0, 0, 1],
    [0, 0, 0, 0, 0, 0, 0],
]
ARCH_OPS = ['input', 'conv1x1-bn-relu', 'conv1x1-bn-relu', 'conv3x3-bn-relu',
            'conv1x1-bn-relu', 'maxpool3x3', 'output']
ARCH = (ARCH_MATRIX, ARCH_OPS)


# ----------------------------------------------------------------------------
# Grid helper: single VMEM-resident block; split M >= 256 into two "parallel"
# blocks so v7x's second TensorCore has work (harmless on v5e/v6e).
# ----------------------------------------------------------------------------
def _m_grid(m):
    if m >= 256 and m % 16 == 0:
        return 2, m // 2
    return 1, m


# ----------------------------------------------------------------------------
# Pallas kernel 1: fused fan-in sum + matmul + per-channel BN affine + ReLU.
# All convolutions (1x1 directly, 3x3 via host im2col) go through this.
# ----------------------------------------------------------------------------
def _make_conv_kernel(n_in, relu):
    def kernel(*refs):
        x_refs = refs[:n_in]
        w_ref, s_ref, b_ref, o_ref = refs[n_in:n_in + 4]
        vin = x_refs[0][...]
        for r in x_refs[1:]:
            vin = vin + r[...]
        acc = jnp.dot(vin, w_ref[...], preferred_element_type=jnp.float32)
        y = acc * s_ref[...] + b_ref[...]
        if relu:
            y = jnp.maximum(y, 0.0)
        o_ref[...] = y
    return kernel


def conv_fused(xs, w, scale, bias, relu):
    """xs: list of (M, K) fan-in tensors (summed in-kernel); w: (K, 128);
    scale/bias: (128,).  Returns (M, 128) f32, lane-dense."""
    m, k = xs[0].shape
    cout = w.shape[1]
    nb, tm = _m_grid(m)
    in_specs = ([pl.BlockSpec((tm, k), lambda i: (i, 0))] * len(xs) +
                [pl.BlockSpec((k, cout), lambda i: (0, 0)),
                 pl.BlockSpec((1, cout), lambda i: (0, 0)),
                 pl.BlockSpec((1, cout), lambda i: (0, 0))])
    return pl.pallas_call(
        _make_conv_kernel(len(xs), relu),
        out_shape=jax.ShapeDtypeStruct((m, cout), jnp.float32),
        grid=(nb,),
        in_specs=in_specs,
        out_specs=pl.BlockSpec((tm, cout), lambda i: (i, 0)),
        compiler_params=pltpu.CompilerParams(dimension_semantics=("parallel",)),
    )(*xs, w, scale.reshape(1, -1), bias.reshape(1, -1))


# ----------------------------------------------------------------------------
# Pallas kernel 2: n-ary lane-dense elementwise reduce (max for pooling,
# add for the rare fan-in sum that cannot be fused into a conv kernel).
# ----------------------------------------------------------------------------
def _make_reduce_kernel(n_in, op):
    def kernel(*refs):
        o_ref = refs[n_in]
        acc = refs[0][...]
        for i in range(1, n_in):
            acc = op(acc, refs[i][...])
        o_ref[...] = acc
    return kernel


def nary_reduce(xs, mode):
    if len(xs) == 1:
        return xs[0]
    m, c = xs[0].shape
    nb, tm = _m_grid(m)
    op = jnp.maximum if mode == 'max' else jnp.add
    return pl.pallas_call(
        _make_reduce_kernel(len(xs), op),
        out_shape=jax.ShapeDtypeStruct((m, c), xs[0].dtype),
        grid=(nb,),
        in_specs=[pl.BlockSpec((tm, c), lambda i: (i, 0))] * len(xs),
        out_specs=pl.BlockSpec((tm, c), lambda i: (i, 0)),
        compiler_params=pltpu.CompilerParams(dimension_semantics=("parallel",)),
    )(*xs)


# ----------------------------------------------------------------------------
# Activation bookkeeping: data is (M, 128) lane-dense, true channel count 'c'.
# ----------------------------------------------------------------------------
def _act(data, n, h, w, c):
    return {'d': data, 'n': n, 'h': h, 'w': w, 'c': c}


def _to4d(a):
    return a['d'].reshape(a['n'], a['h'], a['w'], C_PAD)


def truncate(a, c):
    if a['c'] <= c:
        return a
    mask = (jnp.arange(C_PAD) < c).astype(a['d'].dtype)
    return _act(a['d'] * mask, a['n'], a['h'], a['w'], c)


def fanin_sum(acts):
    if len(acts) == 1:
        return acts[0]
    y = nary_reduce([a['d'] for a in acts], 'sum')
    a0 = acts[0]
    return _act(y, a0['n'], a0['h'], a0['w'], max(a['c'] for a in acts))


def concat_acts(acts):
    parts = [_to4d(a)[..., :a['c']] for a in acts]
    cat = jnp.concatenate(parts, axis=-1)
    c = cat.shape[-1]
    assert c <= C_PAD  # TODO(synk): widen padding if a cell concatenates >128 ch
    cat = jnp.pad(cat, ((0, 0), (0, 0), (0, 0), (0, C_PAD - c)))
    a0 = acts[0]
    return _act(cat.reshape(a0['n'] * a0['h'] * a0['w'], C_PAD),
                a0['n'], a0['h'], a0['w'], c)


# ----------------------------------------------------------------------------
# Layer helpers
# ----------------------------------------------------------------------------
def conv1x1_apply(p, acts, relu=True):
    y = conv_fused([a['d'] for a in acts], p['w'], p['scale'], p['bias'], relu)
    a0 = acts[0]
    return _act(y, a0['n'], a0['h'], a0['w'], p['cout'])


def _im2col3x3(a, cin):
    """Host-side im2col over the TRUE input channels only -> (M, 9*cin)."""
    n, h, w = a['n'], a['h'], a['w']
    x4 = _to4d(a)[..., :cin]
    xp = jnp.pad(x4, ((0, 0), (1, 1), (1, 1), (0, 0)))
    cols = [xp[:, dy:dy + h, dx:dx + w, :] for dy in range(3) for dx in range(3)]
    return jnp.concatenate(cols, axis=-1).reshape(n * h * w, 9 * cin)


def conv3x3_apply(p, acts, relu=True):
    cols = [_im2col3x3(a, p['cin']) for a in acts]   # im2col(sum) == sum(im2col)
    y = conv_fused(cols, p['w'], p['scale'], p['bias'], relu)
    a0 = acts[0]
    return _act(y, a0['n'], a0['h'], a0['w'], p['cout'])


def maxpool3x3_apply(acts):
    """MaxPool2d(kernel=3, stride=1, padding=1) with fused fan-in sum."""
    a = acts[0] if len(acts) == 1 else fanin_sum(acts)
    n, h, w, c = a['n'], a['h'], a['w'], a['c']
    neg = float(np.finfo(np.float32).min)
    xp = jnp.pad(_to4d(a), ((0, 0), (1, 1), (1, 1), (0, 0)), constant_values=neg)
    views = [xp[:, dy:dy + h, dx:dx + w, :].reshape(n * h * w, C_PAD)
             for dy in range(3) for dx in range(3)]
    return _act(nary_reduce(views, 'max'), n, h, w, c)


def maxpool2x2_apply(a):
    """MaxPool2d(kernel=2, stride=2) (downsample between stacks)."""
    n, h, w, c = a['n'], a['h'], a['w'], a['c']
    oh, ow = h // 2, w // 2
    x4 = _to4d(a)
    views = [x4[:, dy::2, dx::2, :].reshape(n * oh * ow, C_PAD)
             for dy in (0, 1) for dx in (0, 1)]
    return _act(nary_reduce(views, 'max'), n, oh, ow, c)


def nearest_interp_act(a, oh, ow):
    """F.interpolate(..., mode='nearest'): idx = floor(i * in / out)."""
    n, h, w = a['n'], a['h'], a['w']
    x4 = _to4d(a)
    hi = (np.arange(oh) * h) // oh
    wi = (np.arange(ow) * w) // ow
    y4 = x4[:, hi][:, :, wi]
    return _act(y4.reshape(n * oh * ow, C_PAD), n, oh, ow, a['c'])


def head_apply(p, a):
    return conv1x1_apply(p, [a], relu=False)


def act_to_nchw(a):
    x4 = _to4d(a)[..., :a['c']]          # restore true channels BEFORE transpose
    return jnp.transpose(x4, (0, 3, 1, 2))


# ----------------------------------------------------------------------------
# Parameter init (padded to 128 output lanes; BN folded, eval mode)
# ----------------------------------------------------------------------------
def _init_bn_affine(key, c, eps=1e-5):
    k1, k2 = jax.random.split(key)
    gamma = 1.0 + 0.1 * jax.random.normal(k1, (c,), jnp.float32)
    beta = 0.01 * jax.random.normal(k2, (c,), jnp.float32)
    running_mean = jnp.zeros((c,), jnp.float32)
    running_var = jnp.ones((c,), jnp.float32)
    scale = gamma / jnp.sqrt(running_var + eps)
    bias = beta - running_mean * scale
    return scale, bias


def _init_conv_bn_relu(key, cin, cout, ksize):
    kw, kb = jax.random.split(key)
    fan_in = ksize * ksize * cin
    w = jax.random.normal(kw, (fan_in, cout), jnp.float32) * np.sqrt(2.0 / fan_in)
    scale, bias = _init_bn_affine(kb, cout)
    if ksize == 1:          # rows padded to 128 (input lives at C_PAD channels)
        w_p = jnp.zeros((C_PAD, C_PAD), jnp.float32).at[:cin, :cout].set(w)
    else:                   # im2col keeps only true channels -> K = 9*cin
        w_p = jnp.zeros((fan_in, C_PAD), jnp.float32).at[:, :cout].set(w)
    scale_p = jnp.zeros((C_PAD,), jnp.float32).at[:cout].set(scale)
    bias_p = jnp.zeros((C_PAD,), jnp.float32).at[:cout].set(bias)
    return {'w': w_p, 'scale': scale_p, 'bias': bias_p,
            'cin': cin, 'cout': cout, 'k': ksize}


def _init_head(key, cin, cout, eps=1e-5):
    """nn.Sequential(BatchNorm2d(cin), Conv2d(cin, cout, 1)) with BN folded."""
    k1, k2, k3 = jax.random.split(key, 3)
    s_in, b_in = _init_bn_affine(k1, cin, eps)
    w = jax.random.normal(k2, (cin, cout), jnp.float32) * np.sqrt(1.0 / cin)
    b = 0.01 * jax.random.normal(k3, (cout,), jnp.float32)
    w_f = s_in[:, None] * w
    b_f = b_in @ w + b
    w_p = jnp.zeros((C_PAD, C_PAD), jnp.float32).at[:cin, :cout].set(w_f)
    scale_p = jnp.zeros((C_PAD,), jnp.float32).at[:cout].set(1.0)
    bias_p = jnp.zeros((C_PAD,), jnp.float32).at[:cout].set(b_f)
    return {'w': w_p, 'scale': scale_p, 'bias': bias_p,
            'cin': cin, 'cout': cout, 'k': 1}


# ----------------------------------------------------------------------------
# NB101 cell (nasbench-pytorch semantics)
# ----------------------------------------------------------------------------
def compute_vertex_channels(in_ch, out_ch, matrix):
    V = len(matrix)
    vc = [0] * V
    vc[0] = in_ch
    vc[-1] = out_ch
    if V == 2:
        return vc
    in_degree = [sum(matrix[src][v] for src in range(1, V)) for v in range(V)]
    interior = out_ch // in_degree[-1]
    correction = out_ch % in_degree[-1]
    for v in range(1, V - 1):
        if matrix[v][-1]:
            vc[v] = interior
            if correction:
                vc[v] += 1
                correction -= 1
    for v in range(V - 3, 0, -1):
        if not matrix[v][-1]:
            for dst in range(v + 1, V - 1):
                if matrix[v][dst]:
                    vc[v] = max(vc[v], vc[dst])
    return vc


def _init_cell(key, matrix, ops, in_ch, out_ch):
    V = len(matrix)
    vc = compute_vertex_channels(in_ch, out_ch, matrix)
    keys = jax.random.split(key, 2 * V)
    vertex = [None] * V
    input_op = [None] * V
    for t in range(1, V - 1):
        op = ops[t]
        if op == 'conv1x1-bn-relu':
            vertex[t] = _init_conv_bn_relu(keys[t], vc[t], vc[t], 1)
        elif op == 'conv3x3-bn-relu':
            vertex[t] = _init_conv_bn_relu(keys[t], vc[t], vc[t], 3)
        elif op == 'maxpool3x3':
            vertex[t] = None
        else:
            raise ValueError(op)
    for t in range(1, V):
        if matrix[0][t]:
            # Projection = ConvBnRelu 1x1 (in_ch -> vertex_channels[t])
            input_op[t] = _init_conv_bn_relu(keys[V + t], in_ch, vc[t], 1)
    return {'vertex': vertex, 'input_op': input_op, 'vc': vc}


def cell_apply(p, x_act, matrix, ops):
    V = len(matrix)
    vc = p['vc']
    tensors = [x_act]
    out_concat = []
    for t in range(1, V - 1):
        fan_in = [truncate(tensors[src], vc[t])
                  for src in range(1, t) if matrix[src][t]]
        if matrix[0][t]:
            fan_in.append(conv1x1_apply(p['input_op'][t], [x_act]))
        op = ops[t]
        if op == 'conv1x1-bn-relu':
            val = conv1x1_apply(p['vertex'][t], fan_in)       # fan-in sum fused
        elif op == 'conv3x3-bn-relu':
            val = conv3x3_apply(p['vertex'][t], fan_in)       # fan-in sum fused
        elif op == 'maxpool3x3':
            val = maxpool3x3_apply(fan_in)
        else:
            raise ValueError(op)
        tensors.append(val)
        if matrix[t][V - 1]:
            out_concat.append(val)
    if not out_concat:
        out = conv1x1_apply(p['input_op'][V - 1], [x_act])
    else:
        out = out_concat[0] if len(out_concat) == 1 else concat_acts(out_concat)
        if matrix[0][V - 1]:
            proj = conv1x1_apply(p['input_op'][V - 1], [x_act])
            out = fanin_sum([out, proj])
    return out


# ----------------------------------------------------------------------------
# NB101Wrapper: construction + forward
# ----------------------------------------------------------------------------
def init_nb101_wrapper(key, arch, init_channels, last_channels, output_size=8,
                       num_stacks=3, num_modules_per_stack=1):
    matrix, ops = arch
    keys = iter(jax.random.split(key, 64))
    layers = []
    in_ch, out_ch = 3, init_channels
    layers.append(('stem', _init_conv_bn_relu(next(keys), in_ch, out_ch, 3)))
    in_ch = out_ch
    for stack in range(num_stacks):
        if stack > 0:
            layers.append(('maxpool2x2', None))
            out_ch *= 2
        for _ in range(num_modules_per_stack):
            layers.append(('cell', _init_cell(next(keys), matrix, ops, in_ch, out_ch)))
            in_ch = out_ch
    heads = [
        _init_head(next(keys), init_channels, last_channels[0]),
        _init_head(next(keys), init_channels * 2, last_channels[1]),
        _init_head(next(keys), init_channels * 4, last_channels[2]),
    ]
    return {'layers': layers, 'heads': heads, 'output_size': output_size,
            'matrix': matrix, 'ops': ops}


def nb101_wrapper_forward(params, x_nchw):
    # layout: NCHW in / NCHW out (PyTorch); lane-dense (M, 128) NHWC inside.
    x4 = jnp.transpose(x_nchw, (0, 2, 3, 1)).astype(jnp.float32)
    n, h, w, cin = x4.shape
    x4p = jnp.pad(x4, ((0, 0), (0, 0), (0, 0), (0, C_PAD - cin)))
    x = _act(x4p.reshape(n * h * w, C_PAD), n, h, w, cin)

    os_ = params['output_size']
    matrix, ops = params['matrix'], params['ops']
    count = 0
    x0 = x1 = None
    for kind, p in params['layers']:
        if kind == 'maxpool2x2' and count == 0:
            x0 = head_apply(params['heads'][0], nearest_interp_act(x, os_, os_))
            count += 1
        elif kind == 'maxpool2x2' and count == 1:
            x1 = head_apply(params['heads'][1], nearest_interp_act(x, os_, os_))
            count += 1
        if kind == 'stem':
            x = conv3x3_apply(p, [x])
        elif kind == 'maxpool2x2':
            x = maxpool2x2_apply(x)
        elif kind == 'cell':
            x = cell_apply(p, x, matrix, ops)
    x2 = head_apply(params['heads'][2], x)
    return [act_to_nchw(x0), act_to_nchw(x1), act_to_nchw(x2)]


# ----------------------------------------------------------------------------
if __name__ == "__main__":
    key = jax.random.PRNGKey(0)
    k_params, k_input = jax.random.split(key)

    N, CIN, S = 2, 3, 16
    init_channels = 8
    last_channels = [8, 16, 32]
    output_size = 8

    params = init_nb101_wrapper(
        k_params, ARCH, init_channels, last_channels,
        output_size=output_size, num_stacks=3, num_modules_per_stack=1)

    x = jax.random.normal(k_input, (N, CIN, S, S), jnp.float32)   # NCHW, like PyTorch

    fwd = jax.jit(functools.partial(nb101_wrapper_forward, params))
    outs = fwd(x)
    outs = [jax.block_until_ready(o) for o in outs]

    assert outs[0].shape == (N, last_channels[0], output_size, output_size)
    assert outs[1].shape == (N, last_channels[1], output_size, output_size)
    assert outs[2].shape == (N, last_channels[2], S // 4, S // 4)
    assert all(bool(jnp.all(jnp.isfinite(o))) for o in outs)

    print("KERNEL_OK")
</pallas_src>

<mosaic_0001>
module attributes {stable_mosaic.version = 11 : i64} {
  func.func @kernel(%arg0: i32, %arg1: memref<256x27xf32, #tpu.memory_space<vmem>>, %arg2: memref<27x128xf32, #tpu.memory_space<vmem>>, %arg3: memref<1x128xf32, #tpu.memory_space<vmem>>, %arg4: memref<1x128xf32, #tpu.memory_space<vmem>>, %arg5: memref<256x128xf32, #tpu.memory_space<vmem>>) attributes {dimension_semantics = [#tpu.dimension_semantics<parallel>], iteration_bounds = array<i64: 2>, scalar_prefetch = 0 : i64, scratch_operands = 0 : i64, tpu.core_type = #tpu.core_type<tc>, window_params = [{transform_indices = @transform_0, window_bounds = array<i64: 256, 27>}, {pipeline_mode = #tpu.pipeline_mode<synchronous>, transform_indices = @transform_1, window_bounds = array<i64: 27, 128>}, {pipeline_mode = #tpu.pipeline_mode<synchronous>, transform_indices = @transform_2, window_bounds = array<i64: 1, 128>}, {pipeline_mode = #tpu.pipeline_mode<synchronous>, transform_indices = @transform_3, window_bounds = array<i64: 1, 128>}, {transform_indices = @transform_4, window_bounds = array<i64: 256, 128>}]} {
    %c0 = arith.constant 0 : index
    %c0_0 = arith.constant 0 : index
    %0 = vector.load %arg1[%c0, %c0_0] : memref<256x27xf32, #tpu.memory_space<vmem>>, vector<256x27xf32>
    %c0_1 = arith.constant 0 : index
    %c0_2 = arith.constant 0 : index
    %1 = vector.load %arg2[%c0_1, %c0_2] : memref<27x128xf32, #tpu.memory_space<vmem>>, vector<27x128xf32>
    %cst = arith.constant dense<0.000000e+00> : vector<256x128xf32>
    %2 = tpu.matmul %0, %1, %cst {dimension_numbers = #tpu.dot_dimension_numbers<[1], [0], [0], [1], [0, 0, 1, 1], [], []>} : vector<256x27xf32>, vector<27x128xf32>, vector<256x128xf32> -> vector<256x128xf32>
    %c0_3 = arith.constant 0 : index
    %c0_4 = arith.constant 0 : index
    %3 = vector.load %arg3[%c0_3, %c0_4] : memref<1x128xf32, #tpu.memory_space<vmem>>, vector<1x128xf32>
    %4 = vector.broadcast %3 : vector<1x128xf32> to vector<256x128xf32>
    %5 = arith.mulf %2, %4 : vector<256x128xf32>
    %c0_5 = arith.constant 0 : index
    %c0_6 = arith.constant 0 : index
    %6 = vector.load %arg4[%c0_5, %c0_6] : memref<1x128xf32, #tpu.memory_space<vmem>>, vector<1x128xf32>
    %7 = vector.broadcast %6 : vector<1x128xf32> to vector<256x128xf32>
    %8 = arith.addf %5, %7 : vector<256x128xf32>
    %cst_7 = arith.constant 0.000000e+00 : f32
    %9 = vector.broadcast %cst_7 : f32 to vector<256x128xf32>
    %10 = arith.maximumf %8, %9 : vector<256x128xf32>
    %c0_8 = arith.constant 0 : index
    %c0_9 = arith.constant 0 : index
    %11 = vector.load %arg5[%c0_8, %c0_9] : memref<256x128xf32, #tpu.memory_space<vmem>>, vector<256x128xf32>
    tpu.vector_store %arg5[%c0_8, %c0_9], %10 {strides = array<i32>} : memref<256x128xf32, #tpu.memory_space<vmem>>, vector<256x128xf32>,
    return
  }
  func.func @transform_0(%arg0: i32) -> (i32, i32) {
    %c0_i32 = arith.constant 0 : i32
    %c0_i32_0 = arith.constant 0 : i32
    return %arg0, %c0_i32 : i32, i32
  }
  func.func @transform_1(%arg0: i32) -> (i32, i32) {
    %c0_i32 = arith.constant 0 : i32
    %c0_i32_0 = arith.constant 0 : i32
    %c0_i32_1 = arith.constant 0 : i32
    return %c0_i32, %c0_i32_0 : i32, i32
  }
  func.func @transform_2(%arg0: i32) -> (i32, i32) {
    %c0_i32 = arith.constant 0 : i32
    %c0_i32_0 = arith.constant 0 : i32
    %c0_i32_1 = arith.constant 0 : i32
    return %c0_i32, %c0_i32_0 : i32, i32
  }
  func.func @transform_3(%arg0: i32) -> (i32, i32) {
    %c0_i32 = arith.constant 0 : i32
    %c0_i32_0 = arith.constant 0 : i32
    %c0_i32_1 = arith.constant 0 : i32
    return %c0_i32, %c0_i32_0 : i32, i32
  }
  func.func @transform_4(%arg0: i32) -> (i32, i32) {
    %c0_i32 = arith.constant 0 : i32
    %c0_i32_0 = arith.constant 0 : i32
    return %arg0, %c0_i32 : i32, i32
  }
}

module attributes {stable_mosaic.version = 11 : i64} {
  func.func @kernel(%arg0: i32, %arg1: memref<256x128xf32, #tpu.memory_space<vmem>>, %arg2: memref<128x128xf32, #tpu.memory_space<vmem>>, %arg3: memref<1x128xf32, #tpu.memory_space<vmem>>, %arg4: memref<1x128xf32, #tpu.memory_space<vmem>>, %arg5: memref<256x128xf32, #tpu.memory_space<vmem>>) attributes {dimension_semantics = [#tpu.dimension_semantics<parallel>], iteration_bounds = array<i64: 2>, scalar_prefetch = 0 : i64, scratch_operands = 0 : i64, tpu.core_type = #tpu.core_type<tc>, window_params = [{transform_indices = @transform_0, window_bounds = array<i64: 256, 128>}, {pipeline_mode = #tpu.pipeline_mode<synchronous>, transform_indices = @transform_1, window_bounds = array<i64: 128, 128>}, {pipeline_mode = #tpu.pipeline_mode<synchronous>, transform_indices = @transform_2, window_bounds = array<i64: 1, 128>}, {pipeline_mode = #tpu.pipeline_mode<synchronous>, transform_indices = @transform_3, window_bounds = array<i64: 1, 128>}, {transform_indices = @transform_4, window_bounds = array<i64: 256, 128>}]} {
    %c0 = arith.constant 0 : index
    %c0_0 = arith.constant 0 : index
    %0 = vector.load %arg1[%c0, %c0_0] : memref<256x128xf32, #tpu.memory_space<vmem>>, vector<256x128xf32>
    %c0_1 = arith.constant 0 : index
    %c0_2 = arith.constant 0 : index
    %1 = vector.load %arg2[%c0_1, %c0_2] : memref<128x128xf32, #tpu.memory_space<vmem>>, vector<128x128xf32>
    %cst = arith.constant dense<0.000000e+00> : vector<256x128xf32>
    %2 = tpu.matmul %0, %1, %cst {dimension_numbers = #tpu.dot_dimension_numbers<[1], [0], [0], [1], [0, 0, 1, 1], [], []>} : vector<256x128xf32>, vector<128x128xf32>, vector<256x128xf32> -> vector<256x128xf32>
    %c0_3 = arith.constant 0 : index
    %c0_4 = arith.constant 0 : index
    %3 = vector.load %arg3[%c0_3, %c0_4] : memref<1x128xf32, #tpu.memory_space<vmem>>, vector<1x128xf32>
    %4 = vector.broadcast %3 : vector<1x128xf32> to vector<256x128xf32>
    %5 = arith.mulf %2, %4 : vector<256x128xf32>
    %c0_5 = arith.constant 0 : index
    %c0_6 = arith.constant 0 : index
    %6 = vector.load %arg4[%c0_5, %c0_6] : memref<1x128xf32, #tpu.memory_space<vmem>>, vector<1x128xf32>
    %7 = vector.broadcast %6 : vector<1x128xf32> to vector<256x128xf32>
    %8 = arith.addf %5, %7 : vector<256x128xf32>
    %cst_7 = arith.constant 0.000000e+00 : f32
    %9 = vector.broadcast %cst_7 : f32 to vector<256x128xf32>
    %10 = arith.maximumf %8, %9 : vector<256x128xf32>
    %c0_8 = arith.constant 0 : index
    %c0_9 = arith.constant 0 : index
    %11 = vector.load %arg5[%c0_8, %c0_9] : memref<256x128xf32, #tpu.memory_space<vmem>>, vector<256x128xf32>
    tpu.vector_store %arg5[%c0_8, %c0_9], %10 {strides = array<i32>} : memref<256x128xf32, #tpu.memory_space<vmem>>, vector<256x128xf32>,
    return
  }
  func.func @transform_0(%arg0: i32) -> (i32, i32) {
    %c0_i32 = arith.constant 0 : i32
    %c0_i32_0 = arith.constant 0 : i32
    return %arg0, %c0_i32 : i32, i32
  }
  func.func @transform_1(%arg0: i32) -> (i32, i32) {
    %c0_i32 = arith.constant 0 : i32
    %c0_i32_0 = arith.constant 0 : i32
    %c0_i32_1 = arith.constant 0 : i32
    return %c0_i32, %c0_i32_0 : i32, i32
  }
  func.func @transform_2(%arg0: i32) -> (i32, i32) {
    %c0_i32 = arith.constant 0 : i32
    %c0_i32_0 = arith.constant 0 : i32
    %c0_i32_1 = arith.constant 0 : i32
    return %c0_i32, %c0_i32_0 : i32, i32
  }
  func.func @transform_3(%arg0: i32) -> (i32, i32) {
    %c0_i32 = arith.constant 0 : i32
    %c0_i32_0 = arith.constant 0 : i32
    %c0_i32_1 = arith.constant 0 : i32
    return %c0_i32, %c0_i32_0 : i32, i32
  }
  func.func @transform_4(%arg0: i32) -> (i32, i32) {
    %c0_i32 = arith.constant 0 : i32
    %c0_i32_0 = arith.constant 0 : i32
    return %arg0, %c0_i32 : i32, i32
  }
}

module attributes {stable_mosaic.version = 11 : i64} {
  func.func @kernel(%arg0: i32, %arg1: memref<256x72xf32, #tpu.memory_space<vmem>>, %arg2: memref<72x128xf32, #tpu.memory_space<vmem>>, %arg3: memref<1x128xf32, #tpu.memory_space<vmem>>, %arg4: memref<1x128xf32, #tpu.memory_space<vmem>>, %arg5: memref<256x128xf32, #tpu.memory_space<vmem>>) attributes {dimension_semantics = [#tpu.dimension_semantics<parallel>], iteration_bounds = array<i64: 2>, scalar_prefetch = 0 : i64, scratch_operands = 0 : i64, tpu.core_type = #tpu.core_type<tc>, window_params = [{transform_indices = @transform_0, window_bounds = array<i64: 256, 72>}, {pipeline_mode = #tpu.pipeline_mode<synchronous>, transform_indices = @transform_1, window_bounds = array<i64: 72, 128>}, {pipeline_mode = #tpu.pipeline_mode<synchronous>, transform_indices = @transform_2, window_bounds = array<i64: 1, 128>}, {pipeline_mode = #tpu.pipeline_mode<synchronous>, transform_indices = @transform_3, window_bounds = array<i64: 1, 128>}, {transform_indices = @transform_4, window_bounds = array<i64: 256, 128>}]} {
    %c0 = arith.constant 0 : index
    %c0_0 = arith.constant 0 : index
    %0 = vector.load %arg1[%c0, %c0_0] : memref<256x72xf32, #tpu.memory_space<vmem>>, vector<256x72xf32>
    %c0_1 = arith.constant 0 : index
    %c0_2 = arith.constant 0 : index
    %1 = vector.load %arg2[%c0_1, %c0_2] : memref<72x128xf32, #tpu.memory_space<vmem>>, vector<72x128xf32>
    %cst = arith.constant dense<0.000000e+00> : vector<256x128xf32>
    %2 = tpu.matmul %0, %1, %cst {dimension_numbers = #tpu.dot_dimension_numbers<[1], [0], [0], [1], [0, 0, 1, 1], [], []>} : vector<256x72xf32>, vector<72x128xf32>, vector<256x128xf32> -> vector<256x128xf32>
    %c0_3 = arith.constant 0 : index
    %c0_4 = arith.constant 0 : index
    %3 = vector.load %arg3[%c0_3, %c0_4] : memref<1x128xf32, #tpu.memory_space<vmem>>, vector<1x128xf32>
    %4 = vector.broadcast %3 : vector<1x128xf32> to vector<256x128xf32>
    %5 = arith.mulf %2, %4 : vector<256x128xf32>
    %c0_5 = arith.constant 0 : index
    %c0_6 = arith.constant 0 : index
    %6 = vector.load %arg4[%c0_5, %c0_6] : memref<1x128xf32, #tpu.memory_space<vmem>>, vector<1x128xf32>
    %7 = vector.broadcast %6 : vector<1x128xf32> to vector<256x128xf32>
    %8 = arith.addf %5, %7 : vector<256x128xf32>
    %cst_7 = arith.constant 0.000000e+00 : f32
    %9 = vector.broadcast %cst_7 : f32 to vector<256x128xf32>
    %10 = arith.maximumf %8, %9 : vector<256x128xf32>
    %c0_8 = arith.constant 0 : index
    %c0_9 = arith.constant 0 : index
    %11 = vector.load %arg5[%c0_8, %c0_9] : memref<256x128xf32, #tpu.memory_space<vmem>>, vector<256x128xf32>
    tpu.vector_store %arg5[%c0_8, %c0_9], %10 {strides = array<i32>} : memref<256x128xf32, #tpu.memory_space<vmem>>, vector<256x128xf32>,
    return
  }
  func.func @transform_0(%arg0: i32) -> (i32, i32) {
    %c0_i32 = arith.constant 0 : i32
    %c0_i32_0 = arith.constant 0 : i32
    return %arg0, %c0_i32 : i32, i32
  }
  func.func @transform_1(%arg0: i32) -> (i32, i32) {
    %c0_i32 = arith.constant 0 : i32
    %c0_i32_0 = arith.constant 0 : i32
    %c0_i32_1 = arith.constant 0 : i32
    return %c0_i32, %c0_i32_0 : i32, i32
  }
  func.func @transform_2(%arg0: i32) -> (i32, i32) {
    %c0_i32 = arith.constant 0 : i32
    %c0_i32_0 = arith.constant 0 : i32
    %c0_i32_1 = arith.constant 0 : i32
    return %c0_i32, %c0_i32_0 : i32, i32
  }
  func.func @transform_3(%arg0: i32) -> (i32, i32) {
    %c0_i32 = arith.constant 0 : i32
    %c0_i32_0 = arith.constant 0 : i32
    %c0_i32_1 = arith.constant 0 : i32
    return %c0_i32, %c0_i32_0 : i32, i32
  }
  func.func @transform_4(%arg0: i32) -> (i32, i32) {
    %c0_i32 = arith.constant 0 : i32
    %c0_i32_0 = arith.constant 0 : i32
    return %arg0, %c0_i32 : i32, i32
  }
}

module attributes {stable_mosaic.version = 11 : i64} {
  func.func @kernel(%arg0: i32, %arg1: memref<256x128xf32, #tpu.memory_space<vmem>>, %arg2: memref<256x128xf32, #tpu.memory_space<vmem>>, %arg3: memref<256x128xf32, #tpu.memory_space<vmem>>, %arg4: memref<256x128xf32, #tpu.memory_space<vmem>>, %arg5: memref<256x128xf32, #tpu.memory_space<vmem>>) attributes {dimension_semantics = [#tpu.dimension_semantics<parallel>], iteration_bounds = array<i64: 2>, scalar_prefetch = 0 : i64, scratch_operands = 0 : i64, tpu.core_type = #tpu.core_type<tc>, window_params = [{transform_indices = @transform_0, window_bounds = array<i64: 256, 128>}, {transform_indices = @transform_1, window_bounds = array<i64: 256, 128>}, {transform_indices = @transform_2, window_bounds = array<i64: 256, 128>}, {transform_indices = @transform_3, window_bounds = array<i64: 256, 128>}, {transform_indices = @transform_4, window_bounds = array<i64: 256, 128>}]} {
    %c0 = arith.constant 0 : index
    %c0_0 = arith.constant 0 : index
    %0 = vector.load %arg1[%c0, %c0_0] : memref<256x128xf32, #tpu.memory_space<vmem>>, vector<256x128xf32>
    %c0_1 = arith.constant 0 : index
    %c0_2 = arith.constant 0 : index
    %1 = vector.load %arg2[%c0_1, %c0_2] : memref<256x128xf32, #tpu.memory_space<vmem>>, vector<256x128xf32>
    %2 = arith.addf %0, %1 : vector<256x128xf32>
    %c0_3 = arith.constant 0 : index
    %c0_4 = arith.constant 0 : index
    %3 = vector.load %arg3[%c0_3, %c0_4] : memref<256x128xf32, #tpu.memory_space<vmem>>, vector<256x128xf32>
    %4 = arith.addf %2, %3 : vector<256x128xf32>
    %c0_5 = arith.constant 0 : index
    %c0_6 = arith.constant 0 : index
    %5 = vector.load %arg4[%c0_5, %c0_6] : memref<256x128xf32, #tpu.memory_space<vmem>>, vector<256x128xf32>
    %6 = arith.addf %4, %5 : vector<256x128xf32>
    %c0_7 = arith.constant 0 : index
    %c0_8 = arith.constant 0 : index
    %7 = vector.load %arg5[%c0_7, %c0_8] : memref<256x128xf32, #tpu.memory_space<vmem>>, vector<256x128xf32>
    tpu.vector_store %arg5[%c0_7, %c0_8], %6 {strides = array<i32>} : memref<256x128xf32, #tpu.memory_space<vmem>>, vector<256x128xf32>,
    return
  }
  func.func @transform_0(%arg0: i32) -> (i32, i32) {
    %c0_i32 = arith.constant 0 : i32
    %c0_i32_0 = arith.constant 0 : i32
    return %arg0, %c0_i32 : i32, i32
  }
  func.func @transform_1(%arg0: i32) -> (i32, i32) {
    %c0_i32 = arith.constant 0 : i32
    %c0_i32_0 = arith.constant 0 : i32
    return %arg0, %c0_i32 : i32, i32
  }
  func.func @transform_2(%arg0: i32) -> (i32, i32) {
    %c0_i32 = arith.constant 0 : i32
    %c0_i32_0 = arith.constant 0 : i32
    return %arg0, %c0_i32 : i32, i32
  }
  func.func @transform_3(%arg0: i32) -> (i32, i32) {
    %c0_i32 = arith.constant 0 : i32
    %c0_i32_0 = arith.constant 0 : i32
    return %arg0, %c0_i32 : i32, i32
  }
  func.func @transform_4(%arg0: i32) -> (i32, i32) {
    %c0_i32 = arith.constant 0 : i32
    %c0_i32_0 = arith.constant 0 : i32
    return %arg0, %c0_i32 : i32, i32
  }
}

module attributes {stable_mosaic.version = 11 : i64} {
  func.func @kernel(%arg0: i32, %arg1: memref<256x128xf32, #tpu.memory_space<vmem>>, %arg2: memref<256x128xf32, #tpu.memory_space<vmem>>, %arg3: memref<256x128xf32, #tpu.memory_space<vmem>>, %arg4: memref<256x128xf32, #tpu.memory_space<vmem>>, %arg5: memref<256x128xf32, #tpu.memory_space<vmem>>, %arg6: memref<256x128xf32, #tpu.memory_space<vmem>>, %arg7: memref<256x128xf32, #tpu.memory_space<vmem>>, %arg8: memref<256x128xf32, #tpu.memory_space<vmem>>, %arg9: memref<256x128xf32, #tpu.memory_space<vmem>>, %arg10: memref<256x128xf32, #tpu.memory_space<vmem>>) attributes {dimension_semantics = [#tpu.dimension_semantics<parallel>], iteration_bounds = array<i64: 2>, scalar_prefetch = 0 : i64, scratch_operands = 0 : i64, tpu.core_type = #tpu.core_type<tc>, window_params = [{transform_indices = @transform_0, window_bounds = array<i64: 256, 128>}, {transform_indices = @transform_1, window_bounds = array<i64: 256, 128>}, {transform_indices = @transform_2, window_bounds = array<i64: 256, 128>}, {transform_indices = @transform_3, window_bounds = array<i64: 256, 128>}, {transform_indices = @transform_4, window_bounds = array<i64: 256, 128>}, {transform_indices = @transform_5, window_bounds = array<i64: 256, 128>}, {transform_indices = @transform_6, window_bounds = array<i64: 256, 128>}, {transform_indices = @transform_7, window_bounds = array<i64: 256, 128>}, {transform_indices = @transform_8, window_bounds = array<i64: 256, 128>}, {transform_indices = @transform_9, window_bounds = array<i64: 256, 128>}]} {
    %c0 = arith.constant 0 : index
    %c0_0 = arith.constant 0 : index
    %0 = vector.load %arg1[%c0, %c0_0] : memref<256x128xf32, #tpu.memory_space<vmem>>, vector<256x128xf32>
    %c0_1 = arith.constant 0 : index
    %c0_2 = arith.constant 0 : index
    %1 = vector.load %arg2[%c0_1, %c0_2] : memref<256x128xf32, #tpu.memory_space<vmem>>, vector<256x128xf32>
    %2 = arith.maximumf %0, %1 : vector<256x128xf32>
    %c0_3 = arith.constant 0 : index
    %c0_4 = arith.constant 0 : index
    %3 = vector.load %arg3[%c0_3, %c0_4] : memref<256x128xf32, #tpu.memory_space<vmem>>, vector<256x128xf32>
    %4 = arith.maximumf %2, %3 : vector<256x128xf32>
    %c0_5 = arith.constant 0 : index
    %c0_6 = arith.constant 0 : index
    %5 = vector.load %arg4[%c0_5, %c0_6] : memref<256x128xf32, #tpu.memory_space<vmem>>, vector<256x128xf32>
    %6 = arith.maximumf %4, %5 : vector<256x128xf32>
    %c0_7 = arith.constant 0 : index
    %c0_8 = arith.constant 0 : index
    %7 = vector.load %arg5[%c0_7, %c0_8] : memref<256x128xf32, #tpu.memory_space<vmem>>, vector<256x128xf32>
    %8 = arith.maximumf %6, %7 : vector<256x128xf32>
    %c0_9 = arith.constant 0 : index
    %c0_10 = arith.constant 0 : index
    %9 = vector.load %arg6[%c0_9, %c0_10] : memref<256x128xf32, #tpu.memory_space<vmem>>, vector<256x128xf32>
    %10 = arith.maximumf %8, %9 : vector<256x128xf32>
    %c0_11 = arith.constant 0 : index
    %c0_12 = arith.constant 0 : index
    %11 = vector.load %arg7[%c0_11, %c0_12] : memref<256x128xf32, #tpu.memory_space<vmem>>, vector<256x128xf32>
    %12 = arith.maximumf %10, %11 : vector<256x128xf32>
    %c0_13 = arith.constant 0 : index
    %c0_14 = arith.constant 0 : index
    %13 = vector.load %arg8[%c0_13, %c0_14] : memref<256x128xf32, #tpu.memory_space<vmem>>, vector<256x128xf32>
    %14 = arith.maximumf %12, %13 : vector<256x128xf32>
    %c0_15 = arith.constant 0 : index
    %c0_16 = arith.constant 0 : index
    %15 = vector.load %arg9[%c0_15, %c0_16] : memref<256x128xf32, #tpu.memory_space<vmem>>, vector<256x128xf32>
    %16 = arith.maximumf %14, %15 : vector<256x128xf32>
    %c0_17 = arith.constant 0 : index
    %c0_18 = arith.constant 0 : index
    %17 = vector.load %arg10[%c0_17, %c0_18] : memref<256x128xf32, #tpu.memory_space<vmem>>, vector<256x128xf32>
    tpu.vector_store %arg10[%c0_17, %c0_18], %16 {strides = array<i32>} : memref<256x128xf32, #tpu.memory_space<vmem>>, vector<256x128xf32>,
    return
  }
  func.func @transform_0(%arg0: i32) -> (i32, i32) {
    %c0_i32 = arith.constant 0 : i32
    %c0_i32_0 = arith.constant 0 : i32
    return %arg0, %c0_i32 : i32, i32
  }
  func.func @transform_1(%arg0: i32) -> (i32, i32) {
    %c0_i32 = arith.constant 0 : i32
    %c0_i32_0 = arith.constant 0 : i32
    return %arg0, %c0_i32 : i32, i32
  }
  func.func @transform_2(%arg0: i32) -> (i32, i32) {
    %c0_i32 = arith.constant 0 : i32
    %c0_i32_0 = arith.constant 0 : i32
    return %arg0, %c0_i32 : i32, i32
  }
  func.func @transform_3(%arg0: i32) -> (i32, i32) {
    %c0_i32 = arith.constant 0 : i32
    %c0_i32_0 = arith.constant 0 : i32
    return %arg0, %c0_i32 : i32, i32
  }
  func.func @transform_4(%arg0: i32) -> (i32, i32) {
    %c0_i32 = arith.constant 0 : i32
    %c0_i32_0 = arith.constant 0 : i32
    return %arg0, %c0_i32 : i32, i32
  }
  func.func @transform_5(%arg0: i32) -> (i32, i32) {
    %c0_i32 = arith.constant 0 : i32
    %c0_i32_0 = arith.constant 0 : i32
    return %arg0, %c0_i32 : i32, i32
  }
  func.func @transform_6(%arg0: i32) -> (i32, i32) {
    %c0_i32 = arith.constant 0 : i32
    %c0_i32_0 = arith.constant 0 : i32
    return %arg0, %c0_i32 : i32, i32
  }
  func.func @transform_7(%arg0: i32) -> (i32, i32) {
    %c0_i32 = arith.constant 0 : i32
    %c0_i32_0 = arith.constant 0 : i32
    return %arg0, %c0_i32 : i32, i32
  }
  func.func @transform_8(%arg0: i32) -> (i32, i32) {
    %c0_i32 = arith.constant 0 : i32
    %c0_i32_0 = arith.constant 0 : i32
    return %arg0, %c0_i32 : i32, i32
  }
  func.func @transform_9(%arg0: i32) -> (i32, i32) {
    %c0_i32 = arith.constant 0 : i32
    %c0_i32_0 = arith.constant 0 : i32
    return %arg0, %c0_i32 : i32, i32
  }
}

module attributes {stable_mosaic.version = 11 : i64} {
  func.func @kernel(%arg0: i32, %arg1: memref<128x128xf32, #tpu.memory_space<vmem>>, %arg2: memref<128x128xf32, #tpu.memory_space<vmem>>, %arg3: memref<128x128xf32, #tpu.memory_space<vmem>>, %arg4: memref<128x128xf32, #tpu.memory_space<vmem>>, %arg5: memref<128x128xf32, #tpu.memory_space<vmem>>) attributes {dimension_semantics = [#tpu.dimension_semantics<parallel>], iteration_bounds = array<i64: 1>, scalar_prefetch = 0 : i64, scratch_operands = 0 : i64, tpu.core_type = #tpu.core_type<tc>, window_params = [{transform_indices = @transform_0, window_bounds = array<i64: 128, 128>}, {transform_indices = @transform_1, window_bounds = array<i64: 128, 128>}, {transform_indices = @transform_2, window_bounds = array<i64: 128, 128>}, {transform_indices = @transform_3, window_bounds = array<i64: 128, 128>}, {transform_indices = @transform_4, window_bounds = array<i64: 128, 128>}]} {
    %c0 = arith.constant 0 : index
    %c0_0 = arith.constant 0 : index
    %0 = vector.load %arg1[%c0, %c0_0] : memref<128x128xf32, #tpu.memory_space<vmem>>, vector<128x128xf32>
    %c0_1 = arith.constant 0 : index
    %c0_2 = arith.constant 0 : index
    %1 = vector.load %arg2[%c0_1, %c0_2] : memref<128x128xf32, #tpu.memory_space<vmem>>, vector<128x128xf32>
    %2 = arith.maximumf %0, %1 : vector<128x128xf32>
    %c0_3 = arith.constant 0 : index
    %c0_4 = arith.constant 0 : index
    %3 = vector.load %arg3[%c0_3, %c0_4] : memref<128x128xf32, #tpu.memory_space<vmem>>, vector<128x128xf32>
    %4 = arith.maximumf %2, %3 : vector<128x128xf32>
    %c0_5 = arith.constant 0 : index
    %c0_6 = arith.constant 0 : index
    %5 = vector.load %arg4[%c0_5, %c0_6] : memref<128x128xf32, #tpu.memory_space<vmem>>, vector<128x128xf32>
    %6 = arith.maximumf %4, %5 : vector<128x128xf32>
    %c0_7 = arith.constant 0 : index
    %c0_8 = arith.constant 0 : index
    %7 = vector.load %arg5[%c0_7, %c0_8] : memref<128x128xf32, #tpu.memory_space<vmem>>, vector<128x128xf32>
    tpu.vector_store %arg5[%c0_7, %c0_8], %6 {strides = array<i32>} : memref<128x128xf32, #tpu.memory_space<vmem>>, vector<128x128xf32>,
    return
  }
  func.func @transform_0(%arg0: i32) -> (i32, i32) {
    %c0_i32 = arith.constant 0 : i32
    %c0_i32_0 = arith.constant 0 : i32
    return %arg0, %c0_i32 : i32, i32
  }
  func.func @transform_1(%arg0: i32) -> (i32, i32) {
    %c0_i32 = arith.constant 0 : i32
    %c0_i32_0 = arith.constant 0 : i32
    return %arg0, %c0_i32 : i32, i32
  }
  func.func @transform_2(%arg0: i32) -> (i32, i32) {
    %c0_i32 = arith.constant 0 : i32
    %c0_i32_0 = arith.constant 0 : i32
    return %arg0, %c0_i32 : i32, i32
  }
  func.func @transform_3(%arg0: i32) -> (i32, i32) {
    %c0_i32 = arith.constant 0 : i32
    %c0_i32_0 = arith.constant 0 : i32
    return %arg0, %c0_i32 : i32, i32
  }
  func.func @transform_4(%arg0: i32) -> (i32, i32) {
    %c0_i32 = arith.constant 0 : i32
    %c0_i32_0 = arith.constant 0 : i32
    return %arg0, %c0_i32 : i32, i32
  }
}

module attributes {stable_mosaic.version = 11 : i64} {
  func.func @kernel(%arg0: i32, %arg1: memref<128x144xf32, #tpu.memory_space<vmem>>, %arg2: memref<144x128xf32, #tpu.memory_space<vmem>>, %arg3: memref<1x128xf32, #tpu.memory_space<vmem>>, %arg4: memref<1x128xf32, #tpu.memory_space<vmem>>, %arg5: memref<128x128xf32, #tpu.memory_space<vmem>>) attributes {dimension_semantics = [#tpu.dimension_semantics<parallel>], iteration_bounds = array<i64: 1>, scalar_prefetch = 0 : i64, scratch_operands = 0 : i64, tpu.core_type = #tpu.core_type<tc>, window_params = [{transform_indices = @transform_0, window_bounds = array<i64: 128, 144>}, {pipeline_mode = #tpu.pipeline_mode<synchronous>, transform_indices = @transform_1, window_bounds = array<i64: 144, 128>}, {pipeline_mode = #tpu.pipeline_mode<synchronous>, transform_indices = @transform_2, window_bounds = array<i64: 1, 128>}, {pipeline_mode = #tpu.pipeline_mode<synchronous>, transform_indices = @transform_3, window_bounds = array<i64: 1, 128>}, {transform_indices = @transform_4, window_bounds = array<i64: 128, 128>}]} {
    %c0 = arith.constant 0 : index
    %c0_0 = arith.constant 0 : index
    %0 = vector.load %arg1[%c0, %c0_0] : memref<128x144xf32, #tpu.memory_space<vmem>>, vector<128x144xf32>
    %c0_1 = arith.constant 0 : index
    %c0_2 = arith.constant 0 : index
    %1 = vector.load %arg2[%c0_1, %c0_2] : memref<144x128xf32, #tpu.memory_space<vmem>>, vector<144x128xf32>
    %cst = arith.constant dense<0.000000e+00> : vector<128x128xf32>
    %2 = tpu.matmul %0, %1, %cst {dimension_numbers = #tpu.dot_dimension_numbers<[1], [0], [0], [1], [0, 0, 1, 1], [], []>} : vector<128x144xf32>, vector<144x128xf32>, vector<128x128xf32> -> vector<128x128xf32>
    %c0_3 = arith.constant 0 : index
    %c0_4 = arith.constant 0 : index
    %3 = vector.load %arg3[%c0_3, %c0_4] : memref<1x128xf32, #tpu.memory_space<vmem>>, vector<1x128xf32>
    %4 = vector.broadcast %3 : vector<1x128xf32> to vector<128x128xf32>
    %5 = arith.mulf %2, %4 : vector<128x128xf32>
    %c0_5 = arith.constant 0 : index
    %c0_6 = arith.constant 0 : index
    %6 = vector.load %arg4[%c0_5, %c0_6] : memref<1x128xf32, #tpu.memory_space<vmem>>, vector<1x128xf32>
    %7 = vector.broadcast %6 : vector<1x128xf32> to vector<128x128xf32>
    %8 = arith.addf %5, %7 : vector<128x128xf32>
    %cst_7 = arith.constant 0.000000e+00 : f32
    %9 = vector.broadcast %cst_7 : f32 to vector<128x128xf32>
    %10 = arith.maximumf %8, %9 : vector<128x128xf32>
    %c0_8 = arith.constant 0 : index
    %c0_9 = arith.constant 0 : index
    %11 = vector.load %arg5[%c0_8, %c0_9] : memref<128x128xf32, #tpu.memory_space<vmem>>, vector<128x128xf32>
    tpu.vector_store %arg5[%c0_8, %c0_9], %10 {strides = array<i32>} : memref<128x128xf32, #tpu.memory_space<vmem>>, vector<128x128xf32>,
    return
  }
  func.func @transform_0(%arg0: i32) -> (i32, i32) {
    %c0_i32 = arith.constant 0 : i32
    %c0_i32_0 = arith.constant 0 : i32
    return %arg0, %c0_i32 : i32, i32
  }
  func.func @transform_1(%arg0: i32) -> (i32, i32) {
    %c0_i32 = arith.constant 0 : i32
    %c0_i32_0 = arith.constant 0 : i32
    %c0_i32_1 = arith.constant 0 : i32
    return %c0_i32, %c0_i32_0 : i32, i32
  }
  func.func @transform_2(%arg0: i32) -> (i32, i32) {
    %c0_i32 = arith.constant 0 : i32
    %c0_i32_0 = arith.constant 0 : i32
    %c0_i32_1 = arith.constant 0 : i32
    return %c0_i32, %c0_i32_0 : i32, i32
  }
  func.func @transform_3(%arg0: i32) -> (i32, i32) {
    %c0_i32 = arith.constant 0 : i32
    %c0_i32_0 = arith.constant 0 : i32
    %c0_i32_1 = arith.constant 0 : i32
    return %c0_i32, %c0_i32_0 : i32, i32
  }
  func.func @transform_4(%arg0: i32) -> (i32, i32) {
    %c0_i32 = arith.constant 0 : i32
    %c0_i32_0 = arith.constant 0 : i32
    return %arg0, %c0_i32 : i32, i32
  }
}

module attributes {stable_mosaic.version = 11 : i64} {
  func.func @kernel(%arg0: i32, %arg1: memref<128x128xf32, #tpu.memory_space<vmem>>, %arg2: memref<128x128xf32, #tpu.memory_space<vmem>>, %arg3: memref<1x128xf32, #tpu.memory_space<vmem>>, %arg4: memref<1x128xf32, #tpu.memory_space<vmem>>, %arg5: memref<128x128xf32, #tpu.memory_space<vmem>>) attributes {dimension_semantics = [#tpu.dimension_semantics<parallel>], iteration_bounds = array<i64: 1>, scalar_prefetch = 0 : i64, scratch_operands = 0 : i64, tpu.core_type = #tpu.core_type<tc>, window_params = [{transform_indices = @transform_0, window_bounds = array<i64: 128, 128>}, {pipeline_mode = #tpu.pipeline_mode<synchronous>, transform_indices = @transform_1, window_bounds = array<i64: 128, 128>}, {pipeline_mode = #tpu.pipeline_mode<synchronous>, transform_indices = @transform_2, window_bounds = array<i64: 1, 128>}, {pipeline_mode = #tpu.pipeline_mode<synchronous>, transform_indices = @transform_3, window_bounds = array<i64: 1, 128>}, {transform_indices = @transform_4, window_bounds = array<i64: 128, 128>}]} {
    %c0 = arith.constant 0 : index
    %c0_0 = arith.constant 0 : index
    %0 = vector.load %arg1[%c0, %c0_0] : memref<128x128xf32, #tpu.memory_space<vmem>>, vector<128x128xf32>
    %c0_1 = arith.constant 0 : index
    %c0_2 = arith.constant 0 : index
    %1 = vector.load %arg2[%c0_1, %c0_2] : memref<128x128xf32, #tpu.memory_space<vmem>>, vector<128x128xf32>
    %cst = arith.constant dense<0.000000e+00> : vector<128x128xf32>
    %2 = tpu.matmul %0, %1, %cst {dimension_numbers = #tpu.dot_dimension_numbers<[1], [0], [0], [1], [0, 0, 1, 1], [], []>} : vector<128x128xf32>, vector<128x128xf32>, vector<128x128xf32> -> vector<128x128xf32>
    %c0_3 = arith.constant 0 : index
    %c0_4 = arith.constant 0 : index
    %3 = vector.load %arg3[%c0_3, %c0_4] : memref<1x128xf32, #tpu.memory_space<vmem>>, vector<1x128xf32>
    %4 = vector.broadcast %3 : vector<1x128xf32> to vector<128x128xf32>
    %5 = arith.mulf %2, %4 : vector<128x128xf32>
    %c0_5 = arith.constant 0 : index
    %c0_6 = arith.constant 0 : index
    %6 = vector.load %arg4[%c0_5, %c0_6] : memref<1x128xf32, #tpu.memory_space<vmem>>, vector<1x128xf32>
    %7 = vector.broadcast %6 : vector<1x128xf32> to vector<128x128xf32>
    %8 = arith.addf %5, %7 : vector<128x128xf32>
    %cst_7 = arith.constant 0.000000e+00 : f32
    %9 = vector.broadcast %cst_7 : f32 to vector<128x128xf32>
    %10 = arith.maximumf %8, %9 : vector<128x128xf32>
    %c0_8 = arith.constant 0 : index
    %c0_9 = arith.constant 0 : index
    %11 = vector.load %arg5[%c0_8, %c0_9] : memref<128x128xf32, #tpu.memory_space<vmem>>, vector<128x128xf32>
    tpu.vector_store %arg5[%c0_8, %c0_9], %10 {strides = array<i32>} : memref<128x128xf32, #tpu.memory_space<vmem>>, vector<128x128xf32>,
    return
  }
  func.func @transform_0(%arg0: i32) -> (i32, i32) {
    %c0_i32 = arith.constant 0 : i32
    %c0_i32_0 = arith.constant 0 : i32
    return %arg0, %c0_i32 : i32, i32
  }
  func.func @transform_1(%arg0: i32) -> (i32, i32) {
    %c0_i32 = arith.constant 0 : i32
    %c0_i32_0 = arith.constant 0 : i32
    %c0_i32_1 = arith.constant 0 : i32
    return %c0_i32, %c0_i32_0 : i32, i32
  }
  func.func @transform_2(%arg0: i32) -> (i32, i32) {
    %c0_i32 = arith.constant 0 : i32
    %c0_i32_0 = arith.constant 0 : i32
    %c0_i32_1 = arith.constant 0 : i32
    return %c0_i32, %c0_i32_0 : i32, i32
  }
  func.func @transform_3(%arg0: i32) -> (i32, i32) {
    %c0_i32 = arith.constant 0 : i32
    %c0_i32_0 = arith.constant 0 : i32
    %c0_i32_1 = arith.constant 0 : i32
    return %c0_i32, %c0_i32_0 : i32, i32
  }
  func.func @transform_4(%arg0: i32) -> (i32, i32) {
    %c0_i32 = arith.constant 0 : i32
    %c0_i32_0 = arith.constant 0 : i32
    return %arg0, %c0_i32 : i32, i32
  }
}

module attributes {stable_mosaic.version = 11 : i64} {
  func.func @kernel(%arg0: i32, %arg1: memref<128x128xf32, #tpu.memory_space<vmem>>, %arg2: memref<128x128xf32, #tpu.memory_space<vmem>>, %arg3: memref<128x128xf32, #tpu.memory_space<vmem>>, %arg4: memref<128x128xf32, #tpu.memory_space<vmem>>, %arg5: memref<128x128xf32, #tpu.memory_space<vmem>>) attributes {dimension_semantics = [#tpu.dimension_semantics<parallel>], iteration_bounds = array<i64: 1>, scalar_prefetch = 0 : i64, scratch_operands = 0 : i64, tpu.core_type = #tpu.core_type<tc>, window_params = [{transform_indices = @transform_0, window_bounds = array<i64: 128, 128>}, {transform_indices = @transform_1, window_bounds = array<i64: 128, 128>}, {transform_indices = @transform_2, window_bounds = array<i64: 128, 128>}, {transform_indices = @transform_3, window_bounds = array<i64: 128, 128>}, {transform_indices = @transform_4, window_bounds = array<i64: 128, 128>}]} {
    %c0 = arith.constant 0 : index
    %c0_0 = arith.constant 0 : index
    %0 = vector.load %arg1[%c0, %c0_0] : memref<128x128xf32, #tpu.memory_space<vmem>>, vector<128x128xf32>
    %c0_1 = arith.constant 0 : index
    %c0_2 = arith.constant 0 : index
    %1 = vector.load %arg2[%c0_1, %c0_2] : memref<128x128xf32, #tpu.memory_space<vmem>>, vector<128x128xf32>
    %2 = arith.addf %0, %1 : vector<128x128xf32>
    %c0_3 = arith.constant 0 : index
    %c0_4 = arith.constant 0 : index
    %3 = vector.load %arg3[%c0_3, %c0_4] : memref<128x128xf32, #tpu.memory_space<vmem>>, vector<128x128xf32>
    %4 = arith.addf %2, %3 : vector<128x128xf32>
    %c0_5 = arith.constant 0 : index
    %c0_6 = arith.constant 0 : index
    %5 = vector.load %arg4[%c0_5, %c0_6] : memref<128x128xf32, #tpu.memory_space<vmem>>, vector<128x128xf32>
    %6 = arith.addf %4, %5 : vector<128x128xf32>
    %c0_7 = arith.constant 0 : index
    %c0_8 = arith.constant 0 : index
    %7 = vector.load %arg5[%c0_7, %c0_8] : memref<128x128xf32, #tpu.memory_space<vmem>>, vector<128x128xf32>
    tpu.vector_store %arg5[%c0_7, %c0_8], %6 {strides = array<i32>} : memref<128x128xf32, #tpu.memory_space<vmem>>, vector<128x128xf32>,
    return
  }
  func.func @transform_0(%arg0: i32) -> (i32, i32) {
    %c0_i32 = arith.constant 0 : i32
    %c0_i32_0 = arith.constant 0 : i32
    return %arg0, %c0_i32 : i32, i32
  }
  func.func @transform_1(%arg0: i32) -> (i32, i32) {
    %c0_i32 = arith.constant 0 : i32
    %c0_i32_0 = arith.constant 0 : i32
    return %arg0, %c0_i32 : i32, i32
  }
  func.func @transform_2(%arg0: i32) -> (i32, i32) {
    %c0_i32 = arith.constant 0 : i32
    %c0_i32_0 = arith.constant 0 : i32
    return %arg0, %c0_i32 : i32, i32
  }
  func.func @transform_3(%arg0: i32) -> (i32, i32) {
    %c0_i32 = arith.constant 0 : i32
    %c0_i32_0 = arith.constant 0 : i32
    return %arg0, %c0_i32 : i32, i32
  }
  func.func @transform_4(%arg0: i32) -> (i32, i32) {
    %c0_i32 = arith.constant 0 : i32
    %c0_i32_0 = arith.constant 0 : i32
    return %arg0, %c0_i32 : i32, i32
  }
}

module attributes {stable_mosaic.version = 11 : i64} {
  func.func @kernel(%arg0: i32, %arg1: memref<128x128xf32, #tpu.memory_space<vmem>>, %arg2: memref<128x128xf32, #tpu.memory_space<vmem>>, %arg3: memref<128x128xf32, #tpu.memory_space<vmem>>, %arg4: memref<128x128xf32, #tpu.memory_space<vmem>>, %arg5: memref<128x128xf32, #tpu.memory_space<vmem>>, %arg6: memref<128x128xf32, #tpu.memory_space<vmem>>, %arg7: memref<128x128xf32, #tpu.memory_space<vmem>>, %arg8: memref<128x128xf32, #tpu.memory_space<vmem>>, %arg9: memref<128x128xf32, #tpu.memory_space<vmem>>, %arg10: memref<128x128xf32, #tpu.memory_space<vmem>>) attributes {dimension_semantics = [#tpu.dimension_semantics<parallel>], iteration_bounds = array<i64: 1>, scalar_prefetch = 0 : i64, scratch_operands = 0 : i64, tpu.core_type = #tpu.core_type<tc>, window_params = [{transform_indices = @transform_0, window_bounds = array<i64: 128, 128>}, {transform_indices = @transform_1, window_bounds = array<i64: 128, 128>}, {transform_indices = @transform_2, window_bounds = array<i64: 128, 128>}, {transform_indices = @transform_3, window_bounds = array<i64: 128, 128>}, {transform_indices = @transform_4, window_bounds = array<i64: 128, 128>}, {transform_indices = @transform_5, window_bounds = array<i64: 128, 128>}, {transform_indices = @transform_6, window_bounds = array<i64: 128, 128>}, {transform_indices = @transform_7, window_bounds = array<i64: 128, 128>}, {transform_indices = @transform_8, window_bounds = array<i64: 128, 128>}, {transform_indices = @transform_9, window_bounds = array<i64: 128, 128>}]} {
    %c0 = arith.constant 0 : index
    %c0_0 = arith.constant 0 : index
    %0 = vector.load %arg1[%c0, %c0_0] : memref<128x128xf32, #tpu.memory_space<vmem>>, vector<128x128xf32>
    %c0_1 = arith.constant 0 : index
    %c0_2 = arith.constant 0 : index
    %1 = vector.load %arg2[%c0_1, %c0_2] : memref<128x128xf32, #tpu.memory_space<vmem>>, vector<128x128xf32>
    %2 = arith.maximumf %0, %1 : vector<128x128xf32>
    %c0_3 = arith.constant 0 : index
    %c0_4 = arith.constant 0 : index
    %3 = vector.load %arg3[%c0_3, %c0_4] : memref<128x128xf32, #tpu.memory_space<vmem>>, vector<128x128xf32>
    %4 = arith.maximumf %2, %3 : vector<128x128xf32>
    %c0_5 = arith.constant 0 : index
    %c0_6 = arith.constant 0 : index
    %5 = vector.load %arg4[%c0_5, %c0_6] : memref<128x128xf32, #tpu.memory_space<vmem>>, vector<128x128xf32>
    %6 = arith.maximumf %4, %5 : vector<128x128xf32>
    %c0_7 = arith.constant 0 : index
    %c0_8 = arith.constant 0 : index
    %7 = vector.load %arg5[%c0_7, %c0_8] : memref<128x128xf32, #tpu.memory_space<vmem>>, vector<128x128xf32>
    %8 = arith.maximumf %6, %7 : vector<128x128xf32>
    %c0_9 = arith.constant 0 : index
    %c0_10 = arith.constant 0 : index
    %9 = vector.load %arg6[%c0_9, %c0_10] : memref<128x128xf32, #tpu.memory_space<vmem>>, vector<128x128xf32>
    %10 = arith.maximumf %8, %9 : vector<128x128xf32>
    %c0_11 = arith.constant 0 : index
    %c0_12 = arith.constant 0 : index
    %11 = vector.load %arg7[%c0_11, %c0_12] : memref<128x128xf32, #tpu.memory_space<vmem>>, vector<128x128xf32>
    %12 = arith.maximumf %10, %11 : vector<128x128xf32>
    %c0_13 = arith.constant 0 : index
    %c0_14 = arith.constant 0 : index
    %13 = vector.load %arg8[%c0_13, %c0_14] : memref<128x128xf32, #tpu.memory_space<vmem>>, vector<128x128xf32>
    %14 = arith.maximumf %12, %13 : vector<128x128xf32>
    %c0_15 = arith.constant 0 : index
    %c0_16 = arith.constant 0 : index
    %15 = vector.load %arg9[%c0_15, %c0_16] : memref<128x128xf32, #tpu.memory_space<vmem>>, vector<128x128xf32>
    %16 = arith.maximumf %14, %15 : vector<128x128xf32>
    %c0_17 = arith.constant 0 : index
    %c0_18 = arith.constant 0 : index
    %17 = vector.load %arg10[%c0_17, %c0_18] : memref<128x128xf32, #tpu.memory_space<vmem>>, vector<128x128xf32>
    tpu.vector_store %arg10[%c0_17, %c0_18], %16 {strides = array<i32>} : memref<128x128xf32, #tpu.memory_space<vmem>>, vector<128x128xf32>,
    return
  }
  func.func @transform_0(%arg0: i32) -> (i32, i32) {
    %c0_i32 = arith.constant 0 : i32
    %c0_i32_0 = arith.constant 0 : i32
    return %arg0, %c0_i32 : i32, i32
  }
  func.func @transform_1(%arg0: i32) -> (i32, i32) {
    %c0_i32 = arith.constant 0 : i32
    %c0_i32_0 = arith.constant 0 : i32
    return %arg0, %c0_i32 : i32, i32
  }
  func.func @transform_2(%arg0: i32) -> (i32, i32) {
    %c0_i32 = arith.constant 0 : i32
    %c0_i32_0 = arith.constant 0 : i32
    return %arg0, %c0_i32 : i32, i32
  }
  func.func @transform_3(%arg0: i32) -> (i32, i32) {
    %c0_i32 = arith.constant 0 : i32
    %c0_i32_0 = arith.constant 0 : i32
    return %arg0, %c0_i32 : i32, i32
  }
  func.func @transform_4(%arg0: i32) -> (i32, i32) {
    %c0_i32 = arith.constant 0 : i32
    %c0_i32_0 = arith.constant 0 : i32
    return %arg0, %c0_i32 : i32, i32
  }
  func.func @transform_5(%arg0: i32) -> (i32, i32) {
    %c0_i32 = arith.constant 0 : i32
    %c0_i32_0 = arith.constant 0 : i32
    return %arg0, %c0_i32 : i32, i32
  }
  func.func @transform_6(%arg0: i32) -> (i32, i32) {
    %c0_i32 = arith.constant 0 : i32
    %c0_i32_0 = arith.constant 0 : i32
    return %arg0, %c0_i32 : i32, i32
  }
  func.func @transform_7(%arg0: i32) -> (i32, i32) {
    %c0_i32 = arith.constant 0 : i32
    %c0_i32_0 = arith.constant 0 : i32
    return %arg0, %c0_i32 : i32, i32
  }
  func.func @transform_8(%arg0: i32) -> (i32, i32) {
    %c0_i32 = arith.constant 0 : i32
    %c0_i32_0 = arith.constant 0 : i32
    return %arg0, %c0_i32 : i32, i32
  }
  func.func @transform_9(%arg0: i32) -> (i32, i32) {
    %c0_i32 = arith.constant 0 : i32
    %c0_i32_0 = arith.constant 0 : i32
    return %arg0, %c0_i32 : i32, i32
  }
}

module attributes {stable_mosaic.version = 11 : i64} {
  func.func @kernel(%arg0: i32, %arg1: memref<32x128xf32, #tpu.memory_space<vmem>>, %arg2: memref<32x128xf32, #tpu.memory_space<vmem>>, %arg3: memref<32x128xf32, #tpu.memory_space<vmem>>, %arg4: memref<32x128xf32, #tpu.memory_space<vmem>>, %arg5: memref<32x128xf32, #tpu.memory_space<vmem>>) attributes {dimension_semantics = [#tpu.dimension_semantics<parallel>], iteration_bounds = array<i64: 1>, scalar_prefetch = 0 : i64, scratch_operands = 0 : i64, tpu.core_type = #tpu.core_type<tc>, window_params = [{transform_indices = @transform_0, window_bounds = array<i64: 32, 128>}, {transform_indices = @transform_1, window_bounds = array<i64: 32, 128>}, {transform_indices = @transform_2, window_bounds = array<i64: 32, 128>}, {transform_indices = @transform_3, window_bounds = array<i64: 32, 128>}, {transform_indices = @transform_4, window_bounds = array<i64: 32, 128>}]} {
    %c0 = arith.constant 0 : index
    %c0_0 = arith.constant 0 : index
    %0 = vector.load %arg1[%c0, %c0_0] : memref<32x128xf32, #tpu.memory_space<vmem>>, vector<32x128xf32>
    %c0_1 = arith.constant 0 : index
    %c0_2 = arith.constant 0 : index
    %1 = vector.load %arg2[%c0_1, %c0_2] : memref<32x128xf32, #tpu.memory_space<vmem>>, vector<32x128xf32>
    %2 = arith.maximumf %0, %1 : vector<32x128xf32>
    %c0_3 = arith.constant 0 : index
    %c0_4 = arith.constant 0 : index
    %3 = vector.load %arg3[%c0_3, %c0_4] : memref<32x128xf32, #tpu.memory_space<vmem>>, vector<32x128xf32>
    %4 = arith.maximumf %2, %3 : vector<32x128xf32>
    %c0_5 = arith.constant 0 : index
    %c0_6 = arith.constant 0 : index
    %5 = vector.load %arg4[%c0_5, %c0_6] : memref<32x128xf32, #tpu.memory_space<vmem>>, vector<32x128xf32>
    %6 = arith.maximumf %4, %5 : vector<32x128xf32>
    %c0_7 = arith.constant 0 : index
    %c0_8 = arith.constant 0 : index
    %7 = vector.load %arg5[%c0_7, %c0_8] : memref<32x128xf32, #tpu.memory_space<vmem>>, vector<32x128xf32>
    tpu.vector_store %arg5[%c0_7, %c0_8], %6 {strides = array<i32>} : memref<32x128xf32, #tpu.memory_space<vmem>>, vector<32x128xf32>,
    return
  }
  func.func @transform_0(%arg0: i32) -> (i32, i32) {
    %c0_i32 = arith.constant 0 : i32
    %c0_i32_0 = arith.constant 0 : i32
    return %arg0, %c0_i32 : i32, i32
  }
  func.func @transform_1(%arg0: i32) -> (i32, i32) {
    %c0_i32 = arith.constant 0 : i32
    %c0_i32_0 = arith.constant 0 : i32
    return %arg0, %c0_i32 : i32, i32
  }
  func.func @transform_2(%arg0: i32) -> (i32, i32) {
    %c0_i32 = arith.constant 0 : i32
    %c0_i32_0 = arith.constant 0 : i32
    return %arg0, %c0_i32 : i32, i32
  }
  func.func @transform_3(%arg0: i32) -> (i32, i32) {
    %c0_i32 = arith.constant 0 : i32
    %c0_i32_0 = arith.constant 0 : i32
    return %arg0, %c0_i32 : i32, i32
  }
  func.func @transform_4(%arg0: i32) -> (i32, i32) {
    %c0_i32 = arith.constant 0 : i32
    %c0_i32_0 = arith.constant 0 : i32
    return %arg0, %c0_i32 : i32, i32
  }
}

module attributes {stable_mosaic.version = 11 : i64} {
  func.func @kernel(%arg0: i32, %arg1: memref<32x128xf32, #tpu.memory_space<vmem>>, %arg2: memref<128x128xf32, #tpu.memory_space<vmem>>, %arg3: memref<1x128xf32, #tpu.memory_space<vmem>>, %arg4: memref<1x128xf32, #tpu.memory_space<vmem>>, %arg5: memref<32x128xf32, #tpu.memory_space<vmem>>) attributes {dimension_semantics = [#tpu.dimension_semantics<parallel>], iteration_bounds = array<i64: 1>, scalar_prefetch = 0 : i64, scratch_operands = 0 : i64, tpu.core_type = #tpu.core_type<tc>, window_params = [{transform_indices = @transform_0, window_bounds = array<i64: 32, 128>}, {pipeline_mode = #tpu.pipeline_mode<synchronous>, transform_indices = @transform_1, window_bounds = array<i64: 128, 128>}, {pipeline_mode = #tpu.pipeline_mode<synchronous>, transform_indices = @transform_2, window_bounds = array<i64: 1, 128>}, {pipeline_mode = #tpu.pipeline_mode<synchronous>, transform_indices = @transform_3, window_bounds = array<i64: 1, 128>}, {transform_indices = @transform_4, window_bounds = array<i64: 32, 128>}]} {
    %c0 = arith.constant 0 : index
    %c0_0 = arith.constant 0 : index
    %0 = vector.load %arg1[%c0, %c0_0] : memref<32x128xf32, #tpu.memory_space<vmem>>, vector<32x128xf32>
    %c0_1 = arith.constant 0 : index
    %c0_2 = arith.constant 0 : index
    %1 = vector.load %arg2[%c0_1, %c0_2] : memref<128x128xf32, #tpu.memory_space<vmem>>, vector<128x128xf32>
    %cst = arith.constant dense<0.000000e+00> : vector<32x128xf32>
    %2 = tpu.matmul %0, %1, %cst {dimension_numbers = #tpu.dot_dimension_numbers<[1], [0], [0], [1], [0, 0, 1, 1], [], []>} : vector<32x128xf32>, vector<128x128xf32>, vector<32x128xf32> -> vector<32x128xf32>
    %c0_3 = arith.constant 0 : index
    %c0_4 = arith.constant 0 : index
    %3 = vector.load %arg3[%c0_3, %c0_4] : memref<1x128xf32, #tpu.memory_space<vmem>>, vector<1x128xf32>
    %4 = vector.broadcast %3 : vector<1x128xf32> to vector<32x128xf32>
    %5 = arith.mulf %2, %4 : vector<32x128xf32>
    %c0_5 = arith.constant 0 : index
    %c0_6 = arith.constant 0 : index
    %6 = vector.load %arg4[%c0_5, %c0_6] : memref<1x128xf32, #tpu.memory_space<vmem>>, vector<1x128xf32>
    %7 = vector.broadcast %6 : vector<1x128xf32> to vector<32x128xf32>
    %8 = arith.addf %5, %7 : vector<32x128xf32>
    %cst_7 = arith.constant 0.000000e+00 : f32
    %9 = vector.broadcast %cst_7 : f32 to vector<32x128xf32>
    %10 = arith.maximumf %8, %9 : vector<32x128xf32>
    %c0_8 = arith.constant 0 : index
    %c0_9 = arith.constant 0 : index
    %11 = vector.load %arg5[%c0_8, %c0_9] : memref<32x128xf32, #tpu.memory_space<vmem>>, vector<32x128xf32>
    tpu.vector_store %arg5[%c0_8, %c0_9], %10 {strides = array<i32>} : memref<32x128xf32, #tpu.memory_space<vmem>>, vector<32x128xf32>,
    return
  }
  func.func @transform_0(%arg0: i32) -> (i32, i32) {
    %c0_i32 = arith.constant 0 : i32
    %c0_i32_0 = arith.constant 0 : i32
    return %arg0, %c0_i32 : i32, i32
  }
  func.func @transform_1(%arg0: i32) -> (i32, i32) {
    %c0_i32 = arith.constant 0 : i32
    %c0_i32_0 = arith.constant 0 : i32
    %c0_i32_1 = arith.constant 0 : i32
    return %c0_i32, %c0_i32_0 : i32, i32
  }
  func.func @transform_2(%arg0: i32) -> (i32, i32) {
    %c0_i32 = arith.constant 0 : i32
    %c0_i32_0 = arith.constant 0 : i32
    %c0_i32_1 = arith.constant 0 : i32
    return %c0_i32, %c0_i32_0 : i32, i32
  }
  func.func @transform_3(%arg0: i32) -> (i32, i32) {
    %c0_i32 = arith.constant 0 : i32
    %c0_i32_0 = arith.constant 0 : i32
    %c0_i32_1 = arith.constant 0 : i32
    return %c0_i32, %c0_i32_0 : i32, i32
  }
  func.func @transform_4(%arg0: i32) -> (i32, i32) {
    %c0_i32 = arith.constant 0 : i32
    %c0_i32_0 = arith.constant 0 : i32
    return %arg0, %c0_i32 : i32, i32
  }
}

module attributes {stable_mosaic.version = 11 : i64} {
  func.func @kernel(%arg0: i32, %arg1: memref<32x288xf32, #tpu.memory_space<vmem>>, %arg2: memref<288x128xf32, #tpu.memory_space<vmem>>, %arg3: memref<1x128xf32, #tpu.memory_space<vmem>>, %arg4: memref<1x128xf32, #tpu.memory_space<vmem>>, %arg5: memref<32x128xf32, #tpu.memory_space<vmem>>) attributes {dimension_semantics = [#tpu.dimension_semantics<parallel>], iteration_bounds = array<i64: 1>, scalar_prefetch = 0 : i64, scratch_operands = 0 : i64, tpu.core_type = #tpu.core_type<tc>, window_params = [{transform_indices = @transform_0, window_bounds = array<i64: 32, 288>}, {pipeline_mode = #tpu.pipeline_mode<synchronous>, transform_indices = @transform_1, window_bounds = array<i64: 288, 128>}, {pipeline_mode = #tpu.pipeline_mode<synchronous>, transform_indices = @transform_2, window_bounds = array<i64: 1, 128>}, {pipeline_mode = #tpu.pipeline_mode<synchronous>, transform_indices = @transform_3, window_bounds = array<i64: 1, 128>}, {transform_indices = @transform_4, window_bounds = array<i64: 32, 128>}]} {
    %c0 = arith.constant 0 : index
    %c0_0 = arith.constant 0 : index
    %0 = vector.load %arg1[%c0, %c0_0] : memref<32x288xf32, #tpu.memory_space<vmem>>, vector<32x288xf32>
    %c0_1 = arith.constant 0 : index
    %c0_2 = arith.constant 0 : index
    %1 = vector.load %arg2[%c0_1, %c0_2] : memref<288x128xf32, #tpu.memory_space<vmem>>, vector<288x128xf32>
    %cst = arith.constant dense<0.000000e+00> : vector<32x128xf32>
    %2 = tpu.matmul %0, %1, %cst {dimension_numbers = #tpu.dot_dimension_numbers<[1], [0], [0], [1], [0, 0, 1, 1], [], []>} : vector<32x288xf32>, vector<288x128xf32>, vector<32x128xf32> -> vector<32x128xf32>
    %c0_3 = arith.constant 0 : index
    %c0_4 = arith.constant 0 : index
    %3 = vector.load %arg3[%c0_3, %c0_4] : memref<1x128xf32, #tpu.memory_space<vmem>>, vector<1x128xf32>
    %4 = vector.broadcast %3 : vector<1x128xf32> to vector<32x128xf32>
    %5 = arith.mulf %2, %4 : vector<32x128xf32>
    %c0_5 = arith.constant 0 : index
    %c0_6 = arith.constant 0 : index
    %6 = vector.load %arg4[%c0_5, %c0_6] : memref<1x128xf32, #tpu.memory_space<vmem>>, vector<1x128xf32>
    %7 = vector.broadcast %6 : vector<1x128xf32> to vector<32x128xf32>
    %8 = arith.addf %5, %7 : vector<32x128xf32>
    %cst_7 = arith.constant 0.000000e+00 : f32
    %9 = vector.broadcast %cst_7 : f32 to vector<32x128xf32>
    %10 = arith.maximumf %8, %9 : vector<32x128xf32>
    %c0_8 = arith.constant 0 : index
    %c0_9 = arith.constant 0 : index
    %11 = vector.load %arg5[%c0_8, %c0_9] : memref<32x128xf32, #tpu.memory_space<vmem>>, vector<32x128xf32>
    tpu.vector_store %arg5[%c0_8, %c0_9], %10 {strides = array<i32>} : memref<32x128xf32, #tpu.memory_space<vmem>>, vector<32x128xf32>,
    return
  }
  func.func @transform_0(%arg0: i32) -> (i32, i32) {
    %c0_i32 = arith.constant 0 : i32
    %c0_i32_0 = arith.constant 0 : i32
    return %arg0, %c0_i32 : i32, i32
  }
  func.func @transform_1(%arg0: i32) -> (i32, i32) {
    %c0_i32 = arith.constant 0 : i32
    %c0_i32_0 = arith.constant 0 : i32
    %c0_i32_1 = arith.constant 0 : i32
    return %c0_i32, %c0_i32_0 : i32, i32
  }
  func.func @transform_2(%arg0: i32) -> (i32, i32) {
    %c0_i32 = arith.constant 0 : i32
    %c0_i32_0 = arith.constant 0 : i32
    %c0_i32_1 = arith.constant 0 : i32
    return %c0_i32, %c0_i32_0 : i32, i32
  }
  func.func @transform_3(%arg0: i32) -> (i32, i32) {
    %c0_i32 = arith.constant 0 : i32
    %c0_i32_0 = arith.constant 0 : i32
    %c0_i32_1 = arith.constant 0 : i32
    return %c0_i32, %c0_i32_0 : i32, i32
  }
  func.func @transform_4(%arg0: i32) -> (i32, i32) {
    %c0_i32 = arith.constant 0 : i32
    %c0_i32_0 = arith.constant 0 : i32
    return %arg0, %c0_i32 : i32, i32
  }
}

module attributes {stable_mosaic.version = 11 : i64} {
  func.func @kernel(%arg0: i32, %arg1: memref<32x128xf32, #tpu.memory_space<vmem>>, %arg2: memref<32x128xf32, #tpu.memory_space<vmem>>, %arg3: memref<32x128xf32, #tpu.memory_space<vmem>>, %arg4: memref<32x128xf32, #tpu.memory_space<vmem>>, %arg5: memref<32x128xf32, #tpu.memory_space<vmem>>, %arg6: memref<32x128xf32, #tpu.memory_space<vmem>>, %arg7: memref<32x128xf32, #tpu.memory_space<vmem>>, %arg8: memref<32x128xf32, #tpu.memory_space<vmem>>, %arg9: memref<32x128xf32, #tpu.memory_space<vmem>>, %arg10: memref<32x128xf32, #tpu.memory_space<vmem>>) attributes {dimension_semantics = [#tpu.dimension_semantics<parallel>], iteration_bounds = array<i64: 1>, scalar_prefetch = 0 : i64, scratch_operands = 0 : i64, tpu.core_type = #tpu.core_type<tc>, window_params = [{transform_indices = @transform_0, window_bounds = array<i64: 32, 128>}, {transform_indices = @transform_1, window_bounds = array<i64: 32, 128>}, {transform_indices = @transform_2, window_bounds = array<i64: 32, 128>}, {transform_indices = @transform_3, window_bounds = array<i64: 32, 128>}, {transform_indices = @transform_4, window_bounds = array<i64: 32, 128>}, {transform_indices = @transform_5, window_bounds = array<i64: 32, 128>}, {transform_indices = @transform_6, window_bounds = array<i64: 32, 128>}, {transform_indices = @transform_7, window_bounds = array<i64: 32, 128>}, {transform_indices = @transform_8, window_bounds = array<i64: 32, 128>}, {transform_indices = @transform_9, window_bounds = array<i64: 32, 128>}]} {
    %c0 = arith.constant 0 : index
    %c0_0 = arith.constant 0 : index
    %0 = vector.load %arg1[%c0, %c0_0] : memref<32x128xf32, #tpu.memory_space<vmem>>, vector<32x128xf32>
    %c0_1 = arith.constant 0 : index
    %c0_2 = arith.constant 0 : index
    %1 = vector.load %arg2[%c0_1, %c0_2] : memref<32x128xf32, #tpu.memory_space<vmem>>, vector<32x128xf32>
    %2 = arith.maximumf %0, %1 : vector<32x128xf32>
    %c0_3 = arith.constant 0 : index
    %c0_4 = arith.constant 0 : index
    %3 = vector.load %arg3[%c0_3, %c0_4] : memref<32x128xf32, #tpu.memory_space<vmem>>, vector<32x128xf32>
    %4 = arith.maximumf %2, %3 : vector<32x128xf32>
    %c0_5 = arith.constant 0 : index
    %c0_6 = arith.constant 0 : index
    %5 = vector.load %arg4[%c0_5, %c0_6] : memref<32x128xf32, #tpu.memory_space<vmem>>, vector<32x128xf32>
    %6 = arith.maximumf %4, %5 : vector<32x128xf32>
    %c0_7 = arith.constant 0 : index
    %c0_8 = arith.constant 0 : index
    %7 = vector.load %arg5[%c0_7, %c0_8] : memref<32x128xf32, #tpu.memory_space<vmem>>, vector<32x128xf32>
    %8 = arith.maximumf %6, %7 : vector<32x128xf32>
    %c0_9 = arith.constant 0 : index
    %c0_10 = arith.constant 0 : index
    %9 = vector.load %arg6[%c0_9, %c0_10] : memref<32x128xf32, #tpu.memory_space<vmem>>, vector<32x128xf32>
    %10 = arith.maximumf %8, %9 : vector<32x128xf32>
    %c0_11 = arith.constant 0 : index
    %c0_12 = arith.constant 0 : index
    %11 = vector.load %arg7[%c0_11, %c0_12] : memref<32x128xf32, #tpu.memory_space<vmem>>, vector<32x128xf32>
    %12 = arith.maximumf %10, %11 : vector<32x128xf32>
    %c0_13 = arith.constant 0 : index
    %c0_14 = arith.constant 0 : index
    %13 = vector.load %arg8[%c0_13, %c0_14] : memref<32x128xf32, #tpu.memory_space<vmem>>, vector<32x128xf32>
    %14 = arith.maximumf %12, %13 : vector<32x128xf32>
    %c0_15 = arith.constant 0 : index
    %c0_16 = arith.constant 0 : index
    %15 = vector.load %arg9[%c0_15, %c0_16] : memref<32x128xf32, #tpu.memory_space<vmem>>, vector<32x128xf32>
    %16 = arith.maximumf %14, %15 : vector<32x128xf32>
    %c0_17 = arith.constant 0 : index
    %c0_18 = arith.constant 0 : index
    %17 = vector.load %arg10[%c0_17, %c0_18] : memref<32x128xf32, #tpu.memory_space<vmem>>, vector<32x128xf32>
    tpu.vector_store %arg10[%c0_17, %c0_18], %16 {strides = array<i32>} : memref<32x128xf32, #tpu.memory_space<vmem>>, vector<32x128xf32>,
    return
  }
  func.func @transform_0(%arg0: i32) -> (i32, i32) {
    %c0_i32 = arith.constant 0 : i32
    %c0_i32_0 = arith.constant 0 : i32
    return %arg0, %c0_i32 : i32, i32
  }
  func.func @transform_1(%arg0: i32) -> (i32, i32) {
    %c0_i32 = arith.constant 0 : i32
    %c0_i32_0 = arith.constant 0 : i32
    return %arg0, %c0_i32 : i32, i32
  }
  func.func @transform_2(%arg0: i32) -> (i32, i32) {
    %c0_i32 = arith.constant 0 : i32
    %c0_i32_0 = arith.constant 0 : i32
    return %arg0, %c0_i32 : i32, i32
  }
  func.func @transform_3(%arg0: i32) -> (i32, i32) {
    %c0_i32 = arith.constant 0 : i32
    %c0_i32_0 = arith.constant 0 : i32
    return %arg0, %c0_i32 : i32, i32
  }
  func.func @transform_4(%arg0: i32) -> (i32, i32) {
    %c0_i32 = arith.constant 0 : i32
    %c0_i32_0 = arith.constant 0 : i32
    return %arg0, %c0_i32 : i32, i32
  }
  func.func @transform_5(%arg0: i32) -> (i32, i32) {
    %c0_i32 = arith.constant 0 : i32
    %c0_i32_0 = arith.constant 0 : i32
    return %arg0, %c0_i32 : i32, i32
  }
  func.func @transform_6(%arg0: i32) -> (i32, i32) {
    %c0_i32 = arith.constant 0 : i32
    %c0_i32_0 = arith.constant 0 : i32
    return %arg0, %c0_i32 : i32, i32
  }
  func.func @transform_7(%arg0: i32) -> (i32, i32) {
    %c0_i32 = arith.constant 0 : i32
    %c0_i32_0 = arith.constant 0 : i32
    return %arg0, %c0_i32 : i32, i32
  }
  func.func @transform_8(%arg0: i32) -> (i32, i32) {
    %c0_i32 = arith.constant 0 : i32
    %c0_i32_0 = arith.constant 0 : i32
    return %arg0, %c0_i32 : i32, i32
  }
  func.func @transform_9(%arg0: i32) -> (i32, i32) {
    %c0_i32 = arith.constant 0 : i32
    %c0_i32_0 = arith.constant 0 : i32
    return %arg0, %c0_i32 : i32, i32
  }
}

module attributes {stable_mosaic.version = 11 : i64} {
  func.func @kernel(%arg0: i32, %arg1: memref<32x128xf32, #tpu.memory_space<vmem>>, %arg2: memref<32x128xf32, #tpu.memory_space<vmem>>, %arg3: memref<32x128xf32, #tpu.memory_space<vmem>>, %arg4: memref<32x128xf32, #tpu.memory_space<vmem>>, %arg5: memref<32x128xf32, #tpu.memory_space<vmem>>) attributes {dimension_semantics = [#tpu.dimension_semantics<parallel>], iteration_bounds = array<i64: 1>, scalar_prefetch = 0 : i64, scratch_operands = 0 : i64, tpu.core_type = #tpu.core_type<tc>, window_params = [{transform_indices = @transform_0, window_bounds = array<i64: 32, 128>}, {transform_indices = @transform_1, window_bounds = array<i64: 32, 128>}, {transform_indices = @transform_2, window_bounds = array<i64: 32, 128>}, {transform_indices = @transform_3, window_bounds = array<i64: 32, 128>}, {transform_indices = @transform_4, window_bounds = array<i64: 32, 128>}]} {
    %c0 = arith.constant 0 : index
    %c0_0 = arith.constant 0 : index
    %0 = vector.load %arg1[%c0, %c0_0] : memref<32x128xf32, #tpu.memory_space<vmem>>, vector<32x128xf32>
    %c0_1 = arith.constant 0 : index
    %c0_2 = arith.constant 0 : index
    %1 = vector.load %arg2[%c0_1, %c0_2] : memref<32x128xf32, #tpu.memory_space<vmem>>, vector<32x128xf32>
    %2 = arith.addf %0, %1 : vector<32x128xf32>
    %c0_3 = arith.constant 0 : index
    %c0_4 = arith.constant 0 : index
    %3 = vector.load %arg3[%c0_3, %c0_4] : memref<32x128xf32, #tpu.memory_space<vmem>>, vector<32x128xf32>
    %4 = arith.addf %2, %3 : vector<32x128xf32>
    %c0_5 = arith.constant 0 : index
    %c0_6 = arith.constant 0 : index
    %5 = vector.load %arg4[%c0_5, %c0_6] : memref<32x128xf32, #tpu.memory_space<vmem>>, vector<32x128xf32>
    %6 = arith.addf %4, %5 : vector<32x128xf32>
    %c0_7 = arith.constant 0 : index
    %c0_8 = arith.constant 0 : index
    %7 = vector.load %arg5[%c0_7, %c0_8] : memref<32x128xf32, #tpu.memory_space<vmem>>, vector<32x128xf32>
    tpu.vector_store %arg5[%c0_7, %c0_8], %6 {strides = array<i32>} : memref<32x128xf32, #tpu.memory_space<vmem>>, vector<32x128xf32>,
    return
  }
  func.func @transform_0(%arg0: i32) -> (i32, i32) {
    %c0_i32 = arith.constant 0 : i32
    %c0_i32_0 = arith.constant 0 : i32
    return %arg0, %c0_i32 : i32, i32
  }
  func.func @transform_1(%arg0: i32) -> (i32, i32) {
    %c0_i32 = arith.constant 0 : i32
    %c0_i32_0 = arith.constant 0 : i32
    return %arg0, %c0_i32 : i32, i32
  }
  func.func @transform_2(%arg0: i32) -> (i32, i32) {
    %c0_i32 = arith.constant 0 : i32
    %c0_i32_0 = arith.constant 0 : i32
    return %arg0, %c0_i32 : i32, i32
  }
  func.func @transform_3(%arg0: i32) -> (i32, i32) {
    %c0_i32 = arith.constant 0 : i32
    %c0_i32_0 = arith.constant 0 : i32
    return %arg0, %c0_i32 : i32, i32
  }
  func.func @transform_4(%arg0: i32) -> (i32, i32) {
    %c0_i32 = arith.constant 0 : i32
    %c0_i32_0 = arith.constant 0 : i32
    return %arg0, %c0_i32 : i32, i32
  }
}

module attributes {stable_mosaic.version = 11 : i64} {
  func.func @kernel(%arg0: i32, %arg1: memref<32x128xf32, #tpu.memory_space<vmem>>, %arg2: memref<128x128xf32, #tpu.memory_space<vmem>>, %arg3: memref<1x128xf32, #tpu.memory_space<vmem>>, %arg4: memref<1x128xf32, #tpu.memory_space<vmem>>, %arg5: memref<32x128xf32, #tpu.memory_space<vmem>>) attributes {dimension_semantics = [#tpu.dimension_semantics<parallel>], iteration_bounds = array<i64: 1>, scalar_prefetch = 0 : i64, scratch_operands = 0 : i64, tpu.core_type = #tpu.core_type<tc>, window_params = [{transform_indices = @transform_0, window_bounds = array<i64: 32, 128>}, {pipeline_mode = #tpu.pipeline_mode<synchronous>, transform_indices = @transform_1, window_bounds = array<i64: 128, 128>}, {pipeline_mode = #tpu.pipeline_mode<synchronous>, transform_indices = @transform_2, window_bounds = array<i64: 1, 128>}, {pipeline_mode = #tpu.pipeline_mode<synchronous>, transform_indices = @transform_3, window_bounds = array<i64: 1, 128>}, {transform_indices = @transform_4, window_bounds = array<i64: 32, 128>}]} {
    %c0 = arith.constant 0 : index
    %c0_0 = arith.constant 0 : index
    %0 = vector.load %arg1[%c0, %c0_0] : memref<32x128xf32, #tpu.memory_space<vmem>>, vector<32x128xf32>
    %c0_1 = arith.constant 0 : index
    %c0_2 = arith.constant 0 : index
    %1 = vector.load %arg2[%c0_1, %c0_2] : memref<128x128xf32, #tpu.memory_space<vmem>>, vector<128x128xf32>
    %cst = arith.constant dense<0.000000e+00> : vector<32x128xf32>
    %2 = tpu.matmul %0, %1, %cst {dimension_numbers = #tpu.dot_dimension_numbers<[1], [0], [0], [1], [0, 0, 1, 1], [], []>} : vector<32x128xf32>, vector<128x128xf32>, vector<32x128xf32> -> vector<32x128xf32>
    %c0_3 = arith.constant 0 : index
    %c0_4 = arith.constant 0 : index
    %3 = vector.load %arg3[%c0_3, %c0_4] : memref<1x128xf32, #tpu.memory_space<vmem>>, vector<1x128xf32>
    %4 = vector.broadcast %3 : vector<1x128xf32> to vector<32x128xf32>
    %5 = arith.mulf %2, %4 : vector<32x128xf32>
    %c0_5 = arith.constant 0 : index
    %c0_6 = arith.constant 0 : index
    %6 = vector.load %arg4[%c0_5, %c0_6] : memref<1x128xf32, #tpu.memory_space<vmem>>, vector<1x128xf32>
    %7 = vector.broadcast %6 : vector<1x128xf32> to vector<32x128xf32>
    %8 = arith.addf %5, %7 : vector<32x128xf32>
    %c0_7 = arith.constant 0 : index
    %c0_8 = arith.constant 0 : index
    %9 = vector.load %arg5[%c0_7, %c0_8] : memref<32x128xf32, #tpu.memory_space<vmem>>, vector<32x128xf32>
    tpu.vector_store %arg5[%c0_7, %c0_8], %8 {strides = array<i32>} : memref<32x128xf32, #tpu.memory_space<vmem>>, vector<32x128xf32>,
    return
  }
  func.func @transform_0(%arg0: i32) -> (i32, i32) {
    %c0_i32 = arith.constant 0 : i32
    %c0_i32_0 = arith.constant 0 : i32
    return %arg0, %c0_i32 : i32, i32
  }
  func.func @transform_1(%arg0: i32) -> (i32, i32) {
    %c0_i32 = arith.constant 0 : i32
    %c0_i32_0 = arith.constant 0 : i32
    %c0_i32_1 = arith.constant 0 : i32
    return %c0_i32, %c0_i32_0 : i32, i32
  }
  func.func @transform_2(%arg0: i32) -> (i32, i32) {
    %c0_i32 = arith.constant 0 : i32
    %c0_i32_0 = arith.constant 0 : i32
    %c0_i32_1 = arith.constant 0 : i32
    return %c0_i32, %c0_i32_0 : i32, i32
  }
  func.func @transform_3(%arg0: i32) -> (i32, i32) {
    %c0_i32 = arith.constant 0 : i32
    %c0_i32_0 = arith.constant 0 : i32
    %c0_i32_1 = arith.constant 0 : i32
    return %c0_i32, %c0_i32_0 : i32, i32
  }
  func.func @transform_4(%arg0: i32) -> (i32, i32) {
    %c0_i32 = arith.constant 0 : i32
    %c0_i32_0 = arith.constant 0 : i32
    return %arg0, %c0_i32 : i32, i32
  }
}

module attributes {stable_mosaic.version = 11 : i64} {
  func.func @kernel(%arg0: i32, %arg1: memref<128x128xf32, #tpu.memory_space<vmem>>, %arg2: memref<128x128xf32, #tpu.memory_space<vmem>>, %arg3: memref<1x128xf32, #tpu.memory_space<vmem>>, %arg4: memref<1x128xf32, #tpu.memory_space<vmem>>, %arg5: memref<128x128xf32, #tpu.memory_space<vmem>>) attributes {dimension_semantics = [#tpu.dimension_semantics<parallel>], iteration_bounds = array<i64: 1>, scalar_prefetch = 0 : i64, scratch_operands = 0 : i64, tpu.core_type = #tpu.core_type<tc>, window_params = [{transform_indices = @transform_0, window_bounds = array<i64: 128, 128>}, {pipeline_mode = #tpu.pipeline_mode<synchronous>, transform_indices = @transform_1, window_bounds = array<i64: 128, 128>}, {pipeline_mode = #tpu.pipeline_mode<synchronous>, transform_indices = @transform_2, window_bounds = array<i64: 1, 128>}, {pipeline_mode = #tpu.pipeline_mode<synchronous>, transform_indices = @transform_3, window_bounds = array<i64: 1, 128>}, {transform_indices = @transform_4, window_bounds = array<i64: 128, 128>}]} {
    %c0 = arith.constant 0 : index
    %c0_0 = arith.constant 0 : index
    %0 = vector.load %arg1[%c0, %c0_0] : memref<128x128xf32, #tpu.memory_space<vmem>>, vector<128x128xf32>
    %c0_1 = arith.constant 0 : index
    %c0_2 = arith.constant 0 : index
    %1 = vector.load %arg2[%c0_1, %c0_2] : memref<128x128xf32, #tpu.memory_space<vmem>>, vector<128x128xf32>
    %cst = arith.constant dense<0.000000e+00> : vector<128x128xf32>
    %2 = tpu.matmul %0, %1, %cst {dimension_numbers = #tpu.dot_dimension_numbers<[1], [0], [0], [1], [0, 0, 1, 1], [], []>} : vector<128x128xf32>, vector<128x128xf32>, vector<128x128xf32> -> vector<128x128xf32>
    %c0_3 = arith.constant 0 : index
    %c0_4 = arith.constant 0 : index
    %3 = vector.load %arg3[%c0_3, %c0_4] : memref<1x128xf32, #tpu.memory_space<vmem>>, vector<1x128xf32>
    %4 = vector.broadcast %3 : vector<1x128xf32> to vector<128x128xf32>
    %5 = arith.mulf %2, %4 : vector<128x128xf32>
    %c0_5 = arith.constant 0 : index
    %c0_6 = arith.constant 0 : index
    %6 = vector.load %arg4[%c0_5, %c0_6] : memref<1x128xf32, #tpu.memory_space<vmem>>, vector<1x128xf32>
    %7 = vector.broadcast %6 : vector<1x128xf32> to vector<128x128xf32>
    %8 = arith.addf %5, %7 : vector<128x128xf32>
    %c0_7 = arith.constant 0 : index
    %c0_8 = arith.constant 0 : index
    %9 = vector.load %arg5[%c0_7, %c0_8] : memref<128x128xf32, #tpu.memory_space<vmem>>, vector<128x128xf32>
    tpu.vector_store %arg5[%c0_7, %c0_8], %8 {strides = array<i32>} : memref<128x128xf32, #tpu.memory_space<vmem>>, vector<128x128xf32>,
    return
  }
  func.func @transform_0(%arg0: i32) -> (i32, i32) {
    %c0_i32 = arith.constant 0 : i32
    %c0_i32_0 = arith.constant 0 : i32
    return %arg0, %c0_i32 : i32, i32
  }
  func.func @transform_1(%arg0: i32) -> (i32, i32) {
    %c0_i32 = arith.constant 0 : i32
    %c0_i32_0 = arith.constant 0 : i32
    %c0_i32_1 = arith.constant 0 : i32
    return %c0_i32, %c0_i32_0 : i32, i32
  }
  func.func @transform_2(%arg0: i32) -> (i32, i32) {
    %c0_i32 = arith.constant 0 : i32
    %c0_i32_0 = arith.constant 0 : i32
    %c0_i32_1 = arith.constant 0 : i32
    return %c0_i32, %c0_i32_0 : i32, i32
  }
  func.func @transform_3(%arg0: i32) -> (i32, i32) {
    %c0_i32 = arith.constant 0 : i32
    %c0_i32_0 = arith.constant 0 : i32
    %c0_i32_1 = arith.constant 0 : i32
    return %c0_i32, %c0_i32_0 : i32, i32
  }
  func.func @transform_4(%arg0: i32) -> (i32, i32) {
    %c0_i32 = arith.constant 0 : i32
    %c0_i32_0 = arith.constant 0 : i32
    return %arg0, %c0_i32 : i32, i32
  }
}

</mosaic_0001>

<llo_original>
// kernel: nb101_wrapper_forward.28
$region0: #{nb101_wrapper_forward.28}
  #allocation0 [shape = 'u32[]', space=smem, size = 0x4, offset = 0x4, fixed_abs, tag = 'smem constant byte address 0x4 - core index']
  #allocation1 [shape = 'u32[144,128]{1,0:T(1,128)}', space=vmem, size = 0x12000, scoped, tag = 'internal scratch']
  %s0 = inlined_call_operand.vmem [shape: f32[512,128], index: 0, kind: input, shape index: {}]
  %s1 = inlined_call_operand.vmem [shape: f32[128,128], index: 1, kind: input, shape index: {}]
  %s2 = inlined_call_operand.vmem [shape: f32[1,128], index: 2, kind: input, shape index: {}]
  %s3 = inlined_call_operand.vmem [shape: f32[1,128], index: 3, kind: input, shape index: {}]
  %s4 = inlined_call_operand.vmem [shape: f32[512,128], index: 4, kind: output, shape index: {}]
  %s5 = sld [smem:[#allocation0]]
  $region49: #{nb101_wrapper_forward.28} parent=0
    _
  %s7 = ssub.s32 1, %s5
  %s8 = scalar_select 0, %s7, %s5
  loop: start=0, step=1, limit=4
  $region2: #{nb101_wrapper_forward.28} parent=0 // loop_pre_header
    _
  $region3: #{nb101_wrapper_forward.28} parent=0 // loop_header
    %s10 = sphi 0, %s14
    %p11 = scmp.ge.s32.totalorder %s10, 4
    %s20 = sphi 0, %s22
    %s23 = sphi 0, %s20
    %s24 = sphi 0, %s23
    %s40 = sphi 0, %s24
    %s44 = sphi 0, %s44
    %s46 = sphi 0, %s44
    %s47 = sphi 0, %s46
    %s61 = sphi 0, %s47
    %s65 = sphi 0, %s65
    %s67 = sphi 0, %s65
    %s68 = sphi 0, %s67
    %s82 = sphi 0, %s68
    %s86 = sphi 0, %s86
    %s88 = sphi 0, %s86
    %s89 = sphi 0, %s88
    %s103 = sphi 0, %s89
    %s109 = sphi 0, %s111
    %s112 = sphi 0, %s109
    %s113 = sphi 0, %s112
    %s129 = sphi 0, %s113
  $region4: #{nb101_wrapper_forward.28} parent=0 // loop_header_branch
    %13 = sbr.rel (%p11) target = $region8
  $region5: #{nb101_wrapper_forward.28} parent=0 // loop_body
    %s15 = ssub.s32 %s10, 1
    %s16 = ssub.s32 %s10, 2
    %s17 = sadd.s32 %s10, 1
    %s18 = ssub.s32 %s10, %s17
    %p19 = scmp.eq.s32.totalorder %s18, 0
    %s21 = sadd.s32 %s20, 1
    %s22 = scalar_select %p19, %s20, %s21
    %p25 = pneg %p19
    %p26 = scmp.eq.s32.totalorder %s10, 1
    %p27 = por %p25, %p26
    %p28 = scmp.ne.s32.totalorder %s20, %s23
    %p29 = scmp.eq.s32.totalorder %s10, 0
    %p30 = por %p28, %p29
    %p31 = scmp.ne.s32.totalorder %s20, %s23
    %p32 = scmp.eq.s32.totalorder %s15, 1
    %p33 = por %p31, %p32
    %p34 = scmp.ne.s32.totalorder %s23, %s24
    %p35 = scmp.eq.s32.totalorder %s15, 0
    %p36 = por %p34, %p35
    %p37 = scmp.ne.s32.totalorder %s23, %s24
    %p38 = scmp.eq.s32.totalorder %s16, 1
    %p39 = por %p37, %p38
    %p41 = scmp.ne.s32.totalorder %s24, %s40
    %p42 = scmp.eq.s32.totalorder %s16, 0
    %p43 = por %p41, %p42
    %s45 = sadd.s32 %s44, 1
    %p48 = scmp.eq.s32.totalorder %s10, 1
    %p49 = scmp.ne.s32.totalorder %s44, %s46
    %p50 = scmp.eq.s32.totalorder %s10, 0
    %p51 = por %p49, %p50
    %p52 = scmp.ne.s32.totalorder %s44, %s46
    %p53 = scmp.eq.s32.totalorder %s15, 1
    %p54 = por %p52, %p53
    %p55 = scmp.ne.s32.totalorder %s46, %s47
    %p56 = scmp.eq.s32.totalorder %s15, 0
    %p57 = por %p55, %p56
    %p58 = scmp.ne.s32.totalorder %s46, %s47
    %p59 = scmp.eq.s32.totalorder %s16, 1
    %p60 = por %p58, %p59
    %p62 = scmp.ne.s32.totalorder %s47, %s61
    %p63 = scmp.eq.s32.totalorder %s16, 0
    %p64 = por %p62, %p63
    %s66 = sadd.s32 %s65, 1
    %p69 = scmp.eq.s32.totalorder %s10, 1
    %p70 = scmp.ne.s32.totalorder %s65, %s67
    %p71 = scmp.eq.s32.totalorder %s10, 0
    %p72 = por %p70, %p71
    %p73 = scmp.ne.s32.totalorder %s65, %s67
    %p74 = scmp.eq.s32.totalorder %s15, 1
    %p75 = por %p73, %p74
    %p76 = scmp.ne.s32.totalorder %s67, %s68
    %p77 = scmp.eq.s32.totalorder %s15, 0
    %p78 = por %p76, %p77
    %p79 = scmp.ne.s32.totalorder %s67, %s68
    %p80 = scmp.eq.s32.totalorder %s16, 1
    %p81 = por %p79, %p80
    %p83 = scmp.ne.s32.totalorder %s68, %s82
    %p84 = scmp.eq.s32.totalorder %s16, 0
    %p85 = por %p83, %p84
    %s87 = sadd.s32 %s86, 1
    %p90 = scmp.eq.s32.totalorder %s10, 1
    %p91 = scmp.ne.s32.totalorder %s86, %s88
    %p92 = scmp.eq.s32.totalorder %s10, 0
    %p93 = por %p91, %p92
    %p94 = scmp.ne.s32.totalorder %s86, %s88
    %p95 = scmp.eq.s32.totalorder %s15, 1
    %p96 = por %p94, %p95
    %p97 = scmp.ne.s32.totalorder %s88, %s89
    %p98 = scmp.eq.s32.totalorder %s15, 0
    %p99 = por %p97, %p98
    %p100 = scmp.ne.s32.totalorder %s88, %s89
    %p101 = scmp.eq.s32.totalorder %s16, 1
    %p102 = por %p100, %p101
    %p104 = scmp.ne.s32.totalorder %s89, %s103
    %p105 = scmp.eq.s32.totalorder %s16, 0
    %p106 = por %p104, %p105
    %s107 = ssub.s32 %s10, %s17
    %p108 = scmp.eq.s32.totalorder %s107, 0
    %s110 = sadd.s32 %s109, 1
    %s111 = scalar_select %p108, %s109, %s110
    %p114 = pneg %p108
    %p115 = scmp.eq.s32.totalorder %s10, 1
    %p116 = por %p114, %p115
    %p117 = scmp.ne.s32.totalorder %s109, %s112
    %p118 = scmp.eq.s32.totalorder %s10, 0
    %p119 = por %p117, %p118
    %p120 = scmp.ne.s32.totalorder %s109, %s112
    %p121 = scmp.eq.s32.totalorder %s15, 1
    %p122 = por %p120, %p121
    %p123 = scmp.ne.s32.totalorder %s112, %s113
    %p124 = scmp.eq.s32.totalorder %s15, 0
    %p125 = por %p123, %p124
    %p126 = scmp.ne.s32.totalorder %s112, %s113
    %p127 = scmp.eq.s32.totalorder %s16, 1
    %p128 = por %p126, %p127
    %p130 = scmp.ne.s32.totalorder %s113, %s129
    %p131 = scmp.eq.s32.totalorder %s16, 0
    %p132 = por %p130, %p131
    %p133 = scmp.le.s32.totalorder 1, %s10
    %p134 = scmp.lt.s32.totalorder %s10, 3
    %p135 = pnand %p133, %p134
    %p136 = pneg %p135
    // Predicated region
    $region9: #{nb101_wrapper_forward.28} parent=5 // pred_check
      _
    $region10: #{nb101_wrapper_forward.28} parent=5 // pred_check_branch
      %138 = sbr.rel (%p135) target = $region12
    $region11: #{nb101_wrapper_forward.28} parent=5 // pred_region
      %s139 = ssub.s32 %s10, 1
      // Predicated region
      $region13: #{nb101_wrapper_forward.28} parent=11 // pred_check
        %p140 = pneg %p57
      $region14: #{nb101_wrapper_forward.28} parent=11 // pred_check_branch
        %142 = sbr.rel (%p140) target = $region16
      $region15: #{nb101_wrapper_forward.28} parent=11 // pred_region
        _
      $region16: #{nb101_wrapper_forward.28} parent=11 // pred_fallthru
        _
      // Predicated region
      $region17: #{nb101_wrapper_forward.28} parent=11 // pred_check
        %p143 = pneg %p78
      $region18: #{nb101_wrapper_forward.28} parent=11 // pred_check_branch
        %145 = sbr.rel (%p143) target = $region20
      $region19: #{nb101_wrapper_forward.28} parent=11 // pred_region
        _
      $region20: #{nb101_wrapper_forward.28} parent=11 // pred_fallthru
        _
      // Predicated region
      $region21: #{nb101_wrapper_forward.28} parent=11 // pred_check
        %p146 = pneg %p99
      $region22: #{nb101_wrapper_forward.28} parent=11 // pred_check_branch
        %148 = sbr.rel (%p146) target = $region24
      $region23: #{nb101_wrapper_forward.28} parent=11 // pred_region
        _
      $region24: #{nb101_wrapper_forward.28} parent=11 // pred_fallthru
        _
    $region12: #{nb101_wrapper_forward.28} parent=5 // pred_fallthru
      _
    %p149 = scmp.lt.s32.totalorder %s10, 2
    // Predicated region
    $region25: #{nb101_wrapper_forward.28} parent=5 // pred_check
      %p150 = pneg %p149
    $region26: #{nb101_wrapper_forward.28} parent=5 // pred_check_branch
      %152 = sbr.rel (%p150) target = $region28
    $region27: #{nb101_wrapper_forward.28} parent=5 // pred_region
      // Predicated region
      $region29: #{nb101_wrapper_forward.28} parent=27 // pred_check
        %p153 = pneg %p30
      $region30: #{nb101_wrapper_forward.28} parent=27 // pred_check_branch
        %155 = sbr.rel (%p153) target = $region32
      $region31: #{nb101_wrapper_forward.28} parent=27 // pred_region
        %s156 = smul.u32 32, %s10
        %p157 = scmp.lt.s32.totalorder %s156, 63
        %s158 = scalar_select %p157, %s156, 63
        %s159 = smul.addr %s158, 8
        %s160 = scalar_lea.vmem %s0, %s159
        %s161 = smul.u32 32, %s10
      $region32: #{nb101_wrapper_forward.28} parent=27 // pred_fallthru
        _
    $region28: #{nb101_wrapper_forward.28} parent=5 // pred_fallthru
      _
    %p162 = scmp.le.s32.totalorder 1, %s10
    %p163 = scmp.lt.s32.totalorder %s10, 3
    %p164 = pnand %p162, %p163
    %p165 = pneg %p164
    // Predicated region
    $region33: #{nb101_wrapper_forward.28} parent=5 // pred_check
      _
    $region34: #{nb101_wrapper_forward.28} parent=5 // pred_check_branch
      %167 = sbr.rel (%p164) target = $region36
    $region35: #{nb101_wrapper_forward.28} parent=5 // pred_region
      %s168 = ssub.s32 %s10, 1
      %s169 = smul.u32 32, %s15
      %p170 = scmp.lt.s32.totalorder %s169, 63
      %s171 = scalar_select %p170, %s169, 63
      %s172 = smul.addr %s171, 8
      %s173 = scalar_lea.vmem %s0, %s172
      %p174 = pneg %p36
      %p175 = pneg %p33
      %p176 = pneg %p57
      %p177 = pneg %p54
      %p178 = pneg %p78
      %p179 = pneg %p75
      %p180 = pneg %p99
      %p181 = pneg %p96
      %p182 = pneg %p125
      %p183 = pneg %p122
      %s184 = smul.u32 32, %s15
      %p185 = scmp.lt.s32.totalorder %s184, 63
      %s186 = scalar_select %p185, %s184, 63
      %s187 = smul.addr %s186, 8
      %s188 = scalar_lea.vmem %s4, %s187
      %s189 = smul.u32 32, %s15
      %p190 = scmp.lt.s32.totalorder %s189, 63
      %s191 = scalar_select %p190, %s189, 63
      %s192 = smul.addr %s191, 8
      %s193 = scalar_lea.vmem %s0, %s192
      %s194 = smul.u32 32, %s15
      %s195 = smul.u32 32, %s15
      %p196 = scmp.lt.s32.totalorder %s195, 63
      %s197 = scalar_select %p196, %s195, 63
      %s198 = smul.addr %s197, 8
      %s199 = scalar_lea.vmem %s4, %s198
      %s200 = smul.u32 32, %s15
      %v201 = vld [vmem:[%s193] sm:$0xff]
      %v202 = vld [vmem:[%s193 + $0x8] sm:$0xff]
      %v203 = vld [vmem:[%s193 + $0x10] sm:$0xff]
      %v204 = vld [vmem:[%s193 + $0x18] sm:$0xff]
      %v205 = vld [vmem:[%s193 + $0x20] sm:$0xff]
      %v206 = vld [vmem:[%s193 + $0x28] sm:$0xff]
      %v207 = vld [vmem:[%s193 + $0x30] sm:$0xff]
      %v208 = vld [vmem:[%s193 + $0x38] sm:$0xff]
      %v209 = vld [vmem:[%s193 + $0x40] sm:$0xff]
      %v210 = vld [vmem:[%s193 + $0x48] sm:$0xff]
      %v211 = vld [vmem:[%s193 + $0x50] sm:$0xff]
      %v212 = vld [vmem:[%s193 + $0x58] sm:$0xff]
      %v213 = vld [vmem:[%s193 + $0x60] sm:$0xff]
      %v214 = vld [vmem:[%s193 + $0x68] sm:$0xff]
      %v215 = vld [vmem:[%s193 + $0x70] sm:$0xff]
      %v216 = vld [vmem:[%s193 + $0x78] sm:$0xff]
      %v217 = vld [vmem:[%s193 + $0x80] sm:$0xff]
      %v218 = vld [vmem:[%s193 + $0x88] sm:$0xff]
      %v219 = vld [vmem:[%s193 + $0x90] sm:$0xff]
      %v220 = vld [vmem:[%s193 + $0x98] sm:$0xff]
      %v221 = vld [vmem:[%s193 + $0xa0] sm:$0xff]
      %v222 = vld [vmem:[%s193 + $0xa8] sm:$0xff]
      %v223 = vld [vmem:[%s193 + $0xb0] sm:$0xff]
      %v224 = vld [vmem:[%s193 + $0xb8] sm:$0xff]
      %v225 = vld [vmem:[%s193 + $0xc0] sm:$0xff]
      %v226 = vld [vmem:[%s193 + $0xc8] sm:$0xff]
      %v227 = vld [vmem:[%s193 + $0xd0] sm:$0xff]
      %v228 = vld [vmem:[%s193 + $0xd8] sm:$0xff]
      %v229 = vld [vmem:[%s193 + $0xe0] sm:$0xff]
      %v230 = vld [vmem:[%s193 + $0xe8] sm:$0xff]
      %v231 = vld [vmem:[%s193 + $0xf0] sm:$0xff]
      %v232 = vld [vmem:[%s193 + $0xf8] sm:$0xff]
      %v233 = vld [vmem:[%s1] sm:$0xff]
      %v234 = vld [vmem:[%s1 + $0x8] sm:$0xff]
      %v235 = vld [vmem:[%s1 + $0x10] sm:$0xff]
      %v236 = vld [vmem:[%s1 + $0x18] sm:$0xff]
      %v237 = vld [vmem:[%s1 + $0x20] sm:$0xff]
      %v238 = vld [vmem:[%s1 + $0x28] sm:$0xff]
      %v239 = vld [vmem:[%s1 + $0x30] sm:$0xff]
      %v240 = vld [vmem:[%s1 + $0x38] sm:$0xff]
      %v241 = vld [vmem:[%s1 + $0x40] sm:$0xff]
      %v242 = vld [vmem:[%s1 + $0x48] sm:$0xff]
      %v243 = vld [vmem:[%s1 + $0x50] sm:$0xff]
      %v244 = vld [vmem:[%s1 + $0x58] sm:$0xff]
      %v245 = vld [vmem:[%s1 + $0x60] sm:$0xff]
      %v246 = vld [vmem:[%s1 + $0x68] sm:$0xff]
      %v247 = vld [vmem:[%s1 + $0x70] sm:$0xff]
      %v248 = vld [vmem:[%s1 + $0x78] sm:$0xff]
      %249 = vmatprep.subr.mxu0 0.0
      %250 = vmatpush1.msra.mxu0 %v233
      %251 = vmatprep.subr.mxu0 0.0
      %252 = vmatpush1.msra.mxu0 %v234
      %253 = vmatprep.subr.mxu0 0.0
      %254 = vmatpush1.msra.mxu0 %v235
      %255 = vmatprep.subr.mxu0 0.0
      %256 = vmatpush1.msra.mxu0 %v236
      %257 = vmatprep.subr.mxu0 0.0
      %258 = vmatpush1.msra.mxu0 %v237
      %259 = vmatprep.subr.mxu0 0.0
      %260 = vmatpush1.msra.mxu0 %v238
      %261 = vmatprep.subr.mxu0 0.0
      %262 = vmatpush1.msra.mxu0 %v239
      %263 = vmatprep.subr.mxu0 0.0
      %264 = vmatpush1.msra.mxu0 %v240
      %265 = vmatprep.subr.mxu0 0.0
      %266 = vmatpush1.msra.mxu0 %v241
      %267 = vmatprep.subr.mxu0 0.0
      %268 = vmatpush1.msra.mxu0 %v242
      %269 = vmatprep.subr.mxu0 0.0
      %270 = vmatpush1.msra.mxu0 %v243
      %271 = vmatprep.subr.mxu0 0.0
      %272 = vmatpush1.msra.mxu0 %v244
      %273 = vmatprep.subr.mxu0 0.0
      %274 = vmatpush1.msra.mxu0 %v245
      %275 = vmatprep.subr.mxu0 0.0
      %276 = vmatpush1.msra.mxu0 %v246
      %277 = vmatprep.subr.mxu0 0.0
      %278 = vmatpush1.msra.mxu0 %v247
      %279 = vmatprep.subr.mxu0 0.0
      %280 = vmatpush1.msra.mxu0 %v248
      %281 = vmatprep.subr.mxu0 0.0
      %282 = vmatpush1.msra.mxu0 0.0
      %283 = vmatprep.subr.mxu0 0.0
      %284 = vmatpush1.msra.mxu0 0.0
      %285 = vmatprep.subr.mxu0 0.0
      %286 = vmatpush1.msra.mxu0 0.0
      %287 = vmatprep.subr.mxu0 0.0
      %288 = vmatpush1.msra.mxu0 0.0
      %289 = vmatprep.subr.mxu0 0.0
      %290 = vmatpush1.msra.mxu0 0.0
      %291 = vmatprep.subr.mxu0 0.0
      %292 = vmatpush1.msra.mxu0 0.0
      %293 = vmatprep.subr.mxu0 0.0
      %294 = vmatpush1.msra.mxu0 0.0
      %295 = vmatprep.subr.mxu0 0.0
      %296 = vmatpush1.msra.mxu0 0.0
      %297 = vmatprep.subr.mxu0 0.0
      %298 = vmatpush1.msra.mxu0 0.0
      %299 = vmatprep.subr.mxu0 0.0
      %300 = vmatpush1.msra.mxu0 0.0
      %301 = vmatprep.subr.mxu0 0.0
      %302 = vmatpush1.msra.mxu0 0.0
      %303 = vmatprep.subr.mxu0 0.0
      %304 = vmatpush1.msra.mxu0 0.0
      %305 = vmatprep.subr.mxu0 0.0
      %306 = vmatpush1.msra.mxu0 0.0
      %307 = vmatprep.subr.mxu0 0.0
      %308 = vmatpush1.msra.mxu0 0.0
      %309 = vmatprep.subr.mxu0 0.0
      %310 = vmatpush1.msra.mxu0 0.0
      %311 = vmatprep.subr.mxu0 0.0
      %312 = vmatpush1.msra.mxu0 0.0
      %313 = vmatprep.mubr.f32.mxu0 0.0
      %314 = vmatmul.mubr.f32.gmra.mrb[0].mxu0 %v201
      %v315 = vpop.f32.mrb[0].mxu0
      %v316 = vadd.f32 0.0, %v315
      %v317 = vpop.f32.mrb[0].mxu0
      %318 = vmatprep.mubr.f32.mxu0 0.0
      %319 = vmatmul.mubr.f32.gmra.mrb[0].mxu0 %v202
      %v320 = vpop.f32.mrb[0].mxu0
      %v321 = vadd.f32 0.0, %v320
      %v322 = vpop.f32.mrb[0].mxu0
      %323 = vmatprep.mubr.f32.mxu0 0.0
      %324 = vmatmul.mubr.f32.gmra.mrb[0].mxu0 %v203
      %v325 = vpop.f32.mrb[0].mxu0
      %v326 = vadd.f32 0.0, %v325
      %v327 = vpop.f32.mrb[0].mxu0
      %328 = vmatprep.mubr.f32.mxu0 0.0
      %329 = vmatmul.mubr.f32.gmra.mrb[0].mxu0 %v204
      %v330 = vpop.f32.mrb[0].mxu0
      %v331 = vadd.f32 0.0, %v330
      %v332 = vpop.f32.mrb[0].mxu0
      %333 = vmatprep.mubr.f32.mxu0 0.0
      %334 = vmatmul.mubr.f32.gmra.mrb[0].mxu0 %v205
      %v335 = vpop.f32.mrb[0].mxu0
      %v336 = vadd.f32 0.0, %v335
      %v337 = vpop.f32.mrb[0].mxu0
      %338 = vmatprep.mubr.f32.mxu0 0.0
      %339 = vmatmul.mubr.f32.gmra.mrb[0].mxu0 %v206
      %v340 = vpop.f32.mrb[0].mxu0
      %v341 = vadd.f32 0.0, %v340
      %v342 = vpop.f32.mrb[0].mxu0
      %343 = vmatprep.mubr.f32.mxu0 0.0
      %344 = vmatmul.mubr.f32.gmra.mrb[0].mxu0 %v207
      %v345 = vpop.f32.mrb[0].mxu0
      %v346 = vadd.f32 0.0, %v345
      %v347 = vpop.f32.mrb[0].mxu0
      %348 = vmatprep.mubr.f32.mxu0 0.0
      %349 = vmatmul.mubr.f32.gmra.mrb[0].mxu0 %v208
      %v350 = vpop.f32.mrb[0].mxu0
      %v351 = vadd.f32 0.0, %v350
      %v352 = vpop.f32.mrb[0].mxu0
      %353 = vmatprep.mubr.f32.mxu0 0.0
      %354 = vmatmul.mubr.f32.gmra.mrb[0].mxu0 %v209
      %v355 = vpop.f32.mrb[0].mxu0
      %v356 = vadd.f32 0.0, %v355
      %v357 = vpop.f32.mrb[0].mxu0
      %358 = vmatprep.mubr.f32.mxu0 0.0
      %359 = vmatmul.mubr.f32.gmra.mrb[0].mxu0 %v210
      %v360 = vpop.f32.mrb[0].mxu0
      %v361 = vadd.f32 0.0, %v360
      %v362 = vpop.f32.mrb[0].mxu0
      %363 = vmatprep.mubr.f32.mxu0 0.0
      %364 = vmatmul.mubr.f32.gmra.mrb[0].mxu0 %v211
      %v365 = vpop.f32.mrb[0].mxu0
      %v366 = vadd.f32 0.0, %v365
      %v367 = vpop.f32.mrb[0].mxu0
      %368 = vmatprep.mubr.f32.mxu0 0.0
      %369 = vmatmul.mubr.f32.gmra.mrb[0].mxu0 %v212
      %v370 = vpop.f32.mrb[0].mxu0
      %v371 = vadd.f32 0.0, %v370
      %v372 = vpop.f32.mrb[0].mxu0
      %373 = vmatprep.mubr.f32.mxu0 0.0
      %374 = vmatmul.mubr.f32.gmra.mrb[0].mxu0 %v213
      %v375 = vpop.f32.mrb[0].mxu0
      %v376 = vadd.f32 0.0, %v375
      %v377 = vpop.f32.mrb[0].mxu0
      %378 = vmatprep.mubr.f32.mxu0 0.0
      %379 = vmatmul.mubr.f32.gmra.mrb[0].mxu0 %v214
      %v380 = vpop.f32.mrb[0].mxu0
      %v381 = vadd.f32 0.0, %v380
      %v382 = vpop.f32.mrb[0].mxu0
      %383 = vmatprep.mubr.f32.mxu0 0.0
      %384 = vmatmul.mubr.f32.gmra.mrb[0].mxu0 %v215
      %v385 = vpop.f32.mrb[0].mxu0
      %v386 = vadd.f32 0.0, %v385
      %v387 = vpop.f32.mrb[0].mxu0
      %388 = vmatprep.mubr.f32.mxu0 0.0
      %389 = vmatmul.mubr.f32.gmra.mrb[0].mxu0 %v216
      %v390 = vpop.f32.mrb[0].mxu0
      %v391 = vadd.f32 0.0, %v390
      %v392 = vpop.f32.mrb[0].mxu0
      %393 = vmatprep.mubr.f32.mxu0 0.0
      %394 = vmatmul.mubr.f32.gmra.mrb[0].mxu0 %v217
      %v395 = vpop.f32.mrb[0].mxu0
      %v396 = vadd.f32 0.0, %v395
      %v397 = vpop.f32.mrb[0].mxu0
      %398 = vmatprep.mubr.f32.mxu0 0.0
      %399 = vmatmul.mubr.f32.gmra.mrb[0].mxu0 %v218
      %v400 = vpop.f32.mrb[0].mxu0
      %v401 = vadd.f32 0.0, %v400
      %v402 = vpop.f32.mrb[0].mxu0
      %403 = vmatprep.mubr.f32.mxu0 0.0
      %404 = vmatmul.mubr.f32.gmra.mrb[0].mxu0 %v219
      %v405 = vpop.f32.mrb[0].mxu0
      %v406 = vadd.f32 0.0, %v405
      %v407 = vpop.f32.mrb[0].mxu0
      %408 = vmatprep.mubr.f32.mxu0 0.0
      %409 = vmatmul.mubr.f32.gmra.mrb[0].mxu0 %v220
      %v410 = vpop.f32.mrb[0].mxu0
      %v411 = vadd.f32 0.0, %v410
      %v412 = vpop.f32.mrb[0].mxu0
      %413 = vmatprep.mubr.f32.mxu0 0.0
      %414 = vmatmul.mubr.f32.gmra.mrb[0].mxu0 %v221
      %v415 = vpop.f32.mrb[0].mxu0
      %v416 = vadd.f32 0.0, %v415
      %v417 = vpop.f32.mrb[0].mxu0
      %418 = vmatprep.mubr.f32.mxu0 0.0
      %419 = vmatmul.mubr.f32.gmra.mrb[0].mxu0 %v222
      %v420 = vpop.f32.mrb[0].mxu0
      %v421 = vadd.f32 0.0, %v420
      %v422 = vpop.f32.mrb[0].mxu0
      %423 = vmatprep.mubr.f32.mxu0 0.0
      %424 = vmatmul.mubr.f32.gmra.mrb[0].mxu0 %v223
      %v425 = vpop.f32.mrb[0].mxu0
      %v426 = vadd.f32 0.0, %v425
      %v427 = vpop.f32.mrb[0].mxu0
      %428 = vmatprep.mubr.f32.mxu0 0.0
      %429 = vmatmul.mubr.f32.gmra.mrb[0].mxu0 %v224
      %v430 = vpop.f32.mrb[0].mxu0
      %v431 = vadd.f32 0.0, %v430
      %v432 = vpop.f32.mrb[0].mxu0
      %433 = vmatprep.mubr.f32.mxu0 0.0
      %434 = vmatmul.mubr.f32.gmra.mrb[0].mxu0 %v225
      %v435 = vpop.f32.mrb[0].mxu0
      %v436 = vadd.f32 0.0, %v435
      %v437 = vpop.f32.mrb[0].mxu0
      %438 = vmatprep.mubr.f32.mxu0 0.0
      %439 = vmatmul.mubr.f32.gmra.mrb[0].mxu0 %v226
      %v440 = vpop.f32.mrb[0].mxu0
      %v441 = vadd.f32 0.0, %v440
      %v442 = vpop.f32.mrb[0].mxu0
      %443 = vmatprep.mubr.f32.mxu0 0.0
      %444 = vmatmul.mubr.f32.gmra.mrb[0].mxu0 %v227
      %v445 = vpop.f32.mrb[0].mxu0
      %v446 = vadd.f32 0.0, %v445
      %v447 = vpop.f32.mrb[0].mxu0
      %448 = vmatprep.mubr.f32.mxu0 0.0
      %449 = vmatmul.mubr.f32.gmra.mrb[0].mxu0 %v228
      %v450 = vpop.f32.mrb[0].mxu0
      %v451 = vadd.f32 0.0, %v450
      %v452 = vpop.f32.mrb[0].mxu0
      %453 = vmatprep.mubr.f32.mxu0 0.0
      %454 = vmatmul.mubr.f32.gmra.mrb[0].mxu0 %v229
      %v455 = vpop.f32.mrb[0].mxu0
      %v456 = vadd.f32 0.0, %v455
      %v457 = vpop.f32.mrb[0].mxu0
      %458 = vmatprep.mubr.f32.mxu0 0.0
      %459 = vmatmul.mubr.f32.gmra.mrb[0].mxu0 %v230
      %v460 = vpop.f32.mrb[0].mxu0
      %v461 = vadd.f32 0.0, %v460
      %v462 = vpop.f32.mrb[0].mxu0
      %463 = vmatprep.mubr.f32.mxu0 0.0
      %464 = vmatmul.mubr.f32.gmra.mrb[0].mxu0 %v231
      %v465 = vpop.f32.mrb[0].mxu0
      %v466 = vadd.f32 0.0, %v465
      %v467 = vpop.f32.mrb[0].mxu0
      %468 = vmatprep.mubr.f32.mxu0 0.0
      %469 = vmatmul.mubr.f32.gmra.mrb[0].mxu0 %v232
      %v470 = vpop.f32.mrb[0].mxu0
      %v471 = vadd.f32 0.0, %v470
      %v472 = vpop.f32.mrb[0].mxu0
      %473 = vdwg.mxu0
      %v474 = vld [vmem:[%s2] sm:$0x1]
      %v476 = vlaneseq
      %v477 = vshrl.u32 %v476, 7
      %v478 = vsub.s32 0, %v477
      %v479 = vrot.slane %v474, %v478
      %v481 = vmul.f32 %v316, %v479
      %v482 = vmul.f32 %v321, %v479
      %v483 = vmul.f32 %v326, %v479
      %v484 = vmul.f32 %v331, %v479
      %v485 = vmul.f32 %v336, %v479
      %v486 = vmul.f32 %v341, %v479
      %v487 = vmul.f32 %v346, %v479
      %v488 = vmul.f32 %v351, %v479
      %v489 = vmul.f32 %v356, %v479
      %v490 = vmul.f32 %v361, %v479
      %v491 = vmul.f32 %v366, %v479
      %v492 = vmul.f32 %v371, %v479
      %v493 = vmul.f32 %v376, %v479
      %v494 = vmul.f32 %v381, %v479
      %v495 = vmul.f32 %v386, %v479
      %v496 = vmul.f32 %v391, %v479
      %v497 = vmul.f32 %v396, %v479
      %v498 = vmul.f32 %v401, %v479
      %v499 = vmul.f32 %v406, %v479
      %v500 = vmul.f32 %v411, %v479
      %v501 = vmul.f32 %v416, %v479
      %v502 = vmul.f32 %v421, %v479
      %v503 = vmul.f32 %v426, %v479
      %v504 = vmul.f32 %v431, %v479
      %v505 = vmul.f32 %v436, %v479
      %v506 = vmul.f32 %v441, %v479
      %v507 = vmul.f32 %v446, %v479
      %v508 = vmul.f32 %v451, %v479
      %v509 = vmul.f32 %v456, %v479
      %v510 = vmul.f32 %v461, %v479
      %v511 = vmul.f32 %v466, %v479
      %v512 = vmul.f32 %v471, %v479
      %v513 = vld [vmem:[%s3] sm:$0x1]
      %v515 = vlaneseq
      %v516 = vshrl.u32 %v515, 7
      %v517 = vsub.s32 0, %v516
      %v518 = vrot.slane %v513, %v517
      %v520 = vadd.f32 %v481, %v518
      %v521 = vadd.f32 %v482, %v518
      %v522 = vadd.f32 %v483, %v518
      %v523 = vadd.f32 %v484, %v518
      %v524 = vadd.f32 %v485, %v518
      %v525 = vadd.f32 %v486, %v518
      %v526 = vadd.f32 %v487, %v518
      %v527 = vadd.f32 %v488, %v518
      %v528 = vadd.f32 %v489, %v518
      %v529 = vadd.f32 %v490, %v518
      %v530 = vadd.f32 %v491, %v518
      %v531 = vadd.f32 %v492, %v518
      %v532 = vadd.f32 %v493, %v518
      %v533 = vadd.f32 %v494, %v518
      %v534 = vadd.f32 %v495, %v518
      %v535 = vadd.f32 %v496, %v518
      %v536 = vadd.f32 %v497, %v518
      %v537 = vadd.f32 %v498, %v518
      %v538 = vadd.f32 %v499, %v518
      %v539 = vadd.f32 %v500, %v518
      %v540 = vadd.f32 %v501, %v518
      %v541 = vadd.f32 %v502, %v518
      %v542 = vadd.f32 %v503, %v518
      %v543 = vadd.f32 %v504, %v518
      %v544 = vadd.f32 %v505, %v518
      %v545 = vadd.f32 %v506, %v518
      %v546 = vadd.f32 %v507, %v518
      %v547 = vadd.f32 %v508, %v518
      %v548 = vadd.f32 %v509, %v518
      %v549 = vadd.f32 %v510, %v518
      %v550 = vadd.f32 %v511, %v518
      %v551 = vadd.f32 %v512, %v518
      %v552 = vmax.f32 %v520, 0.0
      %v553 = vmax.f32 %v521, 0.0
      %v554 = vmax.f32 %v522, 0.0
      %v555 = vmax.f32 %v523, 0.0
      %v556 = vmax.f32 %v524, 0.0
      %v557 = vmax.f32 %v525, 0.0
      %v558 = vmax.f32 %v526, 0.0
      %v559 = vmax.f32 %v527, 0.0
      %v560 = vmax.f32 %v528, 0.0
      %v561 = vmax.f32 %v529, 0.0
      %v562 = vmax.f32 %v530, 0.0
      %v563 = vmax.f32 %v531, 0.0
      %v564 = vmax.f32 %v532, 0.0
      %v565 = vmax.f32 %v533, 0.0
      %v566 = vmax.f32 %v534, 0.0
      %v567 = vmax.f32 %v535, 0.0
      %v568 = vmax.f32 %v536, 0.0
      %v569 = vmax.f32 %v537, 0.0
      %v570 = vmax.f32 %v538, 0.0
      %v571 = vmax.f32 %v539, 0.0
      %v572 = vmax.f32 %v540, 0.0
      %v573 = vmax.f32 %v541, 0.0
      %v574 = vmax.f32 %v542, 0.0
      %v575 = vmax.f32 %v543, 0.0
      %v576 = vmax.f32 %v544, 0.0
      %v577 = vmax.f32 %v545, 0.0
      %v578 = vmax.f32 %v546, 0.0
      %v579 = vmax.f32 %v547, 0.0
      %v580 = vmax.f32 %v548, 0.0
      %v581 = vmax.f32 %v549, 0.0
      %v582 = vmax.f32 %v550, 0.0
      %v583 = vmax.f32 %v551, 0.0
      %584 = vst [vmem:[%s199] sm:$0xff] %v552
      %585 = vst [vmem:[%s199 + $0x8] sm:$0xff] %v553
      %586 = vst [vmem:[%s199 + $0x10] sm:$0xff] %v554
      %587 = vst [vmem:[%s199 + $0x18] sm:$0xff] %v555
      %588 = vst [vmem:[%s199 + $0x20] sm:$0xff] %v556
      %589 = vst [vmem:[%s199 + $0x28] sm:$0xff] %v557
      %590 = vst [vmem:[%s199 + $0x30] sm:$0xff] %v558
      %591 = vst [vmem:[%s199 + $0x38] sm:$0xff] %v559
      %592 = vst [vmem:[%s199 + $0x40] sm:$0xff] %v560
      %593 = vst [vmem:[%s199 + $0x48] sm:$0xff] %v561
      %594 = vst [vmem:[%s199 + $0x50] sm:$0xff] %v562
      %595 = vst [vmem:[%s199 + $0x58] sm:$0xff] %v563
      %596 = vst [vmem:[%s199 + $0x60] sm:$0xff] %v564
      %597 = vst [vmem:[%s199 + $0x68] sm:$0xff] %v565
      %598 = vst [vmem:[%s199 + $0x70] sm:$0xff] %v566
      %599 = vst [vmem:[%s199 + $0x78] sm:$0xff] %v567
      %600 = vst [vmem:[%s199 + $0x80] sm:$0xff] %v568
      %601 = vst [vmem:[%s199 + $0x88] sm:$0xff] %v569
      %602 = vst [vmem:[%s199 + $0x90] sm:$0xff] %v570
      %603 = vst [vmem:[%s199 + $0x98] sm:$0xff] %v571
      %604 = vst [vmem:[%s199 + $0xa0] sm:$0xff] %v572
      %605 = vst [vmem:[%s199 + $0xa8] sm:$0xff] %v573
      %606 = vst [vmem:[%s199 + $0xb0] sm:$0xff] %v574
      %607 = vst [vmem:[%s199 + $0xb8] sm:$0xff] %v575
      %608 = vst [vmem:[%s199 + $0xc0] sm:$0xff] %v576
      %609 = vst [vmem:[%s199 + $0xc8] sm:$0xff] %v577
      %610 = vst [vmem:[%s199 + $0xd0] sm:$0xff] %v578
      %611 = vst [vmem:[%s199 + $0xd8] sm:$0xff] %v579
      %612 = vst [vmem:[%s199 + $0xe0] sm:$0xff] %v580
      %613 = vst [vmem:[%s199 + $0xe8] sm:$0xff] %v581
      %614 = vst [vmem:[%s199 + $0xf0] sm:$0xff] %v582
      %615 = vst [vmem:[%s199 + $0xf8] sm:$0xff] %v583
      %s616 = smul.u32 32, %s15
      %p617 = scmp.lt.s32.totalorder %s616, 63
      %s618 = scalar_select %p617, %s616, 63
      %s619 = smul.addr %s618, 8
      %s620 = scalar_lea.vmem %s4, %s619
      // Predicated region
      $region37: #{nb101_wrapper_forward.28} parent=35 // pred_check
        %p621 = pneg %p122
      $region38: #{nb101_wrapper_forward.28} parent=35 // pred_check_branch
        %623 = sbr.rel (%p621) target = $region40
      $region39: #{nb101_wrapper_forward.28} parent=35 // pred_region
        %s624 = smul.u32 32, %s15
      $region40: #{nb101_wrapper_forward.28} parent=35 // pred_fallthru
        _
    $region36: #{nb101_wrapper_forward.28} parent=5 // pred_fallthru
      _
    %p625 = scmp.le.s32.totalorder 2, %s10
    // Predicated region
    $region41: #{nb101_wrapper_forward.28} parent=5 // pred_check
      %p626 = pneg %p625
    $region42: #{nb101_wrapper_forward.28} parent=5 // pred_check_branch
      %628 = sbr.rel (%p626) target = $region44
    $region43: #{nb101_wrapper_forward.28} parent=5 // pred_region
      %s629 = ssub.s32 %s10, 2
      // Predicated region
      $region45: #{nb101_wrapper_forward.28} parent=43 // pred_check
        %p630 = pneg %p128
      $region46: #{nb101_wrapper_forward.28} parent=43 // pred_check_branch
        %632 = sbr.rel (%p630) target = $region48
      $region47: #{nb101_wrapper_forward.28} parent=43 // pred_region
        %s633 = smul.u32 32, %s16
        %p634 = scmp.lt.s32.totalorder %s633, 63
        %s635 = scalar_select %p634, %s633, 63
        %s636 = smul.addr %s635, 8
        %s637 = scalar_lea.vmem %s4, %s636
      $region48: #{nb101_wrapper_forward.28} parent=43 // pred_fallthru
        _
    $region44: #{nb101_wrapper_forward.28} parent=5 // pred_fallthru
      _
  $region6: #{nb101_wrapper_forward.28} parent=0 // loop_footer
    %s14 = sadd.s32 1, %s10
  $region7: #{nb101_wrapper_forward.28} parent=0 // loop_footer_branch
    %9 = sbr.rel target = $region3
  $region8: #{nb101_wrapper_forward.28} parent=0 // loop_exit
    _

// kernel: nb101_wrapper_forward.27
$region0: #{nb101_wrapper_forward.27}
  #allocation0 [shape = 'u32[]', space=smem, size = 0x4, offset = 0x4, fixed_abs, tag = 'smem constant byte address 0x4 - core index']
  #allocation1 [shape = 'u32[144,128]{1,0:T(1,128)}', space=vmem, size = 0x12000, scoped, tag = 'internal scratch']
  %s0 = inlined_call_operand.vmem [shape: f32[512,27], index: 0, kind: input, shape index: {}]
  %s1 = inlined_call_operand.vmem [shape: f32[27,128], index: 1, kind: input, shape index: {}]
  %s2 = inlined_call_operand.vmem [shape: f32[1,128], index: 2, kind: input, shape index: {}]
  %s3 = inlined_call_operand.vmem [shape: f32[1,128], index: 3, kind: input, shape index: {}]
  %s4 = inlined_call_operand.vmem [shape: f32[512,128], index: 4, kind: output, shape index: {}]
  %s5 = sld [smem:[#allocation0]]
  $region49: #{nb101_wrapper_forward.27} parent=0
    _
  %s7 = ssub.s32 1, %s5
  %s8 = scalar_select 0, %s7, %s5
  loop: start=0, step=1, limit=4
  $region2: #{nb101_wrapper_forward.27} parent=0 // loop_pre_header
    _
  $region3: #{nb101_wrapper_forward.27} parent=0 // loop_header
    %s10 = sphi 0, %s14
    %p11 = scmp.ge.s32.totalorder %s10, 4
    %s20 = sphi 0, %s22
    %s23 = sphi 0, %s20
    %s24 = sphi 0, %s23
    %s40 = sphi 0, %s24
    %s44 = sphi 0, %s44
    %s46 = sphi 0, %s44
    %s47 = sphi 0, %s46
    %s61 = sphi 0, %s47
    %s65 = sphi 0, %s65
    %s67 = sphi 0, %s65
    %s68 = sphi 0, %s67
    %s82 = sphi 0, %s68
    %s86 = sphi 0, %s86
    %s88 = sphi 0, %s86
    %s89 = sphi 0, %s88
    %s103 = sphi 0, %s89
    %s109 = sphi 0, %s111
    %s112 = sphi 0, %s109
    %s113 = sphi 0, %s112
    %s129 = sphi 0, %s113
  $region4: #{nb101_wrapper_forward.27} parent=0 // loop_header_branch
    %13 = sbr.rel (%p11) target = $region8
  $region5: #{nb101_wrapper_forward.27} parent=0 // loop_body
    %s15 = ssub.s32 %s10, 1
    %s16 = ssub.s32 %s10, 2
    %s17 = sadd.s32 %s10, 1
    %s18 = ssub.s32 %s10, %s17
    %p19 = scmp.eq.s32.totalorder %s18, 0
    %s21 = sadd.s32 %s20, 1
    %s22 = scalar_select %p19, %s20, %s21
    %p25 = pneg %p19
    %p26 = scmp.eq.s32.totalorder %s10, 1
    %p27 = por %p25, %p26
    %p28 = scmp.ne.s32.totalorder %s20, %s23
    %p29 = scmp.eq.s32.totalorder %s10, 0
    %p30 = por %p28, %p29
    %p31 = scmp.ne.s32.totalorder %s20, %s23
    %p32 = scmp.eq.s32.totalorder %s15, 1
    %p33 = por %p31, %p32
    %p34 = scmp.ne.s32.totalorder %s23, %s24
    %p35 = scmp.eq.s32.totalorder %s15, 0
    %p36 = por %p34, %p35
    %p37 = scmp.ne.s32.totalorder %s23, %s24
    %p38 = scmp.eq.s32.totalorder %s16, 1
    %p39 = por %p37, %p38
    %p41 = scmp.ne.s32.totalorder %s24, %s40
    %p42 = scmp.eq.s32.totalorder %s16, 0
    %p43 = por %p41, %p42
    %s45 = sadd.s32 %s44, 1
    %p48 = scmp.eq.s32.totalorder %s10, 1
    %p49 = scmp.ne.s32.totalorder %s44, %s46
    %p50 = scmp.eq.s32.totalorder %s10, 0
    %p51 = por %p49, %p50
    %p52 = scmp.ne.s32.totalorder %s44, %s46
    %p53 = scmp.eq.s32.totalorder %s15, 1
    %p54 = por %p52, %p53
    %p55 = scmp.ne.s32.totalorder %s46, %s47
    %p56 = scmp.eq.s32.totalorder %s15, 0
    %p57 = por %p55, %p56
    %p58 = scmp.ne.s32.totalorder %s46, %s47
    %p59 = scmp.eq.s32.totalorder %s16, 1
    %p60 = por %p58, %p59
    %p62 = scmp.ne.s32.totalorder %s47, %s61
    %p63 = scmp.eq.s32.totalorder %s16, 0
    %p64 = por %p62, %p63
    %s66 = sadd.s32 %s65, 1
    %p69 = scmp.eq.s32.totalorder %s10, 1
    %p70 = scmp.ne.s32.totalorder %s65, %s67
    %p71 = scmp.eq.s32.totalorder %s10, 0
    %p72 = por %p70, %p71
    %p73 = scmp.ne.s32.totalorder %s65, %s67
    %p74 = scmp.eq.s32.totalorder %s15, 1
    %p75 = por %p73, %p74
    %p76 = scmp.ne.s32.totalorder %s67, %s68
    %p77 = scmp.eq.s32.totalorder %s15, 0
    %p78 = por %p76, %p77
    %p79 = scmp.ne.s32.totalorder %s67, %s68
    %p80 = scmp.eq.s32.totalorder %s16, 1
    %p81 = por %p79, %p80
    %p83 = scmp.ne.s32.totalorder %s68, %s82
    %p84 = scmp.eq.s32.totalorder %s16, 0
    %p85 = por %p83, %p84
    %s87 = sadd.s32 %s86, 1
    %p90 = scmp.eq.s32.totalorder %s10, 1
    %p91 = scmp.ne.s32.totalorder %s86, %s88
    %p92 = scmp.eq.s32.totalorder %s10, 0
    %p93 = por %p91, %p92
    %p94 = scmp.ne.s32.totalorder %s86, %s88
    %p95 = scmp.eq.s32.totalorder %s15, 1
    %p96 = por %p94, %p95
    %p97 = scmp.ne.s32.totalorder %s88, %s89
    %p98 = scmp.eq.s32.totalorder %s15, 0
    %p99 = por %p97, %p98
    %p100 = scmp.ne.s32.totalorder %s88, %s89
    %p101 = scmp.eq.s32.totalorder %s16, 1
    %p102 = por %p100, %p101
    %p104 = scmp.ne.s32.totalorder %s89, %s103
    %p105 = scmp.eq.s32.totalorder %s16, 0
    %p106 = por %p104, %p105
    %s107 = ssub.s32 %s10, %s17
    %p108 = scmp.eq.s32.totalorder %s107, 0
    %s110 = sadd.s32 %s109, 1
    %s111 = scalar_select %p108, %s109, %s110
    %p114 = pneg %p108
    %p115 = scmp.eq.s32.totalorder %s10, 1
    %p116 = por %p114, %p115
    %p117 = scmp.ne.s32.totalorder %s109, %s112
    %p118 = scmp.eq.s32.totalorder %s10, 0
    %p119 = por %p117, %p118
    %p120 = scmp.ne.s32.totalorder %s109, %s112
    %p121 = scmp.eq.s32.totalorder %s15, 1
    %p122 = por %p120, %p121
    %p123 = scmp.ne.s32.totalorder %s112, %s113
    %p124 = scmp.eq.s32.totalorder %s15, 0
    %p125 = por %p123, %p124
    %p126 = scmp.ne.s32.totalorder %s112, %s113
    %p127 = scmp.eq.s32.totalorder %s16, 1
    %p128 = por %p126, %p127
    %p130 = scmp.ne.s32.totalorder %s113, %s129
    %p131 = scmp.eq.s32.totalorder %s16, 0
    %p132 = por %p130, %p131
    %p133 = scmp.le.s32.totalorder 1, %s10
    %p134 = scmp.lt.s32.totalorder %s10, 3
    %p135 = pnand %p133, %p134
    %p136 = pneg %p135
    // Predicated region
    $region9: #{nb101_wrapper_forward.27} parent=5 // pred_check
      _
    $region10: #{nb101_wrapper_forward.27} parent=5 // pred_check_branch
      %138 = sbr.rel (%p135) target = $region12
    $region11: #{nb101_wrapper_forward.27} parent=5 // pred_region
      %s139 = ssub.s32 %s10, 1
      // Predicated region
      $region13: #{nb101_wrapper_forward.27} parent=11 // pred_check
        %p140 = pneg %p57
      $region14: #{nb101_wrapper_forward.27} parent=11 // pred_check_branch
        %142 = sbr.rel (%p140) target = $region16
      $region15: #{nb101_wrapper_forward.27} parent=11 // pred_region
        _
      $region16: #{nb101_wrapper_forward.27} parent=11 // pred_fallthru
        _
      // Predicated region
      $region17: #{nb101_wrapper_forward.27} parent=11 // pred_check
        %p143 = pneg %p78
      $region18: #{nb101_wrapper_forward.27} parent=11 // pred_check_branch
        %145 = sbr.rel (%p143) target = $region20
      $region19: #{nb101_wrapper_forward.27} parent=11 // pred_region
        _
      $region20: #{nb101_wrapper_forward.27} parent=11 // pred_fallthru
        _
      // Predicated region
      $region21: #{nb101_wrapper_forward.27} parent=11 // pred_check
        %p146 = pneg %p99
      $region22: #{nb101_wrapper_forward.27} parent=11 // pred_check_branch
        %148 = sbr.rel (%p146) target = $region24
      $region23: #{nb101_wrapper_forward.27} parent=11 // pred_region
        _
      $region24: #{nb101_wrapper_forward.27} parent=11 // pred_fallthru
        _
    $region12: #{nb101_wrapper_forward.27} parent=5 // pred_fallthru
      _
    %p149 = scmp.lt.s32.totalorder %s10, 2
    // Predicated region
    $region25: #{nb101_wrapper_forward.27} parent=5 // pred_check
      %p150 = pneg %p149
    $region26: #{nb101_wrapper_forward.27} parent=5 // pred_check_branch
      %152 = sbr.rel (%p150) target = $region28
    $region27: #{nb101_wrapper_forward.27} parent=5 // pred_region
      // Predicated region
      $region29: #{nb101_wrapper_forward.27} parent=27 // pred_check
        %p153 = pneg %p30
      $region30: #{nb101_wrapper_forward.27} parent=27 // pred_check_branch
        %155 = sbr.rel (%p153) target = $region32
      $region31: #{nb101_wrapper_forward.27} parent=27 // pred_region
        %s156 = smul.u32 32, %s10
        %p157 = scmp.lt.s32.totalorder %s156, 63
        %s158 = scalar_select %p157, %s156, 63
        %s159 = smul.addr %s158, 8
        %s160 = scalar_lea.vmem %s0, %s159
        %s161 = smul.u32 32, %s10
      $region32: #{nb101_wrapper_forward.27} parent=27 // pred_fallthru
        _
    $region28: #{nb101_wrapper_forward.27} parent=5 // pred_fallthru
      _
    %p162 = scmp.le.s32.totalorder 1, %s10
    %p163 = scmp.lt.s32.totalorder %s10, 3
    %p164 = pnand %p162, %p163
    %p165 = pneg %p164
    // Predicated region
    $region33: #{nb101_wrapper_forward.27} parent=5 // pred_check
      _
    $region34: #{nb101_wrapper_forward.27} parent=5 // pred_check_branch
      %167 = sbr.rel (%p164) target = $region36
    $region35: #{nb101_wrapper_forward.27} parent=5 // pred_region
      %s168 = ssub.s32 %s10, 1
      %s169 = smul.u32 32, %s15
      %p170 = scmp.lt.s32.totalorder %s169, 63
      %s171 = scalar_select %p170, %s169, 63
      %s172 = smul.addr %s171, 8
      %s173 = scalar_lea.vmem %s0, %s172
      %p174 = pneg %p36
      %p175 = pneg %p33
      %p176 = pneg %p57
      %p177 = pneg %p54
      %p178 = pneg %p78
      %p179 = pneg %p75
      %p180 = pneg %p99
      %p181 = pneg %p96
      %p182 = pneg %p125
      %p183 = pneg %p122
      %s184 = smul.u32 32, %s15
      %p185 = scmp.lt.s32.totalorder %s184, 63
      %s186 = scalar_select %p185, %s184, 63
      %s187 = smul.addr %s186, 8
      %s188 = scalar_lea.vmem %s4, %s187
      %s189 = smul.u32 32, %s15
      %p190 = scmp.lt.s32.totalorder %s189, 63
      %s191 = scalar_select %p190, %s189, 63
      %s192 = smul.addr %s191, 8
      %s193 = scalar_lea.vmem %s0, %s192
      %s194 = smul.u32 32, %s15
      %s195 = smul.u32 32, %s15
      %p196 = scmp.lt.s32.totalorder %s195, 63
      %s197 = scalar_select %p196, %s195, 63
      %s198 = smul.addr %s197, 8
      %s199 = scalar_lea.vmem %s4, %s198
      %s200 = smul.u32 32, %s15
      %v201 = vld [vmem:[%s193] sm:$0xff]
      %v202 = vld [vmem:[%s193 + $0x8] sm:$0xff]
      %v203 = vld [vmem:[%s193 + $0x10] sm:$0xff]
      %v204 = vld [vmem:[%s193 + $0x18] sm:$0xff]
      %v205 = vld [vmem:[%s193 + $0x20] sm:$0xff]
      %v206 = vld [vmem:[%s193 + $0x28] sm:$0xff]
      %v207 = vld [vmem:[%s193 + $0x30] sm:$0xff]
      %v208 = vld [vmem:[%s193 + $0x38] sm:$0xff]
      %v209 = vld [vmem:[%s193 + $0x40] sm:$0xff]
      %v210 = vld [vmem:[%s193 + $0x48] sm:$0xff]
      %v211 = vld [vmem:[%s193 + $0x50] sm:$0xff]
      %v212 = vld [vmem:[%s193 + $0x58] sm:$0xff]
      %v213 = vld [vmem:[%s193 + $0x60] sm:$0xff]
      %v214 = vld [vmem:[%s193 + $0x68] sm:$0xff]
      %v215 = vld [vmem:[%s193 + $0x70] sm:$0xff]
      %v216 = vld [vmem:[%s193 + $0x78] sm:$0xff]
      %v217 = vld [vmem:[%s193 + $0x80] sm:$0xff]
      %v218 = vld [vmem:[%s193 + $0x88] sm:$0xff]
      %v219 = vld [vmem:[%s193 + $0x90] sm:$0xff]
      %v220 = vld [vmem:[%s193 + $0x98] sm:$0xff]
      %v221 = vld [vmem:[%s193 + $0xa0] sm:$0xff]
      %v222 = vld [vmem:[%s193 + $0xa8] sm:$0xff]
      %v223 = vld [vmem:[%s193 + $0xb0] sm:$0xff]
      %v224 = vld [vmem:[%s193 + $0xb8] sm:$0xff]
      %v225 = vld [vmem:[%s193 + $0xc0] sm:$0xff]
      %v226 = vld [vmem:[%s193 + $0xc8] sm:$0xff]
      %v227 = vld [vmem:[%s193 + $0xd0] sm:$0xff]
      %v228 = vld [vmem:[%s193 + $0xd8] sm:$0xff]
      %v229 = vld [vmem:[%s193 + $0xe0] sm:$0xff]
      %v230 = vld [vmem:[%s193 + $0xe8] sm:$0xff]
      %v231 = vld [vmem:[%s193 + $0xf0] sm:$0xff]
      %v232 = vld [vmem:[%s193 + $0xf8] sm:$0xff]
      %v233 = vld [vmem:[%s1] sm:$0xff]
      %v234 = vld [vmem:[%s1 + $0x8] sm:$0xff]
      %v235 = vld [vmem:[%s1 + $0x10] sm:$0xff]
      %v236 = vld [vmem:[%s1 + $0x18] sm:$0x7]
      %vm237 = vcmask 220160
      %v239 = vsel %vm237, %v201, 0
      %v242 = vsel %vm237, %v202, 0
      %v245 = vsel %vm237, %v203, 0
      %v248 = vsel %vm237, %v204, 0
      %v251 = vsel %vm237, %v205, 0
      %v254 = vsel %vm237, %v206, 0
      %v257 = vsel %vm237, %v207, 0
      %v260 = vsel %vm237, %v208, 0
      %v263 = vsel %vm237, %v209, 0
      %v266 = vsel %vm237, %v210, 0
      %v269 = vsel %vm237, %v211, 0
      %v272 = vsel %vm237, %v212, 0
      %v275 = vsel %vm237, %v213, 0
      %v278 = vsel %vm237, %v214, 0
      %v281 = vsel %vm237, %v215, 0
      %v284 = vsel %vm237, %v216, 0
      %v287 = vsel %vm237, %v217, 0
      %v290 = vsel %vm237, %v218, 0
      %v293 = vsel %vm237, %v219, 0
      %v296 = vsel %vm237, %v220, 0
      %v299 = vsel %vm237, %v221, 0
      %v302 = vsel %vm237, %v222, 0
      %v305 = vsel %vm237, %v223, 0
      %v308 = vsel %vm237, %v224, 0
      %v311 = vsel %vm237, %v225, 0
      %v314 = vsel %vm237, %v226, 0
      %v317 = vsel %vm237, %v227, 0
      %v320 = vsel %vm237, %v228, 0
      %v323 = vsel %vm237, %v229, 0
      %v326 = vsel %vm237, %v230, 0
      %v329 = vsel %vm237, %v231, 0
      %v332 = vsel %vm237, %v232, 0
      %vm334 = vcmask 1042432
      %v336 = vsel %vm334, %v236, 0
      %338 = vmatprep.subr.mxu0 0.0
      %339 = vmatpush1.msra.mxu0 %v233
      %340 = vmatprep.subr.mxu0 0.0
      %341 = vmatpush1.msra.mxu0 %v234
      %342 = vmatprep.subr.mxu0 0.0
      %343 = vmatpush1.msra.mxu0 %v235
      %344 = vmatprep.subr.mxu0 0.0
      %345 = vmatpush1.msra.mxu0 %v336
      %346 = vmatprep.subr.mxu0 0.0
      %347 = vmatpush1.msra.mxu0 0.0
      %348 = vmatprep.subr.mxu0 0.0
      %349 = vmatpush1.msra.mxu0 0.0
      %350 = vmatprep.subr.mxu0 0.0
      %351 = vmatpush1.msra.mxu0 0.0
      %352 = vmatprep.subr.mxu0 0.0
      %353 = vmatpush1.msra.mxu0 0.0
      %354 = vmatprep.subr.mxu0 0.0
      %355 = vmatpush1.msra.mxu0 0.0
      %356 = vmatprep.subr.mxu0 0.0
      %357 = vmatpush1.msra.mxu0 0.0
      %358 = vmatprep.subr.mxu0 0.0
      %359 = vmatpush1.msra.mxu0 0.0
      %360 = vmatprep.subr.mxu0 0.0
      %361 = vmatpush1.msra.mxu0 0.0
      %362 = vmatprep.subr.mxu0 0.0
      %363 = vmatpush1.msra.mxu0 0.0
      %364 = vmatprep.subr.mxu0 0.0
      %365 = vmatpush1.msra.mxu0 0.0
      %366 = vmatprep.subr.mxu0 0.0
      %367 = vmatpush1.msra.mxu0 0.0
      %368 = vmatprep.subr.mxu0 0.0
      %369 = vmatpush1.msra.mxu0 0.0
      %370 = vmatprep.subr.mxu0 0.0
      %371 = vmatpush1.msra.mxu0 0.0
      %372 = vmatprep.subr.mxu0 0.0
      %373 = vmatpush1.msra.mxu0 0.0
      %374 = vmatprep.subr.mxu0 0.0
      %375 = vmatpush1.msra.mxu0 0.0
      %376 = vmatprep.subr.mxu0 0.0
      %377 = vmatpush1.msra.mxu0 0.0
      %378 = vmatprep.subr.mxu0 0.0
      %379 = vmatpush1.msra.mxu0 0.0
      %380 = vmatprep.subr.mxu0 0.0
      %381 = vmatpush1.msra.mxu0 0.0
      %382 = vmatprep.subr.mxu0 0.0
      %383 = vmatpush1.msra.mxu0 0.0
      %384 = vmatprep.subr.mxu0 0.0
      %385 = vmatpush1.msra.mxu0 0.0
      %386 = vmatprep.subr.mxu0 0.0
      %387 = vmatpush1.msra.mxu0 0.0
      %388 = vmatprep.subr.mxu0 0.0
      %389 = vmatpush1.msra.mxu0 0.0
      %390 = vmatprep.subr.mxu0 0.0
      %391 = vmatpush1.msra.mxu0 0.0
      %392 = vmatprep.subr.mxu0 0.0
      %393 = vmatpush1.msra.mxu0 0.0
      %394 = vmatprep.subr.mxu0 0.0
      %395 = vmatpush1.msra.mxu0 0.0
      %396 = vmatprep.subr.mxu0 0.0
      %397 = vmatpush1.msra.mxu0 0.0
      %398 = vmatprep.subr.mxu0 0.0
      %399 = vmatpush1.msra.mxu0 0.0
      %400 = vmatprep.subr.mxu0 0.0
      %401 = vmatpush1.msra.mxu0 0.0
      %402 = vmatprep.mubr.f32.mxu0 0.0
      %403 = vmatmul.mubr.f32.gmra.mrb[0].mxu0 %v239
      %v404 = vpop.f32.mrb[0].mxu0
      %v405 = vadd.f32 0.0, %v404
      %v406 = vpop.f32.mrb[0].mxu0
      %407 = vmatprep.mubr.f32.mxu0 0.0
      %408 = vmatmul.mubr.f32.gmra.mrb[0].mxu0 %v242
      %v409 = vpop.f32.mrb[0].mxu0
      %v410 = vadd.f32 0.0, %v409
      %v411 = vpop.f32.mrb[0].mxu0
      %412 = vmatprep.mubr.f32.mxu0 0.0
      %413 = vmatmul.mubr.f32.gmra.mrb[0].mxu0 %v245
      %v414 = vpop.f32.mrb[0].mxu0
      %v415 = vadd.f32 0.0, %v414
      %v416 = vpop.f32.mrb[0].mxu0
      %417 = vmatprep.mubr.f32.mxu0 0.0
      %418 = vmatmul.mubr.f32.gmra.mrb[0].mxu0 %v248
      %v419 = vpop.f32.mrb[0].mxu0
      %v420 = vadd.f32 0.0, %v419
      %v421 = vpop.f32.mrb[0].mxu0
      %422 = vmatprep.mubr.f32.mxu0 0.0
      %423 = vmatmul.mubr.f32.gmra.mrb[0].mxu0 %v251
      %v424 = vpop.f32.mrb[0].mxu0
      %v425 = vadd.f32 0.0, %v424
      %v426 = vpop.f32.mrb[0].mxu0
      %427 = vmatprep.mubr.f32.mxu0 0.0
      %428 = vmatmul.mubr.f32.gmra.mrb[0].mxu0 %v254
      %v429 = vpop.f32.mrb[0].mxu0
      %v430 = vadd.f32 0.0, %v429
      %v431 = vpop.f32.mrb[0].mxu0
      %432 = vmatprep.mubr.f32.mxu0 0.0
      %433 = vmatmul.mubr.f32.gmra.mrb[0].mxu0 %v257
      %v434 = vpop.f32.mrb[0].mxu0
      %v435 = vadd.f32 0.0, %v434
      %v436 = vpop.f32.mrb[0].mxu0
      %437 = vmatprep.mubr.f32.mxu0 0.0
      %438 = vmatmul.mubr.f32.gmra.mrb[0].mxu0 %v260
      %v439 = vpop.f32.mrb[0].mxu0
      %v440 = vadd.f32 0.0, %v439
      %v441 = vpop.f32.mrb[0].mxu0
      %442 = vmatprep.mubr.f32.mxu0 0.0
      %443 = vmatmul.mubr.f32.gmra.mrb[0].mxu0 %v263
      %v444 = vpop.f32.mrb[0].mxu0
      %v445 = vadd.f32 0.0, %v444
      %v446 = vpop.f32.mrb[0].mxu0
      %447 = vmatprep.mubr.f32.mxu0 0.0
      %448 = vmatmul.mubr.f32.gmra.mrb[0].mxu0 %v266
      %v449 = vpop.f32.mrb[0].mxu0
      %v450 = vadd.f32 0.0, %v449
      %v451 = vpop.f32.mrb[0].mxu0
      %452 = vmatprep.mubr.f32.mxu0 0.0
      %453 = vmatmul.mubr.f32.gmra.mrb[0].mxu0 %v269
      %v454 = vpop.f32.mrb[0].mxu0
      %v455 = vadd.f32 0.0, %v454
      %v456 = vpop.f32.mrb[0].mxu0
      %457 = vmatprep.mubr.f32.mxu0 0.0
      %458 = vmatmul.mubr.f32.gmra.mrb[0].mxu0 %v272
      %v459 = vpop.f32.mrb[0].mxu0
      %v460 = vadd.f32 0.0, %v459
      %v461 = vpop.f32.mrb[0].mxu0
      %462 = vmatprep.mubr.f32.mxu0 0.0
      %463 = vmatmul.mubr.f32.gmra.mrb[0].mxu0 %v275
      %v464 = vpop.f32.mrb[0].mxu0
      %v465 = vadd.f32 0.0, %v464
      %v466 = vpop.f32.mrb[0].mxu0
      %467 = vmatprep.mubr.f32.mxu0 0.0
      %468 = vmatmul.mubr.f32.gmra.mrb[0].mxu0 %v278
      %v469 = vpop.f32.mrb[0].mxu0
      %v470 = vadd.f32 0.0, %v469
      %v471 = vpop.f32.mrb[0].mxu0
      %472 = vmatprep.mubr.f32.mxu0 0.0
      %473 = vmatmul.mubr.f32.gmra.mrb[0].mxu0 %v281
      %v474 = vpop.f32.mrb[0].mxu0
      %v475 = vadd.f32 0.0, %v474
      %v476 = vpop.f32.mrb[0].mxu0
      %477 = vmatprep.mubr.f32.mxu0 0.0
      %478 = vmatmul.mubr.f32.gmra.mrb[0].mxu0 %v284
      %v479 = vpop.f32.mrb[0].mxu0
      %v480 = vadd.f32 0.0, %v479
      %v481 = vpop.f32.mrb[0].mxu0
      %482 = vmatprep.mubr.f32.mxu0 0.0
      %483 = vmatmul.mubr.f32.gmra.mrb[0].mxu0 %v287
      %v484 = vpop.f32.mrb[0].mxu0
      %v485 = vadd.f32 0.0, %v484
      %v486 = vpop.f32.mrb[0].mxu0
      %487 = vmatprep.mubr.f32.mxu0 0.0
      %488 = vmatmul.mubr.f32.gmra.mrb[0].mxu0 %v290
      %v489 = vpop.f32.mrb[0].mxu0
      %v490 = vadd.f32 0.0, %v489
      %v491 = vpop.f32.mrb[0].mxu0
      %492 = vmatprep.mubr.f32.mxu0 0.0
      %493 = vmatmul.mubr.f32.gmra.mrb[0].mxu0 %v293
      %v494 = vpop.f32.mrb[0].mxu0
      %v495 = vadd.f32 0.0, %v494
      %v496 = vpop.f32.mrb[0].mxu0
      %497 = vmatprep.mubr.f32.mxu0 0.0
      %498 = vmatmul.mubr.f32.gmra.mrb[0].mxu0 %v296
      %v499 = vpop.f32.mrb[0].mxu0
      %v500 = vadd.f32 0.0, %v499
      %v501 = vpop.f32.mrb[0].mxu0
      %502 = vmatprep.mubr.f32.mxu0 0.0
      %503 = vmatmul.mubr.f32.gmra.mrb[0].mxu0 %v299
      %v504 = vpop.f32.mrb[0].mxu0
      %v505 = vadd.f32 0.0, %v504
      %v506 = vpop.f32.mrb[0].mxu0
      %507 = vmatprep.mubr.f32.mxu0 0.0
      %508 = vmatmul.mubr.f32.gmra.mrb[0].mxu0 %v302
      %v509 = vpop.f32.mrb[0].mxu0
      %v510 = vadd.f32 0.0, %v509
      %v511 = vpop.f32.mrb[0].mxu0
      %512 = vmatprep.mubr.f32.mxu0 0.0
      %513 = vmatmul.mubr.f32.gmra.mrb[0].mxu0 %v305
      %v514 = vpop.f32.mrb[0].mxu0
      %v515 = vadd.f32 0.0, %v514
      %v516 = vpop.f32.mrb[0].mxu0
      %517 = vmatprep.mubr.f32.mxu0 0.0
      %518 = vmatmul.mubr.f32.gmra.mrb[0].mxu0 %v308
      %v519 = vpop.f32.mrb[0].mxu0
      %v520 = vadd.f32 0.0, %v519
      %v521 = vpop.f32.mrb[0].mxu0
      %522 = vmatprep.mubr.f32.mxu0 0.0
      %523 = vmatmul.mubr.f32.gmra.mrb[0].mxu0 %v311
      %v524 = vpop.f32.mrb[0].mxu0
      %v525 = vadd.f32 0.0, %v524
      %v526 = vpop.f32.mrb[0].mxu0
      %527 = vmatprep.mubr.f32.mxu0 0.0
      %528 = vmatmul.mubr.f32.gmra.mrb[0].mxu0 %v314
      %v529 = vpop.f32.mrb[0].mxu0
      %v530 = vadd.f32 0.0, %v529
      %v531 = vpop.f32.mrb[0].mxu0
      %532 = vmatprep.mubr.f32.mxu0 0.0
      %533 = vmatmul.mubr.f32.gmra.mrb[0].mxu0 %v317
      %v534 = vpop.f32.mrb[0].mxu0
      %v535 = vadd.f32 0.0, %v534
      %v536 = vpop.f32.mrb[0].mxu0
      %537 = vmatprep.mubr.f32.mxu0 0.0
      %538 = vmatmul.mubr.f32.gmra.mrb[0].mxu0 %v320
      %v539 = vpop.f32.mrb[0].mxu0
      %v540 = vadd.f32 0.0, %v539
      %v541 = vpop.f32.mrb[0].mxu0
      %542 = vmatprep.mubr.f32.mxu0 0.0
      %543 = vmatmul.mubr.f32.gmra.mrb[0].mxu0 %v323
      %v544 = vpop.f32.mrb[0].mxu0
      %v545 = vadd.f32 0.0, %v544
      %v546 = vpop.f32.mrb[0].mxu0
      %547 = vmatprep.mubr.f32.mxu0 0.0
      %548 = vmatmul.mubr.f32.gmra.mrb[0].mxu0 %v326
      %v549 = vpop.f32.mrb[0].mxu0
      %v550 = vadd.f32 0.0, %v549
      %v551 = vpop.f32.mrb[0].mxu0
      %552 = vmatprep.mubr.f32.mxu0 0.0
      %553 = vmatmul.mubr.f32.gmra.mrb[0].mxu0 %v329
      %v554 = vpop.f32.mrb[0].mxu0
      %v555 = vadd.f32 0.0, %v554
      %v556 = vpop.f32.mrb[0].mxu0
      %557 = vmatprep.mubr.f32.mxu0 0.0
      %558 = vmatmul.mubr.f32.gmra.mrb[0].mxu0 %v332
      %v559 = vpop.f32.mrb[0].mxu0
      %v560 = vadd.f32 0.0, %v559
      %v561 = vpop.f32.mrb[0].mxu0
      %562 = vdwg.mxu0
      %v563 = vld [vmem:[%s2] sm:$0x1]
      %v565 = vlaneseq
      %v566 = vshrl.u32 %v565, 7
      %v567 = vsub.s32 0, %v566
      %v568 = vrot.slane %v563, %v567
      %v570 = vmul.f32 %v405, %v568
      %v571 = vmul.f32 %v410, %v568
      %v572 = vmul.f32 %v415, %v568
      %v573 = vmul.f32 %v420, %v568
      %v574 = vmul.f32 %v425, %v568
      %v575 = vmul.f32 %v430, %v568
      %v576 = vmul.f32 %v435, %v568
      %v577 = vmul.f32 %v440, %v568
      %v578 = vmul.f32 %v445, %v568
      %v579 = vmul.f32 %v450, %v568
      %v580 = vmul.f32 %v455, %v568
      %v581 = vmul.f32 %v460, %v568
      %v582 = vmul.f32 %v465, %v568
      %v583 = vmul.f32 %v470, %v568
      %v584 = vmul.f32 %v475, %v568
      %v585 = vmul.f32 %v480, %v568
      %v586 = vmul.f32 %v485, %v568
      %v587 = vmul.f32 %v490, %v568
      %v588 = vmul.f32 %v495, %v568
      %v589 = vmul.f32 %v500, %v568
      %v590 = vmul.f32 %v505, %v568
      %v591 = vmul.f32 %v510, %v568
      %v592 = vmul.f32 %v515, %v568
      %v593 = vmul.f32 %v520, %v568
      %v594 = vmul.f32 %v525, %v568
      %v595 = vmul.f32 %v530, %v568
      %v596 = vmul.f32 %v535, %v568
      %v597 = vmul.f32 %v540, %v568
      %v598 = vmul.f32 %v545, %v568
      %v599 = vmul.f32 %v550, %v568
      %v600 = vmul.f32 %v555, %v568
      %v601 = vmul.f32 %v560, %v568
      %v602 = vld [vmem:[%s3] sm:$0x1]
      %v604 = vlaneseq
      %v605 = vshrl.u32 %v604, 7
      %v606 = vsub.s32 0, %v605
      %v607 = vrot.slane %v602, %v606
      %v609 = vadd.f32 %v570, %v607
      %v610 = vadd.f32 %v571, %v607
      %v611 = vadd.f32 %v572, %v607
      %v612 = vadd.f32 %v573, %v607
      %v613 = vadd.f32 %v574, %v607
      %v614 = vadd.f32 %v575, %v607
      %v615 = vadd.f32 %v576, %v607
      %v616 = vadd.f32 %v577, %v607
      %v617 = vadd.f32 %v578, %v607
      %v618 = vadd.f32 %v579, %v607
      %v619 = vadd.f32 %v580, %v607
      %v620 = vadd.f32 %v581, %v607
      %v621 = vadd.f32 %v582, %v607
      %v622 = vadd.f32 %v583, %v607
      %v623 = vadd.f32 %v584, %v607
      %v624 = vadd.f32 %v585, %v607
      %v625 = vadd.f32 %v586, %v607
      %v626 = vadd.f32 %v587, %v607
      %v627 = vadd.f32 %v588, %v607
      %v628 = vadd.f32 %v589, %v607
      %v629 = vadd.f32 %v590, %v607
      %v630 = vadd.f32 %v591, %v607
      %v631 = vadd.f32 %v592, %v607
      %v632 = vadd.f32 %v593, %v607
      %v633 = vadd.f32 %v594, %v607
      %v634 = vadd.f32 %v595, %v607
      %v635 = vadd.f32 %v596, %v607
      %v636 = vadd.f32 %v597, %v607
      %v637 = vadd.f32 %v598, %v607
      %v638 = vadd.f32 %v599, %v607
      %v639 = vadd.f32 %v600, %v607
      %v640 = vadd.f32 %v601, %v607
      %v641 = vmax.f32 %v609, 0.0
      %v642 = vmax.f32 %v610, 0.0
      %v643 = vmax.f32 %v611, 0.0
      %v644 = vmax.f32 %v612, 0.0
      %v645 = vmax.f32 %v613, 0.0
      %v646 = vmax.f32 %v614, 0.0
      %v647 = vmax.f32 %v615, 0.0
      %v648 = vmax.f32 %v616, 0.0
      %v649 = vmax.f32 %v617, 0.0
      %v650 = vmax.f32 %v618, 0.0
      %v651 = vmax.f32 %v619, 0.0
      %v652 = vmax.f32 %v620, 0.0
      %v653 = vmax.f32 %v621, 0.0
      %v654 = vmax.f32 %v622, 0.0
      %v655 = vmax.f32 %v623, 0.0
      %v656 = vmax.f32 %v624, 0.0
      %v657 = vmax.f32 %v625, 0.0
      %v658 = vmax.f32 %v626, 0.0
      %v659 = vmax.f32 %v627, 0.0
      %v660 = vmax.f32 %v628, 0.0
      %v661 = vmax.f32 %v629, 0.0
      %v662 = vmax.f32 %v630, 0.0
      %v663 = vmax.f32 %v631, 0.0
      %v664 = vmax.f32 %v632, 0.0
      %v665 = vmax.f32 %v633, 0.0
      %v666 = vmax.f32 %v634, 0.0
      %v667 = vmax.f32 %v635, 0.0
      %v668 = vmax.f32 %v636, 0.0
      %v669 = vmax.f32 %v637, 0.0
      %v670 = vmax.f32 %v638, 0.0
      %v671 = vmax.f32 %v639, 0.0
      %v672 = vmax.f32 %v640, 0.0
      %673 = vst [vmem:[%s199] sm:$0xff] %v641
      %674 = vst [vmem:[%s199 + $0x8] sm:$0xff] %v642
      %675 = vst [vmem:[%s199 + $0x10] sm:$0xff] %v643
      %676 = vst [vmem:[%s199 + $0x18] sm:$0xff] %v644
      %677 = vst [vmem:[%s199 + $0x20] sm:$0xff] %v645
      %678 = vst [vmem:[%s199 + $0x28] sm:$0xff] %v646
      %679 = vst [vmem:[%s199 + $0x30] sm:$0xff] %v647
      %680 = vst [vmem:[%s199 + $0x38] sm:$0xff] %v648
      %681 = vst [vmem:[%s199 + $0x40] sm:$0xff] %v649
      %682 = vst [vmem:[%s199 + $0x48] sm:$0xff] %v650
      %683 = vst [vmem:[%s199 + $0x50] sm:$0xff] %v651
      %684 = vst [vmem:[%s199 + $0x58] sm:$0xff] %v652
      %685 = vst [vmem:[%s199 + $0x60] sm:$0xff] %v653
      %686 = vst [vmem:[%s199 + $0x68] sm:$0xff] %v654
      %687 = vst [vmem:[%s199 + $0x70] sm:$0xff] %v655
      %688 = vst [vmem:[%s199 + $0x78] sm:$0xff] %v656
      %689 = vst [vmem:[%s199 + $0x80] sm:$0xff] %v657
      %690 = vst [vmem:[%s199 + $0x88] sm:$0xff] %v658
      %691 = vst [vmem:[%s199 + $0x90] sm:$0xff] %v659
      %692 = vst [vmem:[%s199 + $0x98] sm:$0xff] %v660
      %693 = vst [vmem:[%s199 + $0xa0] sm:$0xff] %v661
      %694 = vst [vmem:[%s199 + $0xa8] sm:$0xff] %v662
      %695 = vst [vmem:[%s199 + $0xb0] sm:$0xff] %v663
      %696 = vst [vmem:[%s199 + $0xb8] sm:$0xff] %v664
      %697 = vst [vmem:[%s199 + $0xc0] sm:$0xff] %v665
      %698 = vst [vmem:[%s199 + $0xc8] sm:$0xff] %v666
      %699 = vst [vmem:[%s199 + $0xd0] sm:$0xff] %v667
      %700 = vst [vmem:[%s199 + $0xd8] sm:$0xff] %v668
      %701 = vst [vmem:[%s199 + $0xe0] sm:$0xff] %v669
      %702 = vst [vmem:[%s199 + $0xe8] sm:$0xff] %v670
      %703 = vst [vmem:[%s199 + $0xf0] sm:$0xff] %v671
      %704 = vst [vmem:[%s199 + $0xf8] sm:$0xff] %v672
      %s705 = smul.u32 32, %s15
      %p706 = scmp.lt.s32.totalorder %s705, 63
      %s707 = scalar_select %p706, %s705, 63
      %s708 = smul.addr %s707, 8
      %s709 = scalar_lea.vmem %s4, %s708
      // Predicated region
      $region37: #{nb101_wrapper_forward.27} parent=35 // pred_check
        %p710 = pneg %p122
      $region38: #{nb101_wrapper_forward.27} parent=35 // pred_check_branch
        %712 = sbr.rel (%p710) target = $region40
      $region39: #{nb101_wrapper_forward.27} parent=35 // pred_region
        %s713 = smul.u32 32, %s15
      $region40: #{nb101_wrapper_forward.27} parent=35 // pred_fallthru
        _
    $region36: #{nb101_wrapper_forward.27} parent=5 // pred_fallthru
      _
    %p714 = scmp.le.s32.totalorder 2, %s10
    // Predicated region
    $region41: #{nb101_wrapper_forward.27} parent=5 // pred_check
      %p715 = pneg %p714
    $region42: #{nb101_wrapper_forward.27} parent=5 // pred_check_branch
      %717 = sbr.rel (%p715) target = $region44
    $region43: #{nb101_wrapper_forward.27} parent=5 // pred_region
      %s718 = ssub.s32 %s10, 2
      // Predicated region
      $region45: #{nb101_wrapper_forward.27} parent=43 // pred_check
        %p719 = pneg %p128
      $region46: #{nb101_wrapper_forward.27} parent=43 // pred_check_branch
        %721 = sbr.rel (%p719) target = $region48
      $region47: #{nb101_wrapper_forward.27} parent=43 // pred_region
        %s722 = smul.u32 32, %s16
        %p723 = scmp.lt.s32.totalorder %s722, 63
        %s724 = scalar_select %p723, %s722, 63
        %s725 = smul.addr %s724, 8
        %s726 = scalar_lea.vmem %s4, %s725
      $region48: #{nb101_wrapper_forward.27} parent=43 // pred_fallthru
        _
    $region44: #{nb101_wrapper_forward.27} parent=5 // pred_fallthru
      _
  $region6: #{nb101_wrapper_forward.27} parent=0 // loop_footer
    %s14 = sadd.s32 1, %s10
  $region7: #{nb101_wrapper_forward.27} parent=0 // loop_footer_branch
    %9 = sbr.rel target = $region3
  $region8: #{nb101_wrapper_forward.27} parent=0 // loop_exit
    _

// kernel: nb101_wrapper_forward.31
$region0: #{nb101_wrapper_forward.31}
  #allocation0 [shape = 'u32[]', space=smem, size = 0x4, offset = 0x4, fixed_abs, tag = 'smem constant byte address 0x4 - core index']
  #allocation1 [shape = 'u32[144,128]{1,0:T(1,128)}', space=vmem, size = 0x12000, scoped, tag = 'internal scratch']
  %s0 = inlined_call_operand.vmem [shape: f32[512,72], index: 0, kind: input, shape index: {}]
  %s1 = inlined_call_operand.vmem [shape: f32[72,128], index: 1, kind: input, shape index: {}]
  %s2 = inlined_call_operand.vmem [shape: f32[1,128], index: 2, kind: input, shape index: {}]
  %s3 = inlined_call_operand.vmem [shape: f32[1,128], index: 3, kind: input, shape index: {}]
  %s4 = inlined_call_operand.vmem [shape: f32[512,128], index: 4, kind: output, shape index: {}]
  %s5 = sld [smem:[#allocation0]]
  $region49: #{nb101_wrapper_forward.31} parent=0
    _
  %s7 = ssub.s32 1, %s5
  %s8 = scalar_select 0, %s7, %s5
  loop: start=0, step=1, limit=4
  $region2: #{nb101_wrapper_forward.31} parent=0 // loop_pre_header
    _
  $region3: #{nb101_wrapper_forward.31} parent=0 // loop_header
    %s10 = sphi 0, %s14
    %p11 = scmp.ge.s32.totalorder %s10, 4
    %s20 = sphi 0, %s22
    %s23 = sphi 0, %s20
    %s24 = sphi 0, %s23
    %s40 = sphi 0, %s24
    %s44 = sphi 0, %s44
    %s46 = sphi 0, %s44
    %s47 = sphi 0, %s46
    %s61 = sphi 0, %s47
    %s65 = sphi 0, %s65
    %s67 = sphi 0, %s65
    %s68 = sphi 0, %s67
    %s82 = sphi 0, %s68
    %s86 = sphi 0, %s86
    %s88 = sphi 0, %s86
    %s89 = sphi 0, %s88
    %s103 = sphi 0, %s89
    %s109 = sphi 0, %s111
    %s112 = sphi 0, %s109
    %s113 = sphi 0, %s112
    %s129 = sphi 0, %s113
  $region4: #{nb101_wrapper_forward.31} parent=0 // loop_header_branch
    %13 = sbr.rel (%p11) target = $region8
  $region5: #{nb101_wrapper_forward.31} parent=0 // loop_body
    %s15 = ssub.s32 %s10, 1
    %s16 = ssub.s32 %s10, 2
    %s17 = sadd.s32 %s10, 1
    %s18 = ssub.s32 %s10, %s17
    %p19 = scmp.eq.s32.totalorder %s18, 0
    %s21 = sadd.s32 %s20, 1
    %s22 = scalar_select %p19, %s20, %s21
    %p25 = pneg %p19
    %p26 = scmp.eq.s32.totalorder %s10, 1
    %p27 = por %p25, %p26
    %p28 = scmp.ne.s32.totalorder %s20, %s23
    %p29 = scmp.eq.s32.totalorder %s10, 0
    %p30 = por %p28, %p29
    %p31 = scmp.ne.s32.totalorder %s20, %s23
    %p32 = scmp.eq.s32.totalorder %s15, 1
    %p33 = por %p31, %p32
    %p34 = scmp.ne.s32.totalorder %s23, %s24
    %p35 = scmp.eq.s32.totalorder %s15, 0
    %p36 = por %p34, %p35
    %p37 = scmp.ne.s32.totalorder %s23, %s24
    %p38 = scmp.eq.s32.totalorder %s16, 1
    %p39 = por %p37, %p38
    %p41 = scmp.ne.s32.totalorder %s24, %s40
    %p42 = scmp.eq.s32.totalorder %s16, 0
    %p43 = por %p41, %p42
    %s45 = sadd.s32 %s44, 1
    %p48 = scmp.eq.s32.totalorder %s10, 1
    %p49 = scmp.ne.s32.totalorder %s44, %s46
    %p50 = scmp.eq.s32.totalorder %s10, 0
    %p51 = por %p49, %p50
    %p52 = scmp.ne.s32.totalorder %s44, %s46
    %p53 = scmp.eq.s32.totalorder %s15, 1
    %p54 = por %p52, %p53
    %p55 = scmp.ne.s32.totalorder %s46, %s47
    %p56 = scmp.eq.s32.totalorder %s15, 0
    %p57 = por %p55, %p56
    %p58 = scmp.ne.s32.totalorder %s46, %s47
    %p59 = scmp.eq.s32.totalorder %s16, 1
    %p60 = por %p58, %p59
    %p62 = scmp.ne.s32.totalorder %s47, %s61
    %p63 = scmp.eq.s32.totalorder %s16, 0
    %p64 = por %p62, %p63
    %s66 = sadd.s32 %s65, 1
    %p69 = scmp.eq.s32.totalorder %s10, 1
    %p70 = scmp.ne.s32.totalorder %s65, %s67
    %p71 = scmp.eq.s32.totalorder %s10, 0
    %p72 = por %p70, %p71
    %p73 = scmp.ne.s32.totalorder %s65, %s67
    %p74 = scmp.eq.s32.totalorder %s15, 1
    %p75 = por %p73, %p74
    %p76 = scmp.ne.s32.totalorder %s67, %s68
    %p77 = scmp.eq.s32.totalorder %s15, 0
    %p78 = por %p76, %p77
    %p79 = scmp.ne.s32.totalorder %s67, %s68
    %p80 = scmp.eq.s32.totalorder %s16, 1
    %p81 = por %p79, %p80
    %p83 = scmp.ne.s32.totalorder %s68, %s82
    %p84 = scmp.eq.s32.totalorder %s16, 0
    %p85 = por %p83, %p84
    %s87 = sadd.s32 %s86, 1
    %p90 = scmp.eq.s32.totalorder %s10, 1
    %p91 = scmp.ne.s32.totalorder %s86, %s88
    %p92 = scmp.eq.s32.totalorder %s10, 0
    %p93 = por %p91, %p92
    %p94 = scmp.ne.s32.totalorder %s86, %s88
    %p95 = scmp.eq.s32.totalorder %s15, 1
    %p96 = por %p94, %p95
    %p97 = scmp.ne.s32.totalorder %s88, %s89
    %p98 = scmp.eq.s32.totalorder %s15, 0
    %p99 = por %p97, %p98
    %p100 = scmp.ne.s32.totalorder %s88, %s89
    %p101 = scmp.eq.s32.totalorder %s16, 1
    %p102 = por %p100, %p101
    %p104 = scmp.ne.s32.totalorder %s89, %s103
    %p105 = scmp.eq.s32.totalorder %s16, 0
    %p106 = por %p104, %p105
    %s107 = ssub.s32 %s10, %s17
    %p108 = scmp.eq.s32.totalorder %s107, 0
    %s110 = sadd.s32 %s109, 1
    %s111 = scalar_select %p108, %s109, %s110
    %p114 = pneg %p108
    %p115 = scmp.eq.s32.totalorder %s10, 1
    %p116 = por %p114, %p115
    %p117 = scmp.ne.s32.totalorder %s109, %s112
    %p118 = scmp.eq.s32.totalorder %s10, 0
    %p119 = por %p117, %p118
    %p120 = scmp.ne.s32.totalorder %s109, %s112
    %p121 = scmp.eq.s32.totalorder %s15, 1
    %p122 = por %p120, %p121
    %p123 = scmp.ne.s32.totalorder %s112, %s113
    %p124 = scmp.eq.s32.totalorder %s15, 0
    %p125 = por %p123, %p124
    %p126 = scmp.ne.s32.totalorder %s112, %s113
    %p127 = scmp.eq.s32.totalorder %s16, 1
    %p128 = por %p126, %p127
    %p130 = scmp.ne.s32.totalorder %s113, %s129
    %p131 = scmp.eq.s32.totalorder %s16, 0
    %p132 = por %p130, %p131
    %p133 = scmp.le.s32.totalorder 1, %s10
    %p134 = scmp.lt.s32.totalorder %s10, 3
    %p135 = pnand %p133, %p134
    %p136 = pneg %p135
    // Predicated region
    $region9: #{nb101_wrapper_forward.31} parent=5 // pred_check
      _
    $region10: #{nb101_wrapper_forward.31} parent=5 // pred_check_branch
      %138 = sbr.rel (%p135) target = $region12
    $region11: #{nb101_wrapper_forward.31} parent=5 // pred_region
      %s139 = ssub.s32 %s10, 1
      // Predicated region
      $region13: #{nb101_wrapper_forward.31} parent=11 // pred_check
        %p140 = pneg %p57
      $region14: #{nb101_wrapper_forward.31} parent=11 // pred_check_branch
        %142 = sbr.rel (%p140) target = $region16
      $region15: #{nb101_wrapper_forward.31} parent=11 // pred_region
        _
      $region16: #{nb101_wrapper_forward.31} parent=11 // pred_fallthru
        _
      // Predicated region
      $region17: #{nb101_wrapper_forward.31} parent=11 // pred_check
        %p143 = pneg %p78
      $region18: #{nb101_wrapper_forward.31} parent=11 // pred_check_branch
        %145 = sbr.rel (%p143) target = $region20
      $region19: #{nb101_wrapper_forward.31} parent=11 // pred_region
        _
      $region20: #{nb101_wrapper_forward.31} parent=11 // pred_fallthru
        _
      // Predicated region
      $region21: #{nb101_wrapper_forward.31} parent=11 // pred_check
        %p146 = pneg %p99
      $region22: #{nb101_wrapper_forward.31} parent=11 // pred_check_branch
        %148 = sbr.rel (%p146) target = $region24
      $region23: #{nb101_wrapper_forward.31} parent=11 // pred_region
        _
      $region24: #{nb101_wrapper_forward.31} parent=11 // pred_fallthru
        _
    $region12: #{nb101_wrapper_forward.31} parent=5 // pred_fallthru
      _
    %p149 = scmp.lt.s32.totalorder %s10, 2
    // Predicated region
    $region25: #{nb101_wrapper_forward.31} parent=5 // pred_check
      %p150 = pneg %p149
    $region26: #{nb101_wrapper_forward.31} parent=5 // pred_check_branch
      %152 = sbr.rel (%p150) target = $region28
    $region27: #{nb101_wrapper_forward.31} parent=5 // pred_region
      // Predicated region
      $region29: #{nb101_wrapper_forward.31} parent=27 // pred_check
        %p153 = pneg %p30
      $region30: #{nb101_wrapper_forward.31} parent=27 // pred_check_branch
        %155 = sbr.rel (%p153) target = $region32
      $region31: #{nb101_wrapper_forward.31} parent=27 // pred_region
        %s156 = smul.u32 32, %s10
        %p157 = scmp.lt.s32.totalorder %s156, 63
        %s158 = scalar_select %p157, %s156, 63
        %s159 = smul.addr %s158, 8
        %s160 = scalar_lea.vmem %s0, %s159
        %s161 = smul.u32 32, %s10
      $region32: #{nb101_wrapper_forward.31} parent=27 // pred_fallthru
        _
    $region28: #{nb101_wrapper_forward.31} parent=5 // pred_fallthru
      _
    %p162 = scmp.le.s32.totalorder 1, %s10
    %p163 = scmp.lt.s32.totalorder %s10, 3
    %p164 = pnand %p162, %p163
    %p165 = pneg %p164
    // Predicated region
    $region33: #{nb101_wrapper_forward.31} parent=5 // pred_check
      _
    $region34: #{nb101_wrapper_forward.31} parent=5 // pred_check_branch
      %167 = sbr.rel (%p164) target = $region36
    $region35: #{nb101_wrapper_forward.31} parent=5 // pred_region
      %s168 = ssub.s32 %s10, 1
      %s169 = smul.u32 32, %s15
      %p170 = scmp.lt.s32.totalorder %s169, 63
      %s171 = scalar_select %p170, %s169, 63
      %s172 = smul.addr %s171, 8
      %s173 = scalar_lea.vmem %s0, %s172
      %p174 = pneg %p36
      %p175 = pneg %p33
      %p176 = pneg %p57
      %p177 = pneg %p54
      %p178 = pneg %p78
      %p179 = pneg %p75
      %p180 = pneg %p99
      %p181 = pneg %p96
      %p182 = pneg %p125
      %p183 = pneg %p122
      %s184 = smul.u32 32, %s15
      %p185 = scmp.lt.s32.totalorder %s184, 63
      %s186 = scalar_select %p185, %s184, 63
      %s187 = smul.addr %s186, 8
      %s188 = scalar_lea.vmem %s4, %s187
      %s189 = smul.u32 32, %s15
      %p190 = scmp.lt.s32.totalorder %s189, 63
      %s191 = scalar_select %p190, %s189, 63
      %s192 = smul.addr %s191, 8
      %s193 = scalar_lea.vmem %s0, %s192
      %s194 = smul.u32 32, %s15
      %s195 = smul.u32 32, %s15
      %p196 = scmp.lt.s32.totalorder %s195, 63
      %s197 = scalar_select %p196, %s195, 63
      %s198 = smul.addr %s197, 8
      %s199 = scalar_lea.vmem %s4, %s198
      %s200 = smul.u32 32, %s15
      %v201 = vld [vmem:[%s193] sm:$0xff]
      %v202 = vld [vmem:[%s193 + $0x8] sm:$0xff]
      %v203 = vld [vmem:[%s193 + $0x10] sm:$0xff]
      %v204 = vld [vmem:[%s193 + $0x18] sm:$0xff]
      %v205 = vld [vmem:[%s193 + $0x20] sm:$0xff]
      %v206 = vld [vmem:[%s193 + $0x28] sm:$0xff]
      %v207 = vld [vmem:[%s193 + $0x30] sm:$0xff]
      %v208 = vld [vmem:[%s193 + $0x38] sm:$0xff]
      %v209 = vld [vmem:[%s193 + $0x40] sm:$0xff]
      %v210 = vld [vmem:[%s193 + $0x48] sm:$0xff]
      %v211 = vld [vmem:[%s193 + $0x50] sm:$0xff]
      %v212 = vld [vmem:[%s193 + $0x58] sm:$0xff]
      %v213 = vld [vmem:[%s193 + $0x60] sm:$0xff]
      %v214 = vld [vmem:[%s193 + $0x68] sm:$0xff]
      %v215 = vld [vmem:[%s193 + $0x70] sm:$0xff]
      %v216 = vld [vmem:[%s193 + $0x78] sm:$0xff]
      %v217 = vld [vmem:[%s193 + $0x80] sm:$0xff]
      %v218 = vld [vmem:[%s193 + $0x88] sm:$0xff]
      %v219 = vld [vmem:[%s193 + $0x90] sm:$0xff]
      %v220 = vld [vmem:[%s193 + $0x98] sm:$0xff]
      %v221 = vld [vmem:[%s193 + $0xa0] sm:$0xff]
      %v222 = vld [vmem:[%s193 + $0xa8] sm:$0xff]
      %v223 = vld [vmem:[%s193 + $0xb0] sm:$0xff]
      %v224 = vld [vmem:[%s193 + $0xb8] sm:$0xff]
      %v225 = vld [vmem:[%s193 + $0xc0] sm:$0xff]
      %v226 = vld [vmem:[%s193 + $0xc8] sm:$0xff]
      %v227 = vld [vmem:[%s193 + $0xd0] sm:$0xff]
      %v228 = vld [vmem:[%s193 + $0xd8] sm:$0xff]
      %v229 = vld [vmem:[%s193 + $0xe0] sm:$0xff]
      %v230 = vld [vmem:[%s193 + $0xe8] sm:$0xff]
      %v231 = vld [vmem:[%s193 + $0xf0] sm:$0xff]
      %v232 = vld [vmem:[%s193 + $0xf8] sm:$0xff]
      %v233 = vld [vmem:[%s1] sm:$0xff]
      %v234 = vld [vmem:[%s1 + $0x8] sm:$0xff]
      %v235 = vld [vmem:[%s1 + $0x10] sm:$0xff]
      %v236 = vld [vmem:[%s1 + $0x18] sm:$0xff]
      %v237 = vld [vmem:[%s1 + $0x20] sm:$0xff]
      %v238 = vld [vmem:[%s1 + $0x28] sm:$0xff]
      %v239 = vld [vmem:[%s1 + $0x30] sm:$0xff]
      %v240 = vld [vmem:[%s1 + $0x38] sm:$0xff]
      %v241 = vld [vmem:[%s1 + $0x40] sm:$0xff]
      %vm242 = vcmask 588800
      %v244 = vsel %vm242, %v201, 0
      %v247 = vsel %vm242, %v202, 0
      %v250 = vsel %vm242, %v203, 0
      %v253 = vsel %vm242, %v204, 0
      %v256 = vsel %vm242, %v205, 0
      %v259 = vsel %vm242, %v206, 0
      %v262 = vsel %vm242, %v207, 0
      %v265 = vsel %vm242, %v208, 0
      %v268 = vsel %vm242, %v209, 0
      %v271 = vsel %vm242, %v210, 0
      %v274 = vsel %vm242, %v211, 0
      %v277 = vsel %vm242, %v212, 0
      %v280 = vsel %vm242, %v213, 0
      %v283 = vsel %vm242, %v214, 0
      %v286 = vsel %vm242, %v215, 0
      %v289 = vsel %vm242, %v216, 0
      %v292 = vsel %vm242, %v217, 0
      %v295 = vsel %vm242, %v218, 0
      %v298 = vsel %vm242, %v219, 0
      %v301 = vsel %vm242, %v220, 0
      %v304 = vsel %vm242, %v221, 0
      %v307 = vsel %vm242, %v222, 0
      %v310 = vsel %vm242, %v223, 0
      %v313 = vsel %vm242, %v224, 0
      %v316 = vsel %vm242, %v225, 0
      %v319 = vsel %vm242, %v226, 0
      %v322 = vsel %vm242, %v227, 0
      %v325 = vsel %vm242, %v228, 0
      %v328 = vsel %vm242, %v229, 0
      %v331 = vsel %vm242, %v230, 0
      %v334 = vsel %vm242, %v231, 0
      %v337 = vsel %vm242, %v232, 0
      %339 = vmatprep.subr.mxu0 0.0
      %340 = vmatpush1.msra.mxu0 %v233
      %341 = vmatprep.subr.mxu0 0.0
      %342 = vmatpush1.msra.mxu0 %v234
      %343 = vmatprep.subr.mxu0 0.0
      %344 = vmatpush1.msra.mxu0 %v235
      %345 = vmatprep.subr.mxu0 0.0
      %346 = vmatpush1.msra.mxu0 %v236
      %347 = vmatprep.subr.mxu0 0.0
      %348 = vmatpush1.msra.mxu0 %v237
      %349 = vmatprep.subr.mxu0 0.0
      %350 = vmatpush1.msra.mxu0 %v238
      %351 = vmatprep.subr.mxu0 0.0
      %352 = vmatpush1.msra.mxu0 %v239
      %353 = vmatprep.subr.mxu0 0.0
      %354 = vmatpush1.msra.mxu0 %v240
      %355 = vmatprep.subr.mxu0 0.0
      %356 = vmatpush1.msra.mxu0 %v241
      %357 = vmatprep.subr.mxu0 0.0
      %358 = vmatpush1.msra.mxu0 0.0
      %359 = vmatprep.subr.mxu0 0.0
      %360 = vmatpush1.msra.mxu0 0.0
      %361 = vmatprep.subr.mxu0 0.0
      %362 = vmatpush1.msra.mxu0 0.0
      %363 = vmatprep.subr.mxu0 0.0
      %364 = vmatpush1.msra.mxu0 0.0
      %365 = vmatprep.subr.mxu0 0.0
      %366 = vmatpush1.msra.mxu0 0.0
      %367 = vmatprep.subr.mxu0 0.0
      %368 = vmatpush1.msra.mxu0 0.0
      %369 = vmatprep.subr.mxu0 0.0
      %370 = vmatpush1.msra.mxu0 0.0
      %371 = vmatprep.subr.mxu0 0.0
      %372 = vmatpush1.msra.mxu0 0.0
      %373 = vmatprep.subr.mxu0 0.0
      %374 = vmatpush1.msra.mxu0 0.0
      %375 = vmatprep.subr.mxu0 0.0
      %376 = vmatpush1.msra.mxu0 0.0
      %377 = vmatprep.subr.mxu0 0.0
      %378 = vmatpush1.msra.mxu0 0.0
      %379 = vmatprep.subr.mxu0 0.0
      %380 = vmatpush1.msra.mxu0 0.0
      %381 = vmatprep.subr.mxu0 0.0
      %382 = vmatpush1.msra.mxu0 0.0
      %383 = vmatprep.subr.mxu0 0.0
      %384 = vmatpush1.msra.mxu0 0.0
      %385 = vmatprep.subr.mxu0 0.0
      %386 = vmatpush1.msra.mxu0 0.0
      %387 = vmatprep.subr.mxu0 0.0
      %388 = vmatpush1.msra.mxu0 0.0
      %389 = vmatprep.subr.mxu0 0.0
      %390 = vmatpush1.msra.mxu0 0.0
      %391 = vmatprep.subr.mxu0 0.0
      %392 = vmatpush1.msra.mxu0 0.0
      %393 = vmatprep.subr.mxu0 0.0
      %394 = vmatpush1.msra.mxu0 0.0
      %395 = vmatprep.subr.mxu0 0.0
      %396 = vmatpush1.msra.mxu0 0.0
      %397 = vmatprep.subr.mxu0 0.0
      %398 = vmatpush1.msra.mxu0 0.0
      %399 = vmatprep.subr.mxu0 0.0
      %400 = vmatpush1.msra.mxu0 0.0
      %401 = vmatprep.subr.mxu0 0.0
      %402 = vmatpush1.msra.mxu0 0.0
      %403 = vmatprep.mubr.f32.mxu0 0.0
      %404 = vmatmul.mubr.f32.gmra.mrb[0].mxu0 %v244
      %v405 = vpop.f32.mrb[0].mxu0
      %v406 = vadd.f32 0.0, %v405
      %v407 = vpop.f32.mrb[0].mxu0
      %408 = vmatprep.mubr.f32.mxu0 0.0
      %409 = vmatmul.mubr.f32.gmra.mrb[0].mxu0 %v247
      %v410 = vpop.f32.mrb[0].mxu0
      %v411 = vadd.f32 0.0, %v410
      %v412 = vpop.f32.mrb[0].mxu0
      %413 = vmatprep.mubr.f32.mxu0 0.0
      %414 = vmatmul.mubr.f32.gmra.mrb[0].mxu0 %v250
      %v415 = vpop.f32.mrb[0].mxu0
      %v416 = vadd.f32 0.0, %v415
      %v417 = vpop.f32.mrb[0].mxu0
      %418 = vmatprep.mubr.f32.mxu0 0.0
      %419 = vmatmul.mubr.f32.gmra.mrb[0].mxu0 %v253
      %v420 = vpop.f32.mrb[0].mxu0
      %v421 = vadd.f32 0.0, %v420
      %v422 = vpop.f32.mrb[0].mxu0
      %423 = vmatprep.mubr.f32.mxu0 0.0
      %424 = vmatmul.mubr.f32.gmra.mrb[0].mxu0 %v256
      %v425 = vpop.f32.mrb[0].mxu0
      %v426 = vadd.f32 0.0, %v425
      %v427 = vpop.f32.mrb[0].mxu0
      %428 = vmatprep.mubr.f32.mxu0 0.0
      %429 = vmatmul.mubr.f32.gmra.mrb[0].mxu0 %v259
      %v430 = vpop.f32.mrb[0].mxu0
      %v431 = vadd.f32 0.0, %v430
      %v432 = vpop.f32.mrb[0].mxu0
      %433 = vmatprep.mubr.f32.mxu0 0.0
      %434 = vmatmul.mubr.f32.gmra.mrb[0].mxu0 %v262
      %v435 = vpop.f32.mrb[0].mxu0
      %v436 = vadd.f32 0.0, %v435
      %v437 = vpop.f32.mrb[0].mxu0
      %438 = vmatprep.mubr.f32.mxu0 0.0
      %439 = vmatmul.mubr.f32.gmra.mrb[0].mxu0 %v265
      %v440 = vpop.f32.mrb[0].mxu0
      %v441 = vadd.f32 0.0, %v440
      %v442 = vpop.f32.mrb[0].mxu0
      %443 = vmatprep.mubr.f32.mxu0 0.0
      %444 = vmatmul.mubr.f32.gmra.mrb[0].mxu0 %v268
      %v445 = vpop.f32.mrb[0].mxu0
      %v446 = vadd.f32 0.0, %v445
      %v447 = vpop.f32.mrb[0].mxu0
      %448 = vmatprep.mubr.f32.mxu0 0.0
      %449 = vmatmul.mubr.f32.gmra.mrb[0].mxu0 %v271
      %v450 = vpop.f32.mrb[0].mxu0
      %v451 = vadd.f32 0.0, %v450
      %v452 = vpop.f32.mrb[0].mxu0
      %453 = vmatprep.mubr.f32.mxu0 0.0
      %454 = vmatmul.mubr.f32.gmra.mrb[0].mxu0 %v274
      %v455 = vpop.f32.mrb[0].mxu0
      %v456 = vadd.f32 0.0, %v455
      %v457 = vpop.f32.mrb[0].mxu0
      %458 = vmatprep.mubr.f32.mxu0 0.0
      %459 = vmatmul.mubr.f32.gmra.mrb[0].mxu0 %v277
      %v460 = vpop.f32.mrb[0].mxu0
      %v461 = vadd.f32 0.0, %v460
      %v462 = vpop.f32.mrb[0].mxu0
      %463 = vmatprep.mubr.f32.mxu0 0.0
      %464 = vmatmul.mubr.f32.gmra.mrb[0].mxu0 %v280
      %v465 = vpop.f32.mrb[0].mxu0
      %v466 = vadd.f32 0.0, %v465
      %v467 = vpop.f32.mrb[0].mxu0
      %468 = vmatprep.mubr.f32.mxu0 0.0
      %469 = vmatmul.mubr.f32.gmra.mrb[0].mxu0 %v283
      %v470 = vpop.f32.mrb[0].mxu0
      %v471 = vadd.f32 0.0, %v470
      %v472 = vpop.f32.mrb[0].mxu0
      %473 = vmatprep.mubr.f32.mxu0 0.0
      %474 = vmatmul.mubr.f32.gmra.mrb[0].mxu0 %v286
      %v475 = vpop.f32.mrb[0].mxu0
      %v476 = vadd.f32 0.0, %v475
      %v477 = vpop.f32.mrb[0].mxu0
      %478 = vmatprep.mubr.f32.mxu0 0.0
      %479 = vmatmul.mubr.f32.gmra.mrb[0].mxu0 %v289
      %v480 = vpop.f32.mrb[0].mxu0
      %v481 = vadd.f32 0.0, %v480
      %v482 = vpop.f32.mrb[0].mxu0
      %483 = vmatprep.mubr.f32.mxu0 0.0
      %484 = vmatmul.mubr.f32.gmra.mrb[0].mxu0 %v292
      %v485 = vpop.f32.mrb[0].mxu0
      %v486 = vadd.f32 0.0, %v485
      %v487 = vpop.f32.mrb[0].mxu0
      %488 = vmatprep.mubr.f32.mxu0 0.0
      %489 = vmatmul.mubr.f32.gmra.mrb[0].mxu0 %v295
      %v490 = vpop.f32.mrb[0].mxu0
      %v491 = vadd.f32 0.0, %v490
      %v492 = vpop.f32.mrb[0].mxu0
      %493 = vmatprep.mubr.f32.mxu0 0.0
      %494 = vmatmul.mubr.f32.gmra.mrb[0].mxu0 %v298
      %v495 = vpop.f32.mrb[0].mxu0
      %v496 = vadd.f32 0.0, %v495
      %v497 = vpop.f32.mrb[0].mxu0
      %498 = vmatprep.mubr.f32.mxu0 0.0
      %499 = vmatmul.mubr.f32.gmra.mrb[0].mxu0 %v301
      %v500 = vpop.f32.mrb[0].mxu0
      %v501 = vadd.f32 0.0, %v500
      %v502 = vpop.f32.mrb[0].mxu0
      %503 = vmatprep.mubr.f32.mxu0 0.0
      %504 = vmatmul.mubr.f32.gmra.mrb[0].mxu0 %v304
      %v505 = vpop.f32.mrb[0].mxu0
      %v506 = vadd.f32 0.0, %v505
      %v507 = vpop.f32.mrb[0].mxu0
      %508 = vmatprep.mubr.f32.mxu0 0.0
      %509 = vmatmul.mubr.f32.gmra.mrb[0].mxu0 %v307
      %v510 = vpop.f32.mrb[0].mxu0
      %v511 = vadd.f32 0.0, %v510
      %v512 = vpop.f32.mrb[0].mxu0
      %513 = vmatprep.mubr.f32.mxu0 0.0
      %514 = vmatmul.mubr.f32.gmra.mrb[0].mxu0 %v310
      %v515 = vpop.f32.mrb[0].mxu0
      %v516 = vadd.f32 0.0, %v515
      %v517 = vpop.f32.mrb[0].mxu0
      %518 = vmatprep.mubr.f32.mxu0 0.0
      %519 = vmatmul.mubr.f32.gmra.mrb[0].mxu0 %v313
      %v520 = vpop.f32.mrb[0].mxu0
      %v521 = vadd.f32 0.0, %v520
      %v522 = vpop.f32.mrb[0].mxu0
      %523 = vmatprep.mubr.f32.mxu0 0.0
      %524 = vmatmul.mubr.f32.gmra.mrb[0].mxu0 %v316
      %v525 = vpop.f32.mrb[0].mxu0
      %v526 = vadd.f32 0.0, %v525
      %v527 = vpop.f32.mrb[0].mxu0
      %528 = vmatprep.mubr.f32.mxu0 0.0
      %529 = vmatmul.mubr.f32.gmra.mrb[0].mxu0 %v319
      %v530 = vpop.f32.mrb[0].mxu0
      %v531 = vadd.f32 0.0, %v530
      %v532 = vpop.f32.mrb[0].mxu0
      %533 = vmatprep.mubr.f32.mxu0 0.0
      %534 = vmatmul.mubr.f32.gmra.mrb[0].mxu0 %v322
      %v535 = vpop.f32.mrb[0].mxu0
      %v536 = vadd.f32 0.0, %v535
      %v537 = vpop.f32.mrb[0].mxu0
      %538 = vmatprep.mubr.f32.mxu0 0.0
      %539 = vmatmul.mubr.f32.gmra.mrb[0].mxu0 %v325
      %v540 = vpop.f32.mrb[0].mxu0
      %v541 = vadd.f32 0.0, %v540
      %v542 = vpop.f32.mrb[0].mxu0
      %543 = vmatprep.mubr.f32.mxu0 0.0
      %544 = vmatmul.mubr.f32.gmra.mrb[0].mxu0 %v328
      %v545 = vpop.f32.mrb[0].mxu0
      %v546 = vadd.f32 0.0, %v545
      %v547 = vpop.f32.mrb[0].mxu0
      %548 = vmatprep.mubr.f32.mxu0 0.0
      %549 = vmatmul.mubr.f32.gmra.mrb[0].mxu0 %v331
      %v550 = vpop.f32.mrb[0].mxu0
      %v551 = vadd.f32 0.0, %v550
      %v552 = vpop.f32.mrb[0].mxu0
      %553 = vmatprep.mubr.f32.mxu0 0.0
      %554 = vmatmul.mubr.f32.gmra.mrb[0].mxu0 %v334
      %v555 = vpop.f32.mrb[0].mxu0
      %v556 = vadd.f32 0.0, %v555
      %v557 = vpop.f32.mrb[0].mxu0
      %558 = vmatprep.mubr.f32.mxu0 0.0
      %559 = vmatmul.mubr.f32.gmra.mrb[0].mxu0 %v337
      %v560 = vpop.f32.mrb[0].mxu0
      %v561 = vadd.f32 0.0, %v560
      %v562 = vpop.f32.mrb[0].mxu0
      %563 = vdwg.mxu0
      %v564 = vld [vmem:[%s2] sm:$0x1]
      %v566 = vlaneseq
      %v567 = vshrl.u32 %v566, 7
      %v568 = vsub.s32 0, %v567
      %v569 = vrot.slane %v564, %v568
      %v571 = vmul.f32 %v406, %v569
      %v572 = vmul.f32 %v411, %v569
      %v573 = vmul.f32 %v416, %v569
      %v574 = vmul.f32 %v421, %v569
      %v575 = vmul.f32 %v426, %v569
      %v576 = vmul.f32 %v431, %v569
      %v577 = vmul.f32 %v436, %v569
      %v578 = vmul.f32 %v441, %v569
      %v579 = vmul.f32 %v446, %v569
      %v580 = vmul.f32 %v451, %v569
      %v581 = vmul.f32 %v456, %v569
      %v582 = vmul.f32 %v461, %v569
      %v583 = vmul.f32 %v466, %v569
      %v584 = vmul.f32 %v471, %v569
      %v585 = vmul.f32 %v476, %v569
      %v586 = vmul.f32 %v481, %v569
      %v587 = vmul.f32 %v486, %v569
      %v588 = vmul.f32 %v491, %v569
      %v589 = vmul.f32 %v496, %v569
      %v590 = vmul.f32 %v501, %v569
      %v591 = vmul.f32 %v506, %v569
      %v592 = vmul.f32 %v511, %v569
      %v593 = vmul.f32 %v516, %v569
      %v594 = vmul.f32 %v521, %v569
      %v595 = vmul.f32 %v526, %v569
      %v596 = vmul.f32 %v531, %v569
      %v597 = vmul.f32 %v536, %v569
      %v598 = vmul.f32 %v541, %v569
      %v599 = vmul.f32 %v546, %v569
      %v600 = vmul.f32 %v551, %v569
      %v601 = vmul.f32 %v556, %v569
      %v602 = vmul.f32 %v561, %v569
      %v603 = vld [vmem:[%s3] sm:$0x1]
      %v605 = vlaneseq
      %v606 = vshrl.u32 %v605, 7
      %v607 = vsub.s32 0, %v606
      %v608 = vrot.slane %v603, %v607
      %v610 = vadd.f32 %v571, %v608
      %v611 = vadd.f32 %v572, %v608
      %v612 = vadd.f32 %v573, %v608
      %v613 = vadd.f32 %v574, %v608
      %v614 = vadd.f32 %v575, %v608
      %v615 = vadd.f32 %v576, %v608
      %v616 = vadd.f32 %v577, %v608
      %v617 = vadd.f32 %v578, %v608
      %v618 = vadd.f32 %v579, %v608
      %v619 = vadd.f32 %v580, %v608
      %v620 = vadd.f32 %v581, %v608
      %v621 = vadd.f32 %v582, %v608
      %v622 = vadd.f32 %v583, %v608
      %v623 = vadd.f32 %v584, %v608
      %v624 = vadd.f32 %v585, %v608
      %v625 = vadd.f32 %v586, %v608
      %v626 = vadd.f32 %v587, %v608
      %v627 = vadd.f32 %v588, %v608
      %v628 = vadd.f32 %v589, %v608
      %v629 = vadd.f32 %v590, %v608
      %v630 = vadd.f32 %v591, %v608
      %v631 = vadd.f32 %v592, %v608
      %v632 = vadd.f32 %v593, %v608
      %v633 = vadd.f32 %v594, %v608
      %v634 = vadd.f32 %v595, %v608
      %v635 = vadd.f32 %v596, %v608
      %v636 = vadd.f32 %v597, %v608
      %v637 = vadd.f32 %v598, %v608
      %v638 = vadd.f32 %v599, %v608
      %v639 = vadd.f32 %v600, %v608
      %v640 = vadd.f32 %v601, %v608
      %v641 = vadd.f32 %v602, %v608
      %v642 = vmax.f32 %v610, 0.0
      %v643 = vmax.f32 %v611, 0.0
      %v644 = vmax.f32 %v612, 0.0
      %v645 = vmax.f32 %v613, 0.0
      %v646 = vmax.f32 %v614, 0.0
      %v647 = vmax.f32 %v615, 0.0
      %v648 = vmax.f32 %v616, 0.0
      %v649 = vmax.f32 %v617, 0.0
      %v650 = vmax.f32 %v618, 0.0
      %v651 = vmax.f32 %v619, 0.0
      %v652 = vmax.f32 %v620, 0.0
      %v653 = vmax.f32 %v621, 0.0
      %v654 = vmax.f32 %v622, 0.0
      %v655 = vmax.f32 %v623, 0.0
      %v656 = vmax.f32 %v624, 0.0
      %v657 = vmax.f32 %v625, 0.0
      %v658 = vmax.f32 %v626, 0.0
      %v659 = vmax.f32 %v627, 0.0
      %v660 = vmax.f32 %v628, 0.0
      %v661 = vmax.f32 %v629, 0.0
      %v662 = vmax.f32 %v630, 0.0
      %v663 = vmax.f32 %v631, 0.0
      %v664 = vmax.f32 %v632, 0.0
      %v665 = vmax.f32 %v633, 0.0
      %v666 = vmax.f32 %v634, 0.0
      %v667 = vmax.f32 %v635, 0.0
      %v668 = vmax.f32 %v636, 0.0
      %v669 = vmax.f32 %v637, 0.0
      %v670 = vmax.f32 %v638, 0.0
      %v671 = vmax.f32 %v639, 0.0
      %v672 = vmax.f32 %v640, 0.0
      %v673 = vmax.f32 %v641, 0.0
      %674 = vst [vmem:[%s199] sm:$0xff] %v642
      %675 = vst [vmem:[%s199 + $0x8] sm:$0xff] %v643
      %676 = vst [vmem:[%s199 + $0x10] sm:$0xff] %v644
      %677 = vst [vmem:[%s199 + $0x18] sm:$0xff] %v645
      %678 = vst [vmem:[%s199 + $0x20] sm:$0xff] %v646
      %679 = vst [vmem:[%s199 + $0x28] sm:$0xff] %v647
      %680 = vst [vmem:[%s199 + $0x30] sm:$0xff] %v648
      %681 = vst [vmem:[%s199 + $0x38] sm:$0xff] %v649
      %682 = vst [vmem:[%s199 + $0x40] sm:$0xff] %v650
      %683 = vst [vmem:[%s199 + $0x48] sm:$0xff] %v651
      %684 = vst [vmem:[%s199 + $0x50] sm:$0xff] %v652
      %685 = vst [vmem:[%s199 + $0x58] sm:$0xff] %v653
      %686 = vst [vmem:[%s199 + $0x60] sm:$0xff] %v654
      %687 = vst [vmem:[%s199 + $0x68] sm:$0xff] %v655
      %688 = vst [vmem:[%s199 + $0x70] sm:$0xff] %v656
      %689 = vst [vmem:[%s199 + $0x78] sm:$0xff] %v657
      %690 = vst [vmem:[%s199 + $0x80] sm:$0xff] %v658
      %691 = vst [vmem:[%s199 + $0x88] sm:$0xff] %v659
      %692 = vst [vmem:[%s199 + $0x90] sm:$0xff] %v660
      %693 = vst [vmem:[%s199 + $0x98] sm:$0xff] %v661
      %694 = vst [vmem:[%s199 + $0xa0] sm:$0xff] %v662
      %695 = vst [vmem:[%s199 + $0xa8] sm:$0xff] %v663
      %696 = vst [vmem:[%s199 + $0xb0] sm:$0xff] %v664
      %697 = vst [vmem:[%s199 + $0xb8] sm:$0xff] %v665
      %698 = vst [vmem:[%s199 + $0xc0] sm:$0xff] %v666
      %699 = vst [vmem:[%s199 + $0xc8] sm:$0xff] %v667
      %700 = vst [vmem:[%s199 + $0xd0] sm:$0xff] %v668
      %701 = vst [vmem:[%s199 + $0xd8] sm:$0xff] %v669
      %702 = vst [vmem:[%s199 + $0xe0] sm:$0xff] %v670
      %703 = vst [vmem:[%s199 + $0xe8] sm:$0xff] %v671
      %704 = vst [vmem:[%s199 + $0xf0] sm:$0xff] %v672
      %705 = vst [vmem:[%s199 + $0xf8] sm:$0xff] %v673
      %s706 = smul.u32 32, %s15
      %p707 = scmp.lt.s32.totalorder %s706, 63
      %s708 = scalar_select %p707, %s706, 63
      %s709 = smul.addr %s708, 8
      %s710 = scalar_lea.vmem %s4, %s709
      // Predicated region
      $region37: #{nb101_wrapper_forward.31} parent=35 // pred_check
        %p711 = pneg %p122
      $region38: #{nb101_wrapper_forward.31} parent=35 // pred_check_branch
        %713 = sbr.rel (%p711) target = $region40
      $region39: #{nb101_wrapper_forward.31} parent=35 // pred_region
        %s714 = smul.u32 32, %s15
      $region40: #{nb101_wrapper_forward.31} parent=35 // pred_fallthru
        _
    $region36: #{nb101_wrapper_forward.31} parent=5 // pred_fallthru
      _
    %p715 = scmp.le.s32.totalorder 2, %s10
    // Predicated region
    $region41: #{nb101_wrapper_forward.31} parent=5 // pred_check
      %p716 = pneg %p715
    $region42: #{nb101_wrapper_forward.31} parent=5 // pred_check_branch
      %718 = sbr.rel (%p716) target = $region44
    $region43: #{nb101_wrapper_forward.31} parent=5 // pred_region
      %s719 = ssub.s32 %s10, 2
      // Predicated region
      $region45: #{nb101_wrapper_forward.31} parent=43 // pred_check
        %p720 = pneg %p128
      $region46: #{nb101_wrapper_forward.31} parent=43 // pred_check_branch
        %722 = sbr.rel (%p720) target = $region48
      $region47: #{nb101_wrapper_forward.31} parent=43 // pred_region
        %s723 = smul.u32 32, %s16
        %p724 = scmp.lt.s32.totalorder %s723, 63
        %s725 = scalar_select %p724, %s723, 63
        %s726 = smul.addr %s725, 8
        %s727 = scalar_lea.vmem %s4, %s726
      $region48: #{nb101_wrapper_forward.31} parent=43 // pred_fallthru
        _
    $region44: #{nb101_wrapper_forward.31} parent=5 // pred_fallthru
      _
  $region6: #{nb101_wrapper_forward.31} parent=0 // loop_footer
    %s14 = sadd.s32 1, %s10
  $region7: #{nb101_wrapper_forward.31} parent=0 // loop_footer_branch
    %9 = sbr.rel target = $region3
  $region8: #{nb101_wrapper_forward.31} parent=0 // loop_exit
    _

// kernel: nb101_wrapper_forward.33
$region0: #{nb101_wrapper_forward.33}
  #allocation0 [shape = 'u32[]', space=smem, size = 0x4, offset = 0x4, fixed_abs, tag = 'smem constant byte address 0x4 - core index']
  #allocation1 [shape = 'u32[144,128]{1,0:T(1,128)}', space=vmem, size = 0x12000, scoped, tag = 'internal scratch']
  %s0 = inlined_call_operand.vmem [shape: f32[512,128], index: 0, kind: input, shape index: {}]
  %s1 = inlined_call_operand.vmem [shape: f32[512,128], index: 1, kind: input, shape index: {}]
  %s2 = inlined_call_operand.vmem [shape: f32[512,128], index: 2, kind: input, shape index: {}]
  %s3 = inlined_call_operand.vmem [shape: f32[512,128], index: 3, kind: input, shape index: {}]
  %s4 = inlined_call_operand.vmem [shape: f32[512,128], index: 4, kind: output, shape index: {}]
  %s5 = sld [smem:[#allocation0]]
  $region49: #{nb101_wrapper_forward.33} parent=0
    _
  %s7 = ssub.s32 1, %s5
  %s8 = scalar_select 0, %s7, %s5
  loop: start=0, step=1, limit=4
  $region2: #{nb101_wrapper_forward.33} parent=0 // loop_pre_header
    _
  $region3: #{nb101_wrapper_forward.33} parent=0 // loop_header
    %s10 = sphi 0, %s14
    %p11 = scmp.ge.s32.totalorder %s10, 4
    %s20 = sphi 0, %s22
    %s23 = sphi 0, %s20
    %s24 = sphi 0, %s23
    %s40 = sphi 0, %s24
    %s46 = sphi 0, %s48
    %s49 = sphi 0, %s46
    %s50 = sphi 0, %s49
    %s66 = sphi 0, %s50
    %s72 = sphi 0, %s74
    %s75 = sphi 0, %s72
    %s76 = sphi 0, %s75
    %s92 = sphi 0, %s76
    %s98 = sphi 0, %s100
    %s101 = sphi 0, %s98
    %s102 = sphi 0, %s101
    %s118 = sphi 0, %s102
    %s124 = sphi 0, %s126
    %s127 = sphi 0, %s124
    %s128 = sphi 0, %s127
    %s144 = sphi 0, %s128
  $region4: #{nb101_wrapper_forward.33} parent=0 // loop_header_branch
    %13 = sbr.rel (%p11) target = $region8
  $region5: #{nb101_wrapper_forward.33} parent=0 // loop_body
    %s15 = ssub.s32 %s10, 1
    %s16 = ssub.s32 %s10, 2
    %s17 = sadd.s32 %s10, 1
    %s18 = ssub.s32 %s10, %s17
    %p19 = scmp.eq.s32.totalorder %s18, 0
    %s21 = sadd.s32 %s20, 1
    %s22 = scalar_select %p19, %s20, %s21
    %p25 = pneg %p19
    %p26 = scmp.eq.s32.totalorder %s10, 1
    %p27 = por %p25, %p26
    %p28 = scmp.ne.s32.totalorder %s20, %s23
    %p29 = scmp.eq.s32.totalorder %s10, 0
    %p30 = por %p28, %p29
    %p31 = scmp.ne.s32.totalorder %s20, %s23
    %p32 = scmp.eq.s32.totalorder %s15, 1
    %p33 = por %p31, %p32
    %p34 = scmp.ne.s32.totalorder %s23, %s24
    %p35 = scmp.eq.s32.totalorder %s15, 0
    %p36 = por %p34, %p35
    %p37 = scmp.ne.s32.totalorder %s23, %s24
    %p38 = scmp.eq.s32.totalorder %s16, 1
    %p39 = por %p37, %p38
    %p41 = scmp.ne.s32.totalorder %s24, %s40
    %p42 = scmp.eq.s32.totalorder %s16, 0
    %p43 = por %p41, %p42
    %s44 = ssub.s32 %s10, %s17
    %p45 = scmp.eq.s32.totalorder %s44, 0
    %s47 = sadd.s32 %s46, 1
    %s48 = scalar_select %p45, %s46, %s47
    %p51 = pneg %p45
    %p52 = scmp.eq.s32.totalorder %s10, 1
    %p53 = por %p51, %p52
    %p54 = scmp.ne.s32.totalorder %s46, %s49
    %p55 = scmp.eq.s32.totalorder %s10, 0
    %p56 = por %p54, %p55
    %p57 = scmp.ne.s32.totalorder %s46, %s49
    %p58 = scmp.eq.s32.totalorder %s15, 1
    %p59 = por %p57, %p58
    %p60 = scmp.ne.s32.totalorder %s49, %s50
    %p61 = scmp.eq.s32.totalorder %s15, 0
    %p62 = por %p60, %p61
    %p63 = scmp.ne.s32.totalorder %s49, %s50
    %p64 = scmp.eq.s32.totalorder %s16, 1
    %p65 = por %p63, %p64
    %p67 = scmp.ne.s32.totalorder %s50, %s66
    %p68 = scmp.eq.s32.totalorder %s16, 0
    %p69 = por %p67, %p68
    %s70 = ssub.s32 %s10, %s17
    %p71 = scmp.eq.s32.totalorder %s70, 0
    %s73 = sadd.s32 %s72, 1
    %s74 = scalar_select %p71, %s72, %s73
    %p77 = pneg %p71
    %p78 = scmp.eq.s32.totalorder %s10, 1
    %p79 = por %p77, %p78
    %p80 = scmp.ne.s32.totalorder %s72, %s75
    %p81 = scmp.eq.s32.totalorder %s10, 0
    %p82 = por %p80, %p81
    %p83 = scmp.ne.s32.totalorder %s72, %s75
    %p84 = scmp.eq.s32.totalorder %s15, 1
    %p85 = por %p83, %p84
    %p86 = scmp.ne.s32.totalorder %s75, %s76
    %p87 = scmp.eq.s32.totalorder %s15, 0
    %p88 = por %p86, %p87
    %p89 = scmp.ne.s32.totalorder %s75, %s76
    %p90 = scmp.eq.s32.totalorder %s16, 1
    %p91 = por %p89, %p90
    %p93 = scmp.ne.s32.totalorder %s76, %s92
    %p94 = scmp.eq.s32.totalorder %s16, 0
    %p95 = por %p93, %p94
    %s96 = ssub.s32 %s10, %s17
    %p97 = scmp.eq.s32.totalorder %s96, 0
    %s99 = sadd.s32 %s98, 1
    %s100 = scalar_select %p97, %s98, %s99
    %p103 = pneg %p97
    %p104 = scmp.eq.s32.totalorder %s10, 1
    %p105 = por %p103, %p104
    %p106 = scmp.ne.s32.totalorder %s98, %s101
    %p107 = scmp.eq.s32.totalorder %s10, 0
    %p108 = por %p106, %p107
    %p109 = scmp.ne.s32.totalorder %s98, %s101
    %p110 = scmp.eq.s32.totalorder %s15, 1
    %p111 = por %p109, %p110
    %p112 = scmp.ne.s32.totalorder %s101, %s102
    %p113 = scmp.eq.s32.totalorder %s15, 0
    %p114 = por %p112, %p113
    %p115 = scmp.ne.s32.totalorder %s101, %s102
    %p116 = scmp.eq.s32.totalorder %s16, 1
    %p117 = por %p115, %p116
    %p119 = scmp.ne.s32.totalorder %s102, %s118
    %p120 = scmp.eq.s32.totalorder %s16, 0
    %p121 = por %p119, %p120
    %s122 = ssub.s32 %s10, %s17
    %p123 = scmp.eq.s32.totalorder %s122, 0
    %s125 = sadd.s32 %s124, 1
    %s126 = scalar_select %p123, %s124, %s125
    %p129 = pneg %p123
    %p130 = scmp.eq.s32.totalorder %s10, 1
    %p131 = por %p129, %p130
    %p132 = scmp.ne.s32.totalorder %s124, %s127
    %p133 = scmp.eq.s32.totalorder %s10, 0
    %p134 = por %p132, %p133
    %p135 = scmp.ne.s32.totalorder %s124, %s127
    %p136 = scmp.eq.s32.totalorder %s15, 1
    %p137 = por %p135, %p136
    %p138 = scmp.ne.s32.totalorder %s127, %s128
    %p139 = scmp.eq.s32.totalorder %s15, 0
    %p140 = por %p138, %p139
    %p141 = scmp.ne.s32.totalorder %s127, %s128
    %p142 = scmp.eq.s32.totalorder %s16, 1
    %p143 = por %p141, %p142
    %p145 = scmp.ne.s32.totalorder %s128, %s144
    %p146 = scmp.eq.s32.totalorder %s16, 0
    %p147 = por %p145, %p146
    %p148 = scmp.le.s32.totalorder 1, %s10
    %p149 = scmp.lt.s32.totalorder %s10, 3
    %p150 = pnand %p148, %p149
    %p151 = pneg %p150
    // Predicated region
    $region9: #{nb101_wrapper_forward.33} parent=5 // pred_check
      _
    $region10: #{nb101_wrapper_forward.33} parent=5 // pred_check_branch
      %153 = sbr.rel (%p150) target = $region12
    $region11: #{nb101_wrapper_forward.33} parent=5 // pred_region
      %s154 = ssub.s32 %s10, 1
    $region12: #{nb101_wrapper_forward.33} parent=5 // pred_fallthru
      _
    %p155 = scmp.lt.s32.totalorder %s10, 2
    // Predicated region
    $region13: #{nb101_wrapper_forward.33} parent=5 // pred_check
      %p156 = pneg %p155
    $region14: #{nb101_wrapper_forward.33} parent=5 // pred_check_branch
      %158 = sbr.rel (%p156) target = $region16
    $region15: #{nb101_wrapper_forward.33} parent=5 // pred_region
      // Predicated region
      $region17: #{nb101_wrapper_forward.33} parent=15 // pred_check
        %p159 = pneg %p30
      $region18: #{nb101_wrapper_forward.33} parent=15 // pred_check_branch
        %161 = sbr.rel (%p159) target = $region20
      $region19: #{nb101_wrapper_forward.33} parent=15 // pred_region
        %s162 = smul.u32 32, %s10
        %p163 = scmp.lt.s32.totalorder %s162, 63
        %s164 = scalar_select %p163, %s162, 63
        %s165 = smul.addr %s164, 8
        %s166 = scalar_lea.vmem %s0, %s165
        %s167 = smul.u32 32, %s10
      $region20: #{nb101_wrapper_forward.33} parent=15 // pred_fallthru
        _
      // Predicated region
      $region21: #{nb101_wrapper_forward.33} parent=15 // pred_check
        %p168 = pneg %p56
      $region22: #{nb101_wrapper_forward.33} parent=15 // pred_check_branch
        %170 = sbr.rel (%p168) target = $region24
      $region23: #{nb101_wrapper_forward.33} parent=15 // pred_region
        %s171 = smul.u32 32, %s10
        %p172 = scmp.lt.s32.totalorder %s171, 63
        %s173 = scalar_select %p172, %s171, 63
        %s174 = smul.addr %s173, 8
        %s175 = scalar_lea.vmem %s1, %s174
        %s176 = smul.u32 32, %s10
      $region24: #{nb101_wrapper_forward.33} parent=15 // pred_fallthru
        _
      // Predicated region
      $region25: #{nb101_wrapper_forward.33} parent=15 // pred_check
        %p177 = pneg %p82
      $region26: #{nb101_wrapper_forward.33} parent=15 // pred_check_branch
        %179 = sbr.rel (%p177) target = $region28
      $region27: #{nb101_wrapper_forward.33} parent=15 // pred_region
        %s180 = smul.u32 32, %s10
        %p181 = scmp.lt.s32.totalorder %s180, 63
        %s182 = scalar_select %p181, %s180, 63
        %s183 = smul.addr %s182, 8
        %s184 = scalar_lea.vmem %s2, %s183
        %s185 = smul.u32 32, %s10
      $region28: #{nb101_wrapper_forward.33} parent=15 // pred_fallthru
        _
      // Predicated region
      $region29: #{nb101_wrapper_forward.33} parent=15 // pred_check
        %p186 = pneg %p108
      $region30: #{nb101_wrapper_forward.33} parent=15 // pred_check_branch
        %188 = sbr.rel (%p186) target = $region32
      $region31: #{nb101_wrapper_forward.33} parent=15 // pred_region
        %s189 = smul.u32 32, %s10
        %p190 = scmp.lt.s32.totalorder %s189, 63
        %s191 = scalar_select %p190, %s189, 63
        %s192 = smul.addr %s191, 8
        %s193 = scalar_lea.vmem %s3, %s192
        %s194 = smul.u32 32, %s10
      $region32: #{nb101_wrapper_forward.33} parent=15 // pred_fallthru
        _
    $region16: #{nb101_wrapper_forward.33} parent=5 // pred_fallthru
      _
    %p195 = scmp.le.s32.totalorder 1, %s10
    %p196 = scmp.lt.s32.totalorder %s10, 3
    %p197 = pnand %p195, %p196
    %p198 = pneg %p197
    // Predicated region
    $region33: #{nb101_wrapper_forward.33} parent=5 // pred_check
      _
    $region34: #{nb101_wrapper_forward.33} parent=5 // pred_check_branch
      %200 = sbr.rel (%p197) target = $region36
    $region35: #{nb101_wrapper_forward.33} parent=5 // pred_region
      %s201 = ssub.s32 %s10, 1
      %s202 = smul.u32 32, %s15
      %p203 = scmp.lt.s32.totalorder %s202, 63
      %s204 = scalar_select %p203, %s202, 63
      %s205 = smul.addr %s204, 8
      %s206 = scalar_lea.vmem %s0, %s205
      %p207 = pneg %p36
      %p208 = pneg %p33
      %s209 = smul.u32 32, %s15
      %p210 = scmp.lt.s32.totalorder %s209, 63
      %s211 = scalar_select %p210, %s209, 63
      %s212 = smul.addr %s211, 8
      %s213 = scalar_lea.vmem %s1, %s212
      %p214 = pneg %p62
      %p215 = pneg %p59
      %s216 = smul.u32 32, %s15
      %p217 = scmp.lt.s32.totalorder %s216, 63
      %s218 = scalar_select %p217, %s216, 63
      %s219 = smul.addr %s218, 8
      %s220 = scalar_lea.vmem %s2, %s219
      %p221 = pneg %p88
      %p222 = pneg %p85
      %s223 = smul.u32 32, %s15
      %p224 = scmp.lt.s32.totalorder %s223, 63
      %s225 = scalar_select %p224, %s223, 63
      %s226 = smul.addr %s225, 8
      %s227 = scalar_lea.vmem %s3, %s226
      %p228 = pneg %p114
      %p229 = pneg %p111
      %p230 = pneg %p140
      %p231 = pneg %p137
      %s232 = smul.u32 32, %s15
      %p233 = scmp.lt.s32.totalorder %s232, 63
      %s234 = scalar_select %p233, %s232, 63
      %s235 = smul.addr %s234, 8
      %s236 = scalar_lea.vmem %s4, %s235
      %s237 = smul.u32 32, %s15
      %p238 = scmp.lt.s32.totalorder %s237, 63
      %s239 = scalar_select %p238, %s237, 63
      %s240 = smul.addr %s239, 8
      %s241 = scalar_lea.vmem %s0, %s240
      %s242 = smul.u32 32, %s15
      %s243 = smul.u32 32, %s15
      %p244 = scmp.lt.s32.totalorder %s243, 63
      %s245 = scalar_select %p244, %s243, 63
      %s246 = smul.addr %s245, 8
      %s247 = scalar_lea.vmem %s1, %s246
      %s248 = smul.u32 32, %s15
      %s249 = smul.u32 32, %s15
      %p250 = scmp.lt.s32.totalorder %s249, 63
      %s251 = scalar_select %p250, %s249, 63
      %s252 = smul.addr %s251, 8
      %s253 = scalar_lea.vmem %s2, %s252
      %s254 = smul.u32 32, %s15
      %s255 = smul.u32 32, %s15
      %p256 = scmp.lt.s32.totalorder %s255, 63
      %s257 = scalar_select %p256, %s255, 63
      %s258 = smul.addr %s257, 8
      %s259 = scalar_lea.vmem %s3, %s258
      %s260 = smul.u32 32, %s15
      %s261 = smul.u32 32, %s15
      %p262 = scmp.lt.s32.totalorder %s261, 63
      %s263 = scalar_select %p262, %s261, 63
      %s264 = smul.addr %s263, 8
      %s265 = scalar_lea.vmem %s4, %s264
      %s266 = smul.u32 32, %s15
      %v267 = vld [vmem:[%s241] sm:$0xff]
      %v268 = vld [vmem:[%s241 + $0x8] sm:$0xff]
      %v269 = vld [vmem:[%s241 + $0x10] sm:$0xff]
      %v270 = vld [vmem:[%s241 + $0x18] sm:$0xff]
      %v271 = vld [vmem:[%s241 + $0x20] sm:$0xff]
      %v272 = vld [vmem:[%s241 + $0x28] sm:$0xff]
      %v273 = vld [vmem:[%s241 + $0x30] sm:$0xff]
      %v274 = vld [vmem:[%s241 + $0x38] sm:$0xff]
      %v275 = vld [vmem:[%s241 + $0x40] sm:$0xff]
      %v276 = vld [vmem:[%s241 + $0x48] sm:$0xff]
      %v277 = vld [vmem:[%s241 + $0x50] sm:$0xff]
      %v278 = vld [vmem:[%s241 + $0x58] sm:$0xff]
      %v279 = vld [vmem:[%s241 + $0x60] sm:$0xff]
      %v280 = vld [vmem:[%s241 + $0x68] sm:$0xff]
      %v281 = vld [vmem:[%s241 + $0x70] sm:$0xff]
      %v282 = vld [vmem:[%s241 + $0x78] sm:$0xff]
      %v283 = vld [vmem:[%s241 + $0x80] sm:$0xff]
      %v284 = vld [vmem:[%s241 + $0x88] sm:$0xff]
      %v285 = vld [vmem:[%s241 + $0x90] sm:$0xff]
      %v286 = vld [vmem:[%s241 + $0x98] sm:$0xff]
      %v287 = vld [vmem:[%s241 + $0xa0] sm:$0xff]
      %v288 = vld [vmem:[%s241 + $0xa8] sm:$0xff]
      %v289 = vld [vmem:[%s241 + $0xb0] sm:$0xff]
      %v290 = vld [vmem:[%s241 + $0xb8] sm:$0xff]
      %v291 = vld [vmem:[%s241 + $0xc0] sm:$0xff]
      %v292 = vld [vmem:[%s241 + $0xc8] sm:$0xff]
      %v293 = vld [vmem:[%s241 + $0xd0] sm:$0xff]
      %v294 = vld [vmem:[%s241 + $0xd8] sm:$0xff]
      %v295 = vld [vmem:[%s241 + $0xe0] sm:$0xff]
      %v296 = vld [vmem:[%s241 + $0xe8] sm:$0xff]
      %v297 = vld [vmem:[%s241 + $0xf0] sm:$0xff]
      %v298 = vld [vmem:[%s241 + $0xf8] sm:$0xff]
      %v299 = vld [vmem:[%s247] sm:$0xff]
      %v300 = vld [vmem:[%s247 + $0x8] sm:$0xff]
      %v301 = vld [vmem:[%s247 + $0x10] sm:$0xff]
      %v302 = vld [vmem:[%s247 + $0x18] sm:$0xff]
      %v303 = vld [vmem:[%s247 + $0x20] sm:$0xff]
      %v304 = vld [vmem:[%s247 + $0x28] sm:$0xff]
      %v305 = vld [vmem:[%s247 + $0x30] sm:$0xff]
      %v306 = vld [vmem:[%s247 + $0x38] sm:$0xff]
      %v307 = vld [vmem:[%s247 + $0x40] sm:$0xff]
      %v308 = vld [vmem:[%s247 + $0x48] sm:$0xff]
      %v309 = vld [vmem:[%s247 + $0x50] sm:$0xff]
      %v310 = vld [vmem:[%s247 + $0x58] sm:$0xff]
      %v311 = vld [vmem:[%s247 + $0x60] sm:$0xff]
      %v312 = vld [vmem:[%s247 + $0x68] sm:$0xff]
      %v313 = vld [vmem:[%s247 + $0x70] sm:$0xff]
      %v314 = vld [vmem:[%s247 + $0x78] sm:$0xff]
      %v315 = vld [vmem:[%s247 + $0x80] sm:$0xff]
      %v316 = vld [vmem:[%s247 + $0x88] sm:$0xff]
      %v317 = vld [vmem:[%s247 + $0x90] sm:$0xff]
      %v318 = vld [vmem:[%s247 + $0x98] sm:$0xff]
      %v319 = vld [vmem:[%s247 + $0xa0] sm:$0xff]
      %v320 = vld [vmem:[%s247 + $0xa8] sm:$0xff]
      %v321 = vld [vmem:[%s247 + $0xb0] sm:$0xff]
      %v322 = vld [vmem:[%s247 + $0xb8] sm:$0xff]
      %v323 = vld [vmem:[%s247 + $0xc0] sm:$0xff]
      %v324 = vld [vmem:[%s247 + $0xc8] sm:$0xff]
      %v325 = vld [vmem:[%s247 + $0xd0] sm:$0xff]
      %v326 = vld [vmem:[%s247 + $0xd8] sm:$0xff]
      %v327 = vld [vmem:[%s247 + $0xe0] sm:$0xff]
      %v328 = vld [vmem:[%s247 + $0xe8] sm:$0xff]
      %v329 = vld [vmem:[%s247 + $0xf0] sm:$0xff]
      %v330 = vld [vmem:[%s247 + $0xf8] sm:$0xff]
      %v331 = vadd.f32 %v267, %v299
      %v332 = vadd.f32 %v268, %v300
      %v333 = vadd.f32 %v269, %v301
      %v334 = vadd.f32 %v270, %v302
      %v335 = vadd.f32 %v271, %v303
      %v336 = vadd.f32 %v272, %v304
      %v337 = vadd.f32 %v273, %v305
      %v338 = vadd.f32 %v274, %v306
      %v339 = vadd.f32 %v275, %v307
      %v340 = vadd.f32 %v276, %v308
      %v341 = vadd.f32 %v277, %v309
      %v342 = vadd.f32 %v278, %v310
      %v343 = vadd.f32 %v279, %v311
      %v344 = vadd.f32 %v280, %v312
      %v345 = vadd.f32 %v281, %v313
      %v346 = vadd.f32 %v282, %v314
      %v347 = vadd.f32 %v283, %v315
      %v348 = vadd.f32 %v284, %v316
      %v349 = vadd.f32 %v285, %v317
      %v350 = vadd.f32 %v286, %v318
      %v351 = vadd.f32 %v287, %v319
      %v352 = vadd.f32 %v288, %v320
      %v353 = vadd.f32 %v289, %v321
      %v354 = vadd.f32 %v290, %v322
      %v355 = vadd.f32 %v291, %v323
      %v356 = vadd.f32 %v292, %v324
      %v357 = vadd.f32 %v293, %v325
      %v358 = vadd.f32 %v294, %v326
      %v359 = vadd.f32 %v295, %v327
      %v360 = vadd.f32 %v296, %v328
      %v361 = vadd.f32 %v297, %v329
      %v362 = vadd.f32 %v298, %v330
      %v363 = vld [vmem:[%s253] sm:$0xff]
      %v364 = vld [vmem:[%s253 + $0x8] sm:$0xff]
      %v365 = vld [vmem:[%s253 + $0x10] sm:$0xff]
      %v366 = vld [vmem:[%s253 + $0x18] sm:$0xff]
      %v367 = vld [vmem:[%s253 + $0x20] sm:$0xff]
      %v368 = vld [vmem:[%s253 + $0x28] sm:$0xff]
      %v369 = vld [vmem:[%s253 + $0x30] sm:$0xff]
      %v370 = vld [vmem:[%s253 + $0x38] sm:$0xff]
      %v371 = vld [vmem:[%s253 + $0x40] sm:$0xff]
      %v372 = vld [vmem:[%s253 + $0x48] sm:$0xff]
      %v373 = vld [vmem:[%s253 + $0x50] sm:$0xff]
      %v374 = vld [vmem:[%s253 + $0x58] sm:$0xff]
      %v375 = vld [vmem:[%s253 + $0x60] sm:$0xff]
      %v376 = vld [vmem:[%s253 + $0x68] sm:$0xff]
      %v377 = vld [vmem:[%s253 + $0x70] sm:$0xff]
      %v378 = vld [vmem:[%s253 + $0x78] sm:$0xff]
      %v379 = vld [vmem:[%s253 + $0x80] sm:$0xff]
      %v380 = vld [vmem:[%s253 + $0x88] sm:$0xff]
      %v381 = vld [vmem:[%s253 + $0x90] sm:$0xff]
      %v382 = vld [vmem:[%s253 + $0x98] sm:$0xff]
      %v383 = vld [vmem:[%s253 + $0xa0] sm:$0xff]
      %v384 = vld [vmem:[%s253 + $0xa8] sm:$0xff]
      %v385 = vld [vmem:[%s253 + $0xb0] sm:$0xff]
      %v386 = vld [vmem:[%s253 + $0xb8] sm:$0xff]
      %v387 = vld [vmem:[%s253 + $0xc0] sm:$0xff]
      %v388 = vld [vmem:[%s253 + $0xc8] sm:$0xff]
      %v389 = vld [vmem:[%s253 + $0xd0] sm:$0xff]
      %v390 = vld [vmem:[%s253 + $0xd8] sm:$0xff]
      %v391 = vld [vmem:[%s253 + $0xe0] sm:$0xff]
      %v392 = vld [vmem:[%s253 + $0xe8] sm:$0xff]
      %v393 = vld [vmem:[%s253 + $0xf0] sm:$0xff]
      %v394 = vld [vmem:[%s253 + $0xf8] sm:$0xff]
      %v395 = vadd.f32 %v331, %v363
      %v396 = vadd.f32 %v332, %v364
      %v397 = vadd.f32 %v333, %v365
      %v398 = vadd.f32 %v334, %v366
      %v399 = vadd.f32 %v335, %v367
      %v400 = vadd.f32 %v336, %v368
      %v401 = vadd.f32 %v337, %v369
      %v402 = vadd.f32 %v338, %v370
      %v403 = vadd.f32 %v339, %v371
      %v404 = vadd.f32 %v340, %v372
      %v405 = vadd.f32 %v341, %v373
      %v406 = vadd.f32 %v342, %v374
      %v407 = vadd.f32 %v343, %v375
      %v408 = vadd.f32 %v344, %v376
      %v409 = vadd.f32 %v345, %v377
      %v410 = vadd.f32 %v346, %v378
      %v411 = vadd.f32 %v347, %v379
      %v412 = vadd.f32 %v348, %v380
      %v413 = vadd.f32 %v349, %v381
      %v414 = vadd.f32 %v350, %v382
      %v415 = vadd.f32 %v351, %v383
      %v416 = vadd.f32 %v352, %v384
      %v417 = vadd.f32 %v353, %v385
      %v418 = vadd.f32 %v354, %v386
      %v419 = vadd.f32 %v355, %v387
      %v420 = vadd.f32 %v356, %v388
      %v421 = vadd.f32 %v357, %v389
      %v422 = vadd.f32 %v358, %v390
      %v423 = vadd.f32 %v359, %v391
      %v424 = vadd.f32 %v360, %v392
      %v425 = vadd.f32 %v361, %v393
      %v426 = vadd.f32 %v362, %v394
      %v427 = vld [vmem:[%s259] sm:$0xff]
      %v428 = vld [vmem:[%s259 + $0x8] sm:$0xff]
      %v429 = vld [vmem:[%s259 + $0x10] sm:$0xff]
      %v430 = vld [vmem:[%s259 + $0x18] sm:$0xff]
      %v431 = vld [vmem:[%s259 + $0x20] sm:$0xff]
      %v432 = vld [vmem:[%s259 + $0x28] sm:$0xff]
      %v433 = vld [vmem:[%s259 + $0x30] sm:$0xff]
      %v434 = vld [vmem:[%s259 + $0x38] sm:$0xff]
      %v435 = vld [vmem:[%s259 + $0x40] sm:$0xff]
      %v436 = vld [vmem:[%s259 + $0x48] sm:$0xff]
      %v437 = vld [vmem:[%s259 + $0x50] sm:$0xff]
      %v438 = vld [vmem:[%s259 + $0x58] sm:$0xff]
      %v439 = vld [vmem:[%s259 + $0x60] sm:$0xff]
      %v440 = vld [vmem:[%s259 + $0x68] sm:$0xff]
      %v441 = vld [vmem:[%s259 + $0x70] sm:$0xff]
      %v442 = vld [vmem:[%s259 + $0x78] sm:$0xff]
      %v443 = vld [vmem:[%s259 + $0x80] sm:$0xff]
      %v444 = vld [vmem:[%s259 + $0x88] sm:$0xff]
      %v445 = vld [vmem:[%s259 + $0x90] sm:$0xff]
      %v446 = vld [vmem:[%s259 + $0x98] sm:$0xff]
      %v447 = vld [vmem:[%s259 + $0xa0] sm:$0xff]
      %v448 = vld [vmem:[%s259 + $0xa8] sm:$0xff]
      %v449 = vld [vmem:[%s259 + $0xb0] sm:$0xff]
      %v450 = vld [vmem:[%s259 + $0xb8] sm:$0xff]
      %v451 = vld [vmem:[%s259 + $0xc0] sm:$0xff]
      %v452 = vld [vmem:[%s259 + $0xc8] sm:$0xff]
      %v453 = vld [vmem:[%s259 + $0xd0] sm:$0xff]
      %v454 = vld [vmem:[%s259 + $0xd8] sm:$0xff]
      %v455 = vld [vmem:[%s259 + $0xe0] sm:$0xff]
      %v456 = vld [vmem:[%s259 + $0xe8] sm:$0xff]
      %v457 = vld [vmem:[%s259 + $0xf0] sm:$0xff]
      %v458 = vld [vmem:[%s259 + $0xf8] sm:$0xff]
      %v459 = vadd.f32 %v395, %v427
      %v460 = vadd.f32 %v396, %v428
      %v461 = vadd.f32 %v397, %v429
      %v462 = vadd.f32 %v398, %v430
      %v463 = vadd.f32 %v399, %v431
      %v464 = vadd.f32 %v400, %v432
      %v465 = vadd.f32 %v401, %v433
      %v466 = vadd.f32 %v402, %v434
      %v467 = vadd.f32 %v403, %v435
      %v468 = vadd.f32 %v404, %v436
      %v469 = vadd.f32 %v405, %v437
      %v470 = vadd.f32 %v406, %v438
      %v471 = vadd.f32 %v407, %v439
      %v472 = vadd.f32 %v408, %v440
      %v473 = vadd.f32 %v409, %v441
      %v474 = vadd.f32 %v410, %v442
      %v475 = vadd.f32 %v411, %v443
      %v476 = vadd.f32 %v412, %v444
      %v477 = vadd.f32 %v413, %v445
      %v478 = vadd.f32 %v414, %v446
      %v479 = vadd.f32 %v415, %v447
      %v480 = vadd.f32 %v416, %v448
      %v481 = vadd.f32 %v417, %v449
      %v482 = vadd.f32 %v418, %v450
      %v483 = vadd.f32 %v419, %v451
      %v484 = vadd.f32 %v420, %v452
      %v485 = vadd.f32 %v421, %v453
      %v486 = vadd.f32 %v422, %v454
      %v487 = vadd.f32 %v423, %v455
      %v488 = vadd.f32 %v424, %v456
      %v489 = vadd.f32 %v425, %v457
      %v490 = vadd.f32 %v426, %v458
      %491 = vst [vmem:[%s265] sm:$0xff] %v459
      %492 = vst [vmem:[%s265 + $0x8] sm:$0xff] %v460
      %493 = vst [vmem:[%s265 + $0x10] sm:$0xff] %v461
      %494 = vst [vmem:[%s265 + $0x18] sm:$0xff] %v462
      %495 = vst [vmem:[%s265 + $0x20] sm:$0xff] %v463
      %496 = vst [vmem:[%s265 + $0x28] sm:$0xff] %v464
      %497 = vst [vmem:[%s265 + $0x30] sm:$0xff] %v465
      %498 = vst [vmem:[%s265 + $0x38] sm:$0xff] %v466
      %499 = vst [vmem:[%s265 + $0x40] sm:$0xff] %v467
      %500 = vst [vmem:[%s265 + $0x48] sm:$0xff] %v468
      %501 = vst [vmem:[%s265 + $0x50] sm:$0xff] %v469
      %502 = vst [vmem:[%s265 + $0x58] sm:$0xff] %v470
      %503 = vst [vmem:[%s265 + $0x60] sm:$0xff] %v471
      %504 = vst [vmem:[%s265 + $0x68] sm:$0xff] %v472
      %505 = vst [vmem:[%s265 + $0x70] sm:$0xff] %v473
      %506 = vst [vmem:[%s265 + $0x78] sm:$0xff] %v474
      %507 = vst [vmem:[%s265 + $0x80] sm:$0xff] %v475
      %508 = vst [vmem:[%s265 + $0x88] sm:$0xff] %v476
      %509 = vst [vmem:[%s265 + $0x90] sm:$0xff] %v477
      %510 = vst [vmem:[%s265 + $0x98] sm:$0xff] %v478
      %511 = vst [vmem:[%s265 + $0xa0] sm:$0xff] %v479
      %512 = vst [vmem:[%s265 + $0xa8] sm:$0xff] %v480
      %513 = vst [vmem:[%s265 + $0xb0] sm:$0xff] %v481
      %514 = vst [vmem:[%s265 + $0xb8] sm:$0xff] %v482
      %515 = vst [vmem:[%s265 + $0xc0] sm:$0xff] %v483
      %516 = vst [vmem:[%s265 + $0xc8] sm:$0xff] %v484
      %517 = vst [vmem:[%s265 + $0xd0] sm:$0xff] %v485
      %518 = vst [vmem:[%s265 + $0xd8] sm:$0xff] %v486
      %519 = vst [vmem:[%s265 + $0xe0] sm:$0xff] %v487
      %520 = vst [vmem:[%s265 + $0xe8] sm:$0xff] %v488
      %521 = vst [vmem:[%s265 + $0xf0] sm:$0xff] %v489
      %522 = vst [vmem:[%s265 + $0xf8] sm:$0xff] %v490
      %s523 = smul.u32 32, %s15
      %p524 = scmp.lt.s32.totalorder %s523, 63
      %s525 = scalar_select %p524, %s523, 63
      %s526 = smul.addr %s525, 8
      %s527 = scalar_lea.vmem %s4, %s526
      // Predicated region
      $region37: #{nb101_wrapper_forward.33} parent=35 // pred_check
        %p528 = pneg %p137
      $region38: #{nb101_wrapper_forward.33} parent=35 // pred_check_branch
        %530 = sbr.rel (%p528) target = $region40
      $region39: #{nb101_wrapper_forward.33} parent=35 // pred_region
        %s531 = smul.u32 32, %s15
      $region40: #{nb101_wrapper_forward.33} parent=35 // pred_fallthru
        _
    $region36: #{nb101_wrapper_forward.33} parent=5 // pred_fallthru
      _
    %p532 = scmp.le.s32.totalorder 2, %s10
    // Predicated region
    $region41: #{nb101_wrapper_forward.33} parent=5 // pred_check
      %p533 = pneg %p532
    $region42: #{nb101_wrapper_forward.33} parent=5 // pred_check_branch
      %535 = sbr.rel (%p533) target = $region44
    $region43: #{nb101_wrapper_forward.33} parent=5 // pred_region
      %s536 = ssub.s32 %s10, 2
      // Predicated region
      $region45: #{nb101_wrapper_forward.33} parent=43 // pred_check
        %p537 = pneg %p143
      $region46: #{nb101_wrapper_forward.33} parent=43 // pred_check_branch
        %539 = sbr.rel (%p537) target = $region48
      $region47: #{nb101_wrapper_forward.33} parent=43 // pred_region
        %s540 = smul.u32 32, %s16
        %p541 = scmp.lt.s32.totalorder %s540, 63
        %s542 = scalar_select %p541, %s540, 63
        %s543 = smul.addr %s542, 8
        %s544 = scalar_lea.vmem %s4, %s543
      $region48: #{nb101_wrapper_forward.33} parent=43 // pred_fallthru
        _
    $region44: #{nb101_wrapper_forward.33} parent=5 // pred_fallthru
      _
  $region6: #{nb101_wrapper_forward.33} parent=0 // loop_footer
    %s14 = sadd.s32 1, %s10
  $region7: #{nb101_wrapper_forward.33} parent=0 // loop_footer_branch
    %9 = sbr.rel target = $region3
  $region8: #{nb101_wrapper_forward.33} parent=0 // loop_exit
    _

// kernel: nb101_wrapper_forward.34
$region0: #{nb101_wrapper_forward.34}
  #allocation0 [shape = 'u32[]', space=smem, size = 0x4, offset = 0x4, fixed_abs, tag = 'smem constant byte address 0x4 - core index']
  #allocation1 [shape = 'u32[144,128]{1,0:T(1,128)}', space=vmem, size = 0x12000, scoped, tag = 'internal scratch']
  %s0 = inlined_call_operand.vmem [shape: f32[512,128], index: 0, kind: input, shape index: {}]
  %s1 = inlined_call_operand.vmem [shape: f32[512,128], index: 1, kind: input, shape index: {}]
  %s2 = inlined_call_operand.vmem [shape: f32[512,128], index: 2, kind: input, shape index: {}]
  %s3 = inlined_call_operand.vmem [shape: f32[512,128], index: 3, kind: input, shape index: {}]
  %s4 = inlined_call_operand.vmem [shape: f32[512,128], index: 4, kind: input, shape index: {}]
  %s5 = inlined_call_operand.vmem [shape: f32[512,128], index: 5, kind: input, shape index: {}]
  %s6 = inlined_call_operand.vmem [shape: f32[512,128], index: 6, kind: input, shape index: {}]
  %s7 = inlined_call_operand.vmem [shape: f32[512,128], index: 7, kind: input, shape index: {}]
  %s8 = inlined_call_operand.vmem [shape: f32[512,128], index: 8, kind: input, shape index: {}]
  %s9 = inlined_call_operand.vmem [shape: f32[512,128], index: 9, kind: output, shape index: {}]
  %s10 = sld [smem:[#allocation0]]
  $region69: #{nb101_wrapper_forward.34} parent=0
    _
  %s12 = ssub.s32 1, %s10
  %s13 = scalar_select 0, %s12, %s10
  loop: start=0, step=1, limit=4
  $region2: #{nb101_wrapper_forward.34} parent=0 // loop_pre_header
    _
  $region3: #{nb101_wrapper_forward.34} parent=0 // loop_header
    %s15 = sphi 0, %s19
    %p16 = scmp.ge.s32.totalorder %s15, 4
    %s25 = sphi 0, %s27
    %s28 = sphi 0, %s25
    %s29 = sphi 0, %s28
    %s45 = sphi 0, %s29
    %s51 = sphi 0, %s53
    %s54 = sphi 0, %s51
    %s55 = sphi 0, %s54
    %s71 = sphi 0, %s55
    %s77 = sphi 0, %s79
    %s80 = sphi 0, %s77
    %s81 = sphi 0, %s80
    %s97 = sphi 0, %s81
    %s103 = sphi 0, %s105
    %s106 = sphi 0, %s103
    %s107 = sphi 0, %s106
    %s123 = sphi 0, %s107
    %s129 = sphi 0, %s131
    %s132 = sphi 0, %s129
    %s133 = sphi 0, %s132
    %s149 = sphi 0, %s133
    %s155 = sphi 0, %s157
    %s158 = sphi 0, %s155
    %s159 = sphi 0, %s158
    %s175 = sphi 0, %s159
    %s181 = sphi 0, %s183
    %s184 = sphi 0, %s181
    %s185 = sphi 0, %s184
    %s201 = sphi 0, %s185
    %s207 = sphi 0, %s209
    %s210 = sphi 0, %s207
    %s211 = sphi 0, %s210
    %s227 = sphi 0, %s211
    %s233 = sphi 0, %s235
    %s236 = sphi 0, %s233
    %s237 = sphi 0, %s236
    %s253 = sphi 0, %s237
    %s259 = sphi 0, %s261
    %s262 = sphi 0, %s259
    %s263 = sphi 0, %s262
    %s279 = sphi 0, %s263
  $region4: #{nb101_wrapper_forward.34} parent=0 // loop_header_branch
    %18 = sbr.rel (%p16) target = $region8
  $region5: #{nb101_wrapper_forward.34} parent=0 // loop_body
    %s20 = ssub.s32 %s15, 1
    %s21 = ssub.s32 %s15, 2
    %s22 = sadd.s32 %s15, 1
    %s23 = ssub.s32 %s15, %s22
    %p24 = scmp.eq.s32.totalorder %s23, 0
    %s26 = sadd.s32 %s25, 1
    %s27 = scalar_select %p24, %s25, %s26
    %p30 = pneg %p24
    %p31 = scmp.eq.s32.totalorder %s15, 1
    %p32 = por %p30, %p31
    %p33 = scmp.ne.s32.totalorder %s25, %s28
    %p34 = scmp.eq.s32.totalorder %s15, 0
    %p35 = por %p33, %p34
    %p36 = scmp.ne.s32.totalorder %s25, %s28
    %p37 = scmp.eq.s32.totalorder %s20, 1
    %p38 = por %p36, %p37
    %p39 = scmp.ne.s32.totalorder %s28, %s29
    %p40 = scmp.eq.s32.totalorder %s20, 0
    %p41 = por %p39, %p40
    %p42 = scmp.ne.s32.totalorder %s28, %s29
    %p43 = scmp.eq.s32.totalorder %s21, 1
    %p44 = por %p42, %p43
    %p46 = scmp.ne.s32.totalorder %s29, %s45
    %p47 = scmp.eq.s32.totalorder %s21, 0
    %p48 = por %p46, %p47
    %s49 = ssub.s32 %s15, %s22
    %p50 = scmp.eq.s32.totalorder %s49, 0
    %s52 = sadd.s32 %s51, 1
    %s53 = scalar_select %p50, %s51, %s52
    %p56 = pneg %p50
    %p57 = scmp.eq.s32.totalorder %s15, 1
    %p58 = por %p56, %p57
    %p59 = scmp.ne.s32.totalorder %s51, %s54
    %p60 = scmp.eq.s32.totalorder %s15, 0
    %p61 = por %p59, %p60
    %p62 = scmp.ne.s32.totalorder %s51, %s54
    %p63 = scmp.eq.s32.totalorder %s20, 1
    %p64 = por %p62, %p63
    %p65 = scmp.ne.s32.totalorder %s54, %s55
    %p66 = scmp.eq.s32.totalorder %s20, 0
    %p67 = por %p65, %p66
    %p68 = scmp.ne.s32.totalorder %s54, %s55
    %p69 = scmp.eq.s32.totalorder %s21, 1
    %p70 = por %p68, %p69
    %p72 = scmp.ne.s32.totalorder %s55, %s71
    %p73 = scmp.eq.s32.totalorder %s21, 0
    %p74 = por %p72, %p73
    %s75 = ssub.s32 %s15, %s22
    %p76 = scmp.eq.s32.totalorder %s75, 0
    %s78 = sadd.s32 %s77, 1
    %s79 = scalar_select %p76, %s77, %s78
    %p82 = pneg %p76
    %p83 = scmp.eq.s32.totalorder %s15, 1
    %p84 = por %p82, %p83
    %p85 = scmp.ne.s32.totalorder %s77, %s80
    %p86 = scmp.eq.s32.totalorder %s15, 0
    %p87 = por %p85, %p86
    %p88 = scmp.ne.s32.totalorder %s77, %s80
    %p89 = scmp.eq.s32.totalorder %s20, 1
    %p90 = por %p88, %p89
    %p91 = scmp.ne.s32.totalorder %s80, %s81
    %p92 = scmp.eq.s32.totalorder %s20, 0
    %p93 = por %p91, %p92
    %p94 = scmp.ne.s32.totalorder %s80, %s81
    %p95 = scmp.eq.s32.totalorder %s21, 1
    %p96 = por %p94, %p95
    %p98 = scmp.ne.s32.totalorder %s81, %s97
    %p99 = scmp.eq.s32.totalorder %s21, 0
    %p100 = por %p98, %p99
    %s101 = ssub.s32 %s15, %s22
    %p102 = scmp.eq.s32.totalorder %s101, 0
    %s104 = sadd.s32 %s103, 1
    %s105 = scalar_select %p102, %s103, %s104
    %p108 = pneg %p102
    %p109 = scmp.eq.s32.totalorder %s15, 1
    %p110 = por %p108, %p109
    %p111 = scmp.ne.s32.totalorder %s103, %s106
    %p112 = scmp.eq.s32.totalorder %s15, 0
    %p113 = por %p111, %p112
    %p114 = scmp.ne.s32.totalorder %s103, %s106
    %p115 = scmp.eq.s32.totalorder %s20, 1
    %p116 = por %p114, %p115
    %p117 = scmp.ne.s32.totalorder %s106, %s107
    %p118 = scmp.eq.s32.totalorder %s20, 0
    %p119 = por %p117, %p118
    %p120 = scmp.ne.s32.totalorder %s106, %s107
    %p121 = scmp.eq.s32.totalorder %s21, 1
    %p122 = por %p120, %p121
    %p124 = scmp.ne.s32.totalorder %s107, %s123
    %p125 = scmp.eq.s32.totalorder %s21, 0
    %p126 = por %p124, %p125
    %s127 = ssub.s32 %s15, %s22
    %p128 = scmp.eq.s32.totalorder %s127, 0
    %s130 = sadd.s32 %s129, 1
    %s131 = scalar_select %p128, %s129, %s130
    %p134 = pneg %p128
    %p135 = scmp.eq.s32.totalorder %s15, 1
    %p136 = por %p134, %p135
    %p137 = scmp.ne.s32.totalorder %s129, %s132
    %p138 = scmp.eq.s32.totalorder %s15, 0
    %p139 = por %p137, %p138
    %p140 = scmp.ne.s32.totalorder %s129, %s132
    %p141 = scmp.eq.s32.totalorder %s20, 1
    %p142 = por %p140, %p141
    %p143 = scmp.ne.s32.totalorder %s132, %s133
    %p144 = scmp.eq.s32.totalorder %s20, 0
    %p145 = por %p143, %p144
    %p146 = scmp.ne.s32.totalorder %s132, %s133
    %p147 = scmp.eq.s32.totalorder %s21, 1
    %p148 = por %p146, %p147
    %p150 = scmp.ne.s32.totalorder %s133, %s149
    %p151 = scmp.eq.s32.totalorder %s21, 0
    %p152 = por %p150, %p151
    %s153 = ssub.s32 %s15, %s22
    %p154 = scmp.eq.s32.totalorder %s153, 0
    %s156 = sadd.s32 %s155, 1
    %s157 = scalar_select %p154, %s155, %s156
    %p160 = pneg %p154
    %p161 = scmp.eq.s32.totalorder %s15, 1
    %p162 = por %p160, %p161
    %p163 = scmp.ne.s32.totalorder %s155, %s158
    %p164 = scmp.eq.s32.totalorder %s15, 0
    %p165 = por %p163, %p164
    %p166 = scmp.ne.s32.totalorder %s155, %s158
    %p167 = scmp.eq.s32.totalorder %s20, 1
    %p168 = por %p166, %p167
    %p169 = scmp.ne.s32.totalorder %s158, %s159
    %p170 = scmp.eq.s32.totalorder %s20, 0
    %p171 = por %p169, %p170
    %p172 = scmp.ne.s32.totalorder %s158, %s159
    %p173 = scmp.eq.s32.totalorder %s21, 1
    %p174 = por %p172, %p173
    %p176 = scmp.ne.s32.totalorder %s159, %s175
    %p177 = scmp.eq.s32.totalorder %s21, 0
    %p178 = por %p176, %p177
    %s179 = ssub.s32 %s15, %s22
    %p180 = scmp.eq.s32.totalorder %s179, 0
    %s182 = sadd.s32 %s181, 1
    %s183 = scalar_select %p180, %s181, %s182
    %p186 = pneg %p180
    %p187 = scmp.eq.s32.totalorder %s15, 1
    %p188 = por %p186, %p187
    %p189 = scmp.ne.s32.totalorder %s181, %s184
    %p190 = scmp.eq.s32.totalorder %s15, 0
    %p191 = por %p189, %p190
    %p192 = scmp.ne.s32.totalorder %s181, %s184
    %p193 = scmp.eq.s32.totalorder %s20, 1
    %p194 = por %p192, %p193
    %p195 = scmp.ne.s32.totalorder %s184, %s185
    %p196 = scmp.eq.s32.totalorder %s20, 0
    %p197 = por %p195, %p196
    %p198 = scmp.ne.s32.totalorder %s184, %s185
    %p199 = scmp.eq.s32.totalorder %s21, 1
    %p200 = por %p198, %p199
    %p202 = scmp.ne.s32.totalorder %s185, %s201
    %p203 = scmp.eq.s32.totalorder %s21, 0
    %p204 = por %p202, %p203
    %s205 = ssub.s32 %s15, %s22
    %p206 = scmp.eq.s32.totalorder %s205, 0
    %s208 = sadd.s32 %s207, 1
    %s209 = scalar_select %p206, %s207, %s208
    %p212 = pneg %p206
    %p213 = scmp.eq.s32.totalorder %s15, 1
    %p214 = por %p212, %p213
    %p215 = scmp.ne.s32.totalorder %s207, %s210
    %p216 = scmp.eq.s32.totalorder %s15, 0
    %p217 = por %p215, %p216
    %p218 = scmp.ne.s32.totalorder %s207, %s210
    %p219 = scmp.eq.s32.totalorder %s20, 1
    %p220 = por %p218, %p219
    %p221 = scmp.ne.s32.totalorder %s210, %s211
    %p222 = scmp.eq.s32.totalorder %s20, 0
    %p223 = por %p221, %p222
    %p224 = scmp.ne.s32.totalorder %s210, %s211
    %p225 = scmp.eq.s32.totalorder %s21, 1
    %p226 = por %p224, %p225
    %p228 = scmp.ne.s32.totalorder %s211, %s227
    %p229 = scmp.eq.s32.totalorder %s21, 0
    %p230 = por %p228, %p229
    %s231 = ssub.s32 %s15, %s22
    %p232 = scmp.eq.s32.totalorder %s231, 0
    %s234 = sadd.s32 %s233, 1
    %s235 = scalar_select %p232, %s233, %s234
    %p238 = pneg %p232
    %p239 = scmp.eq.s32.totalorder %s15, 1
    %p240 = por %p238, %p239
    %p241 = scmp.ne.s32.totalorder %s233, %s236
    %p242 = scmp.eq.s32.totalorder %s15, 0
    %p243 = por %p241, %p242
    %p244 = scmp.ne.s32.totalorder %s233, %s236
    %p245 = scmp.eq.s32.totalorder %s20, 1
    %p246 = por %p244, %p245
    %p247 = scmp.ne.s32.totalorder %s236, %s237
    %p248 = scmp.eq.s32.totalorder %s20, 0
    %p249 = por %p247, %p248
    %p250 = scmp.ne.s32.totalorder %s236, %s237
    %p251 = scmp.eq.s32.totalorder %s21, 1
    %p252 = por %p250, %p251
    %p254 = scmp.ne.s32.totalorder %s237, %s253
    %p255 = scmp.eq.s32.totalorder %s21, 0
    %p256 = por %p254, %p255
    %s257 = ssub.s32 %s15, %s22
    %p258 = scmp.eq.s32.totalorder %s257, 0
    %s260 = sadd.s32 %s259, 1
    %s261 = scalar_select %p258, %s259, %s260
    %p264 = pneg %p258
    %p265 = scmp.eq.s32.totalorder %s15, 1
    %p266 = por %p264, %p265
    %p267 = scmp.ne.s32.totalorder %s259, %s262
    %p268 = scmp.eq.s32.totalorder %s15, 0
    %p269 = por %p267, %p268
    %p270 = scmp.ne.s32.totalorder %s259, %s262
    %p271 = scmp.eq.s32.totalorder %s20, 1
    %p272 = por %p270, %p271
    %p273 = scmp.ne.s32.totalorder %s262, %s263
    %p274 = scmp.eq.s32.totalorder %s20, 0
    %p275 = por %p273, %p274
    %p276 = scmp.ne.s32.totalorder %s262, %s263
    %p277 = scmp.eq.s32.totalorder %s21, 1
    %p278 = por %p276, %p277
    %p280 = scmp.ne.s32.totalorder %s263, %s279
    %p281 = scmp.eq.s32.totalorder %s21, 0
    %p282 = por %p280, %p281
    %p283 = scmp.le.s32.totalorder 1, %s15
    %p284 = scmp.lt.s32.totalorder %s15, 3
    %p285 = pnand %p283, %p284
    %p286 = pneg %p285
    // Predicated region
    $region9: #{nb101_wrapper_forward.34} parent=5 // pred_check
      _
    $region10: #{nb101_wrapper_forward.34} parent=5 // pred_check_branch
      %288 = sbr.rel (%p285) target = $region12
    $region11: #{nb101_wrapper_forward.34} parent=5 // pred_region
      %s289 = ssub.s32 %s15, 1
    $region12: #{nb101_wrapper_forward.34} parent=5 // pred_fallthru
      _
    %p290 = scmp.lt.s32.totalorder %s15, 2
    // Predicated region
    $region13: #{nb101_wrapper_forward.34} parent=5 // pred_check
      %p291 = pneg %p290
    $region14: #{nb101_wrapper_forward.34} parent=5 // pred_check_branch
      %293 = sbr.rel (%p291) target = $region16
    $region15: #{nb101_wrapper_forward.34} parent=5 // pred_region
      // Predicated region
      $region17: #{nb101_wrapper_forward.34} parent=15 // pred_check
        %p294 = pneg %p35
      $region18: #{nb101_wrapper_forward.34} parent=15 // pred_check_branch
        %296 = sbr.rel (%p294) target = $region20
      $region19: #{nb101_wrapper_forward.34} parent=15 // pred_region
        %s297 = smul.u32 32, %s15
        %p298 = scmp.lt.s32.totalorder %s297, 63
        %s299 = scalar_select %p298, %s297, 63
        %s300 = smul.addr %s299, 8
        %s301 = scalar_lea.vmem %s0, %s300
        %s302 = smul.u32 32, %s15
      $region20: #{nb101_wrapper_forward.34} parent=15 // pred_fallthru
        _
      // Predicated region
      $region21: #{nb101_wrapper_forward.34} parent=15 // pred_check
        %p303 = pneg %p61
      $region22: #{nb101_wrapper_forward.34} parent=15 // pred_check_branch
        %305 = sbr.rel (%p303) target = $region24
      $region23: #{nb101_wrapper_forward.34} parent=15 // pred_region
        %s306 = smul.u32 32, %s15
        %p307 = scmp.lt.s32.totalorder %s306, 63
        %s308 = scalar_select %p307, %s306, 63
        %s309 = smul.addr %s308, 8
        %s310 = scalar_lea.vmem %s1, %s309
        %s311 = smul.u32 32, %s15
      $region24: #{nb101_wrapper_forward.34} parent=15 // pred_fallthru
        _
      // Predicated region
      $region25: #{nb101_wrapper_forward.34} parent=15 // pred_check
        %p312 = pneg %p87
      $region26: #{nb101_wrapper_forward.34} parent=15 // pred_check_branch
        %314 = sbr.rel (%p312) target = $region28
      $region27: #{nb101_wrapper_forward.34} parent=15 // pred_region
        %s315 = smul.u32 32, %s15
        %p316 = scmp.lt.s32.totalorder %s315, 63
        %s317 = scalar_select %p316, %s315, 63
        %s318 = smul.addr %s317, 8
        %s319 = scalar_lea.vmem %s2, %s318
        %s320 = smul.u32 32, %s15
      $region28: #{nb101_wrapper_forward.34} parent=15 // pred_fallthru
        _
      // Predicated region
      $region29: #{nb101_wrapper_forward.34} parent=15 // pred_check
        %p321 = pneg %p113
      $region30: #{nb101_wrapper_forward.34} parent=15 // pred_check_branch
        %323 = sbr.rel (%p321) target = $region32
      $region31: #{nb101_wrapper_forward.34} parent=15 // pred_region
        %s324 = smul.u32 32, %s15
        %p325 = scmp.lt.s32.totalorder %s324, 63
        %s326 = scalar_select %p325, %s324, 63
        %s327 = smul.addr %s326, 8
        %s328 = scalar_lea.vmem %s3, %s327
        %s329 = smul.u32 32, %s15
      $region32: #{nb101_wrapper_forward.34} parent=15 // pred_fallthru
        _
      // Predicated region
      $region33: #{nb101_wrapper_forward.34} parent=15 // pred_check
        %p330 = pneg %p139
      $region34: #{nb101_wrapper_forward.34} parent=15 // pred_check_branch
        %332 = sbr.rel (%p330) target = $region36
      $region35: #{nb101_wrapper_forward.34} parent=15 // pred_region
        %s333 = smul.u32 32, %s15
        %p334 = scmp.lt.s32.totalorder %s333, 63
        %s335 = scalar_select %p334, %s333, 63
        %s336 = smul.addr %s335, 8
        %s337 = scalar_lea.vmem %s4, %s336
        %s338 = smul.u32 32, %s15
      $region36: #{nb101_wrapper_forward.34} parent=15 // pred_fallthru
        _
      // Predicated region
      $region37: #{nb101_wrapper_forward.34} parent=15 // pred_check
        %p339 = pneg %p165
      $region38: #{nb101_wrapper_forward.34} parent=15 // pred_check_branch
        %341 = sbr.rel (%p339) target = $region40
      $region39: #{nb101_wrapper_forward.34} parent=15 // pred_region
        %s342 = smul.u32 32, %s15
        %p343 = scmp.lt.s32.totalorder %s342, 63
        %s344 = scalar_select %p343, %s342, 63
        %s345 = smul.addr %s344, 8
        %s346 = scalar_lea.vmem %s5, %s345
        %s347 = smul.u32 32, %s15
      $region40: #{nb101_wrapper_forward.34} parent=15 // pred_fallthru
        _
      // Predicated region
      $region41: #{nb101_wrapper_forward.34} parent=15 // pred_check
        %p348 = pneg %p191
      $region42: #{nb101_wrapper_forward.34} parent=15 // pred_check_branch
        %350 = sbr.rel (%p348) target = $region44
      $region43: #{nb101_wrapper_forward.34} parent=15 // pred_region
        %s351 = smul.u32 32, %s15
        %p352 = scmp.lt.s32.totalorder %s351, 63
        %s353 = scalar_select %p352, %s351, 63
        %s354 = smul.addr %s353, 8
        %s355 = scalar_lea.vmem %s6, %s354
        %s356 = smul.u32 32, %s15
      $region44: #{nb101_wrapper_forward.34} parent=15 // pred_fallthru
        _
      // Predicated region
      $region45: #{nb101_wrapper_forward.34} parent=15 // pred_check
        %p357 = pneg %p217
      $region46: #{nb101_wrapper_forward.34} parent=15 // pred_check_branch
        %359 = sbr.rel (%p357) target = $region48
      $region47: #{nb101_wrapper_forward.34} parent=15 // pred_region
        %s360 = smul.u32 32, %s15
        %p361 = scmp.lt.s32.totalorder %s360, 63
        %s362 = scalar_select %p361, %s360, 63
        %s363 = smul.addr %s362, 8
        %s364 = scalar_lea.vmem %s7, %s363
        %s365 = smul.u32 32, %s15
      $region48: #{nb101_wrapper_forward.34} parent=15 // pred_fallthru
        _
      // Predicated region
      $region49: #{nb101_wrapper_forward.34} parent=15 // pred_check
        %p366 = pneg %p243
      $region50: #{nb101_wrapper_forward.34} parent=15 // pred_check_branch
        %368 = sbr.rel (%p366) target = $region52
      $region51: #{nb101_wrapper_forward.34} parent=15 // pred_region
        %s369 = smul.u32 32, %s15
        %p370 = scmp.lt.s32.totalorder %s369, 63
        %s371 = scalar_select %p370, %s369, 63
        %s372 = smul.addr %s371, 8
        %s373 = scalar_lea.vmem %s8, %s372
        %s374 = smul.u32 32, %s15
      $region52: #{nb101_wrapper_forward.34} parent=15 // pred_fallthru
        _
    $region16: #{nb101_wrapper_forward.34} parent=5 // pred_fallthru
      _
    %p375 = scmp.le.s32.totalorder 1, %s15
    %p376 = scmp.lt.s32.totalorder %s15, 3
    %p377 = pnand %p375, %p376
    %p378 = pneg %p377
    // Predicated region
    $region53: #{nb101_wrapper_forward.34} parent=5 // pred_check
      _
    $region54: #{nb101_wrapper_forward.34} parent=5 // pred_check_branch
      %380 = sbr.rel (%p377) target = $region56
    $region55: #{nb101_wrapper_forward.34} parent=5 // pred_region
      %s381 = ssub.s32 %s15, 1
      %s382 = smul.u32 32, %s20
      %p383 = scmp.lt.s32.totalorder %s382, 63
      %s384 = scalar_select %p383, %s382, 63
      %s385 = smul.addr %s384, 8
      %s386 = scalar_lea.vmem %s0, %s385
      %p387 = pneg %p41
      %p388 = pneg %p38
      %s389 = smul.u32 32, %s20
      %p390 = scmp.lt.s32.totalorder %s389, 63
      %s391 = scalar_select %p390, %s389, 63
      %s392 = smul.addr %s391, 8
      %s393 = scalar_lea.vmem %s1, %s392
      %p394 = pneg %p67
      %p395 = pneg %p64
      %s396 = smul.u32 32, %s20
      %p397 = scmp.lt.s32.totalorder %s396, 63
      %s398 = scalar_select %p397, %s396, 63
      %s399 = smul.addr %s398, 8
      %s400 = scalar_lea.vmem %s2, %s399
      %p401 = pneg %p93
      %p402 = pneg %p90
      %s403 = smul.u32 32, %s20
      %p404 = scmp.lt.s32.totalorder %s403, 63
      %s405 = scalar_select %p404, %s403, 63
      %s406 = smul.addr %s405, 8
      %s407 = scalar_lea.vmem %s3, %s406
      %p408 = pneg %p119
      %p409 = pneg %p116
      %s410 = smul.u32 32, %s20
      %p411 = scmp.lt.s32.totalorder %s410, 63
      %s412 = scalar_select %p411, %s410, 63
      %s413 = smul.addr %s412, 8
      %s414 = scalar_lea.vmem %s4, %s413
      %p415 = pneg %p145
      %p416 = pneg %p142
      %s417 = smul.u32 32, %s20
      %p418 = scmp.lt.s32.totalorder %s417, 63
      %s419 = scalar_select %p418, %s417, 63
      %s420 = smul.addr %s419, 8
      %s421 = scalar_lea.vmem %s5, %s420
      %p422 = pneg %p171
      %p423 = pneg %p168
      %s424 = smul.u32 32, %s20
      %p425 = scmp.lt.s32.totalorder %s424, 63
      %s426 = scalar_select %p425, %s424, 63
      %s427 = smul.addr %s426, 8
      %s428 = scalar_lea.vmem %s6, %s427
      %p429 = pneg %p197
      %p430 = pneg %p194
      %s431 = smul.u32 32, %s20
      %p432 = scmp.lt.s32.totalorder %s431, 63
      %s433 = scalar_select %p432, %s431, 63
      %s434 = smul.addr %s433, 8
      %s435 = scalar_lea.vmem %s7, %s434
      %p436 = pneg %p223
      %p437 = pneg %p220
      %s438 = smul.u32 32, %s20
      %p439 = scmp.lt.s32.totalorder %s438, 63
      %s440 = scalar_select %p439, %s438, 63
      %s441 = smul.addr %s440, 8
      %s442 = scalar_lea.vmem %s8, %s441
      %p443 = pneg %p249
      %p444 = pneg %p246
      %p445 = pneg %p275
      %p446 = pneg %p272
      %s447 = smul.u32 32, %s20
      %p448 = scmp.lt.s32.totalorder %s447, 63
      %s449 = scalar_select %p448, %s447, 63
      %s450 = smul.addr %s449, 8
      %s451 = scalar_lea.vmem %s9, %s450
      %s452 = smul.u32 32, %s20
      %p453 = scmp.lt.s32.totalorder %s452, 63
      %s454 = scalar_select %p453, %s452, 63
      %s455 = smul.addr %s454, 8
      %s456 = scalar_lea.vmem %s0, %s455
      %s457 = smul.u32 32, %s20
      %s458 = smul.u32 32, %s20
      %p459 = scmp.lt.s32.totalorder %s458, 63
      %s460 = scalar_select %p459, %s458, 63
      %s461 = smul.addr %s460, 8
      %s462 = scalar_lea.vmem %s1, %s461
      %s463 = smul.u32 32, %s20
      %s464 = smul.u32 32, %s20
      %p465 = scmp.lt.s32.totalorder %s464, 63
      %s466 = scalar_select %p465, %s464, 63
      %s467 = smul.addr %s466, 8
      %s468 = scalar_lea.vmem %s2, %s467
      %s469 = smul.u32 32, %s20
      %s470 = smul.u32 32, %s20
      %p471 = scmp.lt.s32.totalorder %s470, 63
      %s472 = scalar_select %p471, %s470, 63
      %s473 = smul.addr %s472, 8
      %s474 = scalar_lea.vmem %s3, %s473
      %s475 = smul.u32 32, %s20
      %s476 = smul.u32 32, %s20
      %p477 = scmp.lt.s32.totalorder %s476, 63
      %s478 = scalar_select %p477, %s476, 63
      %s479 = smul.addr %s478, 8
      %s480 = scalar_lea.vmem %s4, %s479
      %s481 = smul.u32 32, %s20
      %s482 = smul.u32 32, %s20
      %p483 = scmp.lt.s32.totalorder %s482, 63
      %s484 = scalar_select %p483, %s482, 63
      %s485 = smul.addr %s484, 8
      %s486 = scalar_lea.vmem %s5, %s485
      %s487 = smul.u32 32, %s20
      %s488 = smul.u32 32, %s20
      %p489 = scmp.lt.s32.totalorder %s488, 63
      %s490 = scalar_select %p489, %s488, 63
      %s491 = smul.addr %s490, 8
      %s492 = scalar_lea.vmem %s6, %s491
      %s493 = smul.u32 32, %s20
      %s494 = smul.u32 32, %s20
      %p495 = scmp.lt.s32.totalorder %s494, 63
      %s496 = scalar_select %p495, %s494, 63
      %s497 = smul.addr %s496, 8
      %s498 = scalar_lea.vmem %s7, %s497
      %s499 = smul.u32 32, %s20
      %s500 = smul.u32 32, %s20
      %p501 = scmp.lt.s32.totalorder %s500, 63
      %s502 = scalar_select %p501, %s500, 63
      %s503 = smul.addr %s502, 8
      %s504 = scalar_lea.vmem %s8, %s503
      %s505 = smul.u32 32, %s20
      %s506 = smul.u32 32, %s20
      %p507 = scmp.lt.s32.totalorder %s506, 63
      %s508 = scalar_select %p507, %s506, 63
      %s509 = smul.addr %s508, 8
      %s510 = scalar_lea.vmem %s9, %s509
      %s511 = smul.u32 32, %s20
      %v512 = vld [vmem:[%s456] sm:$0xff]
      %v513 = vld [vmem:[%s456 + $0x8] sm:$0xff]
      %v514 = vld [vmem:[%s456 + $0x10] sm:$0xff]
      %v515 = vld [vmem:[%s456 + $0x18] sm:$0xff]
      %v516 = vld [vmem:[%s456 + $0x20] sm:$0xff]
      %v517 = vld [vmem:[%s456 + $0x28] sm:$0xff]
      %v518 = vld [vmem:[%s456 + $0x30] sm:$0xff]
      %v519 = vld [vmem:[%s456 + $0x38] sm:$0xff]
      %v520 = vld [vmem:[%s456 + $0x40] sm:$0xff]
      %v521 = vld [vmem:[%s456 + $0x48] sm:$0xff]
      %v522 = vld [vmem:[%s456 + $0x50] sm:$0xff]
      %v523 = vld [vmem:[%s456 + $0x58] sm:$0xff]
      %v524 = vld [vmem:[%s456 + $0x60] sm:$0xff]
      %v525 = vld [vmem:[%s456 + $0x68] sm:$0xff]
      %v526 = vld [vmem:[%s456 + $0x70] sm:$0xff]
      %v527 = vld [vmem:[%s456 + $0x78] sm:$0xff]
      %v528 = vld [vmem:[%s456 + $0x80] sm:$0xff]
      %v529 = vld [vmem:[%s456 + $0x88] sm:$0xff]
      %v530 = vld [vmem:[%s456 + $0x90] sm:$0xff]
      %v531 = vld [vmem:[%s456 + $0x98] sm:$0xff]
      %v532 = vld [vmem:[%s456 + $0xa0] sm:$0xff]
      %v533 = vld [vmem:[%s456 + $0xa8] sm:$0xff]
      %v534 = vld [vmem:[%s456 + $0xb0] sm:$0xff]
      %v535 = vld [vmem:[%s456 + $0xb8] sm:$0xff]
      %v536 = vld [vmem:[%s456 + $0xc0] sm:$0xff]
      %v537 = vld [vmem:[%s456 + $0xc8] sm:$0xff]
      %v538 = vld [vmem:[%s456 + $0xd0] sm:$0xff]
      %v539 = vld [vmem:[%s456 + $0xd8] sm:$0xff]
      %v540 = vld [vmem:[%s456 + $0xe0] sm:$0xff]
      %v541 = vld [vmem:[%s456 + $0xe8] sm:$0xff]
      %v542 = vld [vmem:[%s456 + $0xf0] sm:$0xff]
      %v543 = vld [vmem:[%s456 + $0xf8] sm:$0xff]
      %v544 = vld [vmem:[%s462] sm:$0xff]
      %v545 = vld [vmem:[%s462 + $0x8] sm:$0xff]
      %v546 = vld [vmem:[%s462 + $0x10] sm:$0xff]
      %v547 = vld [vmem:[%s462 + $0x18] sm:$0xff]
      %v548 = vld [vmem:[%s462 + $0x20] sm:$0xff]
      %v549 = vld [vmem:[%s462 + $0x28] sm:$0xff]
      %v550 = vld [vmem:[%s462 + $0x30] sm:$0xff]
      %v551 = vld [vmem:[%s462 + $0x38] sm:$0xff]
      %v552 = vld [vmem:[%s462 + $0x40] sm:$0xff]
      %v553 = vld [vmem:[%s462 + $0x48] sm:$0xff]
      %v554 = vld [vmem:[%s462 + $0x50] sm:$0xff]
      %v555 = vld [vmem:[%s462 + $0x58] sm:$0xff]
      %v556 = vld [vmem:[%s462 + $0x60] sm:$0xff]
      %v557 = vld [vmem:[%s462 + $0x68] sm:$0xff]
      %v558 = vld [vmem:[%s462 + $0x70] sm:$0xff]
      %v559 = vld [vmem:[%s462 + $0x78] sm:$0xff]
      %v560 = vld [vmem:[%s462 + $0x80] sm:$0xff]
      %v561 = vld [vmem:[%s462 + $0x88] sm:$0xff]
      %v562 = vld [vmem:[%s462 + $0x90] sm:$0xff]
      %v563 = vld [vmem:[%s462 + $0x98] sm:$0xff]
      %v564 = vld [vmem:[%s462 + $0xa0] sm:$0xff]
      %v565 = vld [vmem:[%s462 + $0xa8] sm:$0xff]
      %v566 = vld [vmem:[%s462 + $0xb0] sm:$0xff]
      %v567 = vld [vmem:[%s462 + $0xb8] sm:$0xff]
      %v568 = vld [vmem:[%s462 + $0xc0] sm:$0xff]
      %v569 = vld [vmem:[%s462 + $0xc8] sm:$0xff]
      %v570 = vld [vmem:[%s462 + $0xd0] sm:$0xff]
      %v571 = vld [vmem:[%s462 + $0xd8] sm:$0xff]
      %v572 = vld [vmem:[%s462 + $0xe0] sm:$0xff]
      %v573 = vld [vmem:[%s462 + $0xe8] sm:$0xff]
      %v574 = vld [vmem:[%s462 + $0xf0] sm:$0xff]
      %v575 = vld [vmem:[%s462 + $0xf8] sm:$0xff]
      %v576 = vmax.f32 %v512, %v544
      %v577 = vmax.f32 %v513, %v545
      %v578 = vmax.f32 %v514, %v546
      %v579 = vmax.f32 %v515, %v547
      %v580 = vmax.f32 %v516, %v548
      %v581 = vmax.f32 %v517, %v549
      %v582 = vmax.f32 %v518, %v550
      %v583 = vmax.f32 %v519, %v551
      %v584 = vmax.f32 %v520, %v552
      %v585 = vmax.f32 %v521, %v553
      %v586 = vmax.f32 %v522, %v554
      %v587 = vmax.f32 %v523, %v555
      %v588 = vmax.f32 %v524, %v556
      %v589 = vmax.f32 %v525, %v557
      %v590 = vmax.f32 %v526, %v558
      %v591 = vmax.f32 %v527, %v559
      %v592 = vmax.f32 %v528, %v560
      %v593 = vmax.f32 %v529, %v561
      %v594 = vmax.f32 %v530, %v562
      %v595 = vmax.f32 %v531, %v563
      %v596 = vmax.f32 %v532, %v564
      %v597 = vmax.f32 %v533, %v565
      %v598 = vmax.f32 %v534, %v566
      %v599 = vmax.f32 %v535, %v567
      %v600 = vmax.f32 %v536, %v568
      %v601 = vmax.f32 %v537, %v569
      %v602 = vmax.f32 %v538, %v570
      %v603 = vmax.f32 %v539, %v571
      %v604 = vmax.f32 %v540, %v572
      %v605 = vmax.f32 %v541, %v573
      %v606 = vmax.f32 %v542, %v574
      %v607 = vmax.f32 %v543, %v575
      %v608 = vld [vmem:[%s468] sm:$0xff]
      %v609 = vld [vmem:[%s468 + $0x8] sm:$0xff]
      %v610 = vld [vmem:[%s468 + $0x10] sm:$0xff]
      %v611 = vld [vmem:[%s468 + $0x18] sm:$0xff]
      %v612 = vld [vmem:[%s468 + $0x20] sm:$0xff]
      %v613 = vld [vmem:[%s468 + $0x28] sm:$0xff]
      %v614 = vld [vmem:[%s468 + $0x30] sm:$0xff]
      %v615 = vld [vmem:[%s468 + $0x38] sm:$0xff]
      %v616 = vld [vmem:[%s468 + $0x40] sm:$0xff]
      %v617 = vld [vmem:[%s468 + $0x48] sm:$0xff]
      %v618 = vld [vmem:[%s468 + $0x50] sm:$0xff]
      %v619 = vld [vmem:[%s468 + $0x58] sm:$0xff]
      %v620 = vld [vmem:[%s468 + $0x60] sm:$0xff]
      %v621 = vld [vmem:[%s468 + $0x68] sm:$0xff]
      %v622 = vld [vmem:[%s468 + $0x70] sm:$0xff]
      %v623 = vld [vmem:[%s468 + $0x78] sm:$0xff]
      %v624 = vld [vmem:[%s468 + $0x80] sm:$0xff]
      %v625 = vld [vmem:[%s468 + $0x88] sm:$0xff]
      %v626 = vld [vmem:[%s468 + $0x90] sm:$0xff]
      %v627 = vld [vmem:[%s468 + $0x98] sm:$0xff]
      %v628 = vld [vmem:[%s468 + $0xa0] sm:$0xff]
      %v629 = vld [vmem:[%s468 + $0xa8] sm:$0xff]
      %v630 = vld [vmem:[%s468 + $0xb0] sm:$0xff]
      %v631 = vld [vmem:[%s468 + $0xb8] sm:$0xff]
      %v632 = vld [vmem:[%s468 + $0xc0] sm:$0xff]
      %v633 = vld [vmem:[%s468 + $0xc8] sm:$0xff]
      %v634 = vld [vmem:[%s468 + $0xd0] sm:$0xff]
      %v635 = vld [vmem:[%s468 + $0xd8] sm:$0xff]
      %v636 = vld [vmem:[%s468 + $0xe0] sm:$0xff]
      %v637 = vld [vmem:[%s468 + $0xe8] sm:$0xff]
      %v638 = vld [vmem:[%s468 + $0xf0] sm:$0xff]
      %v639 = vld [vmem:[%s468 + $0xf8] sm:$0xff]
      %v640 = vmax.f32 %v576, %v608
      %v641 = vmax.f32 %v577, %v609
      %v642 = vmax.f32 %v578, %v610
      %v643 = vmax.f32 %v579, %v611
      %v644 = vmax.f32 %v580, %v612
      %v645 = vmax.f32 %v581, %v613
      %v646 = vmax.f32 %v582, %v614
      %v647 = vmax.f32 %v583, %v615
      %v648 = vmax.f32 %v584, %v616
      %v649 = vmax.f32 %v585, %v617
      %v650 = vmax.f32 %v586, %v618
      %v651 = vmax.f32 %v587, %v619
      %v652 = vmax.f32 %v588, %v620
      %v653 = vmax.f32 %v589, %v621
      %v654 = vmax.f32 %v590, %v622
      %v655 = vmax.f32 %v591, %v623
      %v656 = vmax.f32 %v592, %v624
      %v657 = vmax.f32 %v593, %v625
      %v658 = vmax.f32 %v594, %v626
      %v659 = vmax.f32 %v595, %v627
      %v660 = vmax.f32 %v596, %v628
      %v661 = vmax.f32 %v597, %v629
      %v662 = vmax.f32 %v598, %v630
      %v663 = vmax.f32 %v599, %v631
      %v664 = vmax.f32 %v600, %v632
      %v665 = vmax.f32 %v601, %v633
      %v666 = vmax.f32 %v602, %v634
      %v667 = vmax.f32 %v603, %v635
      %v668 = vmax.f32 %v604, %v636
      %v669 = vmax.f32 %v605, %v637
      %v670 = vmax.f32 %v606, %v638
      %v671 = vmax.f32 %v607, %v639
      %v672 = vld [vmem:[%s474] sm:$0xff]
      %v673 = vld [vmem:[%s474 + $0x8] sm:$0xff]
      %v674 = vld [vmem:[%s474 + $0x10] sm:$0xff]
      %v675 = vld [vmem:[%s474 + $0x18] sm:$0xff]
      %v676 = vld [vmem:[%s474 + $0x20] sm:$0xff]
      %v677 = vld [vmem:[%s474 + $0x28] sm:$0xff]
      %v678 = vld [vmem:[%s474 + $0x30] sm:$0xff]
      %v679 = vld [vmem:[%s474 + $0x38] sm:$0xff]
      %v680 = vld [vmem:[%s474 + $0x40] sm:$0xff]
      %v681 = vld [vmem:[%s474 + $0x48] sm:$0xff]
      %v682 = vld [vmem:[%s474 + $0x50] sm:$0xff]
      %v683 = vld [vmem:[%s474 + $0x58] sm:$0xff]
      %v684 = vld [vmem:[%s474 + $0x60] sm:$0xff]
      %v685 = vld [vmem:[%s474 + $0x68] sm:$0xff]
      %v686 = vld [vmem:[%s474 + $0x70] sm:$0xff]
      %v687 = vld [vmem:[%s474 + $0x78] sm:$0xff]
      %v688 = vld [vmem:[%s474 + $0x80] sm:$0xff]
      %v689 = vld [vmem:[%s474 + $0x88] sm:$0xff]
      %v690 = vld [vmem:[%s474 + $0x90] sm:$0xff]
      %v691 = vld [vmem:[%s474 + $0x98] sm:$0xff]
      %v692 = vld [vmem:[%s474 + $0xa0] sm:$0xff]
      %v693 = vld [vmem:[%s474 + $0xa8] sm:$0xff]
      %v694 = vld [vmem:[%s474 + $0xb0] sm:$0xff]
      %v695 = vld [vmem:[%s474 + $0xb8] sm:$0xff]
      %v696 = vld [vmem:[%s474 + $0xc0] sm:$0xff]
      %v697 = vld [vmem:[%s474 + $0xc8] sm:$0xff]
      %v698 = vld [vmem:[%s474 + $0xd0] sm:$0xff]
      %v699 = vld [vmem:[%s474 + $0xd8] sm:$0xff]
      %v700 = vld [vmem:[%s474 + $0xe0] sm:$0xff]
      %v701 = vld [vmem:[%s474 + $0xe8] sm:$0xff]
      %v702 = vld [vmem:[%s474 + $0xf0] sm:$0xff]
      %v703 = vld [vmem:[%s474 + $0xf8] sm:$0xff]
      %v704 = vmax.f32 %v640, %v672
      %v705 = vmax.f32 %v641, %v673
      %v706 = vmax.f32 %v642, %v674
      %v707 = vmax.f32 %v643, %v675
      %v708 = vmax.f32 %v644, %v676
      %v709 = vmax.f32 %v645, %v677
      %v710 = vmax.f32 %v646, %v678
      %v711 = vmax.f32 %v647, %v679
      %v712 = vmax.f32 %v648, %v680
      %v713 = vmax.f32 %v649, %v681
      %v714 = vmax.f32 %v650, %v682
      %v715 = vmax.f32 %v651, %v683
      %v716 = vmax.f32 %v652, %v684
      %v717 = vmax.f32 %v653, %v685
      %v718 = vmax.f32 %v654, %v686
      %v719 = vmax.f32 %v655, %v687
      %v720 = vmax.f32 %v656, %v688
      %v721 = vmax.f32 %v657, %v689
      %v722 = vmax.f32 %v658, %v690
      %v723 = vmax.f32 %v659, %v691
      %v724 = vmax.f32 %v660, %v692
      %v725 = vmax.f32 %v661, %v693
      %v726 = vmax.f32 %v662, %v694
      %v727 = vmax.f32 %v663, %v695
      %v728 = vmax.f32 %v664, %v696
      %v729 = vmax.f32 %v665, %v697
      %v730 = vmax.f32 %v666, %v698
      %v731 = vmax.f32 %v667, %v699
      %v732 = vmax.f32 %v668, %v700
      %v733 = vmax.f32 %v669, %v701
      %v734 = vmax.f32 %v670, %v702
      %v735 = vmax.f32 %v671, %v703
      %v736 = vld [vmem:[%s480] sm:$0xff]
      %v737 = vld [vmem:[%s480 + $0x8] sm:$0xff]
      %v738 = vld [vmem:[%s480 + $0x10] sm:$0xff]
      %v739 = vld [vmem:[%s480 + $0x18] sm:$0xff]
      %v740 = vld [vmem:[%s480 + $0x20] sm:$0xff]
      %v741 = vld [vmem:[%s480 + $0x28] sm:$0xff]
      %v742 = vld [vmem:[%s480 + $0x30] sm:$0xff]
      %v743 = vld [vmem:[%s480 + $0x38] sm:$0xff]
      %v744 = vld [vmem:[%s480 + $0x40] sm:$0xff]
      %v745 = vld [vmem:[%s480 + $0x48] sm:$0xff]
      %v746 = vld [vmem:[%s480 + $0x50] sm:$0xff]
      %v747 = vld [vmem:[%s480 + $0x58] sm:$0xff]
      %v748 = vld [vmem:[%s480 + $0x60] sm:$0xff]
      %v749 = vld [vmem:[%s480 + $0x68] sm:$0xff]
      %v750 = vld [vmem:[%s480 + $0x70] sm:$0xff]
      %v751 = vld [vmem:[%s480 + $0x78] sm:$0xff]
      %v752 = vld [vmem:[%s480 + $0x80] sm:$0xff]
      %v753 = vld [vmem:[%s480 + $0x88] sm:$0xff]
      %v754 = vld [vmem:[%s480 + $0x90] sm:$0xff]
      %v755 = vld [vmem:[%s480 + $0x98] sm:$0xff]
      %v756 = vld [vmem:[%s480 + $0xa0] sm:$0xff]
      %v757 = vld [vmem:[%s480 + $0xa8] sm:$0xff]
      %v758 = vld [vmem:[%s480 + $0xb0] sm:$0xff]
      %v759 = vld [vmem:[%s480 + $0xb8] sm:$0xff]
      %v760 = vld [vmem:[%s480 + $0xc0] sm:$0xff]
      %v761 = vld [vmem:[%s480 + $0xc8] sm:$0xff]
      %v762 = vld [vmem:[%s480 + $0xd0] sm:$0xff]
      %v763 = vld [vmem:[%s480 + $0xd8] sm:$0xff]
      %v764 = vld [vmem:[%s480 + $0xe0] sm:$0xff]
      %v765 = vld [vmem:[%s480 + $0xe8] sm:$0xff]
      %v766 = vld [vmem:[%s480 + $0xf0] sm:$0xff]
      %v767 = vld [vmem:[%s480 + $0xf8] sm:$0xff]
      %v768 = vmax.f32 %v704, %v736
      %v769 = vmax.f32 %v705, %v737
      %v770 = vmax.f32 %v706, %v738
      %v771 = vmax.f32 %v707, %v739
      %v772 = vmax.f32 %v708, %v740
      %v773 = vmax.f32 %v709, %v741
      %v774 = vmax.f32 %v710, %v742
      %v775 = vmax.f32 %v711, %v743
      %v776 = vmax.f32 %v712, %v744
      %v777 = vmax.f32 %v713, %v745
      %v778 = vmax.f32 %v714, %v746
      %v779 = vmax.f32 %v715, %v747
      %v780 = vmax.f32 %v716, %v748
      %v781 = vmax.f32 %v717, %v749
      %v782 = vmax.f32 %v718, %v750
      %v783 = vmax.f32 %v719, %v751
      %v784 = vmax.f32 %v720, %v752
      %v785 = vmax.f32 %v721, %v753
      %v786 = vmax.f32 %v722, %v754
      %v787 = vmax.f32 %v723, %v755
      %v788 = vmax.f32 %v724, %v756
      %v789 = vmax.f32 %v725, %v757
      %v790 = vmax.f32 %v726, %v758
      %v791 = vmax.f32 %v727, %v759
      %v792 = vmax.f32 %v728, %v760
      %v793 = vmax.f32 %v729, %v761
      %v794 = vmax.f32 %v730, %v762
      %v795 = vmax.f32 %v731, %v763
      %v796 = vmax.f32 %v732, %v764
      %v797 = vmax.f32 %v733, %v765
      %v798 = vmax.f32 %v734, %v766
      %v799 = vmax.f32 %v735, %v767
      %v800 = vld [vmem:[%s486] sm:$0xff]
      %v801 = vld [vmem:[%s486 + $0x8] sm:$0xff]
      %v802 = vld [vmem:[%s486 + $0x10] sm:$0xff]
      %v803 = vld [vmem:[%s486 + $0x18] sm:$0xff]
      %v804 = vld [vmem:[%s486 + $0x20] sm:$0xff]
      %v805 = vld [vmem:[%s486 + $0x28] sm:$0xff]
      %v806 = vld [vmem:[%s486 + $0x30] sm:$0xff]
      %v807 = vld [vmem:[%s486 + $0x38] sm:$0xff]
      %v808 = vld [vmem:[%s486 + $0x40] sm:$0xff]
      %v809 = vld [vmem:[%s486 + $0x48] sm:$0xff]
      %v810 = vld [vmem:[%s486 + $0x50] sm:$0xff]
      %v811 = vld [vmem:[%s486 + $0x58] sm:$0xff]
      %v812 = vld [vmem:[%s486 + $0x60] sm:$0xff]
      %v813 = vld [vmem:[%s486 + $0x68] sm:$0xff]
      %v814 = vld [vmem:[%s486 + $0x70] sm:$0xff]
      %v815 = vld [vmem:[%s486 + $0x78] sm:$0xff]
      %v816 = vld [vmem:[%s486 + $0x80] sm:$0xff]
      %v817 = vld [vmem:[%s486 + $0x88] sm:$0xff]
      %v818 = vld [vmem:[%s486 + $0x90] sm:$0xff]
      %v819 = vld [vmem:[%s486 + $0x98] sm:$0xff]
      %v820 = vld [vmem:[%s486 + $0xa0] sm:$0xff]
      %v821 = vld [vmem:[%s486 + $0xa8] sm:$0xff]
      %v822 = vld [vmem:[%s486 + $0xb0] sm:$0xff]
      %v823 = vld [vmem:[%s486 + $0xb8] sm:$0xff]
      %v824 = vld [vmem:[%s486 + $0xc0] sm:$0xff]
      %v825 = vld [vmem:[%s486 + $0xc8] sm:$0xff]
      %v826 = vld [vmem:[%s486 + $0xd0] sm:$0xff]
      %v827 = vld [vmem:[%s486 + $0xd8] sm:$0xff]
      %v828 = vld [vmem:[%s486 + $0xe0] sm:$0xff]
      %v829 = vld [vmem:[%s486 + $0xe8] sm:$0xff]
      %v830 = vld [vmem:[%s486 + $0xf0] sm:$0xff]
      %v831 = vld [vmem:[%s486 + $0xf8] sm:$0xff]
      %v832 = vmax.f32 %v768, %v800
      %v833 = vmax.f32 %v769, %v801
      %v834 = vmax.f32 %v770, %v802
      %v835 = vmax.f32 %v771, %v803
      %v836 = vmax.f32 %v772, %v804
      %v837 = vmax.f32 %v773, %v805
      %v838 = vmax.f32 %v774, %v806
      %v839 = vmax.f32 %v775, %v807
      %v840 = vmax.f32 %v776, %v808
      %v841 = vmax.f32 %v777, %v809
      %v842 = vmax.f32 %v778, %v810
      %v843 = vmax.f32 %v779, %v811
      %v844 = vmax.f32 %v780, %v812
      %v845 = vmax.f32 %v781, %v813
      %v846 = vmax.f32 %v782, %v814
      %v847 = vmax.f32 %v783, %v815
      %v848 = vmax.f32 %v784, %v816
      %v849 = vmax.f32 %v785, %v817
      %v850 = vmax.f32 %v786, %v818
      %v851 = vmax.f32 %v787, %v819
      %v852 = vmax.f32 %v788, %v820
      %v853 = vmax.f32 %v789, %v821
      %v854 = vmax.f32 %v790, %v822
      %v855 = vmax.f32 %v791, %v823
      %v856 = vmax.f32 %v792, %v824
      %v857 = vmax.f32 %v793, %v825
      %v858 = vmax.f32 %v794, %v826
      %v859 = vmax.f32 %v795, %v827
      %v860 = vmax.f32 %v796, %v828
      %v861 = vmax.f32 %v797, %v829
      %v862 = vmax.f32 %v798, %v830
      %v863 = vmax.f32 %v799, %v831
      %v864 = vld [vmem:[%s492] sm:$0xff]
      %v865 = vld [vmem:[%s492 + $0x8] sm:$0xff]
      %v866 = vld [vmem:[%s492 + $0x10] sm:$0xff]
      %v867 = vld [vmem:[%s492 + $0x18] sm:$0xff]
      %v868 = vld [vmem:[%s492 + $0x20] sm:$0xff]
      %v869 = vld [vmem:[%s492 + $0x28] sm:$0xff]
      %v870 = vld [vmem:[%s492 + $0x30] sm:$0xff]
      %v871 = vld [vmem:[%s492 + $0x38] sm:$0xff]
      %v872 = vld [vmem:[%s492 + $0x40] sm:$0xff]
      %v873 = vld [vmem:[%s492 + $0x48] sm:$0xff]
      %v874 = vld [vmem:[%s492 + $0x50] sm:$0xff]
      %v875 = vld [vmem:[%s492 + $0x58] sm:$0xff]
      %v876 = vld [vmem:[%s492 + $0x60] sm:$0xff]
      %v877 = vld [vmem:[%s492 + $0x68] sm:$0xff]
      %v878 = vld [vmem:[%s492 + $0x70] sm:$0xff]
      %v879 = vld [vmem:[%s492 + $0x78] sm:$0xff]
      %v880 = vld [vmem:[%s492 + $0x80] sm:$0xff]
      %v881 = vld [vmem:[%s492 + $0x88] sm:$0xff]
      %v882 = vld [vmem:[%s492 + $0x90] sm:$0xff]
      %v883 = vld [vmem:[%s492 + $0x98] sm:$0xff]
      %v884 = vld [vmem:[%s492 + $0xa0] sm:$0xff]
      %v885 = vld [vmem:[%s492 + $0xa8] sm:$0xff]
      %v886 = vld [vmem:[%s492 + $0xb0] sm:$0xff]
      %v887 = vld [vmem:[%s492 + $0xb8] sm:$0xff]
      %v888 = vld [vmem:[%s492 + $0xc0] sm:$0xff]
      %v889 = vld [vmem:[%s492 + $0xc8] sm:$0xff]
      %v890 = vld [vmem:[%s492 + $0xd0] sm:$0xff]
      %v891 = vld [vmem:[%s492 + $0xd8] sm:$0xff]
      %v892 = vld [vmem:[%s492 + $0xe0] sm:$0xff]
      %v893 = vld [vmem:[%s492 + $0xe8] sm:$0xff]
      %v894 = vld [vmem:[%s492 + $0xf0] sm:$0xff]
      %v895 = vld [vmem:[%s492 + $0xf8] sm:$0xff]
      %v896 = vmax.f32 %v832, %v864
      %v897 = vmax.f32 %v833, %v865
      %v898 = vmax.f32 %v834, %v866
      %v899 = vmax.f32 %v835, %v867
      %v900 = vmax.f32 %v836, %v868
      %v901 = vmax.f32 %v837, %v869
      %v902 = vmax.f32 %v838, %v870
      %v903 = vmax.f32 %v839, %v871
      %v904 = vmax.f32 %v840, %v872
      %v905 = vmax.f32 %v841, %v873
      %v906 = vmax.f32 %v842, %v874
      %v907 = vmax.f32 %v843, %v875
      %v908 = vmax.f32 %v844, %v876
      %v909 = vmax.f32 %v845, %v877
      %v910 = vmax.f32 %v846, %v878
      %v911 = vmax.f32 %v847, %v879
      %v912 = vmax.f32 %v848, %v880
      %v913 = vmax.f32 %v849, %v881
      %v914 = vmax.f32 %v850, %v882
      %v915 = vmax.f32 %v851, %v883
      %v916 = vmax.f32 %v852, %v884
      %v917 = vmax.f32 %v853, %v885
      %v918 = vmax.f32 %v854, %v886
      %v919 = vmax.f32 %v855, %v887
      %v920 = vmax.f32 %v856, %v888
      %v921 = vmax.f32 %v857, %v889
      %v922 = vmax.f32 %v858, %v890
      %v923 = vmax.f32 %v859, %v891
      %v924 = vmax.f32 %v860, %v892
      %v925 = vmax.f32 %v861, %v893
      %v926 = vmax.f32 %v862, %v894
      %v927 = vmax.f32 %v863, %v895
      %v928 = vld [vmem:[%s498] sm:$0xff]
      %v929 = vld [vmem:[%s498 + $0x8] sm:$0xff]
      %v930 = vld [vmem:[%s498 + $0x10] sm:$0xff]
      %v931 = vld [vmem:[%s498 + $0x18] sm:$0xff]
      %v932 = vld [vmem:[%s498 + $0x20] sm:$0xff]
      %v933 = vld [vmem:[%s498 + $0x28] sm:$0xff]
      %v934 = vld [vmem:[%s498 + $0x30] sm:$0xff]
      %v935 = vld [vmem:[%s498 + $0x38] sm:$0xff]
      %v936 = vld [vmem:[%s498 + $0x40] sm:$0xff]
      %v937 = vld [vmem:[%s498 + $0x48] sm:$0xff]
      %v938 = vld [vmem:[%s498 + $0x50] sm:$0xff]
      %v939 = vld [vmem:[%s498 + $0x58] sm:$0xff]
      %v940 = vld [vmem:[%s498 + $0x60] sm:$0xff]
      %v941 = vld [vmem:[%s498 + $0x68] sm:$0xff]
      %v942 = vld [vmem:[%s498 + $0x70] sm:$0xff]
      %v943 = vld [vmem:[%s498 + $0x78] sm:$0xff]
      %v944 = vld [vmem:[%s498 + $0x80] sm:$0xff]
      %v945 = vld [vmem:[%s498 + $0x88] sm:$0xff]
      %v946 = vld [vmem:[%s498 + $0x90] sm:$0xff]
      %v947 = vld [vmem:[%s498 + $0x98] sm:$0xff]
      %v948 = vld [vmem:[%s498 + $0xa0] sm:$0xff]
      %v949 = vld [vmem:[%s498 + $0xa8] sm:$0xff]
      %v950 = vld [vmem:[%s498 + $0xb0] sm:$0xff]
      %v951 = vld [vmem:[%s498 + $0xb8] sm:$0xff]
      %v952 = vld [vmem:[%s498 + $0xc0] sm:$0xff]
      %v953 = vld [vmem:[%s498 + $0xc8] sm:$0xff]
      %v954 = vld [vmem:[%s498 + $0xd0] sm:$0xff]
      %v955 = vld [vmem:[%s498 + $0xd8] sm:$0xff]
      %v956 = vld [vmem:[%s498 + $0xe0] sm:$0xff]
      %v957 = vld [vmem:[%s498 + $0xe8] sm:$0xff]
      %v958 = vld [vmem:[%s498 + $0xf0] sm:$0xff]
      %v959 = vld [vmem:[%s498 + $0xf8] sm:$0xff]
      %v960 = vmax.f32 %v896, %v928
      %v961 = vmax.f32 %v897, %v929
      %v962 = vmax.f32 %v898, %v930
      %v963 = vmax.f32 %v899, %v931
      %v964 = vmax.f32 %v900, %v932
      %v965 = vmax.f32 %v901, %v933
      %v966 = vmax.f32 %v902, %v934
      %v967 = vmax.f32 %v903, %v935
      %v968 = vmax.f32 %v904, %v936
      %v969 = vmax.f32 %v905, %v937
      %v970 = vmax.f32 %v906, %v938
      %v971 = vmax.f32 %v907, %v939
      %v972 = vmax.f32 %v908, %v940
      %v973 = vmax.f32 %v909, %v941
      %v974 = vmax.f32 %v910, %v942
      %v975 = vmax.f32 %v911, %v943
      %v976 = vmax.f32 %v912, %v944
      %v977 = vmax.f32 %v913, %v945
      %v978 = vmax.f32 %v914, %v946
      %v979 = vmax.f32 %v915, %v947
      %v980 = vmax.f32 %v916, %v948
      %v981 = vmax.f32 %v917, %v949
      %v982 = vmax.f32 %v918, %v950
      %v983 = vmax.f32 %v919, %v951
      %v984 = vmax.f32 %v920, %v952
      %v985 = vmax.f32 %v921, %v953
      %v986 = vmax.f32 %v922, %v954
      %v987 = vmax.f32 %v923, %v955
      %v988 = vmax.f32 %v924, %v956
      %v989 = vmax.f32 %v925, %v957
      %v990 = vmax.f32 %v926, %v958
      %v991 = vmax.f32 %v927, %v959
      %v992 = vld [vmem:[%s504] sm:$0xff]
      %v993 = vld [vmem:[%s504 + $0x8] sm:$0xff]
      %v994 = vld [vmem:[%s504 + $0x10] sm:$0xff]
      %v995 = vld [vmem:[%s504 + $0x18] sm:$0xff]
      %v996 = vld [vmem:[%s504 + $0x20] sm:$0xff]
      %v997 = vld [vmem:[%s504 + $0x28] sm:$0xff]
      %v998 = vld [vmem:[%s504 + $0x30] sm:$0xff]
      %v999 = vld [vmem:[%s504 + $0x38] sm:$0xff]
      %v1000 = vld [vmem:[%s504 + $0x40] sm:$0xff]
      %v1001 = vld [vmem:[%s504 + $0x48] sm:$0xff]
      %v1002 = vld [vmem:[%s504 + $0x50] sm:$0xff]
      %v1003 = vld [vmem:[%s504 + $0x58] sm:$0xff]
      %v1004 = vld [vmem:[%s504 + $0x60] sm:$0xff]
      %v1005 = vld [vmem:[%s504 + $0x68] sm:$0xff]
      %v1006 = vld [vmem:[%s504 + $0x70] sm:$0xff]
      %v1007 = vld [vmem:[%s504 + $0x78] sm:$0xff]
      %v1008 = vld [vmem:[%s504 + $0x80] sm:$0xff]
      %v1009 = vld [vmem:[%s504 + $0x88] sm:$0xff]
      %v1010 = vld [vmem:[%s504 + $0x90] sm:$0xff]
      %v1011 = vld [vmem:[%s504 + $0x98] sm:$0xff]
      %v1012 = vld [vmem:[%s504 + $0xa0] sm:$0xff]
      %v1013 = vld [vmem:[%s504 + $0xa8] sm:$0xff]
      %v1014 = vld [vmem:[%s504 + $0xb0] sm:$0xff]
      %v1015 = vld [vmem:[%s504 + $0xb8] sm:$0xff]
      %v1016 = vld [vmem:[%s504 + $0xc0] sm:$0xff]
      %v1017 = vld [vmem:[%s504 + $0xc8] sm:$0xff]
      %v1018 = vld [vmem:[%s504 + $0xd0] sm:$0xff]
      %v1019 = vld [vmem:[%s504 + $0xd8] sm:$0xff]
      %v1020 = vld [vmem:[%s504 + $0xe0] sm:$0xff]
      %v1021 = vld [vmem:[%s504 + $0xe8] sm:$0xff]
      %v1022 = vld [vmem:[%s504 + $0xf0] sm:$0xff]
      %v1023 = vld [vmem:[%s504 + $0xf8] sm:$0xff]
      %v1024 = vmax.f32 %v960, %v992
      %v1025 = vmax.f32 %v961, %v993
      %v1026 = vmax.f32 %v962, %v994
      %v1027 = vmax.f32 %v963, %v995
      %v1028 = vmax.f32 %v964, %v996
      %v1029 = vmax.f32 %v965, %v997
      %v1030 = vmax.f32 %v966, %v998
      %v1031 = vmax.f32 %v967, %v999
      %v1032 = vmax.f32 %v968, %v1000
      %v1033 = vmax.f32 %v969, %v1001
      %v1034 = vmax.f32 %v970, %v1002
      %v1035 = vmax.f32 %v971, %v1003
      %v1036 = vmax.f32 %v972, %v1004
      %v1037 = vmax.f32 %v973, %v1005
      %v1038 = vmax.f32 %v974, %v1006
      %v1039 = vmax.f32 %v975, %v1007
      %v1040 = vmax.f32 %v976, %v1008
      %v1041 = vmax.f32 %v977, %v1009
      %v1042 = vmax.f32 %v978, %v1010
      %v1043 = vmax.f32 %v979, %v1011
      %v1044 = vmax.f32 %v980, %v1012
      %v1045 = vmax.f32 %v981, %v1013
      %v1046 = vmax.f32 %v982, %v1014
      %v1047 = vmax.f32 %v983, %v1015
      %v1048 = vmax.f32 %v984, %v1016
      %v1049 = vmax.f32 %v985, %v1017
      %v1050 = vmax.f32 %v986, %v1018
      %v1051 = vmax.f32 %v987, %v1019
      %v1052 = vmax.f32 %v988, %v1020
      %v1053 = vmax.f32 %v989, %v1021
      %v1054 = vmax.f32 %v990, %v1022
      %v1055 = vmax.f32 %v991, %v1023
      %1056 = vst [vmem:[%s510] sm:$0xff] %v1024
      %1057 = vst [vmem:[%s510 + $0x8] sm:$0xff] %v1025
      %1058 = vst [vmem:[%s510 + $0x10] sm:$0xff] %v1026
      %1059 = vst [vmem:[%s510 + $0x18] sm:$0xff] %v1027
      %1060 = vst [vmem:[%s510 + $0x20] sm:$0xff] %v1028
      %1061 = vst [vmem:[%s510 + $0x28] sm:$0xff] %v1029
      %1062 = vst [vmem:[%s510 + $0x30] sm:$0xff] %v1030
      %1063 = vst [vmem:[%s510 + $0x38] sm:$0xff] %v1031
      %1064 = vst [vmem:[%s510 + $0x40] sm:$0xff] %v1032
      %1065 = vst [vmem:[%s510 + $0x48] sm:$0xff] %v1033
      %1066 = vst [vmem:[%s510 + $0x50] sm:$0xff] %v1034
      %1067 = vst [vmem:[%s510 + $0x58] sm:$0xff] %v1035
      %1068 = vst [vmem:[%s510 + $0x60] sm:$0xff] %v1036
      %1069 = vst [vmem:[%s510 + $0x68] sm:$0xff] %v1037
      %1070 = vst [vmem:[%s510 + $0x70] sm:$0xff] %v1038
      %1071 = vst [vmem:[%s510 + $0x78] sm:$0xff] %v1039
      %1072 = vst [vmem:[%s510 + $0x80] sm:$0xff] %v1040
      %1073 = vst [vmem:[%s510 + $0x88] sm:$0xff] %v1041
      %1074 = vst [vmem:[%s510 + $0x90] sm:$0xff] %v1042
      %1075 = vst [vmem:[%s510 + $0x98] sm:$0xff] %v1043
      %1076 = vst [vmem:[%s510 + $0xa0] sm:$0xff] %v1044
      %1077 = vst [vmem:[%s510 + $0xa8] sm:$0xff] %v1045
      %1078 = vst [vmem:[%s510 + $0xb0] sm:$0xff] %v1046
      %1079 = vst [vmem:[%s510 + $0xb8] sm:$0xff] %v1047
      %1080 = vst [vmem:[%s510 + $0xc0] sm:$0xff] %v1048
      %1081 = vst [vmem:[%s510 + $0xc8] sm:$0xff] %v1049
      %1082 = vst [vmem:[%s510 + $0xd0] sm:$0xff] %v1050
      %1083 = vst [vmem:[%s510 + $0xd8] sm:$0xff] %v1051
      %1084 = vst [vmem:[%s510 + $0xe0] sm:$0xff] %v1052
      %1085 = vst [vmem:[%s510 + $0xe8] sm:$0xff] %v1053
      %1086 = vst [vmem:[%s510 + $0xf0] sm:$0xff] %v1054
      %1087 = vst [vmem:[%s510 + $0xf8] sm:$0xff] %v1055
      %s1088 = smul.u32 32, %s20
      %p1089 = scmp.lt.s32.totalorder %s1088, 63
      %s1090 = scalar_select %p1089, %s1088, 63
      %s1091 = smul.addr %s1090, 8
      %s1092 = scalar_lea.vmem %s9, %s1091
      // Predicated region
      $region57: #{nb101_wrapper_forward.34} parent=55 // pred_check
        %p1093 = pneg %p272
      $region58: #{nb101_wrapper_forward.34} parent=55 // pred_check_branch
        %1095 = sbr.rel (%p1093) target = $region60
      $region59: #{nb101_wrapper_forward.34} parent=55 // pred_region
        %s1096 = smul.u32 32, %s20
      $region60: #{nb101_wrapper_forward.34} parent=55 // pred_fallthru
        _
    $region56: #{nb101_wrapper_forward.34} parent=5 // pred_fallthru
      _
    %p1097 = scmp.le.s32.totalorder 2, %s15
    // Predicated region
    $region61: #{nb101_wrapper_forward.34} parent=5 // pred_check
      %p1098 = pneg %p1097
    $region62: #{nb101_wrapper_forward.34} parent=5 // pred_check_branch
      %1100 = sbr.rel (%p1098) target = $region64
    $region63: #{nb101_wrapper_forward.34} parent=5 // pred_region
      %s1101 = ssub.s32 %s15, 2
      // Predicated region
      $region65: #{nb101_wrapper_forward.34} parent=63 // pred_check
        %p1102 = pneg %p278
      $region66: #{nb101_wrapper_forward.34} parent=63 // pred_check_branch
        %1104 = sbr.rel (%p1102) target = $region68
      $region67: #{nb101_wrapper_forward.34} parent=63 // pred_region
        %s1105 = smul.u32 32, %s21
        %p1106 = scmp.lt.s32.totalorder %s1105, 63
        %s1107 = scalar_select %p1106, %s1105, 63
        %s1108 = smul.addr %s1107, 8
        %s1109 = scalar_lea.vmem %s9, %s1108
      $region68: #{nb101_wrapper_forward.34} parent=63 // pred_fallthru
        _
    $region64: #{nb101_wrapper_forward.34} parent=5 // pred_fallthru
      _
  $region6: #{nb101_wrapper_forward.34} parent=0 // loop_footer
    %s19 = sadd.s32 1, %s15
  $region7: #{nb101_wrapper_forward.34} parent=0 // loop_footer_branch
    %14 = sbr.rel target = $region3
  $region8: #{nb101_wrapper_forward.34} parent=0 // loop_exit
    _

// kernel: nb101_wrapper_forward.36
$region0: #{nb101_wrapper_forward.36}
  #allocation0 [shape = 'u32[]', space=smem, size = 0x4, offset = 0x4, fixed_abs, tag = 'smem constant byte address 0x4 - core index']
  #allocation1 [shape = 'u32[144,128]{1,0:T(1,128)}', space=vmem, size = 0x12000, scoped, tag = 'internal scratch']
  %s0 = inlined_call_operand.vmem [shape: f32[128,128], index: 0, kind: input, shape index: {}]
  %s1 = inlined_call_operand.vmem [shape: f32[128,128], index: 1, kind: input, shape index: {}]
  %s2 = inlined_call_operand.vmem [shape: f32[128,128], index: 2, kind: input, shape index: {}]
  %s3 = inlined_call_operand.vmem [shape: f32[128,128], index: 3, kind: input, shape index: {}]
  %s4 = inlined_call_operand.vmem [shape: f32[128,128], index: 4, kind: output, shape index: {}]
  %s5 = sld [smem:[#allocation0]]
  $region26: #{nb101_wrapper_forward.36} parent=0
    _
  %s7 = ssub.s32 1, %s5
  %s8 = scalar_select 0, %s7, %s5
  // Predicated region
  $region2: #{nb101_wrapper_forward.36} parent=0 // pred_check
    _
  $region3: #{nb101_wrapper_forward.36} parent=0 // pred_check_branch
    %10 = sbr.rel (0) target = $region5
  $region4: #{nb101_wrapper_forward.36} parent=0 // pred_region
    _
  $region5: #{nb101_wrapper_forward.36} parent=0 // pred_fallthru
    _
  // Predicated region
  $region6: #{nb101_wrapper_forward.36} parent=0 // pred_check
    _
  $region7: #{nb101_wrapper_forward.36} parent=0 // pred_check_branch
    %12 = sbr.rel (0) target = $region9
  $region8: #{nb101_wrapper_forward.36} parent=0 // pred_region
    _
  $region9: #{nb101_wrapper_forward.36} parent=0 // pred_fallthru
    _
  // Predicated region
  $region10: #{nb101_wrapper_forward.36} parent=0 // pred_check
    _
  $region11: #{nb101_wrapper_forward.36} parent=0 // pred_check_branch
    %14 = sbr.rel (0) target = $region13
  $region12: #{nb101_wrapper_forward.36} parent=0 // pred_region
    _
  $region13: #{nb101_wrapper_forward.36} parent=0 // pred_fallthru
    _
  // Predicated region
  $region14: #{nb101_wrapper_forward.36} parent=0 // pred_check
    _
  $region15: #{nb101_wrapper_forward.36} parent=0 // pred_check_branch
    %16 = sbr.rel (0) target = $region17
  $region16: #{nb101_wrapper_forward.36} parent=0 // pred_region
    _
  $region17: #{nb101_wrapper_forward.36} parent=0 // pred_fallthru
    _
  %v17 = vld [vmem:[%s0] sm:$0xff]
  %v18 = vld [vmem:[%s0 + $0x8] sm:$0xff]
  %v19 = vld [vmem:[%s0 + $0x10] sm:$0xff]
  %v20 = vld [vmem:[%s0 + $0x18] sm:$0xff]
  %v21 = vld [vmem:[%s0 + $0x20] sm:$0xff]
  %v22 = vld [vmem:[%s0 + $0x28] sm:$0xff]
  %v23 = vld [vmem:[%s0 + $0x30] sm:$0xff]
  %v24 = vld [vmem:[%s0 + $0x38] sm:$0xff]
  %v25 = vld [vmem:[%s0 + $0x40] sm:$0xff]
  %v26 = vld [vmem:[%s0 + $0x48] sm:$0xff]
  %v27 = vld [vmem:[%s0 + $0x50] sm:$0xff]
  %v28 = vld [vmem:[%s0 + $0x58] sm:$0xff]
  %v29 = vld [vmem:[%s0 + $0x60] sm:$0xff]
  %v30 = vld [vmem:[%s0 + $0x68] sm:$0xff]
  %v31 = vld [vmem:[%s0 + $0x70] sm:$0xff]
  %v32 = vld [vmem:[%s0 + $0x78] sm:$0xff]
  %v33 = vld [vmem:[%s1] sm:$0xff]
  %v34 = vld [vmem:[%s1 + $0x8] sm:$0xff]
  %v35 = vld [vmem:[%s1 + $0x10] sm:$0xff]
  %v36 = vld [vmem:[%s1 + $0x18] sm:$0xff]
  %v37 = vld [vmem:[%s1 + $0x20] sm:$0xff]
  %v38 = vld [vmem:[%s1 + $0x28] sm:$0xff]
  %v39 = vld [vmem:[%s1 + $0x30] sm:$0xff]
  %v40 = vld [vmem:[%s1 + $0x38] sm:$0xff]
  %v41 = vld [vmem:[%s1 + $0x40] sm:$0xff]
  %v42 = vld [vmem:[%s1 + $0x48] sm:$0xff]
  %v43 = vld [vmem:[%s1 + $0x50] sm:$0xff]
  %v44 = vld [vmem:[%s1 + $0x58] sm:$0xff]
  %v45 = vld [vmem:[%s1 + $0x60] sm:$0xff]
  %v46 = vld [vmem:[%s1 + $0x68] sm:$0xff]
  %v47 = vld [vmem:[%s1 + $0x70] sm:$0xff]
  %v48 = vld [vmem:[%s1 + $0x78] sm:$0xff]
  %v49 = vmax.f32 %v17, %v33
  %v50 = vmax.f32 %v18, %v34
  %v51 = vmax.f32 %v19, %v35
  %v52 = vmax.f32 %v20, %v36
  %v53 = vmax.f32 %v21, %v37
  %v54 = vmax.f32 %v22, %v38
  %v55 = vmax.f32 %v23, %v39
  %v56 = vmax.f32 %v24, %v40
  %v57 = vmax.f32 %v25, %v41
  %v58 = vmax.f32 %v26, %v42
  %v59 = vmax.f32 %v27, %v43
  %v60 = vmax.f32 %v28, %v44
  %v61 = vmax.f32 %v29, %v45
  %v62 = vmax.f32 %v30, %v46
  %v63 = vmax.f32 %v31, %v47
  %v64 = vmax.f32 %v32, %v48
  %v65 = vld [vmem:[%s2] sm:$0xff]
  %v66 = vld [vmem:[%s2 + $0x8] sm:$0xff]
  %v67 = vld [vmem:[%s2 + $0x10] sm:$0xff]
  %v68 = vld [vmem:[%s2 + $0x18] sm:$0xff]
  %v69 = vld [vmem:[%s2 + $0x20] sm:$0xff]
  %v70 = vld [vmem:[%s2 + $0x28] sm:$0xff]
  %v71 = vld [vmem:[%s2 + $0x30] sm:$0xff]
  %v72 = vld [vmem:[%s2 + $0x38] sm:$0xff]
  %v73 = vld [vmem:[%s2 + $0x40] sm:$0xff]
  %v74 = vld [vmem:[%s2 + $0x48] sm:$0xff]
  %v75 = vld [vmem:[%s2 + $0x50] sm:$0xff]
  %v76 = vld [vmem:[%s2 + $0x58] sm:$0xff]
  %v77 = vld [vmem:[%s2 + $0x60] sm:$0xff]
  %v78 = vld [vmem:[%s2 + $0x68] sm:$0xff]
  %v79 = vld [vmem:[%s2 + $0x70] sm:$0xff]
  %v80 = vld [vmem:[%s2 + $0x78] sm:$0xff]
  %v81 = vmax.f32 %v49, %v65
  %v82 = vmax.f32 %v50, %v66
  %v83 = vmax.f32 %v51, %v67
  %v84 = vmax.f32 %v52, %v68
  %v85 = vmax.f32 %v53, %v69
  %v86 = vmax.f32 %v54, %v70
  %v87 = vmax.f32 %v55, %v71
  %v88 = vmax.f32 %v56, %v72
  %v89 = vmax.f32 %v57, %v73
  %v90 = vmax.f32 %v58, %v74
  %v91 = vmax.f32 %v59, %v75
  %v92 = vmax.f32 %v60, %v76
  %v93 = vmax.f32 %v61, %v77
  %v94 = vmax.f32 %v62, %v78
  %v95 = vmax.f32 %v63, %v79
  %v96 = vmax.f32 %v64, %v80
  %v97 = vld [vmem:[%s3] sm:$0xff]
  %v98 = vld [vmem:[%s3 + $0x8] sm:$0xff]
  %v99 = vld [vmem:[%s3 + $0x10] sm:$0xff]
  %v100 = vld [vmem:[%s3 + $0x18] sm:$0xff]
  %v101 = vld [vmem:[%s3 + $0x20] sm:$0xff]
  %v102 = vld [vmem:[%s3 + $0x28] sm:$0xff]
  %v103 = vld [vmem:[%s3 + $0x30] sm:$0xff]
  %v104 = vld [vmem:[%s3 + $0x38] sm:$0xff]
  %v105 = vld [vmem:[%s3 + $0x40] sm:$0xff]
  %v106 = vld [vmem:[%s3 + $0x48] sm:$0xff]
  %v107 = vld [vmem:[%s3 + $0x50] sm:$0xff]
  %v108 = vld [vmem:[%s3 + $0x58] sm:$0xff]
  %v109 = vld [vmem:[%s3 + $0x60] sm:$0xff]
  %v110 = vld [vmem:[%s3 + $0x68] sm:$0xff]
  %v111 = vld [vmem:[%s3 + $0x70] sm:$0xff]
  %v112 = vld [vmem:[%s3 + $0x78] sm:$0xff]
  %v113 = vmax.f32 %v81, %v97
  %v114 = vmax.f32 %v82, %v98
  %v115 = vmax.f32 %v83, %v99
  %v116 = vmax.f32 %v84, %v100
  %v117 = vmax.f32 %v85, %v101
  %v118 = vmax.f32 %v86, %v102
  %v119 = vmax.f32 %v87, %v103
  %v120 = vmax.f32 %v88, %v104
  %v121 = vmax.f32 %v89, %v105
  %v122 = vmax.f32 %v90, %v106
  %v123 = vmax.f32 %v91, %v107
  %v124 = vmax.f32 %v92, %v108
  %v125 = vmax.f32 %v93, %v109
  %v126 = vmax.f32 %v94, %v110
  %v127 = vmax.f32 %v95, %v111
  %v128 = vmax.f32 %v96, %v112
  %129 = vst [vmem:[%s4] sm:$0xff] %v113
  %130 = vst [vmem:[%s4 + $0x8] sm:$0xff] %v114
  %131 = vst [vmem:[%s4 + $0x10] sm:$0xff] %v115
  %132 = vst [vmem:[%s4 + $0x18] sm:$0xff] %v116
  %133 = vst [vmem:[%s4 + $0x20] sm:$0xff] %v117
  %134 = vst [vmem:[%s4 + $0x28] sm:$0xff] %v118
  %135 = vst [vmem:[%s4 + $0x30] sm:$0xff] %v119
  %136 = vst [vmem:[%s4 + $0x38] sm:$0xff] %v120
  %137 = vst [vmem:[%s4 + $0x40] sm:$0xff] %v121
  %138 = vst [vmem:[%s4 + $0x48] sm:$0xff] %v122
  %139 = vst [vmem:[%s4 + $0x50] sm:$0xff] %v123
  %140 = vst [vmem:[%s4 + $0x58] sm:$0xff] %v124
  %141 = vst [vmem:[%s4 + $0x60] sm:$0xff] %v125
  %142 = vst [vmem:[%s4 + $0x68] sm:$0xff] %v126
  %143 = vst [vmem:[%s4 + $0x70] sm:$0xff] %v127
  %144 = vst [vmem:[%s4 + $0x78] sm:$0xff] %v128
  // Predicated region
  $region18: #{nb101_wrapper_forward.36} parent=0 // pred_check
    _
  $region19: #{nb101_wrapper_forward.36} parent=0 // pred_check_branch
    %146 = sbr.rel (0) target = $region21
  $region20: #{nb101_wrapper_forward.36} parent=0 // pred_region
    _
  $region21: #{nb101_wrapper_forward.36} parent=0 // pred_fallthru
    _
  // Predicated region
  $region22: #{nb101_wrapper_forward.36} parent=0 // pred_check
    _
  $region23: #{nb101_wrapper_forward.36} parent=0 // pred_check_branch
    %148 = sbr.rel (0) target = $region25
  $region24: #{nb101_wrapper_forward.36} parent=0 // pred_region
    _
  $region25: #{nb101_wrapper_forward.36} parent=0 // pred_fallthru
    _

// kernel: nb101_wrapper_forward.40
$region0: #{nb101_wrapper_forward.40}
  #allocation0 [shape = 'u32[]', space=smem, size = 0x4, offset = 0x4, fixed_abs, tag = 'smem constant byte address 0x4 - core index']
  #allocation1 [shape = 'u32[144,128]{1,0:T(1,128)}', space=vmem, size = 0x12000, scoped, tag = 'internal scratch']
  %s0 = inlined_call_operand.vmem [shape: f32[128,144], index: 0, kind: input, shape index: {}]
  %s1 = inlined_call_operand.vmem [shape: f32[144,128], index: 1, kind: input, shape index: {}]
  %s2 = inlined_call_operand.vmem [shape: f32[1,128], index: 2, kind: input, shape index: {}]
  %s3 = inlined_call_operand.vmem [shape: f32[1,128], index: 3, kind: input, shape index: {}]
  %s4 = inlined_call_operand.vmem [shape: f32[128,128], index: 4, kind: output, shape index: {}]
  %s5 = sld [smem:[#allocation0]]
  $region26: #{nb101_wrapper_forward.40} parent=0
    _
  %s7 = ssub.s32 1, %s5
  %s8 = scalar_select 0, %s7, %s5
  // Predicated region
  $region2: #{nb101_wrapper_forward.40} parent=0 // pred_check
    _
  $region3: #{nb101_wrapper_forward.40} parent=0 // pred_check_branch
    %10 = sbr.rel (0) target = $region5
  $region4: #{nb101_wrapper_forward.40} parent=0 // pred_region
    _
  $region5: #{nb101_wrapper_forward.40} parent=0 // pred_fallthru
    _
  // Predicated region
  $region6: #{nb101_wrapper_forward.40} parent=0 // pred_check
    _
  $region7: #{nb101_wrapper_forward.40} parent=0 // pred_check_branch
    %12 = sbr.rel (0) target = $region9
  $region8: #{nb101_wrapper_forward.40} parent=0 // pred_region
    _
  $region9: #{nb101_wrapper_forward.40} parent=0 // pred_fallthru
    _
  // Predicated region
  $region10: #{nb101_wrapper_forward.40} parent=0 // pred_check
    _
  $region11: #{nb101_wrapper_forward.40} parent=0 // pred_check_branch
    %14 = sbr.rel (0) target = $region13
  $region12: #{nb101_wrapper_forward.40} parent=0 // pred_region
    _
  $region13: #{nb101_wrapper_forward.40} parent=0 // pred_fallthru
    _
  // Predicated region
  $region14: #{nb101_wrapper_forward.40} parent=0 // pred_check
    _
  $region15: #{nb101_wrapper_forward.40} parent=0 // pred_check_branch
    %16 = sbr.rel (0) target = $region17
  $region16: #{nb101_wrapper_forward.40} parent=0 // pred_region
    _
  $region17: #{nb101_wrapper_forward.40} parent=0 // pred_fallthru
    _
  %v17 = vld [vmem:[%s0] sm:$0xff]
  %v18 = vld [vmem:[%s0 + $0x8] sm:$0xff]
  %v19 = vld [vmem:[%s0 + $0x10] sm:$0xff]
  %v20 = vld [vmem:[%s0 + $0x18] sm:$0xff]
  %v21 = vld [vmem:[%s0 + $0x20] sm:$0xff]
  %v22 = vld [vmem:[%s0 + $0x28] sm:$0xff]
  %v23 = vld [vmem:[%s0 + $0x30] sm:$0xff]
  %v24 = vld [vmem:[%s0 + $0x38] sm:$0xff]
  %v25 = vld [vmem:[%s0 + $0x40] sm:$0xff]
  %v26 = vld [vmem:[%s0 + $0x48] sm:$0xff]
  %v27 = vld [vmem:[%s0 + $0x50] sm:$0xff]
  %v28 = vld [vmem:[%s0 + $0x58] sm:$0xff]
  %v29 = vld [vmem:[%s0 + $0x60] sm:$0xff]
  %v30 = vld [vmem:[%s0 + $0x68] sm:$0xff]
  %v31 = vld [vmem:[%s0 + $0x70] sm:$0xff]
  %v32 = vld [vmem:[%s0 + $0x78] sm:$0xff]
  %v33 = vld [vmem:[%s0 + $0x80] sm:$0xff]
  %v34 = vld [vmem:[%s0 + $0x88] sm:$0xff]
  %v35 = vld [vmem:[%s0 + $0x90] sm:$0xff]
  %v36 = vld [vmem:[%s0 + $0x98] sm:$0xff]
  %v37 = vld [vmem:[%s0 + $0xa0] sm:$0xff]
  %v38 = vld [vmem:[%s0 + $0xa8] sm:$0xff]
  %v39 = vld [vmem:[%s0 + $0xb0] sm:$0xff]
  %v40 = vld [vmem:[%s0 + $0xb8] sm:$0xff]
  %v41 = vld [vmem:[%s0 + $0xc0] sm:$0xff]
  %v42 = vld [vmem:[%s0 + $0xc8] sm:$0xff]
  %v43 = vld [vmem:[%s0 + $0xd0] sm:$0xff]
  %v44 = vld [vmem:[%s0 + $0xd8] sm:$0xff]
  %v45 = vld [vmem:[%s0 + $0xe0] sm:$0xff]
  %v46 = vld [vmem:[%s0 + $0xe8] sm:$0xff]
  %v47 = vld [vmem:[%s0 + $0xf0] sm:$0xff]
  %v48 = vld [vmem:[%s0 + $0xf8] sm:$0xff]
  %v49 = vld [vmem:[%s1] sm:$0xff]
  %v50 = vld [vmem:[%s1 + $0x8] sm:$0xff]
  %v51 = vld [vmem:[%s1 + $0x10] sm:$0xff]
  %v52 = vld [vmem:[%s1 + $0x18] sm:$0xff]
  %v53 = vld [vmem:[%s1 + $0x20] sm:$0xff]
  %v54 = vld [vmem:[%s1 + $0x28] sm:$0xff]
  %v55 = vld [vmem:[%s1 + $0x30] sm:$0xff]
  %v56 = vld [vmem:[%s1 + $0x38] sm:$0xff]
  %v57 = vld [vmem:[%s1 + $0x40] sm:$0xff]
  %v58 = vld [vmem:[%s1 + $0x48] sm:$0xff]
  %v59 = vld [vmem:[%s1 + $0x50] sm:$0xff]
  %v60 = vld [vmem:[%s1 + $0x58] sm:$0xff]
  %v61 = vld [vmem:[%s1 + $0x60] sm:$0xff]
  %v62 = vld [vmem:[%s1 + $0x68] sm:$0xff]
  %v63 = vld [vmem:[%s1 + $0x70] sm:$0xff]
  %v64 = vld [vmem:[%s1 + $0x78] sm:$0xff]
  %v65 = vld [vmem:[%s1 + $0x80] sm:$0xff]
  %v66 = vld [vmem:[%s1 + $0x88] sm:$0xff]
  %vm67 = vcmask 130048
  %v69 = vsel %vm67, %v18, 0
  %v72 = vsel %vm67, %v20, 0
  %v75 = vsel %vm67, %v22, 0
  %v78 = vsel %vm67, %v24, 0
  %v81 = vsel %vm67, %v26, 0
  %v84 = vsel %vm67, %v28, 0
  %v87 = vsel %vm67, %v30, 0
  %v90 = vsel %vm67, %v32, 0
  %v93 = vsel %vm67, %v34, 0
  %v96 = vsel %vm67, %v36, 0
  %v99 = vsel %vm67, %v38, 0
  %v102 = vsel %vm67, %v40, 0
  %v105 = vsel %vm67, %v42, 0
  %v108 = vsel %vm67, %v44, 0
  %v111 = vsel %vm67, %v46, 0
  %v114 = vsel %vm67, %v48, 0
  %116 = vmatprep.subr.mxu0 0.0
  %117 = vmatpush1.msra.mxu0 %v49
  %118 = vmatprep.subr.mxu0 0.0
  %119 = vmatpush1.msra.mxu0 %v50
  %120 = vmatprep.subr.mxu0 0.0
  %121 = vmatpush1.msra.mxu0 %v51
  %122 = vmatprep.subr.mxu0 0.0
  %123 = vmatpush1.msra.mxu0 %v52
  %124 = vmatprep.subr.mxu0 0.0
  %125 = vmatpush1.msra.mxu0 %v53
  %126 = vmatprep.subr.mxu0 0.0
  %127 = vmatpush1.msra.mxu0 %v54
  %128 = vmatprep.subr.mxu0 0.0
  %129 = vmatpush1.msra.mxu0 %v55
  %130 = vmatprep.subr.mxu0 0.0
  %131 = vmatpush1.msra.mxu0 %v56
  %132 = vmatprep.subr.mxu0 0.0
  %133 = vmatpush1.msra.mxu0 %v57
  %134 = vmatprep.subr.mxu0 0.0
  %135 = vmatpush1.msra.mxu0 %v58
  %136 = vmatprep.subr.mxu0 0.0
  %137 = vmatpush1.msra.mxu0 %v59
  %138 = vmatprep.subr.mxu0 0.0
  %139 = vmatpush1.msra.mxu0 %v60
  %140 = vmatprep.subr.mxu0 0.0
  %141 = vmatpush1.msra.mxu0 %v61
  %142 = vmatprep.subr.mxu0 0.0
  %143 = vmatpush1.msra.mxu0 %v62
  %144 = vmatprep.subr.mxu0 0.0
  %145 = vmatpush1.msra.mxu0 %v63
  %146 = vmatprep.subr.mxu0 0.0
  %147 = vmatpush1.msra.mxu0 %v64
  %148 = vmatprep.subr.mxu0 0.0
  %149 = vmatpush1.msra.mxu0 %v65
  %150 = vmatprep.subr.mxu0 0.0
  %151 = vmatpush1.msra.mxu0 %v66
  %152 = vmatprep.subr.mxu0 0.0
  %153 = vmatpush1.msra.mxu0 0.0
  %154 = vmatprep.subr.mxu0 0.0
  %155 = vmatpush1.msra.mxu0 0.0
  %156 = vmatprep.subr.mxu0 0.0
  %157 = vmatpush1.msra.mxu0 0.0
  %158 = vmatprep.subr.mxu0 0.0
  %159 = vmatpush1.msra.mxu0 0.0
  %160 = vmatprep.subr.mxu0 0.0
  %161 = vmatpush1.msra.mxu0 0.0
  %162 = vmatprep.subr.mxu0 0.0
  %163 = vmatpush1.msra.mxu0 0.0
  %164 = vmatprep.subr.mxu0 0.0
  %165 = vmatpush1.msra.mxu0 0.0
  %166 = vmatprep.subr.mxu0 0.0
  %167 = vmatpush1.msra.mxu0 0.0
  %168 = vmatprep.subr.mxu0 0.0
  %169 = vmatpush1.msra.mxu0 0.0
  %170 = vmatprep.subr.mxu0 0.0
  %171 = vmatpush1.msra.mxu0 0.0
  %172 = vmatprep.subr.mxu0 0.0
  %173 = vmatpush1.msra.mxu0 0.0
  %174 = vmatprep.subr.mxu0 0.0
  %175 = vmatpush1.msra.mxu0 0.0
  %176 = vmatprep.subr.mxu0 0.0
  %177 = vmatpush1.msra.mxu0 0.0
  %178 = vmatprep.subr.mxu0 0.0
  %179 = vmatpush1.msra.mxu0 0.0
  %180 = vmatprep.mubr.f32.mxu0 %v69
  %181 = vmatmul.mubr.f32.gmra.mrb[0].mxu0 %v17
  %v182 = vpop.f32.mrb[0].mxu0
  %v183 = vadd.f32 0.0, %v182
  %v184 = vpop.f32.mrb[0].mxu0
  %185 = vmatprep.mubr.f32.mxu0 %v72
  %186 = vmatmul.mubr.f32.gmra.mrb[0].mxu0 %v19
  %v187 = vpop.f32.mrb[0].mxu0
  %v188 = vadd.f32 0.0, %v187
  %v189 = vpop.f32.mrb[0].mxu0
  %190 = vmatprep.mubr.f32.mxu0 %v75
  %191 = vmatmul.mubr.f32.gmra.mrb[0].mxu0 %v21
  %v192 = vpop.f32.mrb[0].mxu0
  %v193 = vadd.f32 0.0, %v192
  %v194 = vpop.f32.mrb[0].mxu0
  %195 = vmatprep.mubr.f32.mxu0 %v78
  %196 = vmatmul.mubr.f32.gmra.mrb[0].mxu0 %v23
  %v197 = vpop.f32.mrb[0].mxu0
  %v198 = vadd.f32 0.0, %v197
  %v199 = vpop.f32.mrb[0].mxu0
  %200 = vmatprep.mubr.f32.mxu0 %v81
  %201 = vmatmul.mubr.f32.gmra.mrb[0].mxu0 %v25
  %v202 = vpop.f32.mrb[0].mxu0
  %v203 = vadd.f32 0.0, %v202
  %v204 = vpop.f32.mrb[0].mxu0
  %205 = vmatprep.mubr.f32.mxu0 %v84
  %206 = vmatmul.mubr.f32.gmra.mrb[0].mxu0 %v27
  %v207 = vpop.f32.mrb[0].mxu0
  %v208 = vadd.f32 0.0, %v207
  %v209 = vpop.f32.mrb[0].mxu0
  %210 = vmatprep.mubr.f32.mxu0 %v87
  %211 = vmatmul.mubr.f32.gmra.mrb[0].mxu0 %v29
  %v212 = vpop.f32.mrb[0].mxu0
  %v213 = vadd.f32 0.0, %v212
  %v214 = vpop.f32.mrb[0].mxu0
  %215 = vmatprep.mubr.f32.mxu0 %v90
  %216 = vmatmul.mubr.f32.gmra.mrb[0].mxu0 %v31
  %v217 = vpop.f32.mrb[0].mxu0
  %v218 = vadd.f32 0.0, %v217
  %v219 = vpop.f32.mrb[0].mxu0
  %220 = vmatprep.mubr.f32.mxu0 %v93
  %221 = vmatmul.mubr.f32.gmra.mrb[0].mxu0 %v33
  %v222 = vpop.f32.mrb[0].mxu0
  %v223 = vadd.f32 0.0, %v222
  %v224 = vpop.f32.mrb[0].mxu0
  %225 = vmatprep.mubr.f32.mxu0 %v96
  %226 = vmatmul.mubr.f32.gmra.mrb[0].mxu0 %v35
  %v227 = vpop.f32.mrb[0].mxu0
  %v228 = vadd.f32 0.0, %v227
  %v229 = vpop.f32.mrb[0].mxu0
  %230 = vmatprep.mubr.f32.mxu0 %v99
  %231 = vmatmul.mubr.f32.gmra.mrb[0].mxu0 %v37
  %v232 = vpop.f32.mrb[0].mxu0
  %v233 = vadd.f32 0.0, %v232
  %v234 = vpop.f32.mrb[0].mxu0
  %235 = vmatprep.mubr.f32.mxu0 %v102
  %236 = vmatmul.mubr.f32.gmra.mrb[0].mxu0 %v39
  %v237 = vpop.f32.mrb[0].mxu0
  %v238 = vadd.f32 0.0, %v237
  %v239 = vpop.f32.mrb[0].mxu0
  %240 = vmatprep.mubr.f32.mxu0 %v105
  %241 = vmatmul.mubr.f32.gmra.mrb[0].mxu0 %v41
  %v242 = vpop.f32.mrb[0].mxu0
  %v243 = vadd.f32 0.0, %v242
  %v244 = vpop.f32.mrb[0].mxu0
  %245 = vmatprep.mubr.f32.mxu0 %v108
  %246 = vmatmul.mubr.f32.gmra.mrb[0].mxu0 %v43
  %v247 = vpop.f32.mrb[0].mxu0
  %v248 = vadd.f32 0.0, %v247
  %v249 = vpop.f32.mrb[0].mxu0
  %250 = vmatprep.mubr.f32.mxu0 %v111
  %251 = vmatmul.mubr.f32.gmra.mrb[0].mxu0 %v45
  %v252 = vpop.f32.mrb[0].mxu0
  %v253 = vadd.f32 0.0, %v252
  %v254 = vpop.f32.mrb[0].mxu0
  %255 = vmatprep.mubr.f32.mxu0 %v114
  %256 = vmatmul.mubr.f32.gmra.mrb[0].mxu0 %v47
  %v257 = vpop.f32.mrb[0].mxu0
  %v258 = vadd.f32 0.0, %v257
  %v259 = vpop.f32.mrb[0].mxu0
  %260 = vdwg.mxu0
  %v261 = vld [vmem:[%s2] sm:$0x1]
  %v263 = vlaneseq
  %v264 = vshrl.u32 %v263, 7
  %v265 = vsub.s32 0, %v264
  %v266 = vrot.slane %v261, %v265
  %v268 = vmul.f32 %v183, %v266
  %v269 = vmul.f32 %v188, %v266
  %v270 = vmul.f32 %v193, %v266
  %v271 = vmul.f32 %v198, %v266
  %v272 = vmul.f32 %v203, %v266
  %v273 = vmul.f32 %v208, %v266
  %v274 = vmul.f32 %v213, %v266
  %v275 = vmul.f32 %v218, %v266
  %v276 = vmul.f32 %v223, %v266
  %v277 = vmul.f32 %v228, %v266
  %v278 = vmul.f32 %v233, %v266
  %v279 = vmul.f32 %v238, %v266
  %v280 = vmul.f32 %v243, %v266
  %v281 = vmul.f32 %v248, %v266
  %v282 = vmul.f32 %v253, %v266
  %v283 = vmul.f32 %v258, %v266
  %v284 = vld [vmem:[%s3] sm:$0x1]
  %v286 = vlaneseq
  %v287 = vshrl.u32 %v286, 7
  %v288 = vsub.s32 0, %v287
  %v289 = vrot.slane %v284, %v288
  %v291 = vadd.f32 %v268, %v289
  %v292 = vadd.f32 %v269, %v289
  %v293 = vadd.f32 %v270, %v289
  %v294 = vadd.f32 %v271, %v289
  %v295 = vadd.f32 %v272, %v289
  %v296 = vadd.f32 %v273, %v289
  %v297 = vadd.f32 %v274, %v289
  %v298 = vadd.f32 %v275, %v289
  %v299 = vadd.f32 %v276, %v289
  %v300 = vadd.f32 %v277, %v289
  %v301 = vadd.f32 %v278, %v289
  %v302 = vadd.f32 %v279, %v289
  %v303 = vadd.f32 %v280, %v289
  %v304 = vadd.f32 %v281, %v289
  %v305 = vadd.f32 %v282, %v289
  %v306 = vadd.f32 %v283, %v289
  %v307 = vmax.f32 %v291, 0.0
  %v308 = vmax.f32 %v292, 0.0
  %v309 = vmax.f32 %v293, 0.0
  %v310 = vmax.f32 %v294, 0.0
  %v311 = vmax.f32 %v295, 0.0
  %v312 = vmax.f32 %v296, 0.0
  %v313 = vmax.f32 %v297, 0.0
  %v314 = vmax.f32 %v298, 0.0
  %v315 = vmax.f32 %v299, 0.0
  %v316 = vmax.f32 %v300, 0.0
  %v317 = vmax.f32 %v301, 0.0
  %v318 = vmax.f32 %v302, 0.0
  %v319 = vmax.f32 %v303, 0.0
  %v320 = vmax.f32 %v304, 0.0
  %v321 = vmax.f32 %v305, 0.0
  %v322 = vmax.f32 %v306, 0.0
  %323 = vst [vmem:[%s4] sm:$0xff] %v307
  %324 = vst [vmem:[%s4 + $0x8] sm:$0xff] %v308
  %325 = vst [vmem:[%s4 + $0x10] sm:$0xff] %v309
  %326 = vst [vmem:[%s4 + $0x18] sm:$0xff] %v310
  %327 = vst [vmem:[%s4 + $0x20] sm:$0xff] %v311
  %328 = vst [vmem:[%s4 + $0x28] sm:$0xff] %v312
  %329 = vst [vmem:[%s4 + $0x30] sm:$0xff] %v313
  %330 = vst [vmem:[%s4 + $0x38] sm:$0xff] %v314
  %331 = vst [vmem:[%s4 + $0x40] sm:$0xff] %v315
  %332 = vst [vmem:[%s4 + $0x48] sm:$0xff] %v316
  %333 = vst [vmem:[%s4 + $0x50] sm:$0xff] %v317
  %334 = vst [vmem:[%s4 + $0x58] sm:$0xff] %v318
  %335 = vst [vmem:[%s4 + $0x60] sm:$0xff] %v319
  %336 = vst [vmem:[%s4 + $0x68] sm:$0xff] %v320
  %337 = vst [vmem:[%s4 + $0x70] sm:$0xff] %v321
  %338 = vst [vmem:[%s4 + $0x78] sm:$0xff] %v322
  // Predicated region
  $region18: #{nb101_wrapper_forward.40} parent=0 // pred_check
    _
  $region19: #{nb101_wrapper_forward.40} parent=0 // pred_check_branch
    %340 = sbr.rel (0) target = $region21
  $region20: #{nb101_wrapper_forward.40} parent=0 // pred_region
    _
  $region21: #{nb101_wrapper_forward.40} parent=0 // pred_fallthru
    _
  // Predicated region
  $region22: #{nb101_wrapper_forward.40} parent=0 // pred_check
    _
  $region23: #{nb101_wrapper_forward.40} parent=0 // pred_check_branch
    %342 = sbr.rel (0) target = $region25
  $region24: #{nb101_wrapper_forward.40} parent=0 // pred_region
    _
  $region25: #{nb101_wrapper_forward.40} parent=0 // pred_fallthru
    _

// kernel: nb101_wrapper_forward.37
$region0: #{nb101_wrapper_forward.37}
  #allocation0 [shape = 'u32[]', space=smem, size = 0x4, offset = 0x4, fixed_abs, tag = 'smem constant byte address 0x4 - core index']
  #allocation1 [shape = 'u32[144,128]{1,0:T(1,128)}', space=vmem, size = 0x12000, scoped, tag = 'internal scratch']
  %s0 = inlined_call_operand.vmem [shape: f32[128,128], index: 0, kind: input, shape index: {}]
  %s1 = inlined_call_operand.vmem [shape: f32[128,128], index: 1, kind: input, shape index: {}]
  %s2 = inlined_call_operand.vmem [shape: f32[1,128], index: 2, kind: input, shape index: {}]
  %s3 = inlined_call_operand.vmem [shape: f32[1,128], index: 3, kind: input, shape index: {}]
  %s4 = inlined_call_operand.vmem [shape: f32[128,128], index: 4, kind: output, shape index: {}]
  %s5 = sld [smem:[#allocation0]]
  $region26: #{nb101_wrapper_forward.37} parent=0
    _
  %s7 = ssub.s32 1, %s5
  %s8 = scalar_select 0, %s7, %s5
  // Predicated region
  $region2: #{nb101_wrapper_forward.37} parent=0 // pred_check
    _
  $region3: #{nb101_wrapper_forward.37} parent=0 // pred_check_branch
    %10 = sbr.rel (0) target = $region5
  $region4: #{nb101_wrapper_forward.37} parent=0 // pred_region
    _
  $region5: #{nb101_wrapper_forward.37} parent=0 // pred_fallthru
    _
  // Predicated region
  $region6: #{nb101_wrapper_forward.37} parent=0 // pred_check
    _
  $region7: #{nb101_wrapper_forward.37} parent=0 // pred_check_branch
    %12 = sbr.rel (0) target = $region9
  $region8: #{nb101_wrapper_forward.37} parent=0 // pred_region
    _
  $region9: #{nb101_wrapper_forward.37} parent=0 // pred_fallthru
    _
  // Predicated region
  $region10: #{nb101_wrapper_forward.37} parent=0 // pred_check
    _
  $region11: #{nb101_wrapper_forward.37} parent=0 // pred_check_branch
    %14 = sbr.rel (0) target = $region13
  $region12: #{nb101_wrapper_forward.37} parent=0 // pred_region
    _
  $region13: #{nb101_wrapper_forward.37} parent=0 // pred_fallthru
    _
  // Predicated region
  $region14: #{nb101_wrapper_forward.37} parent=0 // pred_check
    _
  $region15: #{nb101_wrapper_forward.37} parent=0 // pred_check_branch
    %16 = sbr.rel (0) target = $region17
  $region16: #{nb101_wrapper_forward.37} parent=0 // pred_region
    _
  $region17: #{nb101_wrapper_forward.37} parent=0 // pred_fallthru
    _
  %v17 = vld [vmem:[%s0] sm:$0xff]
  %v18 = vld [vmem:[%s0 + $0x8] sm:$0xff]
  %v19 = vld [vmem:[%s0 + $0x10] sm:$0xff]
  %v20 = vld [vmem:[%s0 + $0x18] sm:$0xff]
  %v21 = vld [vmem:[%s0 + $0x20] sm:$0xff]
  %v22 = vld [vmem:[%s0 + $0x28] sm:$0xff]
  %v23 = vld [vmem:[%s0 + $0x30] sm:$0xff]
  %v24 = vld [vmem:[%s0 + $0x38] sm:$0xff]
  %v25 = vld [vmem:[%s0 + $0x40] sm:$0xff]
  %v26 = vld [vmem:[%s0 + $0x48] sm:$0xff]
  %v27 = vld [vmem:[%s0 + $0x50] sm:$0xff]
  %v28 = vld [vmem:[%s0 + $0x58] sm:$0xff]
  %v29 = vld [vmem:[%s0 + $0x60] sm:$0xff]
  %v30 = vld [vmem:[%s0 + $0x68] sm:$0xff]
  %v31 = vld [vmem:[%s0 + $0x70] sm:$0xff]
  %v32 = vld [vmem:[%s0 + $0x78] sm:$0xff]
  %v33 = vld [vmem:[%s1] sm:$0xff]
  %v34 = vld [vmem:[%s1 + $0x8] sm:$0xff]
  %v35 = vld [vmem:[%s1 + $0x10] sm:$0xff]
  %v36 = vld [vmem:[%s1 + $0x18] sm:$0xff]
  %v37 = vld [vmem:[%s1 + $0x20] sm:$0xff]
  %v38 = vld [vmem:[%s1 + $0x28] sm:$0xff]
  %v39 = vld [vmem:[%s1 + $0x30] sm:$0xff]
  %v40 = vld [vmem:[%s1 + $0x38] sm:$0xff]
  %v41 = vld [vmem:[%s1 + $0x40] sm:$0xff]
  %v42 = vld [vmem:[%s1 + $0x48] sm:$0xff]
  %v43 = vld [vmem:[%s1 + $0x50] sm:$0xff]
  %v44 = vld [vmem:[%s1 + $0x58] sm:$0xff]
  %v45 = vld [vmem:[%s1 + $0x60] sm:$0xff]
  %v46 = vld [vmem:[%s1 + $0x68] sm:$0xff]
  %v47 = vld [vmem:[%s1 + $0x70] sm:$0xff]
  %v48 = vld [vmem:[%s1 + $0x78] sm:$0xff]
  %49 = vmatprep.subr.mxu0 0.0
  %50 = vmatpush1.msra.mxu0 %v33
  %51 = vmatprep.subr.mxu0 0.0
  %52 = vmatpush1.msra.mxu0 %v34
  %53 = vmatprep.subr.mxu0 0.0
  %54 = vmatpush1.msra.mxu0 %v35
  %55 = vmatprep.subr.mxu0 0.0
  %56 = vmatpush1.msra.mxu0 %v36
  %57 = vmatprep.subr.mxu0 0.0
  %58 = vmatpush1.msra.mxu0 %v37
  %59 = vmatprep.subr.mxu0 0.0
  %60 = vmatpush1.msra.mxu0 %v38
  %61 = vmatprep.subr.mxu0 0.0
  %62 = vmatpush1.msra.mxu0 %v39
  %63 = vmatprep.subr.mxu0 0.0
  %64 = vmatpush1.msra.mxu0 %v40
  %65 = vmatprep.subr.mxu0 0.0
  %66 = vmatpush1.msra.mxu0 %v41
  %67 = vmatprep.subr.mxu0 0.0
  %68 = vmatpush1.msra.mxu0 %v42
  %69 = vmatprep.subr.mxu0 0.0
  %70 = vmatpush1.msra.mxu0 %v43
  %71 = vmatprep.subr.mxu0 0.0
  %72 = vmatpush1.msra.mxu0 %v44
  %73 = vmatprep.subr.mxu0 0.0
  %74 = vmatpush1.msra.mxu0 %v45
  %75 = vmatprep.subr.mxu0 0.0
  %76 = vmatpush1.msra.mxu0 %v46
  %77 = vmatprep.subr.mxu0 0.0
  %78 = vmatpush1.msra.mxu0 %v47
  %79 = vmatprep.subr.mxu0 0.0
  %80 = vmatpush1.msra.mxu0 %v48
  %81 = vmatprep.subr.mxu0 0.0
  %82 = vmatpush1.msra.mxu0 0.0
  %83 = vmatprep.subr.mxu0 0.0
  %84 = vmatpush1.msra.mxu0 0.0
  %85 = vmatprep.subr.mxu0 0.0
  %86 = vmatpush1.msra.mxu0 0.0
  %87 = vmatprep.subr.mxu0 0.0
  %88 = vmatpush1.msra.mxu0 0.0
  %89 = vmatprep.subr.mxu0 0.0
  %90 = vmatpush1.msra.mxu0 0.0
  %91 = vmatprep.subr.mxu0 0.0
  %92 = vmatpush1.msra.mxu0 0.0
  %93 = vmatprep.subr.mxu0 0.0
  %94 = vmatpush1.msra.mxu0 0.0
  %95 = vmatprep.subr.mxu0 0.0
  %96 = vmatpush1.msra.mxu0 0.0
  %97 = vmatprep.subr.mxu0 0.0
  %98 = vmatpush1.msra.mxu0 0.0
  %99 = vmatprep.subr.mxu0 0.0
  %100 = vmatpush1.msra.mxu0 0.0
  %101 = vmatprep.subr.mxu0 0.0
  %102 = vmatpush1.msra.mxu0 0.0
  %103 = vmatprep.subr.mxu0 0.0
  %104 = vmatpush1.msra.mxu0 0.0
  %105 = vmatprep.subr.mxu0 0.0
  %106 = vmatpush1.msra.mxu0 0.0
  %107 = vmatprep.subr.mxu0 0.0
  %108 = vmatpush1.msra.mxu0 0.0
  %109 = vmatprep.subr.mxu0 0.0
  %110 = vmatpush1.msra.mxu0 0.0
  %111 = vmatprep.subr.mxu0 0.0
  %112 = vmatpush1.msra.mxu0 0.0
  %113 = vmatprep.mubr.f32.mxu0 0.0
  %114 = vmatmul.mubr.f32.gmra.mrb[0].mxu0 %v17
  %v115 = vpop.f32.mrb[0].mxu0
  %v116 = vadd.f32 0.0, %v115
  %v117 = vpop.f32.mrb[0].mxu0
  %118 = vmatprep.mubr.f32.mxu0 0.0
  %119 = vmatmul.mubr.f32.gmra.mrb[0].mxu0 %v18
  %v120 = vpop.f32.mrb[0].mxu0
  %v121 = vadd.f32 0.0, %v120
  %v122 = vpop.f32.mrb[0].mxu0
  %123 = vmatprep.mubr.f32.mxu0 0.0
  %124 = vmatmul.mubr.f32.gmra.mrb[0].mxu0 %v19
  %v125 = vpop.f32.mrb[0].mxu0
  %v126 = vadd.f32 0.0, %v125
  %v127 = vpop.f32.mrb[0].mxu0
  %128 = vmatprep.mubr.f32.mxu0 0.0
  %129 = vmatmul.mubr.f32.gmra.mrb[0].mxu0 %v20
  %v130 = vpop.f32.mrb[0].mxu0
  %v131 = vadd.f32 0.0, %v130
  %v132 = vpop.f32.mrb[0].mxu0
  %133 = vmatprep.mubr.f32.mxu0 0.0
  %134 = vmatmul.mubr.f32.gmra.mrb[0].mxu0 %v21
  %v135 = vpop.f32.mrb[0].mxu0
  %v136 = vadd.f32 0.0, %v135
  %v137 = vpop.f32.mrb[0].mxu0
  %138 = vmatprep.mubr.f32.mxu0 0.0
  %139 = vmatmul.mubr.f32.gmra.mrb[0].mxu0 %v22
  %v140 = vpop.f32.mrb[0].mxu0
  %v141 = vadd.f32 0.0, %v140
  %v142 = vpop.f32.mrb[0].mxu0
  %143 = vmatprep.mubr.f32.mxu0 0.0
  %144 = vmatmul.mubr.f32.gmra.mrb[0].mxu0 %v23
  %v145 = vpop.f32.mrb[0].mxu0
  %v146 = vadd.f32 0.0, %v145
  %v147 = vpop.f32.mrb[0].mxu0
  %148 = vmatprep.mubr.f32.mxu0 0.0
  %149 = vmatmul.mubr.f32.gmra.mrb[0].mxu0 %v24
  %v150 = vpop.f32.mrb[0].mxu0
  %v151 = vadd.f32 0.0, %v150
  %v152 = vpop.f32.mrb[0].mxu0
  %153 = vmatprep.mubr.f32.mxu0 0.0
  %154 = vmatmul.mubr.f32.gmra.mrb[0].mxu0 %v25
  %v155 = vpop.f32.mrb[0].mxu0
  %v156 = vadd.f32 0.0, %v155
  %v157 = vpop.f32.mrb[0].mxu0
  %158 = vmatprep.mubr.f32.mxu0 0.0
  %159 = vmatmul.mubr.f32.gmra.mrb[0].mxu0 %v26
  %v160 = vpop.f32.mrb[0].mxu0
  %v161 = vadd.f32 0.0, %v160
  %v162 = vpop.f32.mrb[0].mxu0
  %163 = vmatprep.mubr.f32.mxu0 0.0
  %164 = vmatmul.mubr.f32.gmra.mrb[0].mxu0 %v27
  %v165 = vpop.f32.mrb[0].mxu0
  %v166 = vadd.f32 0.0, %v165
  %v167 = vpop.f32.mrb[0].mxu0
  %168 = vmatprep.mubr.f32.mxu0 0.0
  %169 = vmatmul.mubr.f32.gmra.mrb[0].mxu0 %v28
  %v170 = vpop.f32.mrb[0].mxu0
  %v171 = vadd.f32 0.0, %v170
  %v172 = vpop.f32.mrb[0].mxu0
  %173 = vmatprep.mubr.f32.mxu0 0.0
  %174 = vmatmul.mubr.f32.gmra.mrb[0].mxu0 %v29
  %v175 = vpop.f32.mrb[0].mxu0
  %v176 = vadd.f32 0.0, %v175
  %v177 = vpop.f32.mrb[0].mxu0
  %178 = vmatprep.mubr.f32.mxu0 0.0
  %179 = vmatmul.mubr.f32.gmra.mrb[0].mxu0 %v30
  %v180 = vpop.f32.mrb[0].mxu0
  %v181 = vadd.f32 0.0, %v180
  %v182 = vpop.f32.mrb[0].mxu0
  %183 = vmatprep.mubr.f32.mxu0 0.0
  %184 = vmatmul.mubr.f32.gmra.mrb[0].mxu0 %v31
  %v185 = vpop.f32.mrb[0].mxu0
  %v186 = vadd.f32 0.0, %v185
  %v187 = vpop.f32.mrb[0].mxu0
  %188 = vmatprep.mubr.f32.mxu0 0.0
  %189 = vmatmul.mubr.f32.gmra.mrb[0].mxu0 %v32
  %v190 = vpop.f32.mrb[0].mxu0
  %v191 = vadd.f32 0.0, %v190
  %v192 = vpop.f32.mrb[0].mxu0
  %193 = vdwg.mxu0
  %v194 = vld [vmem:[%s2] sm:$0x1]
  %v196 = vlaneseq
  %v197 = vshrl.u32 %v196, 7
  %v198 = vsub.s32 0, %v197
  %v199 = vrot.slane %v194, %v198
  %v201 = vmul.f32 %v116, %v199
  %v202 = vmul.f32 %v121, %v199
  %v203 = vmul.f32 %v126, %v199
  %v204 = vmul.f32 %v131, %v199
  %v205 = vmul.f32 %v136, %v199
  %v206 = vmul.f32 %v141, %v199
  %v207 = vmul.f32 %v146, %v199
  %v208 = vmul.f32 %v151, %v199
  %v209 = vmul.f32 %v156, %v199
  %v210 = vmul.f32 %v161, %v199
  %v211 = vmul.f32 %v166, %v199
  %v212 = vmul.f32 %v171, %v199
  %v213 = vmul.f32 %v176, %v199
  %v214 = vmul.f32 %v181, %v199
  %v215 = vmul.f32 %v186, %v199
  %v216 = vmul.f32 %v191, %v199
  %v217 = vld [vmem:[%s3] sm:$0x1]
  %v219 = vlaneseq
  %v220 = vshrl.u32 %v219, 7
  %v221 = vsub.s32 0, %v220
  %v222 = vrot.slane %v217, %v221
  %v224 = vadd.f32 %v201, %v222
  %v225 = vadd.f32 %v202, %v222
  %v226 = vadd.f32 %v203, %v222
  %v227 = vadd.f32 %v204, %v222
  %v228 = vadd.f32 %v205, %v222
  %v229 = vadd.f32 %v206, %v222
  %v230 = vadd.f32 %v207, %v222
  %v231 = vadd.f32 %v208, %v222
  %v232 = vadd.f32 %v209, %v222
  %v233 = vadd.f32 %v210, %v222
  %v234 = vadd.f32 %v211, %v222
  %v235 = vadd.f32 %v212, %v222
  %v236 = vadd.f32 %v213, %v222
  %v237 = vadd.f32 %v214, %v222
  %v238 = vadd.f32 %v215, %v222
  %v239 = vadd.f32 %v216, %v222
  %v240 = vmax.f32 %v224, 0.0
  %v241 = vmax.f32 %v225, 0.0
  %v242 = vmax.f32 %v226, 0.0
  %v243 = vmax.f32 %v227, 0.0
  %v244 = vmax.f32 %v228, 0.0
  %v245 = vmax.f32 %v229, 0.0
  %v246 = vmax.f32 %v230, 0.0
  %v247 = vmax.f32 %v231, 0.0
  %v248 = vmax.f32 %v232, 0.0
  %v249 = vmax.f32 %v233, 0.0
  %v250 = vmax.f32 %v234, 0.0
  %v251 = vmax.f32 %v235, 0.0
  %v252 = vmax.f32 %v236, 0.0
  %v253 = vmax.f32 %v237, 0.0
  %v254 = vmax.f32 %v238, 0.0
  %v255 = vmax.f32 %v239, 0.0
  %256 = vst [vmem:[%s4] sm:$0xff] %v240
  %257 = vst [vmem:[%s4 + $0x8] sm:$0xff] %v241
  %258 = vst [vmem:[%s4 + $0x10] sm:$0xff] %v242
  %259 = vst [vmem:[%s4 + $0x18] sm:$0xff] %v243
  %260 = vst [vmem:[%s4 + $0x20] sm:$0xff] %v244
  %261 = vst [vmem:[%s4 + $0x28] sm:$0xff] %v245
  %262 = vst [vmem:[%s4 + $0x30] sm:$0xff] %v246
  %263 = vst [vmem:[%s4 + $0x38] sm:$0xff] %v247
  %264 = vst [vmem:[%s4 + $0x40] sm:$0xff] %v248
  %265 = vst [vmem:[%s4 + $0x48] sm:$0xff] %v249
  %266 = vst [vmem:[%s4 + $0x50] sm:$0xff] %v250
  %267 = vst [vmem:[%s4 + $0x58] sm:$0xff] %v251
  %268 = vst [vmem:[%s4 + $0x60] sm:$0xff] %v252
  %269 = vst [vmem:[%s4 + $0x68] sm:$0xff] %v253
  %270 = vst [vmem:[%s4 + $0x70] sm:$0xff] %v254
  %271 = vst [vmem:[%s4 + $0x78] sm:$0xff] %v255
  // Predicated region
  $region18: #{nb101_wrapper_forward.37} parent=0 // pred_check
    _
  $region19: #{nb101_wrapper_forward.37} parent=0 // pred_check_branch
    %273 = sbr.rel (0) target = $region21
  $region20: #{nb101_wrapper_forward.37} parent=0 // pred_region
    _
  $region21: #{nb101_wrapper_forward.37} parent=0 // pred_fallthru
    _
  // Predicated region
  $region22: #{nb101_wrapper_forward.37} parent=0 // pred_check
    _
  $region23: #{nb101_wrapper_forward.37} parent=0 // pred_check_branch
    %275 = sbr.rel (0) target = $region25
  $region24: #{nb101_wrapper_forward.37} parent=0 // pred_region
    _
  $region25: #{nb101_wrapper_forward.37} parent=0 // pred_fallthru
    _

// kernel: nb101_wrapper_forward.42
$region0: #{nb101_wrapper_forward.42}
  #allocation0 [shape = 'u32[]', space=smem, size = 0x4, offset = 0x4, fixed_abs, tag = 'smem constant byte address 0x4 - core index']
  #allocation1 [shape = 'u32[144,128]{1,0:T(1,128)}', space=vmem, size = 0x12000, scoped, tag = 'internal scratch']
  %s0 = inlined_call_operand.vmem [shape: f32[128,128], index: 0, kind: input, shape index: {}]
  %s1 = inlined_call_operand.vmem [shape: f32[128,128], index: 1, kind: input, shape index: {}]
  %s2 = inlined_call_operand.vmem [shape: f32[128,128], index: 2, kind: input, shape index: {}]
  %s3 = inlined_call_operand.vmem [shape: f32[128,128], index: 3, kind: input, shape index: {}]
  %s4 = inlined_call_operand.vmem [shape: f32[128,128], index: 4, kind: output, shape index: {}]
  %s5 = sld [smem:[#allocation0]]
  $region26: #{nb101_wrapper_forward.42} parent=0
    _
  %s7 = ssub.s32 1, %s5
  %s8 = scalar_select 0, %s7, %s5
  // Predicated region
  $region2: #{nb101_wrapper_forward.42} parent=0 // pred_check
    _
  $region3: #{nb101_wrapper_forward.42} parent=0 // pred_check_branch
    %10 = sbr.rel (0) target = $region5
  $region4: #{nb101_wrapper_forward.42} parent=0 // pred_region
    _
  $region5: #{nb101_wrapper_forward.42} parent=0 // pred_fallthru
    _
  // Predicated region
  $region6: #{nb101_wrapper_forward.42} parent=0 // pred_check
    _
  $region7: #{nb101_wrapper_forward.42} parent=0 // pred_check_branch
    %12 = sbr.rel (0) target = $region9
  $region8: #{nb101_wrapper_forward.42} parent=0 // pred_region
    _
  $region9: #{nb101_wrapper_forward.42} parent=0 // pred_fallthru
    _
  // Predicated region
  $region10: #{nb101_wrapper_forward.42} parent=0 // pred_check
    _
  $region11: #{nb101_wrapper_forward.42} parent=0 // pred_check_branch
    %14 = sbr.rel (0) target = $region13
  $region12: #{nb101_wrapper_forward.42} parent=0 // pred_region
    _
  $region13: #{nb101_wrapper_forward.42} parent=0 // pred_fallthru
    _
  // Predicated region
  $region14: #{nb101_wrapper_forward.42} parent=0 // pred_check
    _
  $region15: #{nb101_wrapper_forward.42} parent=0 // pred_check_branch
    %16 = sbr.rel (0) target = $region17
  $region16: #{nb101_wrapper_forward.42} parent=0 // pred_region
    _
  $region17: #{nb101_wrapper_forward.42} parent=0 // pred_fallthru
    _
  %v17 = vld [vmem:[%s0] sm:$0xff]
  %v18 = vld [vmem:[%s0 + $0x8] sm:$0xff]
  %v19 = vld [vmem:[%s0 + $0x10] sm:$0xff]
  %v20 = vld [vmem:[%s0 + $0x18] sm:$0xff]
  %v21 = vld [vmem:[%s0 + $0x20] sm:$0xff]
  %v22 = vld [vmem:[%s0 + $0x28] sm:$0xff]
  %v23 = vld [vmem:[%s0 + $0x30] sm:$0xff]
  %v24 = vld [vmem:[%s0 + $0x38] sm:$0xff]
  %v25 = vld [vmem:[%s0 + $0x40] sm:$0xff]
  %v26 = vld [vmem:[%s0 + $0x48] sm:$0xff]
  %v27 = vld [vmem:[%s0 + $0x50] sm:$0xff]
  %v28 = vld [vmem:[%s0 + $0x58] sm:$0xff]
  %v29 = vld [vmem:[%s0 + $0x60] sm:$0xff]
  %v30 = vld [vmem:[%s0 + $0x68] sm:$0xff]
  %v31 = vld [vmem:[%s0 + $0x70] sm:$0xff]
  %v32 = vld [vmem:[%s0 + $0x78] sm:$0xff]
  %v33 = vld [vmem:[%s1] sm:$0xff]
  %v34 = vld [vmem:[%s1 + $0x8] sm:$0xff]
  %v35 = vld [vmem:[%s1 + $0x10] sm:$0xff]
  %v36 = vld [vmem:[%s1 + $0x18] sm:$0xff]
  %v37 = vld [vmem:[%s1 + $0x20] sm:$0xff]
  %v38 = vld [vmem:[%s1 + $0x28] sm:$0xff]
  %v39 = vld [vmem:[%s1 + $0x30] sm:$0xff]
  %v40 = vld [vmem:[%s1 + $0x38] sm:$0xff]
  %v41 = vld [vmem:[%s1 + $0x40] sm:$0xff]
  %v42 = vld [vmem:[%s1 + $0x48] sm:$0xff]
  %v43 = vld [vmem:[%s1 + $0x50] sm:$0xff]
  %v44 = vld [vmem:[%s1 + $0x58] sm:$0xff]
  %v45 = vld [vmem:[%s1 + $0x60] sm:$0xff]
  %v46 = vld [vmem:[%s1 + $0x68] sm:$0xff]
  %v47 = vld [vmem:[%s1 + $0x70] sm:$0xff]
  %v48 = vld [vmem:[%s1 + $0x78] sm:$0xff]
  %v49 = vadd.f32 %v17, %v33
  %v50 = vadd.f32 %v18, %v34
  %v51 = vadd.f32 %v19, %v35
  %v52 = vadd.f32 %v20, %v36
  %v53 = vadd.f32 %v21, %v37
  %v54 = vadd.f32 %v22, %v38
  %v55 = vadd.f32 %v23, %v39
  %v56 = vadd.f32 %v24, %v40
  %v57 = vadd.f32 %v25, %v41
  %v58 = vadd.f32 %v26, %v42
  %v59 = vadd.f32 %v27, %v43
  %v60 = vadd.f32 %v28, %v44
  %v61 = vadd.f32 %v29, %v45
  %v62 = vadd.f32 %v30, %v46
  %v63 = vadd.f32 %v31, %v47
  %v64 = vadd.f32 %v32, %v48
  %v65 = vld [vmem:[%s2] sm:$0xff]
  %v66 = vld [vmem:[%s2 + $0x8] sm:$0xff]
  %v67 = vld [vmem:[%s2 + $0x10] sm:$0xff]
  %v68 = vld [vmem:[%s2 + $0x18] sm:$0xff]
  %v69 = vld [vmem:[%s2 + $0x20] sm:$0xff]
  %v70 = vld [vmem:[%s2 + $0x28] sm:$0xff]
  %v71 = vld [vmem:[%s2 + $0x30] sm:$0xff]
  %v72 = vld [vmem:[%s2 + $0x38] sm:$0xff]
  %v73 = vld [vmem:[%s2 + $0x40] sm:$0xff]
  %v74 = vld [vmem:[%s2 + $0x48] sm:$0xff]
  %v75 = vld [vmem:[%s2 + $0x50] sm:$0xff]
  %v76 = vld [vmem:[%s2 + $0x58] sm:$0xff]
  %v77 = vld [vmem:[%s2 + $0x60] sm:$0xff]
  %v78 = vld [vmem:[%s2 + $0x68] sm:$0xff]
  %v79 = vld [vmem:[%s2 + $0x70] sm:$0xff]
  %v80 = vld [vmem:[%s2 + $0x78] sm:$0xff]
  %v81 = vadd.f32 %v49, %v65
  %v82 = vadd.f32 %v50, %v66
  %v83 = vadd.f32 %v51, %v67
  %v84 = vadd.f32 %v52, %v68
  %v85 = vadd.f32 %v53, %v69
  %v86 = vadd.f32 %v54, %v70
  %v87 = vadd.f32 %v55, %v71
  %v88 = vadd.f32 %v56, %v72
  %v89 = vadd.f32 %v57, %v73
  %v90 = vadd.f32 %v58, %v74
  %v91 = vadd.f32 %v59, %v75
  %v92 = vadd.f32 %v60, %v76
  %v93 = vadd.f32 %v61, %v77
  %v94 = vadd.f32 %v62, %v78
  %v95 = vadd.f32 %v63, %v79
  %v96 = vadd.f32 %v64, %v80
  %v97 = vld [vmem:[%s3] sm:$0xff]
  %v98 = vld [vmem:[%s3 + $0x8] sm:$0xff]
  %v99 = vld [vmem:[%s3 + $0x10] sm:$0xff]
  %v100 = vld [vmem:[%s3 + $0x18] sm:$0xff]
  %v101 = vld [vmem:[%s3 + $0x20] sm:$0xff]
  %v102 = vld [vmem:[%s3 + $0x28] sm:$0xff]
  %v103 = vld [vmem:[%s3 + $0x30] sm:$0xff]
  %v104 = vld [vmem:[%s3 + $0x38] sm:$0xff]
  %v105 = vld [vmem:[%s3 + $0x40] sm:$0xff]
  %v106 = vld [vmem:[%s3 + $0x48] sm:$0xff]
  %v107 = vld [vmem:[%s3 + $0x50] sm:$0xff]
  %v108 = vld [vmem:[%s3 + $0x58] sm:$0xff]
  %v109 = vld [vmem:[%s3 + $0x60] sm:$0xff]
  %v110 = vld [vmem:[%s3 + $0x68] sm:$0xff]
  %v111 = vld [vmem:[%s3 + $0x70] sm:$0xff]
  %v112 = vld [vmem:[%s3 + $0x78] sm:$0xff]
  %v113 = vadd.f32 %v81, %v97
  %v114 = vadd.f32 %v82, %v98
  %v115 = vadd.f32 %v83, %v99
  %v116 = vadd.f32 %v84, %v100
  %v117 = vadd.f32 %v85, %v101
  %v118 = vadd.f32 %v86, %v102
  %v119 = vadd.f32 %v87, %v103
  %v120 = vadd.f32 %v88, %v104
  %v121 = vadd.f32 %v89, %v105
  %v122 = vadd.f32 %v90, %v106
  %v123 = vadd.f32 %v91, %v107
  %v124 = vadd.f32 %v92, %v108
  %v125 = vadd.f32 %v93, %v109
  %v126 = vadd.f32 %v94, %v110
  %v127 = vadd.f32 %v95, %v111
  %v128 = vadd.f32 %v96, %v112
  %129 = vst [vmem:[%s4] sm:$0xff] %v113
  %130 = vst [vmem:[%s4 + $0x8] sm:$0xff] %v114
  %131 = vst [vmem:[%s4 + $0x10] sm:$0xff] %v115
  %132 = vst [vmem:[%s4 + $0x18] sm:$0xff] %v116
  %133 = vst [vmem:[%s4 + $0x20] sm:$0xff] %v117
  %134 = vst [vmem:[%s4 + $0x28] sm:$0xff] %v118
  %135 = vst [vmem:[%s4 + $0x30] sm:$0xff] %v119
  %136 = vst [vmem:[%s4 + $0x38] sm:$0xff] %v120
  %137 = vst [vmem:[%s4 + $0x40] sm:$0xff] %v121
  %138 = vst [vmem:[%s4 + $0x48] sm:$0xff] %v122
  %139 = vst [vmem:[%s4 + $0x50] sm:$0xff] %v123
  %140 = vst [vmem:[%s4 + $0x58] sm:$0xff] %v124
  %141 = vst [vmem:[%s4 + $0x60] sm:$0xff] %v125
  %142 = vst [vmem:[%s4 + $0x68] sm:$0xff] %v126
  %143 = vst [vmem:[%s4 + $0x70] sm:$0xff] %v127
  %144 = vst [vmem:[%s4 + $0x78] sm:$0xff] %v128
  // Predicated region
  $region18: #{nb101_wrapper_forward.42} parent=0 // pred_check
    _
  $region19: #{nb101_wrapper_forward.42} parent=0 // pred_check_branch
    %146 = sbr.rel (0) target = $region21
  $region20: #{nb101_wrapper_forward.42} parent=0 // pred_region
    _
  $region21: #{nb101_wrapper_forward.42} parent=0 // pred_fallthru
    _
  // Predicated region
  $region22: #{nb101_wrapper_forward.42} parent=0 // pred_check
    _
  $region23: #{nb101_wrapper_forward.42} parent=0 // pred_check_branch
    %148 = sbr.rel (0) target = $region25
  $region24: #{nb101_wrapper_forward.42} parent=0 // pred_region
    _
  $region25: #{nb101_wrapper_forward.42} parent=0 // pred_fallthru
    _

// kernel: nb101_wrapper_forward.45
$region0: #{nb101_wrapper_forward.45}
  #allocation0 [shape = 'u32[]', space=smem, size = 0x4, offset = 0x4, fixed_abs, tag = 'smem constant byte address 0x4 - core index']
  #allocation1 [shape = 'u32[144,128]{1,0:T(1,128)}', space=vmem, size = 0x12000, scoped, tag = 'internal scratch']
  %s0 = inlined_call_operand.vmem [shape: f32[32,128], index: 0, kind: input, shape index: {}]
  %s1 = inlined_call_operand.vmem [shape: f32[32,128], index: 1, kind: input, shape index: {}]
  %s2 = inlined_call_operand.vmem [shape: f32[32,128], index: 2, kind: input, shape index: {}]
  %s3 = inlined_call_operand.vmem [shape: f32[32,128], index: 3, kind: input, shape index: {}]
  %s4 = inlined_call_operand.vmem [shape: f32[32,128], index: 4, kind: output, shape index: {}]
  %s5 = sld [smem:[#allocation0]]
  $region26: #{nb101_wrapper_forward.45} parent=0
    _
  %s7 = ssub.s32 1, %s5
  %s8 = scalar_select 0, %s7, %s5
  // Predicated region
  $region2: #{nb101_wrapper_forward.45} parent=0 // pred_check
    _
  $region3: #{nb101_wrapper_forward.45} parent=0 // pred_check_branch
    %10 = sbr.rel (0) target = $region5
  $region4: #{nb101_wrapper_forward.45} parent=0 // pred_region
    _
  $region5: #{nb101_wrapper_forward.45} parent=0 // pred_fallthru
    _
  // Predicated region
  $region6: #{nb101_wrapper_forward.45} parent=0 // pred_check
    _
  $region7: #{nb101_wrapper_forward.45} parent=0 // pred_check_branch
    %12 = sbr.rel (0) target = $region9
  $region8: #{nb101_wrapper_forward.45} parent=0 // pred_region
    _
  $region9: #{nb101_wrapper_forward.45} parent=0 // pred_fallthru
    _
  // Predicated region
  $region10: #{nb101_wrapper_forward.45} parent=0 // pred_check
    _
  $region11: #{nb101_wrapper_forward.45} parent=0 // pred_check_branch
    %14 = sbr.rel (0) target = $region13
  $region12: #{nb101_wrapper_forward.45} parent=0 // pred_region
    _
  $region13: #{nb101_wrapper_forward.45} parent=0 // pred_fallthru
    _
  // Predicated region
  $region14: #{nb101_wrapper_forward.45} parent=0 // pred_check
    _
  $region15: #{nb101_wrapper_forward.45} parent=0 // pred_check_branch
    %16 = sbr.rel (0) target = $region17
  $region16: #{nb101_wrapper_forward.45} parent=0 // pred_region
    _
  $region17: #{nb101_wrapper_forward.45} parent=0 // pred_fallthru
    _
  %v17 = vld [vmem:[%s0] sm:$0xff]
  %v18 = vld [vmem:[%s0 + $0x8] sm:$0xff]
  %v19 = vld [vmem:[%s0 + $0x10] sm:$0xff]
  %v20 = vld [vmem:[%s0 + $0x18] sm:$0xff]
  %v21 = vld [vmem:[%s1] sm:$0xff]
  %v22 = vld [vmem:[%s1 + $0x8] sm:$0xff]
  %v23 = vld [vmem:[%s1 + $0x10] sm:$0xff]
  %v24 = vld [vmem:[%s1 + $0x18] sm:$0xff]
  %v25 = vmax.f32 %v17, %v21
  %v26 = vmax.f32 %v18, %v22
  %v27 = vmax.f32 %v19, %v23
  %v28 = vmax.f32 %v20, %v24
  %v29 = vld [vmem:[%s2] sm:$0xff]
  %v30 = vld [vmem:[%s2 + $0x8] sm:$0xff]
  %v31 = vld [vmem:[%s2 + $0x10] sm:$0xff]
  %v32 = vld [vmem:[%s2 + $0x18] sm:$0xff]
  %v33 = vmax.f32 %v25, %v29
  %v34 = vmax.f32 %v26, %v30
  %v35 = vmax.f32 %v27, %v31
  %v36 = vmax.f32 %v28, %v32
  %v37 = vld [vmem:[%s3] sm:$0xff]
  %v38 = vld [vmem:[%s3 + $0x8] sm:$0xff]
  %v39 = vld [vmem:[%s3 + $0x10] sm:$0xff]
  %v40 = vld [vmem:[%s3 + $0x18] sm:$0xff]
  %v41 = vmax.f32 %v33, %v37
  %v42 = vmax.f32 %v34, %v38
  %v43 = vmax.f32 %v35, %v39
  %v44 = vmax.f32 %v36, %v40
  %45 = vst [vmem:[%s4] sm:$0xff] %v41
  %46 = vst [vmem:[%s4 + $0x8] sm:$0xff] %v42
  %47 = vst [vmem:[%s4 + $0x10] sm:$0xff] %v43
  %48 = vst [vmem:[%s4 + $0x18] sm:$0xff] %v44
  // Predicated region
  $region18: #{nb101_wrapper_forward.45} parent=0 // pred_check
    _
  $region19: #{nb101_wrapper_forward.45} parent=0 // pred_check_branch
    %50 = sbr.rel (0) target = $region21
  $region20: #{nb101_wrapper_forward.45} parent=0 // pred_region
    _
  $region21: #{nb101_wrapper_forward.45} parent=0 // pred_fallthru
    _
  // Predicated region
  $region22: #{nb101_wrapper_forward.45} parent=0 // pred_check
    _
  $region23: #{nb101_wrapper_forward.45} parent=0 // pred_check_branch
    %52 = sbr.rel (0) target = $region25
  $region24: #{nb101_wrapper_forward.45} parent=0 // pred_region
    _
  $region25: #{nb101_wrapper_forward.45} parent=0 // pred_fallthru
    _

// kernel: nb101_wrapper_forward.43
$region0: #{nb101_wrapper_forward.43}
  #allocation0 [shape = 'u32[]', space=smem, size = 0x4, offset = 0x4, fixed_abs, tag = 'smem constant byte address 0x4 - core index']
  #allocation1 [shape = 'u32[144,128]{1,0:T(1,128)}', space=vmem, size = 0x12000, scoped, tag = 'internal scratch']
  %s0 = inlined_call_operand.vmem [shape: f32[128,128], index: 0, kind: input, shape index: {}]
  %s1 = inlined_call_operand.vmem [shape: f32[128,128], index: 1, kind: input, shape index: {}]
  %s2 = inlined_call_operand.vmem [shape: f32[128,128], index: 2, kind: input, shape index: {}]
  %s3 = inlined_call_operand.vmem [shape: f32[128,128], index: 3, kind: input, shape index: {}]
  %s4 = inlined_call_operand.vmem [shape: f32[128,128], index: 4, kind: input, shape index: {}]
  %s5 = inlined_call_operand.vmem [shape: f32[128,128], index: 5, kind: input, shape index: {}]
  %s6 = inlined_call_operand.vmem [shape: f32[128,128], index: 6, kind: input, shape index: {}]
  %s7 = inlined_call_operand.vmem [shape: f32[128,128], index: 7, kind: input, shape index: {}]
  %s8 = inlined_call_operand.vmem [shape: f32[128,128], index: 8, kind: input, shape index: {}]
  %s9 = inlined_call_operand.vmem [shape: f32[128,128], index: 9, kind: output, shape index: {}]
  %s10 = sld [smem:[#allocation0]]
  $region46: #{nb101_wrapper_forward.43} parent=0
    _
  %s12 = ssub.s32 1, %s10
  %s13 = scalar_select 0, %s12, %s10
  // Predicated region
  $region2: #{nb101_wrapper_forward.43} parent=0 // pred_check
    _
  $region3: #{nb101_wrapper_forward.43} parent=0 // pred_check_branch
    %15 = sbr.rel (0) target = $region5
  $region4: #{nb101_wrapper_forward.43} parent=0 // pred_region
    _
  $region5: #{nb101_wrapper_forward.43} parent=0 // pred_fallthru
    _
  // Predicated region
  $region6: #{nb101_wrapper_forward.43} parent=0 // pred_check
    _
  $region7: #{nb101_wrapper_forward.43} parent=0 // pred_check_branch
    %17 = sbr.rel (0) target = $region9
  $region8: #{nb101_wrapper_forward.43} parent=0 // pred_region
    _
  $region9: #{nb101_wrapper_forward.43} parent=0 // pred_fallthru
    _
  // Predicated region
  $region10: #{nb101_wrapper_forward.43} parent=0 // pred_check
    _
  $region11: #{nb101_wrapper_forward.43} parent=0 // pred_check_branch
    %19 = sbr.rel (0) target = $region13
  $region12: #{nb101_wrapper_forward.43} parent=0 // pred_region
    _
  $region13: #{nb101_wrapper_forward.43} parent=0 // pred_fallthru
    _
  // Predicated region
  $region14: #{nb101_wrapper_forward.43} parent=0 // pred_check
    _
  $region15: #{nb101_wrapper_forward.43} parent=0 // pred_check_branch
    %21 = sbr.rel (0) target = $region17
  $region16: #{nb101_wrapper_forward.43} parent=0 // pred_region
    _
  $region17: #{nb101_wrapper_forward.43} parent=0 // pred_fallthru
    _
  // Predicated region
  $region18: #{nb101_wrapper_forward.43} parent=0 // pred_check
    _
  $region19: #{nb101_wrapper_forward.43} parent=0 // pred_check_branch
    %23 = sbr.rel (0) target = $region21
  $region20: #{nb101_wrapper_forward.43} parent=0 // pred_region
    _
  $region21: #{nb101_wrapper_forward.43} parent=0 // pred_fallthru
    _
  // Predicated region
  $region22: #{nb101_wrapper_forward.43} parent=0 // pred_check
    _
  $region23: #{nb101_wrapper_forward.43} parent=0 // pred_check_branch
    %25 = sbr.rel (0) target = $region25
  $region24: #{nb101_wrapper_forward.43} parent=0 // pred_region
    _
  $region25: #{nb101_wrapper_forward.43} parent=0 // pred_fallthru
    _
  // Predicated region
  $region26: #{nb101_wrapper_forward.43} parent=0 // pred_check
    _
  $region27: #{nb101_wrapper_forward.43} parent=0 // pred_check_branch
    %27 = sbr.rel (0) target = $region29
  $region28: #{nb101_wrapper_forward.43} parent=0 // pred_region
    _
  $region29: #{nb101_wrapper_forward.43} parent=0 // pred_fallthru
    _
  // Predicated region
  $region30: #{nb101_wrapper_forward.43} parent=0 // pred_check
    _
  $region31: #{nb101_wrapper_forward.43} parent=0 // pred_check_branch
    %29 = sbr.rel (0) target = $region33
  $region32: #{nb101_wrapper_forward.43} parent=0 // pred_region
    _
  $region33: #{nb101_wrapper_forward.43} parent=0 // pred_fallthru
    _
  // Predicated region
  $region34: #{nb101_wrapper_forward.43} parent=0 // pred_check
    _
  $region35: #{nb101_wrapper_forward.43} parent=0 // pred_check_branch
    %31 = sbr.rel (0) target = $region37
  $region36: #{nb101_wrapper_forward.43} parent=0 // pred_region
    _
  $region37: #{nb101_wrapper_forward.43} parent=0 // pred_fallthru
    _
  %v32 = vld [vmem:[%s0] sm:$0xff]
  %v33 = vld [vmem:[%s0 + $0x8] sm:$0xff]
  %v34 = vld [vmem:[%s0 + $0x10] sm:$0xff]
  %v35 = vld [vmem:[%s0 + $0x18] sm:$0xff]
  %v36 = vld [vmem:[%s0 + $0x20] sm:$0xff]
  %v37 = vld [vmem:[%s0 + $0x28] sm:$0xff]
  %v38 = vld [vmem:[%s0 + $0x30] sm:$0xff]
  %v39 = vld [vmem:[%s0 + $0x38] sm:$0xff]
  %v40 = vld [vmem:[%s0 + $0x40] sm:$0xff]
  %v41 = vld [vmem:[%s0 + $0x48] sm:$0xff]
  %v42 = vld [vmem:[%s0 + $0x50] sm:$0xff]
  %v43 = vld [vmem:[%s0 + $0x58] sm:$0xff]
  %v44 = vld [vmem:[%s0 + $0x60] sm:$0xff]
  %v45 = vld [vmem:[%s0 + $0x68] sm:$0xff]
  %v46 = vld [vmem:[%s0 + $0x70] sm:$0xff]
  %v47 = vld [vmem:[%s0 + $0x78] sm:$0xff]
  %v48 = vld [vmem:[%s1] sm:$0xff]
  %v49 = vld [vmem:[%s1 + $0x8] sm:$0xff]
  %v50 = vld [vmem:[%s1 + $0x10] sm:$0xff]
  %v51 = vld [vmem:[%s1 + $0x18] sm:$0xff]
  %v52 = vld [vmem:[%s1 + $0x20] sm:$0xff]
  %v53 = vld [vmem:[%s1 + $0x28] sm:$0xff]
  %v54 = vld [vmem:[%s1 + $0x30] sm:$0xff]
  %v55 = vld [vmem:[%s1 + $0x38] sm:$0xff]
  %v56 = vld [vmem:[%s1 + $0x40] sm:$0xff]
  %v57 = vld [vmem:[%s1 + $0x48] sm:$0xff]
  %v58 = vld [vmem:[%s1 + $0x50] sm:$0xff]
  %v59 = vld [vmem:[%s1 + $0x58] sm:$0xff]
  %v60 = vld [vmem:[%s1 + $0x60] sm:$0xff]
  %v61 = vld [vmem:[%s1 + $0x68] sm:$0xff]
  %v62 = vld [vmem:[%s1 + $0x70] sm:$0xff]
  %v63 = vld [vmem:[%s1 + $0x78] sm:$0xff]
  %v64 = vmax.f32 %v32, %v48
  %v65 = vmax.f32 %v33, %v49
  %v66 = vmax.f32 %v34, %v50
  %v67 = vmax.f32 %v35, %v51
  %v68 = vmax.f32 %v36, %v52
  %v69 = vmax.f32 %v37, %v53
  %v70 = vmax.f32 %v38, %v54
  %v71 = vmax.f32 %v39, %v55
  %v72 = vmax.f32 %v40, %v56
  %v73 = vmax.f32 %v41, %v57
  %v74 = vmax.f32 %v42, %v58
  %v75 = vmax.f32 %v43, %v59
  %v76 = vmax.f32 %v44, %v60
  %v77 = vmax.f32 %v45, %v61
  %v78 = vmax.f32 %v46, %v62
  %v79 = vmax.f32 %v47, %v63
  %v80 = vld [vmem:[%s2] sm:$0xff]
  %v81 = vld [vmem:[%s2 + $0x8] sm:$0xff]
  %v82 = vld [vmem:[%s2 + $0x10] sm:$0xff]
  %v83 = vld [vmem:[%s2 + $0x18] sm:$0xff]
  %v84 = vld [vmem:[%s2 + $0x20] sm:$0xff]
  %v85 = vld [vmem:[%s2 + $0x28] sm:$0xff]
  %v86 = vld [vmem:[%s2 + $0x30] sm:$0xff]
  %v87 = vld [vmem:[%s2 + $0x38] sm:$0xff]
  %v88 = vld [vmem:[%s2 + $0x40] sm:$0xff]
  %v89 = vld [vmem:[%s2 + $0x48] sm:$0xff]
  %v90 = vld [vmem:[%s2 + $0x50] sm:$0xff]
  %v91 = vld [vmem:[%s2 + $0x58] sm:$0xff]
  %v92 = vld [vmem:[%s2 + $0x60] sm:$0xff]
  %v93 = vld [vmem:[%s2 + $0x68] sm:$0xff]
  %v94 = vld [vmem:[%s2 + $0x70] sm:$0xff]
  %v95 = vld [vmem:[%s2 + $0x78] sm:$0xff]
  %v96 = vmax.f32 %v64, %v80
  %v97 = vmax.f32 %v65, %v81
  %v98 = vmax.f32 %v66, %v82
  %v99 = vmax.f32 %v67, %v83
  %v100 = vmax.f32 %v68, %v84
  %v101 = vmax.f32 %v69, %v85
  %v102 = vmax.f32 %v70, %v86
  %v103 = vmax.f32 %v71, %v87
  %v104 = vmax.f32 %v72, %v88
  %v105 = vmax.f32 %v73, %v89
  %v106 = vmax.f32 %v74, %v90
  %v107 = vmax.f32 %v75, %v91
  %v108 = vmax.f32 %v76, %v92
  %v109 = vmax.f32 %v77, %v93
  %v110 = vmax.f32 %v78, %v94
  %v111 = vmax.f32 %v79, %v95
  %v112 = vld [vmem:[%s3] sm:$0xff]
  %v113 = vld [vmem:[%s3 + $0x8] sm:$0xff]
  %v114 = vld [vmem:[%s3 + $0x10] sm:$0xff]
  %v115 = vld [vmem:[%s3 + $0x18] sm:$0xff]
  %v116 = vld [vmem:[%s3 + $0x20] sm:$0xff]
  %v117 = vld [vmem:[%s3 + $0x28] sm:$0xff]
  %v118 = vld [vmem:[%s3 + $0x30] sm:$0xff]
  %v119 = vld [vmem:[%s3 + $0x38] sm:$0xff]
  %v120 = vld [vmem:[%s3 + $0x40] sm:$0xff]
  %v121 = vld [vmem:[%s3 + $0x48] sm:$0xff]
  %v122 = vld [vmem:[%s3 + $0x50] sm:$0xff]
  %v123 = vld [vmem:[%s3 + $0x58] sm:$0xff]
  %v124 = vld [vmem:[%s3 + $0x60] sm:$0xff]
  %v125 = vld [vmem:[%s3 + $0x68] sm:$0xff]
  %v126 = vld [vmem:[%s3 + $0x70] sm:$0xff]
  %v127 = vld [vmem:[%s3 + $0x78] sm:$0xff]
  %v128 = vmax.f32 %v96, %v112
  %v129 = vmax.f32 %v97, %v113
  %v130 = vmax.f32 %v98, %v114
  %v131 = vmax.f32 %v99, %v115
  %v132 = vmax.f32 %v100, %v116
  %v133 = vmax.f32 %v101, %v117
  %v134 = vmax.f32 %v102, %v118
  %v135 = vmax.f32 %v103, %v119
  %v136 = vmax.f32 %v104, %v120
  %v137 = vmax.f32 %v105, %v121
  %v138 = vmax.f32 %v106, %v122
  %v139 = vmax.f32 %v107, %v123
  %v140 = vmax.f32 %v108, %v124
  %v141 = vmax.f32 %v109, %v125
  %v142 = vmax.f32 %v110, %v126
  %v143 = vmax.f32 %v111, %v127
  %v144 = vld [vmem:[%s4] sm:$0xff]
  %v145 = vld [vmem:[%s4 + $0x8] sm:$0xff]
  %v146 = vld [vmem:[%s4 + $0x10] sm:$0xff]
  %v147 = vld [vmem:[%s4 + $0x18] sm:$0xff]
  %v148 = vld [vmem:[%s4 + $0x20] sm:$0xff]
  %v149 = vld [vmem:[%s4 + $0x28] sm:$0xff]
  %v150 = vld [vmem:[%s4 + $0x30] sm:$0xff]
  %v151 = vld [vmem:[%s4 + $0x38] sm:$0xff]
  %v152 = vld [vmem:[%s4 + $0x40] sm:$0xff]
  %v153 = vld [vmem:[%s4 + $0x48] sm:$0xff]
  %v154 = vld [vmem:[%s4 + $0x50] sm:$0xff]
  %v155 = vld [vmem:[%s4 + $0x58] sm:$0xff]
  %v156 = vld [vmem:[%s4 + $0x60] sm:$0xff]
  %v157 = vld [vmem:[%s4 + $0x68] sm:$0xff]
  %v158 = vld [vmem:[%s4 + $0x70] sm:$0xff]
  %v159 = vld [vmem:[%s4 + $0x78] sm:$0xff]
  %v160 = vmax.f32 %v128, %v144
  %v161 = vmax.f32 %v129, %v145
  %v162 = vmax.f32 %v130, %v146
  %v163 = vmax.f32 %v131, %v147
  %v164 = vmax.f32 %v132, %v148
  %v165 = vmax.f32 %v133, %v149
  %v166 = vmax.f32 %v134, %v150
  %v167 = vmax.f32 %v135, %v151
  %v168 = vmax.f32 %v136, %v152
  %v169 = vmax.f32 %v137, %v153
  %v170 = vmax.f32 %v138, %v154
  %v171 = vmax.f32 %v139, %v155
  %v172 = vmax.f32 %v140, %v156
  %v173 = vmax.f32 %v141, %v157
  %v174 = vmax.f32 %v142, %v158
  %v175 = vmax.f32 %v143, %v159
  %v176 = vld [vmem:[%s5] sm:$0xff]
  %v177 = vld [vmem:[%s5 + $0x8] sm:$0xff]
  %v178 = vld [vmem:[%s5 + $0x10] sm:$0xff]
  %v179 = vld [vmem:[%s5 + $0x18] sm:$0xff]
  %v180 = vld [vmem:[%s5 + $0x20] sm:$0xff]
  %v181 = vld [vmem:[%s5 + $0x28] sm:$0xff]
  %v182 = vld [vmem:[%s5 + $0x30] sm:$0xff]
  %v183 = vld [vmem:[%s5 + $0x38] sm:$0xff]
  %v184 = vld [vmem:[%s5 + $0x40] sm:$0xff]
  %v185 = vld [vmem:[%s5 + $0x48] sm:$0xff]
  %v186 = vld [vmem:[%s5 + $0x50] sm:$0xff]
  %v187 = vld [vmem:[%s5 + $0x58] sm:$0xff]
  %v188 = vld [vmem:[%s5 + $0x60] sm:$0xff]
  %v189 = vld [vmem:[%s5 + $0x68] sm:$0xff]
  %v190 = vld [vmem:[%s5 + $0x70] sm:$0xff]
  %v191 = vld [vmem:[%s5 + $0x78] sm:$0xff]
  %v192 = vmax.f32 %v160, %v176
  %v193 = vmax.f32 %v161, %v177
  %v194 = vmax.f32 %v162, %v178
  %v195 = vmax.f32 %v163, %v179
  %v196 = vmax.f32 %v164, %v180
  %v197 = vmax.f32 %v165, %v181
  %v198 = vmax.f32 %v166, %v182
  %v199 = vmax.f32 %v167, %v183
  %v200 = vmax.f32 %v168, %v184
  %v201 = vmax.f32 %v169, %v185
  %v202 = vmax.f32 %v170, %v186
  %v203 = vmax.f32 %v171, %v187
  %v204 = vmax.f32 %v172, %v188
  %v205 = vmax.f32 %v173, %v189
  %v206 = vmax.f32 %v174, %v190
  %v207 = vmax.f32 %v175, %v191
  %v208 = vld [vmem:[%s6] sm:$0xff]
  %v209 = vld [vmem:[%s6 + $0x8] sm:$0xff]
  %v210 = vld [vmem:[%s6 + $0x10] sm:$0xff]
  %v211 = vld [vmem:[%s6 + $0x18] sm:$0xff]
  %v212 = vld [vmem:[%s6 + $0x20] sm:$0xff]
  %v213 = vld [vmem:[%s6 + $0x28] sm:$0xff]
  %v214 = vld [vmem:[%s6 + $0x30] sm:$0xff]
  %v215 = vld [vmem:[%s6 + $0x38] sm:$0xff]
  %v216 = vld [vmem:[%s6 + $0x40] sm:$0xff]
  %v217 = vld [vmem:[%s6 + $0x48] sm:$0xff]
  %v218 = vld [vmem:[%s6 + $0x50] sm:$0xff]
  %v219 = vld [vmem:[%s6 + $0x58] sm:$0xff]
  %v220 = vld [vmem:[%s6 + $0x60] sm:$0xff]
  %v221 = vld [vmem:[%s6 + $0x68] sm:$0xff]
  %v222 = vld [vmem:[%s6 + $0x70] sm:$0xff]
  %v223 = vld [vmem:[%s6 + $0x78] sm:$0xff]
  %v224 = vmax.f32 %v192, %v208
  %v225 = vmax.f32 %v193, %v209
  %v226 = vmax.f32 %v194, %v210
  %v227 = vmax.f32 %v195, %v211
  %v228 = vmax.f32 %v196, %v212
  %v229 = vmax.f32 %v197, %v213
  %v230 = vmax.f32 %v198, %v214
  %v231 = vmax.f32 %v199, %v215
  %v232 = vmax.f32 %v200, %v216
  %v233 = vmax.f32 %v201, %v217
  %v234 = vmax.f32 %v202, %v218
  %v235 = vmax.f32 %v203, %v219
  %v236 = vmax.f32 %v204, %v220
  %v237 = vmax.f32 %v205, %v221
  %v238 = vmax.f32 %v206, %v222
  %v239 = vmax.f32 %v207, %v223
  %v240 = vld [vmem:[%s7] sm:$0xff]
  %v241 = vld [vmem:[%s7 + $0x8] sm:$0xff]
  %v242 = vld [vmem:[%s7 + $0x10] sm:$0xff]
  %v243 = vld [vmem:[%s7 + $0x18] sm:$0xff]
  %v244 = vld [vmem:[%s7 + $0x20] sm:$0xff]
  %v245 = vld [vmem:[%s7 + $0x28] sm:$0xff]
  %v246 = vld [vmem:[%s7 + $0x30] sm:$0xff]
  %v247 = vld [vmem:[%s7 + $0x38] sm:$0xff]
  %v248 = vld [vmem:[%s7 + $0x40] sm:$0xff]
  %v249 = vld [vmem:[%s7 + $0x48] sm:$0xff]
  %v250 = vld [vmem:[%s7 + $0x50] sm:$0xff]
  %v251 = vld [vmem:[%s7 + $0x58] sm:$0xff]
  %v252 = vld [vmem:[%s7 + $0x60] sm:$0xff]
  %v253 = vld [vmem:[%s7 + $0x68] sm:$0xff]
  %v254 = vld [vmem:[%s7 + $0x70] sm:$0xff]
  %v255 = vld [vmem:[%s7 + $0x78] sm:$0xff]
  %v256 = vmax.f32 %v224, %v240
  %v257 = vmax.f32 %v225, %v241
  %v258 = vmax.f32 %v226, %v242
  %v259 = vmax.f32 %v227, %v243
  %v260 = vmax.f32 %v228, %v244
  %v261 = vmax.f32 %v229, %v245
  %v262 = vmax.f32 %v230, %v246
  %v263 = vmax.f32 %v231, %v247
  %v264 = vmax.f32 %v232, %v248
  %v265 = vmax.f32 %v233, %v249
  %v266 = vmax.f32 %v234, %v250
  %v267 = vmax.f32 %v235, %v251
  %v268 = vmax.f32 %v236, %v252
  %v269 = vmax.f32 %v237, %v253
  %v270 = vmax.f32 %v238, %v254
  %v271 = vmax.f32 %v239, %v255
  %v272 = vld [vmem:[%s8] sm:$0xff]
  %v273 = vld [vmem:[%s8 + $0x8] sm:$0xff]
  %v274 = vld [vmem:[%s8 + $0x10] sm:$0xff]
  %v275 = vld [vmem:[%s8 + $0x18] sm:$0xff]
  %v276 = vld [vmem:[%s8 + $0x20] sm:$0xff]
  %v277 = vld [vmem:[%s8 + $0x28] sm:$0xff]
  %v278 = vld [vmem:[%s8 + $0x30] sm:$0xff]
  %v279 = vld [vmem:[%s8 + $0x38] sm:$0xff]
  %v280 = vld [vmem:[%s8 + $0x40] sm:$0xff]
  %v281 = vld [vmem:[%s8 + $0x48] sm:$0xff]
  %v282 = vld [vmem:[%s8 + $0x50] sm:$0xff]
  %v283 = vld [vmem:[%s8 + $0x58] sm:$0xff]
  %v284 = vld [vmem:[%s8 + $0x60] sm:$0xff]
  %v285 = vld [vmem:[%s8 + $0x68] sm:$0xff]
  %v286 = vld [vmem:[%s8 + $0x70] sm:$0xff]
  %v287 = vld [vmem:[%s8 + $0x78] sm:$0xff]
  %v288 = vmax.f32 %v256, %v272
  %v289 = vmax.f32 %v257, %v273
  %v290 = vmax.f32 %v258, %v274
  %v291 = vmax.f32 %v259, %v275
  %v292 = vmax.f32 %v260, %v276
  %v293 = vmax.f32 %v261, %v277
  %v294 = vmax.f32 %v262, %v278
  %v295 = vmax.f32 %v263, %v279
  %v296 = vmax.f32 %v264, %v280
  %v297 = vmax.f32 %v265, %v281
  %v298 = vmax.f32 %v266, %v282
  %v299 = vmax.f32 %v267, %v283
  %v300 = vmax.f32 %v268, %v284
  %v301 = vmax.f32 %v269, %v285
  %v302 = vmax.f32 %v270, %v286
  %v303 = vmax.f32 %v271, %v287
  %304 = vst [vmem:[%s9] sm:$0xff] %v288
  %305 = vst [vmem:[%s9 + $0x8] sm:$0xff] %v289
  %306 = vst [vmem:[%s9 + $0x10] sm:$0xff] %v290
  %307 = vst [vmem:[%s9 + $0x18] sm:$0xff] %v291
  %308 = vst [vmem:[%s9 + $0x20] sm:$0xff] %v292
  %309 = vst [vmem:[%s9 + $0x28] sm:$0xff] %v293
  %310 = vst [vmem:[%s9 + $0x30] sm:$0xff] %v294
  %311 = vst [vmem:[%s9 + $0x38] sm:$0xff] %v295
  %312 = vst [vmem:[%s9 + $0x40] sm:$0xff] %v296
  %313 = vst [vmem:[%s9 + $0x48] sm:$0xff] %v297
  %314 = vst [vmem:[%s9 + $0x50] sm:$0xff] %v298
  %315 = vst [vmem:[%s9 + $0x58] sm:$0xff] %v299
  %316 = vst [vmem:[%s9 + $0x60] sm:$0xff] %v300
  %317 = vst [vmem:[%s9 + $0x68] sm:$0xff] %v301
  %318 = vst [vmem:[%s9 + $0x70] sm:$0xff] %v302
  %319 = vst [vmem:[%s9 + $0x78] sm:$0xff] %v303
  // Predicated region
  $region38: #{nb101_wrapper_forward.43} parent=0 // pred_check
    _
  $region39: #{nb101_wrapper_forward.43} parent=0 // pred_check_branch
    %321 = sbr.rel (0) target = $region41
  $region40: #{nb101_wrapper_forward.43} parent=0 // pred_region
    _
  $region41: #{nb101_wrapper_forward.43} parent=0 // pred_fallthru
    _
  // Predicated region
  $region42: #{nb101_wrapper_forward.43} parent=0 // pred_check
    _
  $region43: #{nb101_wrapper_forward.43} parent=0 // pred_check_branch
    %323 = sbr.rel (0) target = $region45
  $region44: #{nb101_wrapper_forward.43} parent=0 // pred_region
    _
  $region45: #{nb101_wrapper_forward.43} parent=0 // pred_fallthru
    _

// kernel: nb101_wrapper_forward.46
$region0: #{nb101_wrapper_forward.46}
  #allocation0 [shape = 'u32[]', space=smem, size = 0x4, offset = 0x4, fixed_abs, tag = 'smem constant byte address 0x4 - core index']
  #allocation1 [shape = 'u32[144,128]{1,0:T(1,128)}', space=vmem, size = 0x12000, scoped, tag = 'internal scratch']
  %s0 = inlined_call_operand.vmem [shape: f32[32,128], index: 0, kind: input, shape index: {}]
  %s1 = inlined_call_operand.vmem [shape: f32[128,128], index: 1, kind: input, shape index: {}]
  %s2 = inlined_call_operand.vmem [shape: f32[1,128], index: 2, kind: input, shape index: {}]
  %s3 = inlined_call_operand.vmem [shape: f32[1,128], index: 3, kind: input, shape index: {}]
  %s4 = inlined_call_operand.vmem [shape: f32[32,128], index: 4, kind: output, shape index: {}]
  %s5 = sld [smem:[#allocation0]]
  $region26: #{nb101_wrapper_forward.46} parent=0
    _
  %s7 = ssub.s32 1, %s5
  %s8 = scalar_select 0, %s7, %s5
  // Predicated region
  $region2: #{nb101_wrapper_forward.46} parent=0 // pred_check
    _
  $region3: #{nb101_wrapper_forward.46} parent=0 // pred_check_branch
    %10 = sbr.rel (0) target = $region5
  $region4: #{nb101_wrapper_forward.46} parent=0 // pred_region
    _
  $region5: #{nb101_wrapper_forward.46} parent=0 // pred_fallthru
    _
  // Predicated region
  $region6: #{nb101_wrapper_forward.46} parent=0 // pred_check
    _
  $region7: #{nb101_wrapper_forward.46} parent=0 // pred_check_branch
    %12 = sbr.rel (0) target = $region9
  $region8: #{nb101_wrapper_forward.46} parent=0 // pred_region
    _
  $region9: #{nb101_wrapper_forward.46} parent=0 // pred_fallthru
    _
  // Predicated region
  $region10: #{nb101_wrapper_forward.46} parent=0 // pred_check
    _
  $region11: #{nb101_wrapper_forward.46} parent=0 // pred_check_branch
    %14 = sbr.rel (0) target = $region13
  $region12: #{nb101_wrapper_forward.46} parent=0 // pred_region
    _
  $region13: #{nb101_wrapper_forward.46} parent=0 // pred_fallthru
    _
  // Predicated region
  $region14: #{nb101_wrapper_forward.46} parent=0 // pred_check
    _
  $region15: #{nb101_wrapper_forward.46} parent=0 // pred_check_branch
    %16 = sbr.rel (0) target = $region17
  $region16: #{nb101_wrapper_forward.46} parent=0 // pred_region
    _
  $region17: #{nb101_wrapper_forward.46} parent=0 // pred_fallthru
    _
  %v17 = vld [vmem:[%s0] sm:$0xff]
  %v18 = vld [vmem:[%s0 + $0x8] sm:$0xff]
  %v19 = vld [vmem:[%s0 + $0x10] sm:$0xff]
  %v20 = vld [vmem:[%s0 + $0x18] sm:$0xff]
  %v21 = vld [vmem:[%s1] sm:$0xff]
  %v22 = vld [vmem:[%s1 + $0x8] sm:$0xff]
  %v23 = vld [vmem:[%s1 + $0x10] sm:$0xff]
  %v24 = vld [vmem:[%s1 + $0x18] sm:$0xff]
  %v25 = vld [vmem:[%s1 + $0x20] sm:$0xff]
  %v26 = vld [vmem:[%s1 + $0x28] sm:$0xff]
  %v27 = vld [vmem:[%s1 + $0x30] sm:$0xff]
  %v28 = vld [vmem:[%s1 + $0x38] sm:$0xff]
  %v29 = vld [vmem:[%s1 + $0x40] sm:$0xff]
  %v30 = vld [vmem:[%s1 + $0x48] sm:$0xff]
  %v31 = vld [vmem:[%s1 + $0x50] sm:$0xff]
  %v32 = vld [vmem:[%s1 + $0x58] sm:$0xff]
  %v33 = vld [vmem:[%s1 + $0x60] sm:$0xff]
  %v34 = vld [vmem:[%s1 + $0x68] sm:$0xff]
  %v35 = vld [vmem:[%s1 + $0x70] sm:$0xff]
  %v36 = vld [vmem:[%s1 + $0x78] sm:$0xff]
  %37 = vmatprep.subr.mxu0 0.0
  %38 = vmatpush1.msra.mxu0 %v21
  %39 = vmatprep.subr.mxu0 0.0
  %40 = vmatpush1.msra.mxu0 %v22
  %41 = vmatprep.subr.mxu0 0.0
  %42 = vmatpush1.msra.mxu0 %v23
  %43 = vmatprep.subr.mxu0 0.0
  %44 = vmatpush1.msra.mxu0 %v24
  %45 = vmatprep.subr.mxu0 0.0
  %46 = vmatpush1.msra.mxu0 %v25
  %47 = vmatprep.subr.mxu0 0.0
  %48 = vmatpush1.msra.mxu0 %v26
  %49 = vmatprep.subr.mxu0 0.0
  %50 = vmatpush1.msra.mxu0 %v27
  %51 = vmatprep.subr.mxu0 0.0
  %52 = vmatpush1.msra.mxu0 %v28
  %53 = vmatprep.subr.mxu0 0.0
  %54 = vmatpush1.msra.mxu0 %v29
  %55 = vmatprep.subr.mxu0 0.0
  %56 = vmatpush1.msra.mxu0 %v30
  %57 = vmatprep.subr.mxu0 0.0
  %58 = vmatpush1.msra.mxu0 %v31
  %59 = vmatprep.subr.mxu0 0.0
  %60 = vmatpush1.msra.mxu0 %v32
  %61 = vmatprep.subr.mxu0 0.0
  %62 = vmatpush1.msra.mxu0 %v33
  %63 = vmatprep.subr.mxu0 0.0
  %64 = vmatpush1.msra.mxu0 %v34
  %65 = vmatprep.subr.mxu0 0.0
  %66 = vmatpush1.msra.mxu0 %v35
  %67 = vmatprep.subr.mxu0 0.0
  %68 = vmatpush1.msra.mxu0 %v36
  %69 = vmatprep.subr.mxu0 0.0
  %70 = vmatpush1.msra.mxu0 0.0
  %71 = vmatprep.subr.mxu0 0.0
  %72 = vmatpush1.msra.mxu0 0.0
  %73 = vmatprep.subr.mxu0 0.0
  %74 = vmatpush1.msra.mxu0 0.0
  %75 = vmatprep.subr.mxu0 0.0
  %76 = vmatpush1.msra.mxu0 0.0
  %77 = vmatprep.subr.mxu0 0.0
  %78 = vmatpush1.msra.mxu0 0.0
  %79 = vmatprep.subr.mxu0 0.0
  %80 = vmatpush1.msra.mxu0 0.0
  %81 = vmatprep.subr.mxu0 0.0
  %82 = vmatpush1.msra.mxu0 0.0
  %83 = vmatprep.subr.mxu0 0.0
  %84 = vmatpush1.msra.mxu0 0.0
  %85 = vmatprep.subr.mxu0 0.0
  %86 = vmatpush1.msra.mxu0 0.0
  %87 = vmatprep.subr.mxu0 0.0
  %88 = vmatpush1.msra.mxu0 0.0
  %89 = vmatprep.subr.mxu0 0.0
  %90 = vmatpush1.msra.mxu0 0.0
  %91 = vmatprep.subr.mxu0 0.0
  %92 = vmatpush1.msra.mxu0 0.0
  %93 = vmatprep.subr.mxu0 0.0
  %94 = vmatpush1.msra.mxu0 0.0
  %95 = vmatprep.subr.mxu0 0.0
  %96 = vmatpush1.msra.mxu0 0.0
  %97 = vmatprep.subr.mxu0 0.0
  %98 = vmatpush1.msra.mxu0 0.0
  %99 = vmatprep.subr.mxu0 0.0
  %100 = vmatpush1.msra.mxu0 0.0
  %101 = vmatprep.mubr.f32.mxu0 0.0
  %102 = vmatmul.mubr.f32.gmra.mrb[0].mxu0 %v17
  %v103 = vpop.f32.mrb[0].mxu0
  %v104 = vadd.f32 0.0, %v103
  %v105 = vpop.f32.mrb[0].mxu0
  %106 = vmatprep.mubr.f32.mxu0 0.0
  %107 = vmatmul.mubr.f32.gmra.mrb[0].mxu0 %v18
  %v108 = vpop.f32.mrb[0].mxu0
  %v109 = vadd.f32 0.0, %v108
  %v110 = vpop.f32.mrb[0].mxu0
  %111 = vmatprep.mubr.f32.mxu0 0.0
  %112 = vmatmul.mubr.f32.gmra.mrb[0].mxu0 %v19
  %v113 = vpop.f32.mrb[0].mxu0
  %v114 = vadd.f32 0.0, %v113
  %v115 = vpop.f32.mrb[0].mxu0
  %116 = vmatprep.mubr.f32.mxu0 0.0
  %117 = vmatmul.mubr.f32.gmra.mrb[0].mxu0 %v20
  %v118 = vpop.f32.mrb[0].mxu0
  %v119 = vadd.f32 0.0, %v118
  %v120 = vpop.f32.mrb[0].mxu0
  %121 = vdwg.mxu0
  %v122 = vld [vmem:[%s2] sm:$0x1]
  %v124 = vlaneseq
  %v125 = vshrl.u32 %v124, 7
  %v126 = vsub.s32 0, %v125
  %v127 = vrot.slane %v122, %v126
  %v129 = vmul.f32 %v104, %v127
  %v130 = vmul.f32 %v109, %v127
  %v131 = vmul.f32 %v114, %v127
  %v132 = vmul.f32 %v119, %v127
  %v133 = vld [vmem:[%s3] sm:$0x1]
  %v135 = vlaneseq
  %v136 = vshrl.u32 %v135, 7
  %v137 = vsub.s32 0, %v136
  %v138 = vrot.slane %v133, %v137
  %v140 = vadd.f32 %v129, %v138
  %v141 = vadd.f32 %v130, %v138
  %v142 = vadd.f32 %v131, %v138
  %v143 = vadd.f32 %v132, %v138
  %v144 = vmax.f32 %v140, 0.0
  %v145 = vmax.f32 %v141, 0.0
  %v146 = vmax.f32 %v142, 0.0
  %v147 = vmax.f32 %v143, 0.0
  %148 = vst [vmem:[%s4] sm:$0xff] %v144
  %149 = vst [vmem:[%s4 + $0x8] sm:$0xff] %v145
  %150 = vst [vmem:[%s4 + $0x10] sm:$0xff] %v146
  %151 = vst [vmem:[%s4 + $0x18] sm:$0xff] %v147
  // Predicated region
  $region18: #{nb101_wrapper_forward.46} parent=0 // pred_check
    _
  $region19: #{nb101_wrapper_forward.46} parent=0 // pred_check_branch
    %153 = sbr.rel (0) target = $region21
  $region20: #{nb101_wrapper_forward.46} parent=0 // pred_region
    _
  $region21: #{nb101_wrapper_forward.46} parent=0 // pred_fallthru
    _
  // Predicated region
  $region22: #{nb101_wrapper_forward.46} parent=0 // pred_check
    _
  $region23: #{nb101_wrapper_forward.46} parent=0 // pred_check_branch
    %155 = sbr.rel (0) target = $region25
  $region24: #{nb101_wrapper_forward.46} parent=0 // pred_region
    _
  $region25: #{nb101_wrapper_forward.46} parent=0 // pred_fallthru
    _

// kernel: nb101_wrapper_forward.51
$region0: #{nb101_wrapper_forward.51}
  #allocation0 [shape = 'u32[]', space=smem, size = 0x4, offset = 0x4, fixed_abs, tag = 'smem constant byte address 0x4 - core index']
  #allocation1 [shape = 'u32[144,128]{1,0:T(1,128)}', space=vmem, size = 0x12000, scoped, tag = 'internal scratch']
  %s0 = inlined_call_operand.vmem [shape: f32[32,128], index: 0, kind: input, shape index: {}]
  %s1 = inlined_call_operand.vmem [shape: f32[32,128], index: 1, kind: input, shape index: {}]
  %s2 = inlined_call_operand.vmem [shape: f32[32,128], index: 2, kind: input, shape index: {}]
  %s3 = inlined_call_operand.vmem [shape: f32[32,128], index: 3, kind: input, shape index: {}]
  %s4 = inlined_call_operand.vmem [shape: f32[32,128], index: 4, kind: output, shape index: {}]
  %s5 = sld [smem:[#allocation0]]
  $region26: #{nb101_wrapper_forward.51} parent=0
    _
  %s7 = ssub.s32 1, %s5
  %s8 = scalar_select 0, %s7, %s5
  // Predicated region
  $region2: #{nb101_wrapper_forward.51} parent=0 // pred_check
    _
  $region3: #{nb101_wrapper_forward.51} parent=0 // pred_check_branch
    %10 = sbr.rel (0) target = $region5
  $region4: #{nb101_wrapper_forward.51} parent=0 // pred_region
    _
  $region5: #{nb101_wrapper_forward.51} parent=0 // pred_fallthru
    _
  // Predicated region
  $region6: #{nb101_wrapper_forward.51} parent=0 // pred_check
    _
  $region7: #{nb101_wrapper_forward.51} parent=0 // pred_check_branch
    %12 = sbr.rel (0) target = $region9
  $region8: #{nb101_wrapper_forward.51} parent=0 // pred_region
    _
  $region9: #{nb101_wrapper_forward.51} parent=0 // pred_fallthru
    _
  // Predicated region
  $region10: #{nb101_wrapper_forward.51} parent=0 // pred_check
    _
  $region11: #{nb101_wrapper_forward.51} parent=0 // pred_check_branch
    %14 = sbr.rel (0) target = $region13
  $region12: #{nb101_wrapper_forward.51} parent=0 // pred_region
    _
  $region13: #{nb101_wrapper_forward.51} parent=0 // pred_fallthru
    _
  // Predicated region
  $region14: #{nb101_wrapper_forward.51} parent=0 // pred_check
    _
  $region15: #{nb101_wrapper_forward.51} parent=0 // pred_check_branch
    %16 = sbr.rel (0) target = $region17
  $region16: #{nb101_wrapper_forward.51} parent=0 // pred_region
    _
  $region17: #{nb101_wrapper_forward.51} parent=0 // pred_fallthru
    _
  %v17 = vld [vmem:[%s0] sm:$0xff]
  %v18 = vld [vmem:[%s0 + $0x8] sm:$0xff]
  %v19 = vld [vmem:[%s0 + $0x10] sm:$0xff]
  %v20 = vld [vmem:[%s0 + $0x18] sm:$0xff]
  %v21 = vld [vmem:[%s1] sm:$0xff]
  %v22 = vld [vmem:[%s1 + $0x8] sm:$0xff]
  %v23 = vld [vmem:[%s1 + $0x10] sm:$0xff]
  %v24 = vld [vmem:[%s1 + $0x18] sm:$0xff]
  %v25 = vadd.f32 %v17, %v21
  %v26 = vadd.f32 %v18, %v22
  %v27 = vadd.f32 %v19, %v23
  %v28 = vadd.f32 %v20, %v24
  %v29 = vld [vmem:[%s2] sm:$0xff]
  %v30 = vld [vmem:[%s2 + $0x8] sm:$0xff]
  %v31 = vld [vmem:[%s2 + $0x10] sm:$0xff]
  %v32 = vld [vmem:[%s2 + $0x18] sm:$0xff]
  %v33 = vadd.f32 %v25, %v29
  %v34 = vadd.f32 %v26, %v30
  %v35 = vadd.f32 %v27, %v31
  %v36 = vadd.f32 %v28, %v32
  %v37 = vld [vmem:[%s3] sm:$0xff]
  %v38 = vld [vmem:[%s3 + $0x8] sm:$0xff]
  %v39 = vld [vmem:[%s3 + $0x10] sm:$0xff]
  %v40 = vld [vmem:[%s3 + $0x18] sm:$0xff]
  %v41 = vadd.f32 %v33, %v37
  %v42 = vadd.f32 %v34, %v38
  %v43 = vadd.f32 %v35, %v39
  %v44 = vadd.f32 %v36, %v40
  %45 = vst [vmem:[%s4] sm:$0xff] %v41
  %46 = vst [vmem:[%s4 + $0x8] sm:$0xff] %v42
  %47 = vst [vmem:[%s4 + $0x10] sm:$0xff] %v43
  %48 = vst [vmem:[%s4 + $0x18] sm:$0xff] %v44
  // Predicated region
  $region18: #{nb101_wrapper_forward.51} parent=0 // pred_check
    _
  $region19: #{nb101_wrapper_forward.51} parent=0 // pred_check_branch
    %50 = sbr.rel (0) target = $region21
  $region20: #{nb101_wrapper_forward.51} parent=0 // pred_region
    _
  $region21: #{nb101_wrapper_forward.51} parent=0 // pred_fallthru
    _
  // Predicated region
  $region22: #{nb101_wrapper_forward.51} parent=0 // pred_check
    _
  $region23: #{nb101_wrapper_forward.51} parent=0 // pred_check_branch
    %52 = sbr.rel (0) target = $region25
  $region24: #{nb101_wrapper_forward.51} parent=0 // pred_region
    _
  $region25: #{nb101_wrapper_forward.51} parent=0 // pred_fallthru
    _

// kernel: nb101_wrapper_forward.52
$region0: #{nb101_wrapper_forward.52}
  #allocation0 [shape = 'u32[]', space=smem, size = 0x4, offset = 0x4, fixed_abs, tag = 'smem constant byte address 0x4 - core index']
  #allocation1 [shape = 'u32[144,128]{1,0:T(1,128)}', space=vmem, size = 0x12000, scoped, tag = 'internal scratch']
  %s0 = inlined_call_operand.vmem [shape: f32[32,128], index: 0, kind: input, shape index: {}]
  %s1 = inlined_call_operand.vmem [shape: f32[32,128], index: 1, kind: input, shape index: {}]
  %s2 = inlined_call_operand.vmem [shape: f32[32,128], index: 2, kind: input, shape index: {}]
  %s3 = inlined_call_operand.vmem [shape: f32[32,128], index: 3, kind: input, shape index: {}]
  %s4 = inlined_call_operand.vmem [shape: f32[32,128], index: 4, kind: input, shape index: {}]
  %s5 = inlined_call_operand.vmem [shape: f32[32,128], index: 5, kind: input, shape index: {}]
  %s6 = inlined_call_operand.vmem [shape: f32[32,128], index: 6, kind: input, shape index: {}]
  %s7 = inlined_call_operand.vmem [shape: f32[32,128], index: 7, kind: input, shape index: {}]
  %s8 = inlined_call_operand.vmem [shape: f32[32,128], index: 8, kind: input, shape index: {}]
  %s9 = inlined_call_operand.vmem [shape: f32[32,128], index: 9, kind: output, shape index: {}]
  %s10 = sld [smem:[#allocation0]]
  $region46: #{nb101_wrapper_forward.52} parent=0
    _
  %s12 = ssub.s32 1, %s10
  %s13 = scalar_select 0, %s12, %s10
  // Predicated region
  $region2: #{nb101_wrapper_forward.52} parent=0 // pred_check
    _
  $region3: #{nb101_wrapper_forward.52} parent=0 // pred_check_branch
    %15 = sbr.rel (0) target = $region5
  $region4: #{nb101_wrapper_forward.52} parent=0 // pred_region
    _
  $region5: #{nb101_wrapper_forward.52} parent=0 // pred_fallthru
    _
  // Predicated region
  $region6: #{nb101_wrapper_forward.52} parent=0 // pred_check
    _
  $region7: #{nb101_wrapper_forward.52} parent=0 // pred_check_branch
    %17 = sbr.rel (0) target = $region9
  $region8: #{nb101_wrapper_forward.52} parent=0 // pred_region
    _
  $region9: #{nb101_wrapper_forward.52} parent=0 // pred_fallthru
    _
  // Predicated region
  $region10: #{nb101_wrapper_forward.52} parent=0 // pred_check
    _
  $region11: #{nb101_wrapper_forward.52} parent=0 // pred_check_branch
    %19 = sbr.rel (0) target = $region13
  $region12: #{nb101_wrapper_forward.52} parent=0 // pred_region
    _
  $region13: #{nb101_wrapper_forward.52} parent=0 // pred_fallthru
    _
  // Predicated region
  $region14: #{nb101_wrapper_forward.52} parent=0 // pred_check
    _
  $region15: #{nb101_wrapper_forward.52} parent=0 // pred_check_branch
    %21 = sbr.rel (0) target = $region17
  $region16: #{nb101_wrapper_forward.52} parent=0 // pred_region
    _
  $region17: #{nb101_wrapper_forward.52} parent=0 // pred_fallthru
    _
  // Predicated region
  $region18: #{nb101_wrapper_forward.52} parent=0 // pred_check
    _
  $region19: #{nb101_wrapper_forward.52} parent=0 // pred_check_branch
    %23 = sbr.rel (0) target = $region21
  $region20: #{nb101_wrapper_forward.52} parent=0 // pred_region
    _
  $region21: #{nb101_wrapper_forward.52} parent=0 // pred_fallthru
    _
  // Predicated region
  $region22: #{nb101_wrapper_forward.52} parent=0 // pred_check
    _
  $region23: #{nb101_wrapper_forward.52} parent=0 // pred_check_branch
    %25 = sbr.rel (0) target = $region25
  $region24: #{nb101_wrapper_forward.52} parent=0 // pred_region
    _
  $region25: #{nb101_wrapper_forward.52} parent=0 // pred_fallthru
    _
  // Predicated region
  $region26: #{nb101_wrapper_forward.52} parent=0 // pred_check
    _
  $region27: #{nb101_wrapper_forward.52} parent=0 // pred_check_branch
    %27 = sbr.rel (0) target = $region29
  $region28: #{nb101_wrapper_forward.52} parent=0 // pred_region
    _
  $region29: #{nb101_wrapper_forward.52} parent=0 // pred_fallthru
    _
  // Predicated region
  $region30: #{nb101_wrapper_forward.52} parent=0 // pred_check
    _
  $region31: #{nb101_wrapper_forward.52} parent=0 // pred_check_branch
    %29 = sbr.rel (0) target = $region33
  $region32: #{nb101_wrapper_forward.52} parent=0 // pred_region
    _
  $region33: #{nb101_wrapper_forward.52} parent=0 // pred_fallthru
    _
  // Predicated region
  $region34: #{nb101_wrapper_forward.52} parent=0 // pred_check
    _
  $region35: #{nb101_wrapper_forward.52} parent=0 // pred_check_branch
    %31 = sbr.rel (0) target = $region37
  $region36: #{nb101_wrapper_forward.52} parent=0 // pred_region
    _
  $region37: #{nb101_wrapper_forward.52} parent=0 // pred_fallthru
    _
  %v32 = vld [vmem:[%s0] sm:$0xff]
  %v33 = vld [vmem:[%s0 + $0x8] sm:$0xff]
  %v34 = vld [vmem:[%s0 + $0x10] sm:$0xff]
  %v35 = vld [vmem:[%s0 + $0x18] sm:$0xff]
  %v36 = vld [vmem:[%s1] sm:$0xff]
  %v37 = vld [vmem:[%s1 + $0x8] sm:$0xff]
  %v38 = vld [vmem:[%s1 + $0x10] sm:$0xff]
  %v39 = vld [vmem:[%s1 + $0x18] sm:$0xff]
  %v40 = vmax.f32 %v32, %v36
  %v41 = vmax.f32 %v33, %v37
  %v42 = vmax.f32 %v34, %v38
  %v43 = vmax.f32 %v35, %v39
  %v44 = vld [vmem:[%s2] sm:$0xff]
  %v45 = vld [vmem:[%s2 + $0x8] sm:$0xff]
  %v46 = vld [vmem:[%s2 + $0x10] sm:$0xff]
  %v47 = vld [vmem:[%s2 + $0x18] sm:$0xff]
  %v48 = vmax.f32 %v40, %v44
  %v49 = vmax.f32 %v41, %v45
  %v50 = vmax.f32 %v42, %v46
  %v51 = vmax.f32 %v43, %v47
  %v52 = vld [vmem:[%s3] sm:$0xff]
  %v53 = vld [vmem:[%s3 + $0x8] sm:$0xff]
  %v54 = vld [vmem:[%s3 + $0x10] sm:$0xff]
  %v55 = vld [vmem:[%s3 + $0x18] sm:$0xff]
  %v56 = vmax.f32 %v48, %v52
  %v57 = vmax.f32 %v49, %v53
  %v58 = vmax.f32 %v50, %v54
  %v59 = vmax.f32 %v51, %v55
  %v60 = vld [vmem:[%s4] sm:$0xff]
  %v61 = vld [vmem:[%s4 + $0x8] sm:$0xff]
  %v62 = vld [vmem:[%s4 + $0x10] sm:$0xff]
  %v63 = vld [vmem:[%s4 + $0x18] sm:$0xff]
  %v64 = vmax.f32 %v56, %v60
  %v65 = vmax.f32 %v57, %v61
  %v66 = vmax.f32 %v58, %v62
  %v67 = vmax.f32 %v59, %v63
  %v68 = vld [vmem:[%s5] sm:$0xff]
  %v69 = vld [vmem:[%s5 + $0x8] sm:$0xff]
  %v70 = vld [vmem:[%s5 + $0x10] sm:$0xff]
  %v71 = vld [vmem:[%s5 + $0x18] sm:$0xff]
  %v72 = vmax.f32 %v64, %v68
  %v73 = vmax.f32 %v65, %v69
  %v74 = vmax.f32 %v66, %v70
  %v75 = vmax.f32 %v67, %v71
  %v76 = vld [vmem:[%s6] sm:$0xff]
  %v77 = vld [vmem:[%s6 + $0x8] sm:$0xff]
  %v78 = vld [vmem:[%s6 + $0x10] sm:$0xff]
  %v79 = vld [vmem:[%s6 + $0x18] sm:$0xff]
  %v80 = vmax.f32 %v72, %v76
  %v81 = vmax.f32 %v73, %v77
  %v82 = vmax.f32 %v74, %v78
  %v83 = vmax.f32 %v75, %v79
  %v84 = vld [vmem:[%s7] sm:$0xff]
  %v85 = vld [vmem:[%s7 + $0x8] sm:$0xff]
  %v86 = vld [vmem:[%s7 + $0x10] sm:$0xff]
  %v87 = vld [vmem:[%s7 + $0x18] sm:$0xff]
  %v88 = vmax.f32 %v80, %v84
  %v89 = vmax.f32 %v81, %v85
  %v90 = vmax.f32 %v82, %v86
  %v91 = vmax.f32 %v83, %v87
  %v92 = vld [vmem:[%s8] sm:$0xff]
  %v93 = vld [vmem:[%s8 + $0x8] sm:$0xff]
  %v94 = vld [vmem:[%s8 + $0x10] sm:$0xff]
  %v95 = vld [vmem:[%s8 + $0x18] sm:$0xff]
  %v96 = vmax.f32 %v88, %v92
  %v97 = vmax.f32 %v89, %v93
  %v98 = vmax.f32 %v90, %v94
  %v99 = vmax.f32 %v91, %v95
  %100 = vst [vmem:[%s9] sm:$0xff] %v96
  %101 = vst [vmem:[%s9 + $0x8] sm:$0xff] %v97
  %102 = vst [vmem:[%s9 + $0x10] sm:$0xff] %v98
  %103 = vst [vmem:[%s9 + $0x18] sm:$0xff] %v99
  // Predicated region
  $region38: #{nb101_wrapper_forward.52} parent=0 // pred_check
    _
  $region39: #{nb101_wrapper_forward.52} parent=0 // pred_check_branch
    %105 = sbr.rel (0) target = $region41
  $region40: #{nb101_wrapper_forward.52} parent=0 // pred_region
    _
  $region41: #{nb101_wrapper_forward.52} parent=0 // pred_fallthru
    _
  // Predicated region
  $region42: #{nb101_wrapper_forward.52} parent=0 // pred_check
    _
  $region43: #{nb101_wrapper_forward.52} parent=0 // pred_check_branch
    %107 = sbr.rel (0) target = $region45
  $region44: #{nb101_wrapper_forward.52} parent=0 // pred_region
    _
  $region45: #{nb101_wrapper_forward.52} parent=0 // pred_fallthru
    _

// kernel: nb101_wrapper_forward.49
$region0: #{nb101_wrapper_forward.49}
  #allocation0 [shape = 'u32[]', space=smem, size = 0x4, offset = 0x4, fixed_abs, tag = 'smem constant byte address 0x4 - core index']
  #allocation1 [shape = 'u32[144,128]{1,0:T(1,128)}', space=vmem, size = 0x12000, scoped, tag = 'internal scratch']
  %s0 = inlined_call_operand.vmem [shape: f32[32,288], index: 0, kind: input, shape index: {}]
  %s1 = inlined_call_operand.vmem [shape: f32[288,128], index: 1, kind: input, shape index: {}]
  %s2 = inlined_call_operand.vmem [shape: f32[1,128], index: 2, kind: input, shape index: {}]
  %s3 = inlined_call_operand.vmem [shape: f32[1,128], index: 3, kind: input, shape index: {}]
  %s4 = inlined_call_operand.vmem [shape: f32[32,128], index: 4, kind: output, shape index: {}]
  %s5 = sld [smem:[#allocation0]]
  $region26: #{nb101_wrapper_forward.49} parent=0
    _
  %s7 = ssub.s32 1, %s5
  %s8 = scalar_select 0, %s7, %s5
  // Predicated region
  $region2: #{nb101_wrapper_forward.49} parent=0 // pred_check
    _
  $region3: #{nb101_wrapper_forward.49} parent=0 // pred_check_branch
    %10 = sbr.rel (0) target = $region5
  $region4: #{nb101_wrapper_forward.49} parent=0 // pred_region
    _
  $region5: #{nb101_wrapper_forward.49} parent=0 // pred_fallthru
    _
  // Predicated region
  $region6: #{nb101_wrapper_forward.49} parent=0 // pred_check
    _
  $region7: #{nb101_wrapper_forward.49} parent=0 // pred_check_branch
    %12 = sbr.rel (0) target = $region9
  $region8: #{nb101_wrapper_forward.49} parent=0 // pred_region
    _
  $region9: #{nb101_wrapper_forward.49} parent=0 // pred_fallthru
    _
  // Predicated region
  $region10: #{nb101_wrapper_forward.49} parent=0 // pred_check
    _
  $region11: #{nb101_wrapper_forward.49} parent=0 // pred_check_branch
    %14 = sbr.rel (0) target = $region13
  $region12: #{nb101_wrapper_forward.49} parent=0 // pred_region
    _
  $region13: #{nb101_wrapper_forward.49} parent=0 // pred_fallthru
    _
  // Predicated region
  $region14: #{nb101_wrapper_forward.49} parent=0 // pred_check
    _
  $region15: #{nb101_wrapper_forward.49} parent=0 // pred_check_branch
    %16 = sbr.rel (0) target = $region17
  $region16: #{nb101_wrapper_forward.49} parent=0 // pred_region
    _
  $region17: #{nb101_wrapper_forward.49} parent=0 // pred_fallthru
    _
  %v17 = vld [vmem:[%s0] sm:$0xff]
  %v18 = vld [vmem:[%s0 + $0x8] sm:$0xff]
  %v19 = vld [vmem:[%s0 + $0x10] sm:$0xff]
  %v20 = vld [vmem:[%s0 + $0x18] sm:$0xff]
  %v21 = vld [vmem:[%s0 + $0x20] sm:$0xff]
  %v22 = vld [vmem:[%s0 + $0x28] sm:$0xff]
  %v23 = vld [vmem:[%s0 + $0x30] sm:$0xff]
  %v24 = vld [vmem:[%s0 + $0x38] sm:$0xff]
  %v25 = vld [vmem:[%s0 + $0x40] sm:$0xff]
  %v26 = vld [vmem:[%s0 + $0x48] sm:$0xff]
  %v27 = vld [vmem:[%s0 + $0x50] sm:$0xff]
  %v28 = vld [vmem:[%s0 + $0x58] sm:$0xff]
  %v29 = vld [vmem:[%s1] sm:$0xff]
  %v30 = vld [vmem:[%s1 + $0x8] sm:$0xff]
  %v31 = vld [vmem:[%s1 + $0x10] sm:$0xff]
  %v32 = vld [vmem:[%s1 + $0x18] sm:$0xff]
  %v33 = vld [vmem:[%s1 + $0x20] sm:$0xff]
  %v34 = vld [vmem:[%s1 + $0x28] sm:$0xff]
  %v35 = vld [vmem:[%s1 + $0x30] sm:$0xff]
  %v36 = vld [vmem:[%s1 + $0x38] sm:$0xff]
  %v37 = vld [vmem:[%s1 + $0x40] sm:$0xff]
  %v38 = vld [vmem:[%s1 + $0x48] sm:$0xff]
  %v39 = vld [vmem:[%s1 + $0x50] sm:$0xff]
  %v40 = vld [vmem:[%s1 + $0x58] sm:$0xff]
  %v41 = vld [vmem:[%s1 + $0x60] sm:$0xff]
  %v42 = vld [vmem:[%s1 + $0x68] sm:$0xff]
  %v43 = vld [vmem:[%s1 + $0x70] sm:$0xff]
  %v44 = vld [vmem:[%s1 + $0x78] sm:$0xff]
  %v45 = vld [vmem:[%s1 + $0x80] sm:$0xff]
  %v46 = vld [vmem:[%s1 + $0x88] sm:$0xff]
  %v47 = vld [vmem:[%s1 + $0x90] sm:$0xff]
  %v48 = vld [vmem:[%s1 + $0x98] sm:$0xff]
  %v49 = vld [vmem:[%s1 + $0xa0] sm:$0xff]
  %v50 = vld [vmem:[%s1 + $0xa8] sm:$0xff]
  %v51 = vld [vmem:[%s1 + $0xb0] sm:$0xff]
  %v52 = vld [vmem:[%s1 + $0xb8] sm:$0xff]
  %v53 = vld [vmem:[%s1 + $0xc0] sm:$0xff]
  %v54 = vld [vmem:[%s1 + $0xc8] sm:$0xff]
  %v55 = vld [vmem:[%s1 + $0xd0] sm:$0xff]
  %v56 = vld [vmem:[%s1 + $0xd8] sm:$0xff]
  %v57 = vld [vmem:[%s1 + $0xe0] sm:$0xff]
  %v58 = vld [vmem:[%s1 + $0xe8] sm:$0xff]
  %v59 = vld [vmem:[%s1 + $0xf0] sm:$0xff]
  %v60 = vld [vmem:[%s1 + $0xf8] sm:$0xff]
  %v61 = vld [vmem:[%s1 + $0x100] sm:$0xff]
  %v62 = vld [vmem:[%s1 + $0x108] sm:$0xff]
  %v63 = vld [vmem:[%s1 + $0x110] sm:$0xff]
  %v64 = vld [vmem:[%s1 + $0x118] sm:$0xff]
  %vm65 = vcmask 261120
  %v67 = vsel %vm65, %v19, 0
  %v70 = vsel %vm65, %v22, 0
  %v73 = vsel %vm65, %v25, 0
  %v76 = vsel %vm65, %v28, 0
  %78 = vmatprep.subr.mxu0 0.0
  %79 = vmatpush1.msra.mxu0 %v29
  %80 = vmatprep.subr.mxu0 0.0
  %81 = vmatpush1.msra.mxu0 %v30
  %82 = vmatprep.subr.mxu0 0.0
  %83 = vmatpush1.msra.mxu0 %v31
  %84 = vmatprep.subr.mxu0 0.0
  %85 = vmatpush1.msra.mxu0 %v32
  %86 = vmatprep.subr.mxu0 0.0
  %87 = vmatpush1.msra.mxu0 %v33
  %88 = vmatprep.subr.mxu0 0.0
  %89 = vmatpush1.msra.mxu0 %v34
  %90 = vmatprep.subr.mxu0 0.0
  %91 = vmatpush1.msra.mxu0 %v35
  %92 = vmatprep.subr.mxu0 0.0
  %93 = vmatpush1.msra.mxu0 %v36
  %94 = vmatprep.subr.mxu0 0.0
  %95 = vmatpush1.msra.mxu0 %v37
  %96 = vmatprep.subr.mxu0 0.0
  %97 = vmatpush1.msra.mxu0 %v38
  %98 = vmatprep.subr.mxu0 0.0
  %99 = vmatpush1.msra.mxu0 %v39
  %100 = vmatprep.subr.mxu0 0.0
  %101 = vmatpush1.msra.mxu0 %v40
  %102 = vmatprep.subr.mxu0 0.0
  %103 = vmatpush1.msra.mxu0 %v41
  %104 = vmatprep.subr.mxu0 0.0
  %105 = vmatpush1.msra.mxu0 %v42
  %106 = vmatprep.subr.mxu0 0.0
  %107 = vmatpush1.msra.mxu0 %v43
  %108 = vmatprep.subr.mxu0 0.0
  %109 = vmatpush1.msra.mxu0 %v44
  %110 = vmatprep.subr.mxu0 0.0
  %111 = vmatpush1.msra.mxu0 %v45
  %112 = vmatprep.subr.mxu0 0.0
  %113 = vmatpush1.msra.mxu0 %v46
  %114 = vmatprep.subr.mxu0 0.0
  %115 = vmatpush1.msra.mxu0 %v47
  %116 = vmatprep.subr.mxu0 0.0
  %117 = vmatpush1.msra.mxu0 %v48
  %118 = vmatprep.subr.mxu0 0.0
  %119 = vmatpush1.msra.mxu0 %v49
  %120 = vmatprep.subr.mxu0 0.0
  %121 = vmatpush1.msra.mxu0 %v50
  %122 = vmatprep.subr.mxu0 0.0
  %123 = vmatpush1.msra.mxu0 %v51
  %124 = vmatprep.subr.mxu0 0.0
  %125 = vmatpush1.msra.mxu0 %v52
  %126 = vmatprep.subr.mxu0 0.0
  %127 = vmatpush1.msra.mxu0 %v53
  %128 = vmatprep.subr.mxu0 0.0
  %129 = vmatpush1.msra.mxu0 %v54
  %130 = vmatprep.subr.mxu0 0.0
  %131 = vmatpush1.msra.mxu0 %v55
  %132 = vmatprep.subr.mxu0 0.0
  %133 = vmatpush1.msra.mxu0 %v56
  %134 = vmatprep.subr.mxu0 0.0
  %135 = vmatpush1.msra.mxu0 %v57
  %136 = vmatprep.subr.mxu0 0.0
  %137 = vmatpush1.msra.mxu0 %v58
  %138 = vmatprep.subr.mxu0 0.0
  %139 = vmatpush1.msra.mxu0 %v59
  %140 = vmatprep.subr.mxu0 0.0
  %141 = vmatpush1.msra.mxu0 %v60
  %142 = vmatprep.mubr.f32.mxu0 %v18
  %143 = vmatmul.mubr.f32.gmra.mrb[0].mxu0 %v17
  %v144 = vpop.f32.mrb[0].mxu0
  %v145 = vadd.f32 0.0, %v144
  %v146 = vpop.f32.mrb[0].mxu0
  %147 = vmatprep.mubr.f32.mxu0 %v21
  %148 = vmatmul.mubr.f32.gmra.mrb[0].mxu0 %v20
  %v149 = vpop.f32.mrb[0].mxu0
  %v150 = vadd.f32 0.0, %v149
  %v151 = vpop.f32.mrb[0].mxu0
  %152 = vmatprep.mubr.f32.mxu0 %v24
  %153 = vmatmul.mubr.f32.gmra.mrb[0].mxu0 %v23
  %v154 = vpop.f32.mrb[0].mxu0
  %v155 = vadd.f32 0.0, %v154
  %v156 = vpop.f32.mrb[0].mxu0
  %157 = vmatprep.mubr.f32.mxu0 %v27
  %158 = vmatmul.mubr.f32.gmra.mrb[0].mxu0 %v26
  %v159 = vpop.f32.mrb[0].mxu0
  %v160 = vadd.f32 0.0, %v159
  %v161 = vpop.f32.mrb[0].mxu0
  %162 = vdwg.mxu0
  %163 = vmatprep.subr.mxu0 0.0
  %164 = vmatpush1.msra.mxu0 %v61
  %165 = vmatprep.subr.mxu0 0.0
  %166 = vmatpush1.msra.mxu0 %v62
  %167 = vmatprep.subr.mxu0 0.0
  %168 = vmatpush1.msra.mxu0 %v63
  %169 = vmatprep.subr.mxu0 0.0
  %170 = vmatpush1.msra.mxu0 %v64
  %171 = vmatprep.subr.mxu0 0.0
  %172 = vmatpush1.msra.mxu0 0.0
  %173 = vmatprep.subr.mxu0 0.0
  %174 = vmatpush1.msra.mxu0 0.0
  %175 = vmatprep.subr.mxu0 0.0
  %176 = vmatpush1.msra.mxu0 0.0
  %177 = vmatprep.subr.mxu0 0.0
  %178 = vmatpush1.msra.mxu0 0.0
  %179 = vmatprep.subr.mxu0 0.0
  %180 = vmatpush1.msra.mxu0 0.0
  %181 = vmatprep.subr.mxu0 0.0
  %182 = vmatpush1.msra.mxu0 0.0
  %183 = vmatprep.subr.mxu0 0.0
  %184 = vmatpush1.msra.mxu0 0.0
  %185 = vmatprep.subr.mxu0 0.0
  %186 = vmatpush1.msra.mxu0 0.0
  %187 = vmatprep.subr.mxu0 0.0
  %188 = vmatpush1.msra.mxu0 0.0
  %189 = vmatprep.subr.mxu0 0.0
  %190 = vmatpush1.msra.mxu0 0.0
  %191 = vmatprep.subr.mxu0 0.0
  %192 = vmatpush1.msra.mxu0 0.0
  %193 = vmatprep.subr.mxu0 0.0
  %194 = vmatpush1.msra.mxu0 0.0
  %195 = vmatprep.subr.mxu0 0.0
  %196 = vmatpush1.msra.mxu0 0.0
  %197 = vmatprep.subr.mxu0 0.0
  %198 = vmatpush1.msra.mxu0 0.0
  %199 = vmatprep.subr.mxu0 0.0
  %200 = vmatpush1.msra.mxu0 0.0
  %201 = vmatprep.subr.mxu0 0.0
  %202 = vmatpush1.msra.mxu0 0.0
  %203 = vmatprep.subr.mxu0 0.0
  %204 = vmatpush1.msra.mxu0 0.0
  %205 = vmatprep.subr.mxu0 0.0
  %206 = vmatpush1.msra.mxu0 0.0
  %207 = vmatprep.subr.mxu0 0.0
  %208 = vmatpush1.msra.mxu0 0.0
  %209 = vmatprep.subr.mxu0 0.0
  %210 = vmatpush1.msra.mxu0 0.0
  %211 = vmatprep.subr.mxu0 0.0
  %212 = vmatpush1.msra.mxu0 0.0
  %213 = vmatprep.subr.mxu0 0.0
  %214 = vmatpush1.msra.mxu0 0.0
  %215 = vmatprep.subr.mxu0 0.0
  %216 = vmatpush1.msra.mxu0 0.0
  %217 = vmatprep.subr.mxu0 0.0
  %218 = vmatpush1.msra.mxu0 0.0
  %219 = vmatprep.subr.mxu0 0.0
  %220 = vmatpush1.msra.mxu0 0.0
  %221 = vmatprep.subr.mxu0 0.0
  %222 = vmatpush1.msra.mxu0 0.0
  %223 = vmatprep.subr.mxu0 0.0
  %224 = vmatpush1.msra.mxu0 0.0
  %225 = vmatprep.subr.mxu0 0.0
  %226 = vmatpush1.msra.mxu0 0.0
  %227 = vmatprep.mubr.f32.mxu0 0.0
  %228 = vmatmul.mubr.f32.gmra.mrb[0].mxu0 %v67
  %v229 = vpop.f32.mrb[0].mxu0
  %v230 = vadd.f32 %v145, %v229
  %v231 = vpop.f32.mrb[0].mxu0
  %232 = vmatprep.mubr.f32.mxu0 0.0
  %233 = vmatmul.mubr.f32.gmra.mrb[0].mxu0 %v70
  %v234 = vpop.f32.mrb[0].mxu0
  %v235 = vadd.f32 %v150, %v234
  %v236 = vpop.f32.mrb[0].mxu0
  %237 = vmatprep.mubr.f32.mxu0 0.0
  %238 = vmatmul.mubr.f32.gmra.mrb[0].mxu0 %v73
  %v239 = vpop.f32.mrb[0].mxu0
  %v240 = vadd.f32 %v155, %v239
  %v241 = vpop.f32.mrb[0].mxu0
  %242 = vmatprep.mubr.f32.mxu0 0.0
  %243 = vmatmul.mubr.f32.gmra.mrb[0].mxu0 %v76
  %v244 = vpop.f32.mrb[0].mxu0
  %v245 = vadd.f32 %v160, %v244
  %v246 = vpop.f32.mrb[0].mxu0
  %247 = vdwg.mxu0
  %v248 = vld [vmem:[%s2] sm:$0x1]
  %v250 = vlaneseq
  %v251 = vshrl.u32 %v250, 7
  %v252 = vsub.s32 0, %v251
  %v253 = vrot.slane %v248, %v252
  %v255 = vmul.f32 %v230, %v253
  %v256 = vmul.f32 %v235, %v253
  %v257 = vmul.f32 %v240, %v253
  %v258 = vmul.f32 %v245, %v253
  %v259 = vld [vmem:[%s3] sm:$0x1]
  %v261 = vlaneseq
  %v262 = vshrl.u32 %v261, 7
  %v263 = vsub.s32 0, %v262
  %v264 = vrot.slane %v259, %v263
  %v266 = vadd.f32 %v255, %v264
  %v267 = vadd.f32 %v256, %v264
  %v268 = vadd.f32 %v257, %v264
  %v269 = vadd.f32 %v258, %v264
  %v270 = vmax.f32 %v266, 0.0
  %v271 = vmax.f32 %v267, 0.0
  %v272 = vmax.f32 %v268, 0.0
  %v273 = vmax.f32 %v269, 0.0
  %274 = vst [vmem:[%s4] sm:$0xff] %v270
  %275 = vst [vmem:[%s4 + $0x8] sm:$0xff] %v271
  %276 = vst [vmem:[%s4 + $0x10] sm:$0xff] %v272
  %277 = vst [vmem:[%s4 + $0x18] sm:$0xff] %v273
  // Predicated region
  $region18: #{nb101_wrapper_forward.49} parent=0 // pred_check
    _
  $region19: #{nb101_wrapper_forward.49} parent=0 // pred_check_branch
    %279 = sbr.rel (0) target = $region21
  $region20: #{nb101_wrapper_forward.49} parent=0 // pred_region
    _
  $region21: #{nb101_wrapper_forward.49} parent=0 // pred_fallthru
    _
  // Predicated region
  $region22: #{nb101_wrapper_forward.49} parent=0 // pred_check
    _
  $region23: #{nb101_wrapper_forward.49} parent=0 // pred_check_branch
    %281 = sbr.rel (0) target = $region25
  $region24: #{nb101_wrapper_forward.49} parent=0 // pred_region
    _
  $region25: #{nb101_wrapper_forward.49} parent=0 // pred_fallthru
    _

// kernel: nb101_wrapper_forward.53
$region0: #{nb101_wrapper_forward.53}
  #allocation0 [shape = 'u32[]', space=smem, size = 0x4, offset = 0x4, fixed_abs, tag = 'smem constant byte address 0x4 - core index']
  #allocation1 [shape = 'u32[144,128]{1,0:T(1,128)}', space=vmem, size = 0x12000, scoped, tag = 'internal scratch']
  %s0 = inlined_call_operand.vmem [shape: f32[32,128], index: 0, kind: input, shape index: {}]
  %s1 = inlined_call_operand.vmem [shape: f32[128,128], index: 1, kind: input, shape index: {}]
  %s2 = inlined_call_operand.vmem [shape: f32[1,128], index: 2, kind: input, shape index: {}]
  %s3 = inlined_call_operand.vmem [shape: f32[1,128], index: 3, kind: input, shape index: {}]
  %s4 = inlined_call_operand.vmem [shape: f32[32,128], index: 4, kind: output, shape index: {}]
  %s5 = sld [smem:[#allocation0]]
  $region26: #{nb101_wrapper_forward.53} parent=0
    _
  %s7 = ssub.s32 1, %s5
  %s8 = scalar_select 0, %s7, %s5
  // Predicated region
  $region2: #{nb101_wrapper_forward.53} parent=0 // pred_check
    _
  $region3: #{nb101_wrapper_forward.53} parent=0 // pred_check_branch
    %10 = sbr.rel (0) target = $region5
  $region4: #{nb101_wrapper_forward.53} parent=0 // pred_region
    _
  $region5: #{nb101_wrapper_forward.53} parent=0 // pred_fallthru
    _
  // Predicated region
  $region6: #{nb101_wrapper_forward.53} parent=0 // pred_check
    _
  $region7: #{nb101_wrapper_forward.53} parent=0 // pred_check_branch
    %12 = sbr.rel (0) target = $region9
  $region8: #{nb101_wrapper_forward.53} parent=0 // pred_region
    _
  $region9: #{nb101_wrapper_forward.53} parent=0 // pred_fallthru
    _
  // Predicated region
  $region10: #{nb101_wrapper_forward.53} parent=0 // pred_check
    _
  $region11: #{nb101_wrapper_forward.53} parent=0 // pred_check_branch
    %14 = sbr.rel (0) target = $region13
  $region12: #{nb101_wrapper_forward.53} parent=0 // pred_region
    _
  $region13: #{nb101_wrapper_forward.53} parent=0 // pred_fallthru
    _
  // Predicated region
  $region14: #{nb101_wrapper_forward.53} parent=0 // pred_check
    _
  $region15: #{nb101_wrapper_forward.53} parent=0 // pred_check_branch
    %16 = sbr.rel (0) target = $region17
  $region16: #{nb101_wrapper_forward.53} parent=0 // pred_region
    _
  $region17: #{nb101_wrapper_forward.53} parent=0 // pred_fallthru
    _
  %v17 = vld [vmem:[%s0] sm:$0xff]
  %v18 = vld [vmem:[%s0 + $0x8] sm:$0xff]
  %v19 = vld [vmem:[%s0 + $0x10] sm:$0xff]
  %v20 = vld [vmem:[%s0 + $0x18] sm:$0xff]
  %v21 = vld [vmem:[%s1] sm:$0xff]
  %v22 = vld [vmem:[%s1 + $0x8] sm:$0xff]
  %v23 = vld [vmem:[%s1 + $0x10] sm:$0xff]
  %v24 = vld [vmem:[%s1 + $0x18] sm:$0xff]
  %v25 = vld [vmem:[%s1 + $0x20] sm:$0xff]
  %v26 = vld [vmem:[%s1 + $0x28] sm:$0xff]
  %v27 = vld [vmem:[%s1 + $0x30] sm:$0xff]
  %v28 = vld [vmem:[%s1 + $0x38] sm:$0xff]
  %v29 = vld [vmem:[%s1 + $0x40] sm:$0xff]
  %v30 = vld [vmem:[%s1 + $0x48] sm:$0xff]
  %v31 = vld [vmem:[%s1 + $0x50] sm:$0xff]
  %v32 = vld [vmem:[%s1 + $0x58] sm:$0xff]
  %v33 = vld [vmem:[%s1 + $0x60] sm:$0xff]
  %v34 = vld [vmem:[%s1 + $0x68] sm:$0xff]
  %v35 = vld [vmem:[%s1 + $0x70] sm:$0xff]
  %v36 = vld [vmem:[%s1 + $0x78] sm:$0xff]
  %37 = vmatprep.subr.mxu0 0.0
  %38 = vmatpush1.msra.mxu0 %v21
  %39 = vmatprep.subr.mxu0 0.0
  %40 = vmatpush1.msra.mxu0 %v22
  %41 = vmatprep.subr.mxu0 0.0
  %42 = vmatpush1.msra.mxu0 %v23
  %43 = vmatprep.subr.mxu0 0.0
  %44 = vmatpush1.msra.mxu0 %v24
  %45 = vmatprep.subr.mxu0 0.0
  %46 = vmatpush1.msra.mxu0 %v25
  %47 = vmatprep.subr.mxu0 0.0
  %48 = vmatpush1.msra.mxu0 %v26
  %49 = vmatprep.subr.mxu0 0.0
  %50 = vmatpush1.msra.mxu0 %v27
  %51 = vmatprep.subr.mxu0 0.0
  %52 = vmatpush1.msra.mxu0 %v28
  %53 = vmatprep.subr.mxu0 0.0
  %54 = vmatpush1.msra.mxu0 %v29
  %55 = vmatprep.subr.mxu0 0.0
  %56 = vmatpush1.msra.mxu0 %v30
  %57 = vmatprep.subr.mxu0 0.0
  %58 = vmatpush1.msra.mxu0 %v31
  %59 = vmatprep.subr.mxu0 0.0
  %60 = vmatpush1.msra.mxu0 %v32
  %61 = vmatprep.subr.mxu0 0.0
  %62 = vmatpush1.msra.mxu0 %v33
  %63 = vmatprep.subr.mxu0 0.0
  %64 = vmatpush1.msra.mxu0 %v34
  %65 = vmatprep.subr.mxu0 0.0
  %66 = vmatpush1.msra.mxu0 %v35
  %67 = vmatprep.subr.mxu0 0.0
  %68 = vmatpush1.msra.mxu0 %v36
  %69 = vmatprep.subr.mxu0 0.0
  %70 = vmatpush1.msra.mxu0 0.0
  %71 = vmatprep.subr.mxu0 0.0
  %72 = vmatpush1.msra.mxu0 0.0
  %73 = vmatprep.subr.mxu0 0.0
  %74 = vmatpush1.msra.mxu0 0.0
  %75 = vmatprep.subr.mxu0 0.0
  %76 = vmatpush1.msra.mxu0 0.0
  %77 = vmatprep.subr.mxu0 0.0
  %78 = vmatpush1.msra.mxu0 0.0
  %79 = vmatprep.subr.mxu0 0.0
  %80 = vmatpush1.msra.mxu0 0.0
  %81 = vmatprep.subr.mxu0 0.0
  %82 = vmatpush1.msra.mxu0 0.0
  %83 = vmatprep.subr.mxu0 0.0
  %84 = vmatpush1.msra.mxu0 0.0
  %85 = vmatprep.subr.mxu0 0.0
  %86 = vmatpush1.msra.mxu0 0.0
  %87 = vmatprep.subr.mxu0 0.0
  %88 = vmatpush1.msra.mxu0 0.0
  %89 = vmatprep.subr.mxu0 0.0
  %90 = vmatpush1.msra.mxu0 0.0
  %91 = vmatprep.subr.mxu0 0.0
  %92 = vmatpush1.msra.mxu0 0.0
  %93 = vmatprep.subr.mxu0 0.0
  %94 = vmatpush1.msra.mxu0 0.0
  %95 = vmatprep.subr.mxu0 0.0
  %96 = vmatpush1.msra.mxu0 0.0
  %97 = vmatprep.subr.mxu0 0.0
  %98 = vmatpush1.msra.mxu0 0.0
  %99 = vmatprep.subr.mxu0 0.0
  %100 = vmatpush1.msra.mxu0 0.0
  %101 = vmatprep.mubr.f32.mxu0 0.0
  %102 = vmatmul.mubr.f32.gmra.mrb[0].mxu0 %v17
  %v103 = vpop.f32.mrb[0].mxu0
  %v104 = vadd.f32 0.0, %v103
  %v105 = vpop.f32.mrb[0].mxu0
  %106 = vmatprep.mubr.f32.mxu0 0.0
  %107 = vmatmul.mubr.f32.gmra.mrb[0].mxu0 %v18
  %v108 = vpop.f32.mrb[0].mxu0
  %v109 = vadd.f32 0.0, %v108
  %v110 = vpop.f32.mrb[0].mxu0
  %111 = vmatprep.mubr.f32.mxu0 0.0
  %112 = vmatmul.mubr.f32.gmra.mrb[0].mxu0 %v19
  %v113 = vpop.f32.mrb[0].mxu0
  %v114 = vadd.f32 0.0, %v113
  %v115 = vpop.f32.mrb[0].mxu0
  %116 = vmatprep.mubr.f32.mxu0 0.0
  %117 = vmatmul.mubr.f32.gmra.mrb[0].mxu0 %v20
  %v118 = vpop.f32.mrb[0].mxu0
  %v119 = vadd.f32 0.0, %v118
  %v120 = vpop.f32.mrb[0].mxu0
  %121 = vdwg.mxu0
  %v122 = vld [vmem:[%s2] sm:$0x1]
  %v124 = vlaneseq
  %v125 = vshrl.u32 %v124, 7
  %v126 = vsub.s32 0, %v125
  %v127 = vrot.slane %v122, %v126
  %v129 = vmul.f32 %v104, %v127
  %v130 = vmul.f32 %v109, %v127
  %v131 = vmul.f32 %v114, %v127
  %v132 = vmul.f32 %v119, %v127
  %v133 = vld [vmem:[%s3] sm:$0x1]
  %v135 = vlaneseq
  %v136 = vshrl.u32 %v135, 7
  %v137 = vsub.s32 0, %v136
  %v138 = vrot.slane %v133, %v137
  %v140 = vadd.f32 %v129, %v138
  %v141 = vadd.f32 %v130, %v138
  %v142 = vadd.f32 %v131, %v138
  %v143 = vadd.f32 %v132, %v138
  %144 = vst [vmem:[%s4] sm:$0xff] %v140
  %145 = vst [vmem:[%s4 + $0x8] sm:$0xff] %v141
  %146 = vst [vmem:[%s4 + $0x10] sm:$0xff] %v142
  %147 = vst [vmem:[%s4 + $0x18] sm:$0xff] %v143
  // Predicated region
  $region18: #{nb101_wrapper_forward.53} parent=0 // pred_check
    _
  $region19: #{nb101_wrapper_forward.53} parent=0 // pred_check_branch
    %149 = sbr.rel (0) target = $region21
  $region20: #{nb101_wrapper_forward.53} parent=0 // pred_region
    _
  $region21: #{nb101_wrapper_forward.53} parent=0 // pred_fallthru
    _
  // Predicated region
  $region22: #{nb101_wrapper_forward.53} parent=0 // pred_check
    _
  $region23: #{nb101_wrapper_forward.53} parent=0 // pred_check_branch
    %151 = sbr.rel (0) target = $region25
  $region24: #{nb101_wrapper_forward.53} parent=0 // pred_region
    _
  $region25: #{nb101_wrapper_forward.53} parent=0 // pred_fallthru
    _

// kernel: nb101_wrapper_forward.44
$region0: #{nb101_wrapper_forward.44}
  #allocation0 [shape = 'u32[]', space=smem, size = 0x4, offset = 0x4, fixed_abs, tag = 'smem constant byte address 0x4 - core index']
  #allocation1 [shape = 'u32[144,128]{1,0:T(1,128)}', space=vmem, size = 0x12000, scoped, tag = 'internal scratch']
  %s0 = inlined_call_operand.vmem [shape: f32[128,128], index: 0, kind: input, shape index: {}]
  %s1 = inlined_call_operand.vmem [shape: f32[128,128], index: 1, kind: input, shape index: {}]
  %s2 = inlined_call_operand.vmem [shape: f32[1,128], index: 2, kind: input, shape index: {}]
  %s3 = inlined_call_operand.vmem [shape: f32[1,128], index: 3, kind: input, shape index: {}]
  %s4 = inlined_call_operand.vmem [shape: f32[128,128], index: 4, kind: output, shape index: {}]
  %s5 = sld [smem:[#allocation0]]
  $region26: #{nb101_wrapper_forward.44} parent=0
    _
  %s7 = ssub.s32 1, %s5
  %s8 = scalar_select 0, %s7, %s5
  // Predicated region
  $region2: #{nb101_wrapper_forward.44} parent=0 // pred_check
    _
  $region3: #{nb101_wrapper_forward.44} parent=0 // pred_check_branch
    %10 = sbr.rel (0) target = $region5
  $region4: #{nb101_wrapper_forward.44} parent=0 // pred_region
    _
  $region5: #{nb101_wrapper_forward.44} parent=0 // pred_fallthru
    _
  // Predicated region
  $region6: #{nb101_wrapper_forward.44} parent=0 // pred_check
    _
  $region7: #{nb101_wrapper_forward.44} parent=0 // pred_check_branch
    %12 = sbr.rel (0) target = $region9
  $region8: #{nb101_wrapper_forward.44} parent=0 // pred_region
    _
  $region9: #{nb101_wrapper_forward.44} parent=0 // pred_fallthru
    _
  // Predicated region
  $region10: #{nb101_wrapper_forward.44} parent=0 // pred_check
    _
  $region11: #{nb101_wrapper_forward.44} parent=0 // pred_check_branch
    %14 = sbr.rel (0) target = $region13
  $region12: #{nb101_wrapper_forward.44} parent=0 // pred_region
    _
  $region13: #{nb101_wrapper_forward.44} parent=0 // pred_fallthru
    _
  // Predicated region
  $region14: #{nb101_wrapper_forward.44} parent=0 // pred_check
    _
  $region15: #{nb101_wrapper_forward.44} parent=0 // pred_check_branch
    %16 = sbr.rel (0) target = $region17
  $region16: #{nb101_wrapper_forward.44} parent=0 // pred_region
    _
  $region17: #{nb101_wrapper_forward.44} parent=0 // pred_fallthru
    _
  %v17 = vld [vmem:[%s0] sm:$0xff]
  %v18 = vld [vmem:[%s0 + $0x8] sm:$0xff]
  %v19 = vld [vmem:[%s0 + $0x10] sm:$0xff]
  %v20 = vld [vmem:[%s0 + $0x18] sm:$0xff]
  %v21 = vld [vmem:[%s0 + $0x20] sm:$0xff]
  %v22 = vld [vmem:[%s0 + $0x28] sm:$0xff]
  %v23 = vld [vmem:[%s0 + $0x30] sm:$0xff]
  %v24 = vld [vmem:[%s0 + $0x38] sm:$0xff]
  %v25 = vld [vmem:[%s0 + $0x40] sm:$0xff]
  %v26 = vld [vmem:[%s0 + $0x48] sm:$0xff]
  %v27 = vld [vmem:[%s0 + $0x50] sm:$0xff]
  %v28 = vld [vmem:[%s0 + $0x58] sm:$0xff]
  %v29 = vld [vmem:[%s0 + $0x60] sm:$0xff]
  %v30 = vld [vmem:[%s0 + $0x68] sm:$0xff]
  %v31 = vld [vmem:[%s0 + $0x70] sm:$0xff]
  %v32 = vld [vmem:[%s0 + $0x78] sm:$0xff]
  %v33 = vld [vmem:[%s1] sm:$0xff]
  %v34 = vld [vmem:[%s1 + $0x8] sm:$0xff]
  %v35 = vld [vmem:[%s1 + $0x10] sm:$0xff]
  %v36 = vld [vmem:[%s1 + $0x18] sm:$0xff]
  %v37 = vld [vmem:[%s1 + $0x20] sm:$0xff]
  %v38 = vld [vmem:[%s1 + $0x28] sm:$0xff]
  %v39 = vld [vmem:[%s1 + $0x30] sm:$0xff]
  %v40 = vld [vmem:[%s1 + $0x38] sm:$0xff]
  %v41 = vld [vmem:[%s1 + $0x40] sm:$0xff]
  %v42 = vld [vmem:[%s1 + $0x48] sm:$0xff]
  %v43 = vld [vmem:[%s1 + $0x50] sm:$0xff]
  %v44 = vld [vmem:[%s1 + $0x58] sm:$0xff]
  %v45 = vld [vmem:[%s1 + $0x60] sm:$0xff]
  %v46 = vld [vmem:[%s1 + $0x68] sm:$0xff]
  %v47 = vld [vmem:[%s1 + $0x70] sm:$0xff]
  %v48 = vld [vmem:[%s1 + $0x78] sm:$0xff]
  %49 = vmatprep.subr.mxu0 0.0
  %50 = vmatpush1.msra.mxu0 %v33
  %51 = vmatprep.subr.mxu0 0.0
  %52 = vmatpush1.msra.mxu0 %v34
  %53 = vmatprep.subr.mxu0 0.0
  %54 = vmatpush1.msra.mxu0 %v35
  %55 = vmatprep.subr.mxu0 0.0
  %56 = vmatpush1.msra.mxu0 %v36
  %57 = vmatprep.subr.mxu0 0.0
  %58 = vmatpush1.msra.mxu0 %v37
  %59 = vmatprep.subr.mxu0 0.0
  %60 = vmatpush1.msra.mxu0 %v38
  %61 = vmatprep.subr.mxu0 0.0
  %62 = vmatpush1.msra.mxu0 %v39
  %63 = vmatprep.subr.mxu0 0.0
  %64 = vmatpush1.msra.mxu0 %v40
  %65 = vmatprep.subr.mxu0 0.0
  %66 = vmatpush1.msra.mxu0 %v41
  %67 = vmatprep.subr.mxu0 0.0
  %68 = vmatpush1.msra.mxu0 %v42
  %69 = vmatprep.subr.mxu0 0.0
  %70 = vmatpush1.msra.mxu0 %v43
  %71 = vmatprep.subr.mxu0 0.0
  %72 = vmatpush1.msra.mxu0 %v44
  %73 = vmatprep.subr.mxu0 0.0
  %74 = vmatpush1.msra.mxu0 %v45
  %75 = vmatprep.subr.mxu0 0.0
  %76 = vmatpush1.msra.mxu0 %v46
  %77 = vmatprep.subr.mxu0 0.0
  %78 = vmatpush1.msra.mxu0 %v47
  %79 = vmatprep.subr.mxu0 0.0
  %80 = vmatpush1.msra.mxu0 %v48
  %81 = vmatprep.subr.mxu0 0.0
  %82 = vmatpush1.msra.mxu0 0.0
  %83 = vmatprep.subr.mxu0 0.0
  %84 = vmatpush1.msra.mxu0 0.0
  %85 = vmatprep.subr.mxu0 0.0
  %86 = vmatpush1.msra.mxu0 0.0
  %87 = vmatprep.subr.mxu0 0.0
  %88 = vmatpush1.msra.mxu0 0.0
  %89 = vmatprep.subr.mxu0 0.0
  %90 = vmatpush1.msra.mxu0 0.0
  %91 = vmatprep.subr.mxu0 0.0
  %92 = vmatpush1.msra.mxu0 0.0
  %93 = vmatprep.subr.mxu0 0.0
  %94 = vmatpush1.msra.mxu0 0.0
  %95 = vmatprep.subr.mxu0 0.0
  %96 = vmatpush1.msra.mxu0 0.0
  %97 = vmatprep.subr.mxu0 0.0
  %98 = vmatpush1.msra.mxu0 0.0
  %99 = vmatprep.subr.mxu0 0.0
  %100 = vmatpush1.msra.mxu0 0.0
  %101 = vmatprep.subr.mxu0 0.0
  %102 = vmatpush1.msra.mxu0 0.0
  %103 = vmatprep.subr.mxu0 0.0
  %104 = vmatpush1.msra.mxu0 0.0
  %105 = vmatprep.subr.mxu0 0.0
  %106 = vmatpush1.msra.mxu0 0.0
  %107 = vmatprep.subr.mxu0 0.0
  %108 = vmatpush1.msra.mxu0 0.0
  %109 = vmatprep.subr.mxu0 0.0
  %110 = vmatpush1.msra.mxu0 0.0
  %111 = vmatprep.subr.mxu0 0.0
  %112 = vmatpush1.msra.mxu0 0.0
  %113 = vmatprep.mubr.f32.mxu0 0.0
  %114 = vmatmul.mubr.f32.gmra.mrb[0].mxu0 %v17
  %v115 = vpop.f32.mrb[0].mxu0
  %v116 = vadd.f32 0.0, %v115
  %v117 = vpop.f32.mrb[0].mxu0
  %118 = vmatprep.mubr.f32.mxu0 0.0
  %119 = vmatmul.mubr.f32.gmra.mrb[0].mxu0 %v18
  %v120 = vpop.f32.mrb[0].mxu0
  %v121 = vadd.f32 0.0, %v120
  %v122 = vpop.f32.mrb[0].mxu0
  %123 = vmatprep.mubr.f32.mxu0 0.0
  %124 = vmatmul.mubr.f32.gmra.mrb[0].mxu0 %v19
  %v125 = vpop.f32.mrb[0].mxu0
  %v126 = vadd.f32 0.0, %v125
  %v127 = vpop.f32.mrb[0].mxu0
  %128 = vmatprep.mubr.f32.mxu0 0.0
  %129 = vmatmul.mubr.f32.gmra.mrb[0].mxu0 %v20
  %v130 = vpop.f32.mrb[0].mxu0
  %v131 = vadd.f32 0.0, %v130
  %v132 = vpop.f32.mrb[0].mxu0
  %133 = vmatprep.mubr.f32.mxu0 0.0
  %134 = vmatmul.mubr.f32.gmra.mrb[0].mxu0 %v21
  %v135 = vpop.f32.mrb[0].mxu0
  %v136 = vadd.f32 0.0, %v135
  %v137 = vpop.f32.mrb[0].mxu0
  %138 = vmatprep.mubr.f32.mxu0 0.0
  %139 = vmatmul.mubr.f32.gmra.mrb[0].mxu0 %v22
  %v140 = vpop.f32.mrb[0].mxu0
  %v141 = vadd.f32 0.0, %v140
  %v142 = vpop.f32.mrb[0].mxu0
  %143 = vmatprep.mubr.f32.mxu0 0.0
  %144 = vmatmul.mubr.f32.gmra.mrb[0].mxu0 %v23
  %v145 = vpop.f32.mrb[0].mxu0
  %v146 = vadd.f32 0.0, %v145
  %v147 = vpop.f32.mrb[0].mxu0
  %148 = vmatprep.mubr.f32.mxu0 0.0
  %149 = vmatmul.mubr.f32.gmra.mrb[0].mxu0 %v24
  %v150 = vpop.f32.mrb[0].mxu0
  %v151 = vadd.f32 0.0, %v150
  %v152 = vpop.f32.mrb[0].mxu0
  %153 = vmatprep.mubr.f32.mxu0 0.0
  %154 = vmatmul.mubr.f32.gmra.mrb[0].mxu0 %v25
  %v155 = vpop.f32.mrb[0].mxu0
  %v156 = vadd.f32 0.0, %v155
  %v157 = vpop.f32.mrb[0].mxu0
  %158 = vmatprep.mubr.f32.mxu0 0.0
  %159 = vmatmul.mubr.f32.gmra.mrb[0].mxu0 %v26
  %v160 = vpop.f32.mrb[0].mxu0
  %v161 = vadd.f32 0.0, %v160
  %v162 = vpop.f32.mrb[0].mxu0
  %163 = vmatprep.mubr.f32.mxu0 0.0
  %164 = vmatmul.mubr.f32.gmra.mrb[0].mxu0 %v27
  %v165 = vpop.f32.mrb[0].mxu0
  %v166 = vadd.f32 0.0, %v165
  %v167 = vpop.f32.mrb[0].mxu0
  %168 = vmatprep.mubr.f32.mxu0 0.0
  %169 = vmatmul.mubr.f32.gmra.mrb[0].mxu0 %v28
  %v170 = vpop.f32.mrb[0].mxu0
  %v171 = vadd.f32 0.0, %v170
  %v172 = vpop.f32.mrb[0].mxu0
  %173 = vmatprep.mubr.f32.mxu0 0.0
  %174 = vmatmul.mubr.f32.gmra.mrb[0].mxu0 %v29
  %v175 = vpop.f32.mrb[0].mxu0
  %v176 = vadd.f32 0.0, %v175
  %v177 = vpop.f32.mrb[0].mxu0
  %178 = vmatprep.mubr.f32.mxu0 0.0
  %179 = vmatmul.mubr.f32.gmra.mrb[0].mxu0 %v30
  %v180 = vpop.f32.mrb[0].mxu0
  %v181 = vadd.f32 0.0, %v180
  %v182 = vpop.f32.mrb[0].mxu0
  %183 = vmatprep.mubr.f32.mxu0 0.0
  %184 = vmatmul.mubr.f32.gmra.mrb[0].mxu0 %v31
  %v185 = vpop.f32.mrb[0].mxu0
  %v186 = vadd.f32 0.0, %v185
  %v187 = vpop.f32.mrb[0].mxu0
  %188 = vmatprep.mubr.f32.mxu0 0.0
  %189 = vmatmul.mubr.f32.gmra.mrb[0].mxu0 %v32
  %v190 = vpop.f32.mrb[0].mxu0
  %v191 = vadd.f32 0.0, %v190
  %v192 = vpop.f32.mrb[0].mxu0
  %193 = vdwg.mxu0
  %v194 = vld [vmem:[%s2] sm:$0x1]
  %v196 = vlaneseq
  %v197 = vshrl.u32 %v196, 7
  %v198 = vsub.s32 0, %v197
  %v199 = vrot.slane %v194, %v198
  %v201 = vmul.f32 %v116, %v199
  %v202 = vmul.f32 %v121, %v199
  %v203 = vmul.f32 %v126, %v199
  %v204 = vmul.f32 %v131, %v199
  %v205 = vmul.f32 %v136, %v199
  %v206 = vmul.f32 %v141, %v199
  %v207 = vmul.f32 %v146, %v199
  %v208 = vmul.f32 %v151, %v199
  %v209 = vmul.f32 %v156, %v199
  %v210 = vmul.f32 %v161, %v199
  %v211 = vmul.f32 %v166, %v199
  %v212 = vmul.f32 %v171, %v199
  %v213 = vmul.f32 %v176, %v199
  %v214 = vmul.f32 %v181, %v199
  %v215 = vmul.f32 %v186, %v199
  %v216 = vmul.f32 %v191, %v199
  %v217 = vld [vmem:[%s3] sm:$0x1]
  %v219 = vlaneseq
  %v220 = vshrl.u32 %v219, 7
  %v221 = vsub.s32 0, %v220
  %v222 = vrot.slane %v217, %v221
  %v224 = vadd.f32 %v201, %v222
  %v225 = vadd.f32 %v202, %v222
  %v226 = vadd.f32 %v203, %v222
  %v227 = vadd.f32 %v204, %v222
  %v228 = vadd.f32 %v205, %v222
  %v229 = vadd.f32 %v206, %v222
  %v230 = vadd.f32 %v207, %v222
  %v231 = vadd.f32 %v208, %v222
  %v232 = vadd.f32 %v209, %v222
  %v233 = vadd.f32 %v210, %v222
  %v234 = vadd.f32 %v211, %v222
  %v235 = vadd.f32 %v212, %v222
  %v236 = vadd.f32 %v213, %v222
  %v237 = vadd.f32 %v214, %v222
  %v238 = vadd.f32 %v215, %v222
  %v239 = vadd.f32 %v216, %v222
  %240 = vst [vmem:[%s4] sm:$0xff] %v224
  %241 = vst [vmem:[%s4 + $0x8] sm:$0xff] %v225
  %242 = vst [vmem:[%s4 + $0x10] sm:$0xff] %v226
  %243 = vst [vmem:[%s4 + $0x18] sm:$0xff] %v227
  %244 = vst [vmem:[%s4 + $0x20] sm:$0xff] %v228
  %245 = vst [vmem:[%s4 + $0x28] sm:$0xff] %v229
  %246 = vst [vmem:[%s4 + $0x30] sm:$0xff] %v230
  %247 = vst [vmem:[%s4 + $0x38] sm:$0xff] %v231
  %248 = vst [vmem:[%s4 + $0x40] sm:$0xff] %v232
  %249 = vst [vmem:[%s4 + $0x48] sm:$0xff] %v233
  %250 = vst [vmem:[%s4 + $0x50] sm:$0xff] %v234
  %251 = vst [vmem:[%s4 + $0x58] sm:$0xff] %v235
  %252 = vst [vmem:[%s4 + $0x60] sm:$0xff] %v236
  %253 = vst [vmem:[%s4 + $0x68] sm:$0xff] %v237
  %254 = vst [vmem:[%s4 + $0x70] sm:$0xff] %v238
  %255 = vst [vmem:[%s4 + $0x78] sm:$0xff] %v239
  // Predicated region
  $region18: #{nb101_wrapper_forward.44} parent=0 // pred_check
    _
  $region19: #{nb101_wrapper_forward.44} parent=0 // pred_check_branch
    %257 = sbr.rel (0) target = $region21
  $region20: #{nb101_wrapper_forward.44} parent=0 // pred_region
    _
  $region21: #{nb101_wrapper_forward.44} parent=0 // pred_fallthru
    _
  // Predicated region
  $region22: #{nb101_wrapper_forward.44} parent=0 // pred_check
    _
  $region23: #{nb101_wrapper_forward.44} parent=0 // pred_check_branch
    %259 = sbr.rel (0) target = $region25
  $region24: #{nb101_wrapper_forward.44} parent=0 // pred_region
    _
  $region25: #{nb101_wrapper_forward.44} parent=0 // pred_fallthru
    _

</llo_original>
